<compile_context>
chip_gen: v6e
topology: v6e:2x2x1
jax: 0.10.0
libtpu: 0.0.40
codegen_flags: <defaults>
</compile_context>

<pallas_src>
import functools

import jax
import jax.numpy as jnp
from jax.experimental import pallas as pl
from jax.experimental.pallas import tpu as pltpu


LANE = 128
SUBLANE = 8


def _round_up(x, m):
    return (x + m - 1) // m * m


def _pick_block(n, cap=32):
    """Largest divisor of n that is <= cap (time-block size)."""
    b = min(n, cap)
    while n % b:
        b -= 1
    return b


# ----------------------------------------------------------------------------
# Shared LSTM gate math (PyTorch gate order i, f, g, o).  sigmoid is expressed
# through tanh so each gate costs one EUP op instead of exp + reciprocal.
# ----------------------------------------------------------------------------
def _sigmoid(x):
    return 0.5 * (1.0 + jnp.tanh(0.5 * x))


def _lstm_gates(gates, c_prev):
    """gates (B, 4H), c_prev (B, H) -> (h_new, c_new); H lane-aligned."""
    H = c_prev.shape[-1]
    i = _sigmoid(gates[:, 0 * H:1 * H])
    f = _sigmoid(gates[:, 1 * H:2 * H])
    g = jnp.tanh(gates[:, 2 * H:3 * H])
    o = _sigmoid(gates[:, 3 * H:4 * H])
    c_new = f * c_prev + i * g
    h_new = o * jnp.tanh(c_new)
    return h_new, c_new


# ----------------------------------------------------------------------------
# Encoder: grid = (batch blocks [parallel], time blocks [arbitrary]).
# Per time block: one big MXU input-projection matmul per layer, then an
# unrolled recurrence that only does h @ W_hh.  h/c state lives in VMEM
# scratch across time blocks; weights are resident (constant index maps).
# ----------------------------------------------------------------------------
def _encoder_kernel(x_ref, w_ih0_ref, w_hh0_ref, b0_ref,
                    w_ih1_ref, w_hh1_ref, b1_ref,
                    enc_out_ref, h0_out_ref, h1_out_ref,
                    h0_sc, c0_sc, h1_sc, c1_sc, xp_sc, h0blk_sc):
    tb = pl.program_id(1)
    Tt, Bb, E = x_ref.shape
    H4 = w_hh0_ref.shape[1]

    @pl.when(tb == 0)
    def _init():
        h0_sc[...] = jnp.zeros_like(h0_sc)
        c0_sc[...] = jnp.zeros_like(c0_sc)
        h1_sc[...] = jnp.zeros_like(h1_sc)
        c1_sc[...] = jnp.zeros_like(c1_sc)

    w_hh0 = w_hh0_ref[...]                      # resident bf16 weights, hoisted
    w_hh1 = w_hh1_ref[...]

    # ---- layer 0: batched input projection for the whole time block --------
    x = x_ref[...].reshape(Tt * Bb, E)
    xp0 = jnp.dot(x.astype(jnp.bfloat16), w_ih0_ref[...],
                  preferred_element_type=jnp.float32)
    xp_sc[...] = xp0.reshape(Tt, Bb, H4) + b0_ref[...]

    def step0(t, carry):
        g = xp_sc[t] + jnp.dot(h0_sc[...].astype(jnp.bfloat16), w_hh0,
                               preferred_element_type=jnp.float32)
        h, c = _lstm_gates(g, c0_sc[...])
        h0_sc[...] = h
        c0_sc[...] = c
        h0blk_sc[t] = h
        return carry

    jax.lax.fori_loop(0, Tt, step0, 0, unroll=True)

    # ---- layer 1: batched input projection over the stashed layer-0 block --
    xp1 = jnp.dot(h0blk_sc[...].reshape(Tt * Bb, -1).astype(jnp.bfloat16),
                  w_ih1_ref[...], preferred_element_type=jnp.float32)
    xp_sc[...] = xp1.reshape(Tt, Bb, H4) + b1_ref[...]

    def step1(t, carry):
        g = xp_sc[t] + jnp.dot(h1_sc[...].astype(jnp.bfloat16), w_hh1,
                               preferred_element_type=jnp.float32)
        h, c = _lstm_gates(g, c1_sc[...])
        h1_sc[...] = h
        c1_sc[...] = c
        enc_out_ref[t] = h                       # lane-dense (Bb, H_pad) store
        return carry

    jax.lax.fori_loop(0, Tt, step1, 0, unroll=True)

    # Final hidden states written once, at the last time block only.
    @pl.when(tb == pl.num_programs(1) - 1)
    def _fin():
        h0_out_ref[...] = h0_sc[...]
        h1_out_ref[...] = h1_sc[...]


def encoder_forward(enc_seq, enc_params, *, t_block=None, b_block=None):
    """enc_seq (T, B_pad, E_pad) f32 -> enc_out (T,B_pad,H_pad), h0, h1."""
    T, B_pad, E_pad = enc_seq.shape
    l0, l1 = enc_params
    H_pad = l0['w_hh'].shape[0]
    H4 = 4 * H_pad
    if t_block is None:
        t_block = _pick_block(T, 32)
    if b_block is None:
        b_block = B_pad
    n_b, n_t = B_pad // b_block, T // t_block

    def const(shape):
        return pl.BlockSpec(shape, lambda bb, tb: (0,) * len(shape))

    grid_spec = pltpu.PrefetchScalarGridSpec(
        num_scalar_prefetch=0,
        grid=(n_b, n_t),
        in_specs=[
            pl.BlockSpec((t_block, b_block, E_pad), lambda bb, tb: (tb, bb, 0)),
            const((E_pad, H4)), const((H_pad, H4)), const((1, H4)),
            const((H_pad, H4)), const((H_pad, H4)), const((1, H4)),
        ],
        out_specs=(
            pl.BlockSpec((t_block, b_block, H_pad), lambda bb, tb: (tb, bb, 0)),
            pl.BlockSpec((b_block, H_pad), lambda bb, tb: (bb, 0)),
            pl.BlockSpec((b_block, H_pad), lambda bb, tb: (bb, 0)),
        ),
        scratch_shapes=[
            pltpu.VMEM((b_block, H_pad), jnp.float32),            # h0
            pltpu.VMEM((b_block, H_pad), jnp.float32),            # c0
            pltpu.VMEM((b_block, H_pad), jnp.float32),            # h1
            pltpu.VMEM((b_block, H_pad), jnp.float32),            # c1
            pltpu.VMEM((t_block, b_block, H4), jnp.float32),      # input projections
            pltpu.VMEM((t_block, b_block, H_pad), jnp.float32),   # layer-0 output stash
        ],
    )

    cost = pl.CostEstimate(
        flops=2 * T * B_pad * H4 * (E_pad + 3 * H_pad),
        transcendentals=10 * T * B_pad * H_pad,
        bytes_accessed=4 * (T * B_pad * (E_pad + H_pad) + 2 * B_pad * H_pad)
                       + 2 * H4 * (E_pad + 3 * H_pad),
    )

    return pl.pallas_call(
        _encoder_kernel,
        grid_spec=grid_spec,
        out_shape=(jax.ShapeDtypeStruct((T, B_pad, H_pad), jnp.float32),
                   jax.ShapeDtypeStruct((B_pad, H_pad), jnp.float32),
                   jax.ShapeDtypeStruct((B_pad, H_pad), jnp.float32)),
        compiler_params=pltpu.CompilerParams(
            dimension_semantics=("parallel", "arbitrary"),
            vmem_limit_bytes=32 * 1024 * 1024),
        cost_estimate=cost,
    )(enc_seq, l0['w_ih'], l0['w_hh'], l0['b'],
      l1['w_ih'], l1['w_hh'], l1['b'])


# ----------------------------------------------------------------------------
# Decoder: additive attention streamed over T blocks (online softmax, ctx/m/l
# in VMEM scratch), then the two fused LSTM cells at the final block.
# Consumes enc_output in its produced (T, B, H) layout (no wrapper transpose).
# ----------------------------------------------------------------------------
def _decoder_kernel(enc_ref, x_ref, s0_ref, s1_ref,
                    ws_ref, we_ref, va_ref,
                    wx_ref, wc_ref, whh0_ref, b0_ref,
                    wih1_ref, whh1_ref, b1_ref,
                    out_ref,
                    m_sc, l_sc, ctx_sc, sproj_sc):
    tb = pl.program_id(1)
    Tt, Bb, H = enc_ref.shape

    @pl.when(tb == 0)
    def _init():
        m_sc[...] = jnp.full_like(m_sc, -jnp.inf)
        l_sc[...] = jnp.zeros_like(l_sc)
        ctx_sc[...] = jnp.zeros_like(ctx_sc)
        # query projection s1 @ Ws computed once, kept resident
        sproj_sc[...] = jnp.dot(s1_ref[...].astype(jnp.bfloat16), ws_ref[...],
                                preferred_element_type=jnp.float32)

    enc = enc_ref[...]                                              # (Tt,Bb,H)
    e_proj = jnp.dot(enc.reshape(Tt * Bb, H).astype(jnp.bfloat16), we_ref[...],
                     preferred_element_type=jnp.float32).reshape(Tt, Bb, H)
    energy = jnp.tanh(e_proj + sproj_sc[...])                       # (Tt,Bb,H)
    # score via VPU mul + lane reduction (no N=1 MXU matmul)
    score = jnp.sum(energy * va_ref[...], axis=-1, keepdims=True)   # (Tt,Bb,1)

    # ---- online softmax accumulation over time blocks -----------------------
    blk_max = jnp.max(score, axis=0, keepdims=True)                 # (1,Bb,1)
    m_new = jnp.maximum(m_sc[...], blk_max)
    alpha = jnp.exp(m_sc[...] - m_new)                              # (1,Bb,1)
    p = jnp.exp(score - m_new)                                      # (Tt,Bb,1)
    l_sc[...] = alpha * l_sc[...] + jnp.sum(p, axis=0, keepdims=True)
    ctx_sc[...] = alpha[0] * ctx_sc[...] + jnp.sum(p * enc, axis=0)  # (Bb,H)
    m_sc[...] = m_new

    # ---- final block: normalize ctx, run both decoder LSTM cells ------------
    @pl.when(tb == pl.num_programs(1) - 1)
    def _fin():
        inv_l = pl.reciprocal(l_sc[...], approx=True)   # ~1e-3 rel err vs exact
        ctx = ctx_sc[...] * inv_l[0]                    # (Bb,H)
        zeros = jnp.zeros_like(ctx)                     # decoder initial cell state

        # layer 0: input = [dec_x ; ctx] as a split matmul, hidden init = s0
        g0 = (jnp.dot(x_ref[...].astype(jnp.bfloat16), wx_ref[...],
                      preferred_element_type=jnp.float32)
              + jnp.dot(ctx.astype(jnp.bfloat16), wc_ref[...],
                        preferred_element_type=jnp.float32)
              + jnp.dot(s0_ref[...].astype(jnp.bfloat16), whh0_ref[...],
                        preferred_element_type=jnp.float32)
              + b0_ref[...])
        h_d0, _ = _lstm_gates(g0, zeros)

        # layer 1: hidden init = s1
        g1 = (jnp.dot(h_d0.astype(jnp.bfloat16), wih1_ref[...],
                      preferred_element_type=jnp.float32)
              + jnp.dot(s1_ref[...].astype(jnp.bfloat16), whh1_ref[...],
                        preferred_element_type=jnp.float32)
              + b1_ref[...])
        h_d1, _ = _lstm_gates(g1, zeros)
        out_ref[...] = h_d1


def decoder_forward(enc_output, dec_x, s0, s1, attn_p, dec_p,
                    *, t_block=None, b_block=None):
    """enc_output (T,B_pad,H_pad), dec_x (B_pad,E_pad), s0/s1 (B_pad,H_pad)."""
    T, B_pad, H_pad = enc_output.shape
    E_pad = dec_x.shape[-1]
    H4 = 4 * H_pad
    d0, d1 = dec_p
    if t_block is None:
        t_block = _pick_block(T, 32)
    if b_block is None:
        b_block = B_pad
    n_b, n_t = B_pad // b_block, T // t_block

    def const(shape):
        return pl.BlockSpec(shape, lambda bb, tb: (0,) * len(shape))

    def per_b(shape):
        return pl.BlockSpec(shape, lambda bb, tb: (bb, 0))

    grid_spec = pltpu.PrefetchScalarGridSpec(
        num_scalar_prefetch=0,
        grid=(n_b, n_t),
        in_specs=[
            pl.BlockSpec((t_block, b_block, H_pad), lambda bb, tb: (tb, bb, 0)),
            per_b((b_block, E_pad)),
            per_b((b_block, H_pad)),
            per_b((b_block, H_pad)),
            const((H_pad, H_pad)), const((H_pad, H_pad)), const((1, H_pad)),
            const((E_pad, H4)), const((H_pad, H4)), const((H_pad, H4)), const((1, H4)),
            const((H_pad, H4)), const((H_pad, H4)), const((1, H4)),
        ],
        out_specs=per_b((b_block, H_pad)),
        scratch_shapes=[
            pltpu.VMEM((1, b_block, 1), jnp.float32),     # running max m
            pltpu.VMEM((1, b_block, 1), jnp.float32),     # running denom l
            pltpu.VMEM((b_block, H_pad), jnp.float32),    # running context
            pltpu.VMEM((b_block, H_pad), jnp.float32),    # s1 @ Ws
        ],
    )

    cost = pl.CostEstimate(
        flops=2 * T * B_pad * H_pad * (H_pad + 1)
              + 2 * B_pad * H4 * (E_pad + 4 * H_pad),
        transcendentals=T * B_pad * (H_pad + 2) + 10 * B_pad * H_pad,
        bytes_accessed=4 * (T * B_pad * H_pad + B_pad * (E_pad + 4 * H_pad))
                       + 2 * (2 * H_pad * H_pad + H4 * (E_pad + 4 * H_pad)),
    )

    return pl.pallas_call(
        _decoder_kernel,
        grid_spec=grid_spec,
        out_shape=jax.ShapeDtypeStruct((B_pad, H_pad), jnp.float32),
        compiler_params=pltpu.CompilerParams(
            dimension_semantics=("parallel", "arbitrary"),
            vmem_limit_bytes=32 * 1024 * 1024),
        cost_estimate=cost,
    )(enc_output, dec_x, s0, s1,
      attn_p['ws'], attn_p['we'], attn_p['va'],
      d0['w_x'], d0['w_c'], d0['w_hh'], d0['b'],
      d1['w_ih'], d1['w_hh'], d1['b'])


# ----------------------------------------------------------------------------
# Model glue: pad to (8,128)-aligned shapes, run the two fused kernels, slice.
# ----------------------------------------------------------------------------
def seq2seq_forward(padded_params, enc_input, dec_input, *, hidden):
    """enc_input (B, T, E), dec_input (B, E) -> dec_output (1, B, hidden)."""
    B, T, E = enc_input.shape
    e0 = padded_params['enc'][0]
    E_pad = e0['w_ih'].shape[0]
    H_pad = e0['w_hh'].shape[0]
    B_pad = _round_up(B, SUBLANE)

    # permute(1,0,2): batch-first -> seq-first (tiny input); pad B/E for layout.
    enc_seq = jnp.transpose(enc_input, (1, 0, 2)).astype(jnp.float32)
    enc_seq = jnp.pad(enc_seq, ((0, 0), (0, B_pad - B), (0, E_pad - E)))
    dec_x = jnp.pad(dec_input.astype(jnp.float32),
                    ((0, B_pad - B), (0, E_pad - E)))

    enc_output, h0, h1 = encoder_forward(enc_seq, padded_params['enc'])
    dec_h = decoder_forward(enc_output, dec_x, h0, h1,
                            padded_params['attn'], padded_params['dec'])
    # TODO(synk): self.fc / CrossEntropyLoss exist in __init__ but are unused in forward.
    return dec_h[None, :B, :hidden]


# ----------------------------------------------------------------------------
# Parameters: logical (unpadded, f32) init + padding / bf16 prep for the TPU
# kernels.  Weights are stored transposed vs PyTorch, b_ih/b_hh are folded
# into one bias per layer, decoder layer-0 input weight is pre-split w_x/w_c,
# and each of the 4 gate blocks is padded independently (lane alignment).
# ----------------------------------------------------------------------------
def init_params(key, in_features, hidden):
    ks = jax.random.split(key, 16)
    w = lambda k, shape: 0.1 * jax.random.normal(k, shape, jnp.float32)
    return {
        'enc': [
            dict(w_ih=w(ks[0], (in_features, 4 * hidden)),
                 w_hh=w(ks[1], (hidden, 4 * hidden)),
                 b=w(ks[2], (1, 4 * hidden))),
            dict(w_ih=w(ks[3], (hidden, 4 * hidden)),
                 w_hh=w(ks[4], (hidden, 4 * hidden)),
                 b=w(ks[5], (1, 4 * hidden))),
        ],
        'attn': dict(ws=w(ks[6], (hidden, hidden)),
                     we=w(ks[7], (hidden, hidden)),
                     va=w(ks[8], (1, hidden))),
        'dec': [
            dict(w_x=w(ks[9], (in_features, 4 * hidden)),
                 w_c=w(ks[10], (hidden, 4 * hidden)),
                 w_hh=w(ks[11], (hidden, 4 * hidden)),
                 b=w(ks[12], (1, 4 * hidden))),
            dict(w_ih=w(ks[13], (hidden, 4 * hidden)),
                 w_hh=w(ks[14], (hidden, 4 * hidden)),
                 b=w(ks[15], (1, 4 * hidden))),
        ],
    }


def prepare_params(params, in_features, hidden):
    E, H = in_features, hidden
    E_pad = _round_up(E, LANE)
    H_pad = _round_up(H, LANE)

    def gate_w(w_, in_dim, in_pad):
        w_ = w_.reshape(in_dim, 4, H)
        w_ = jnp.pad(w_, ((0, in_pad - in_dim), (0, 0), (0, H_pad - H)))
        return w_.reshape(in_pad, 4 * H_pad).astype(jnp.bfloat16)

    def gate_b(b_):
        b_ = b_.reshape(1, 4, H)
        b_ = jnp.pad(b_, ((0, 0), (0, 0), (0, H_pad - H)))
        return b_.reshape(1, 4 * H_pad)                         # keep f32

    def mat(w_, shape):
        pads = [(0, s - d) for d, s in zip(w_.shape, shape)]
        return jnp.pad(w_, pads).astype(jnp.bfloat16)

    e0, e1 = params['enc']
    a = params['attn']
    d0, d1 = params['dec']
    return {
        'enc': [
            dict(w_ih=gate_w(e0['w_ih'], E, E_pad), w_hh=gate_w(e0['w_hh'], H, H_pad),
                 b=gate_b(e0['b'])),
            dict(w_ih=gate_w(e1['w_ih'], H, H_pad), w_hh=gate_w(e1['w_hh'], H, H_pad),
                 b=gate_b(e1['b'])),
        ],
        'attn': dict(ws=mat(a['ws'], (H_pad, H_pad)),
                     we=mat(a['we'], (H_pad, H_pad)),
                     va=jnp.pad(a['va'], ((0, 0), (0, H_pad - H)))),   # f32 (VPU path)
        'dec': [
            dict(w_x=gate_w(d0['w_x'], E, E_pad), w_c=gate_w(d0['w_c'], H, H_pad),
                 w_hh=gate_w(d0['w_hh'], H, H_pad), b=gate_b(d0['b'])),
            dict(w_ih=gate_w(d1['w_ih'], H, H_pad), w_hh=gate_w(d1['w_hh'], H, H_pad),
                 b=gate_b(d1['b'])),
        ],
    }


# ----------------------------------------------------------------------------
# Pure-JAX f32 reference (unpadded) for a loose numerical sanity check.
# ----------------------------------------------------------------------------
def reference_forward(params, enc_input, dec_input):
    enc_seq = jnp.transpose(enc_input, (1, 0, 2)).astype(jnp.float32)
    l0, l1 = params['enc']
    T, B, _ = enc_seq.shape
    H = l0['w_hh'].shape[0]

    def cell(x, h, c, w_ih, w_hh, b):
        g = x @ w_ih + h @ w_hh + b
        i = jax.nn.sigmoid(g[:, :H])
        f = jax.nn.sigmoid(g[:, H:2 * H])
        gg = jnp.tanh(g[:, 2 * H:3 * H])
        o = jax.nn.sigmoid(g[:, 3 * H:])
        c = f * c + i * gg
        return o * jnp.tanh(c), c

    h0 = c0 = h1 = c1 = jnp.zeros((B, H), jnp.float32)
    outs = []
    for t in range(T):
        h0, c0 = cell(enc_seq[t], h0, c0, l0['w_ih'], l0['w_hh'], l0['b'])
        h1, c1 = cell(h0, h1, c1, l1['w_ih'], l1['w_hh'], l1['b'])
        outs.append(h1)
    enc_out = jnp.stack(outs)                                        # (T,B,H)

    a = params['attn']
    energy = jnp.tanh(enc_out @ a['we'] + (h1 @ a['ws'])[None])
    score = jnp.sum(energy * a['va'], axis=-1)                       # (T,B)
    attn = jax.nn.softmax(score, axis=0)
    ctx = jnp.sum(attn[:, :, None] * enc_out, axis=0)                # (B,H)

    d0, d1 = params['dec']
    zeros = jnp.zeros((B, H), jnp.float32)
    g0 = dec_input @ d0['w_x'] + ctx @ d0['w_c'] + h0 @ d0['w_hh'] + d0['b']
    i = jax.nn.sigmoid(g0[:, :H]); f = jax.nn.sigmoid(g0[:, H:2 * H])
    gg = jnp.tanh(g0[:, 2 * H:3 * H]); o = jax.nn.sigmoid(g0[:, 3 * H:])
    c = f * zeros + i * gg
    hd0 = o * jnp.tanh(c)

    g1 = hd0 @ d1['w_ih'] + h1 @ d1['w_hh'] + d1['b']
    i = jax.nn.sigmoid(g1[:, :H]); f = jax.nn.sigmoid(g1[:, H:2 * H])
    gg = jnp.tanh(g1[:, 2 * H:3 * H]); o = jax.nn.sigmoid(g1[:, 3 * H:])
    c = f * zeros + i * gg
    hd1 = o * jnp.tanh(c)
    return hd1[None]


if __name__ == "__main__":
    B, T, E, H = 2, 8, 16, 32

    key = jax.random.PRNGKey(0)
    k_enc, k_dec = jax.random.split(key)
    enc_input = jax.random.normal(k_enc, (B, T, E), jnp.float32)   # (batch, seq, embed)
    dec_input = jax.random.normal(k_dec, (B, E), jnp.float32)      # (batch, embed)

    params = init_params(jax.random.PRNGKey(42), E, H)
    padded_params = prepare_params(params, E, H)

    fwd = jax.jit(functools.partial(seq2seq_forward, hidden=H))
    out = fwd(padded_params, enc_input, dec_input)
    jax.block_until_ready(out)

    assert out.shape == (1, B, H), out.shape
    assert out.dtype == jnp.float32

    ref = reference_forward(params, enc_input, dec_input)
    err = float(jnp.max(jnp.abs(out - ref)))
    assert err < 1e-1, f"max abs error vs f32 reference: {err}"

    print("KERNEL_OK")
</pallas_src>

<mosaic_0001>
module attributes {stable_mosaic.version = 11 : i64} {
  func.func @_encoder_kernel(%arg0: i32, %arg1: i32, %arg2: memref<8x8x128xf32, #tpu.memory_space<vmem>>, %arg3: memref<128x512xbf16, #tpu.memory_space<vmem>>, %arg4: memref<128x512xbf16, #tpu.memory_space<vmem>>, %arg5: memref<1x512xf32, #tpu.memory_space<vmem>>, %arg6: memref<128x512xbf16, #tpu.memory_space<vmem>>, %arg7: memref<128x512xbf16, #tpu.memory_space<vmem>>, %arg8: memref<1x512xf32, #tpu.memory_space<vmem>>, %arg9: memref<8x8x128xf32, #tpu.memory_space<vmem>>, %arg10: memref<8x128xf32, #tpu.memory_space<vmem>>, %arg11: memref<8x128xf32, #tpu.memory_space<vmem>>, %arg12: memref<8x128xf32, #tpu.memory_space<vmem>>, %arg13: memref<8x128xf32, #tpu.memory_space<vmem>>, %arg14: memref<8x128xf32, #tpu.memory_space<vmem>>, %arg15: memref<8x128xf32, #tpu.memory_space<vmem>>, %arg16: memref<8x8x512xf32, #tpu.memory_space<vmem>>, %arg17: memref<8x8x128xf32, #tpu.memory_space<vmem>>) attributes {dimension_semantics = [#tpu.dimension_semantics<parallel>, #tpu.dimension_semantics<arbitrary>], iteration_bounds = array<i64: 1, 1>, scalar_prefetch = 0 : i64, scratch_operands = 6 : i64, tpu.core_type = #tpu.core_type<tc>, window_params = [{transform_indices = @transform_0, window_bounds = array<i64: 8, 8, 128>}, {pipeline_mode = #tpu.pipeline_mode<synchronous>, transform_indices = @transform_1, window_bounds = array<i64: 128, 512>}, {pipeline_mode = #tpu.pipeline_mode<synchronous>, transform_indices = @transform_2, window_bounds = array<i64: 128, 512>}, {pipeline_mode = #tpu.pipeline_mode<synchronous>, transform_indices = @transform_3, window_bounds = array<i64: 1, 512>}, {pipeline_mode = #tpu.pipeline_mode<synchronous>, transform_indices = @transform_4, window_bounds = array<i64: 128, 512>}, {pipeline_mode = #tpu.pipeline_mode<synchronous>, transform_indices = @transform_5, window_bounds = array<i64: 128, 512>}, {pipeline_mode = #tpu.pipeline_mode<synchronous>, transform_indices = @transform_6, window_bounds = array<i64: 1, 512>}, {transform_indices = @transform_7, window_bounds = array<i64: 8, 8, 128>}, {transform_indices = @transform_8, window_bounds = array<i64: 8, 128>}, {transform_indices = @transform_9, window_bounds = array<i64: 8, 128>}]} {
    %c0_i32 = arith.constant 0 : i32
    %0 = arith.cmpi eq, %arg1, %c0_i32 : i32
    %1 = arith.extui %0 : i1 to i32
    %c0_i32_0 = arith.constant 0 : i32
    %2 = arith.cmpi ne, %1, %c0_i32_0 : i32
    scf.if %2 {
      %cst_389 = arith.constant 0.000000e+00 : f32
      %750 = vector.broadcast %cst_389 : f32 to vector<8x128xf32>
      %c0_390 = arith.constant 0 : index
      %c0_391 = arith.constant 0 : index
      %751 = vector.load %arg12[%c0_390, %c0_391] : memref<8x128xf32, #tpu.memory_space<vmem>>, vector<8x128xf32>
      tpu.vector_store %arg12[%c0_390, %c0_391], %750 {strides = array<i32>} : memref<8x128xf32, #tpu.memory_space<vmem>>, vector<8x128xf32>,
      %cst_392 = arith.constant 0.000000e+00 : f32
      %752 = vector.broadcast %cst_392 : f32 to vector<8x128xf32>
      %c0_393 = arith.constant 0 : index
      %c0_394 = arith.constant 0 : index
      %753 = vector.load %arg13[%c0_393, %c0_394] : memref<8x128xf32, #tpu.memory_space<vmem>>, vector<8x128xf32>
      tpu.vector_store %arg13[%c0_393, %c0_394], %752 {strides = array<i32>} : memref<8x128xf32, #tpu.memory_space<vmem>>, vector<8x128xf32>,
      %cst_395 = arith.constant 0.000000e+00 : f32
      %754 = vector.broadcast %cst_395 : f32 to vector<8x128xf32>
      %c0_396 = arith.constant 0 : index
      %c0_397 = arith.constant 0 : index
      %755 = vector.load %arg14[%c0_396, %c0_397] : memref<8x128xf32, #tpu.memory_space<vmem>>, vector<8x128xf32>
      tpu.vector_store %arg14[%c0_396, %c0_397], %754 {strides = array<i32>} : memref<8x128xf32, #tpu.memory_space<vmem>>, vector<8x128xf32>,
      %cst_398 = arith.constant 0.000000e+00 : f32
      %756 = vector.broadcast %cst_398 : f32 to vector<8x128xf32>
      %c0_399 = arith.constant 0 : index
      %c0_400 = arith.constant 0 : index
      %757 = vector.load %arg15[%c0_399, %c0_400] : memref<8x128xf32, #tpu.memory_space<vmem>>, vector<8x128xf32>
      tpu.vector_store %arg15[%c0_399, %c0_400], %756 {strides = array<i32>} : memref<8x128xf32, #tpu.memory_space<vmem>>, vector<8x128xf32>,
    } else {
    }
    %c0 = arith.constant 0 : index
    %c0_1 = arith.constant 0 : index
    %3 = vector.load %arg4[%c0, %c0_1] : memref<128x512xbf16, #tpu.memory_space<vmem>>, vector<128x512xbf16>
    %c0_2 = arith.constant 0 : index
    %c0_3 = arith.constant 0 : index
    %4 = vector.load %arg7[%c0_2, %c0_3] : memref<128x512xbf16, #tpu.memory_space<vmem>>, vector<128x512xbf16>
    %c0_4 = arith.constant 0 : index
    %c0_5 = arith.constant 0 : index
    %c0_6 = arith.constant 0 : index
    %5 = vector.load %arg2[%c0_4, %c0_5, %c0_6] : memref<8x8x128xf32, #tpu.memory_space<vmem>>, vector<8x8x128xf32>
    %6 = vector.shape_cast %5 : vector<8x8x128xf32> to vector<64x128xf32>
    %7 = arith.truncf %6 : vector<64x128xf32> to vector<64x128xbf16>
    %c0_7 = arith.constant 0 : index
    %c0_8 = arith.constant 0 : index
    %8 = vector.load %arg3[%c0_7, %c0_8] : memref<128x512xbf16, #tpu.memory_space<vmem>>, vector<128x512xbf16>
    %cst = arith.constant dense<0.000000e+00> : vector<64x512xf32>
    %9 = tpu.matmul %7, %8, %cst {dimension_numbers = #tpu.dot_dimension_numbers<[1], [0], [0], [1], [0, 0, 1, 1], [], []>} : vector<64x128xbf16>, vector<128x512xbf16>, vector<64x512xf32> -> vector<64x512xf32>
    %10 = vector.shape_cast %9 : vector<64x512xf32> to vector<8x8x512xf32>
    %c0_9 = arith.constant 0 : index
    %c0_10 = arith.constant 0 : index
    %11 = vector.load %arg5[%c0_9, %c0_10] : memref<1x512xf32, #tpu.memory_space<vmem>>, vector<1x512xf32>
    %12 = vector.shape_cast %11 : vector<1x512xf32> to vector<1x1x512xf32>
    %13 = vector.broadcast %12 : vector<1x1x512xf32> to vector<8x8x512xf32>
    %14 = arith.addf %10, %13 : vector<8x8x512xf32>
    %c0_11 = arith.constant 0 : index
    %c0_12 = arith.constant 0 : index
    %c0_13 = arith.constant 0 : index
    %15 = vector.load %arg16[%c0_11, %c0_12, %c0_13] : memref<8x8x512xf32, #tpu.memory_space<vmem>>, vector<8x8x512xf32>
    tpu.vector_store %arg16[%c0_11, %c0_12, %c0_13], %14 {strides = array<i32>} : memref<8x8x512xf32, #tpu.memory_space<vmem>>, vector<8x8x512xf32>,
    %c0_i32_14 = arith.constant 0 : i32
    %16 = arith.index_cast %c0_i32_14 : i32 to index
    %c0_15 = arith.constant 0 : index
    %c0_16 = arith.constant 0 : index
    %17 = vector.load %arg16[%16, %c0_15, %c0_16] : memref<8x8x512xf32, #tpu.memory_space<vmem>>, vector<1x8x512xf32>
    %18 = vector.shape_cast %17 : vector<1x8x512xf32> to vector<8x512xf32>
    %c0_17 = arith.constant 0 : index
    %c0_18 = arith.constant 0 : index
    %19 = vector.load %arg12[%c0_17, %c0_18] : memref<8x128xf32, #tpu.memory_space<vmem>>, vector<8x128xf32>
    %20 = arith.truncf %19 : vector<8x128xf32> to vector<8x128xbf16>
    %cst_19 = arith.constant dense<0.000000e+00> : vector<8x512xf32>
    %21 = tpu.matmul %20, %3, %cst_19 {dimension_numbers = #tpu.dot_dimension_numbers<[1], [0], [0], [1], [0, 0, 1, 1], [], []>} : vector<8x128xbf16>, vector<128x512xbf16>, vector<8x512xf32> -> vector<8x512xf32>
    %22 = arith.addf %18, %21 : vector<8x512xf32>
    %c0_20 = arith.constant 0 : index
    %c0_21 = arith.constant 0 : index
    %23 = vector.load %arg13[%c0_20, %c0_21] : memref<8x128xf32, #tpu.memory_space<vmem>>, vector<8x128xf32>
    %24 = vector.extract_strided_slice %22 {offsets = [0, 0], sizes = [8, 128], strides = [1, 1]} : vector<8x512xf32> to vector<8x128xf32>
    %cst_22 = arith.constant 5.000000e-01 : f32
    %25 = vector.broadcast %cst_22 : f32 to vector<8x128xf32>
    %26 = arith.mulf %25, %24 : vector<8x128xf32>
    %27 = math.tanh %26 : vector<8x128xf32>
    %cst_23 = arith.constant 1.000000e+00 : f32
    %28 = vector.broadcast %cst_23 : f32 to vector<8x128xf32>
    %29 = arith.addf %28, %27 : vector<8x128xf32>
    %cst_24 = arith.constant 5.000000e-01 : f32
    %30 = vector.broadcast %cst_24 : f32 to vector<8x128xf32>
    %31 = arith.mulf %30, %29 : vector<8x128xf32>
    %32 = vector.extract_strided_slice %22 {offsets = [0, 128], sizes = [8, 128], strides = [1, 1]} : vector<8x512xf32> to vector<8x128xf32>
    %cst_25 = arith.constant 5.000000e-01 : f32
    %33 = vector.broadcast %cst_25 : f32 to vector<8x128xf32>
    %34 = arith.mulf %33, %32 : vector<8x128xf32>
    %35 = math.tanh %34 : vector<8x128xf32>
    %cst_26 = arith.constant 1.000000e+00 : f32
    %36 = vector.broadcast %cst_26 : f32 to vector<8x128xf32>
    %37 = arith.addf %36, %35 : vector<8x128xf32>
    %cst_27 = arith.constant 5.000000e-01 : f32
    %38 = vector.broadcast %cst_27 : f32 to vector<8x128xf32>
    %39 = arith.mulf %38, %37 : vector<8x128xf32>
    %40 = vector.extract_strided_slice %22 {offsets = [0, 256], sizes = [8, 128], strides = [1, 1]} : vector<8x512xf32> to vector<8x128xf32>
    %41 = math.tanh %40 : vector<8x128xf32>
    %42 = vector.extract_strided_slice %22 {offsets = [0, 384], sizes = [8, 128], strides = [1, 1]} : vector<8x512xf32> to vector<8x128xf32>
    %cst_28 = arith.constant 5.000000e-01 : f32
    %43 = vector.broadcast %cst_28 : f32 to vector<8x128xf32>
    %44 = arith.mulf %43, %42 : vector<8x128xf32>
    %45 = math.tanh %44 : vector<8x128xf32>
    %cst_29 = arith.constant 1.000000e+00 : f32
    %46 = vector.broadcast %cst_29 : f32 to vector<8x128xf32>
    %47 = arith.addf %46, %45 : vector<8x128xf32>
    %cst_30 = arith.constant 5.000000e-01 : f32
    %48 = vector.broadcast %cst_30 : f32 to vector<8x128xf32>
    %49 = arith.mulf %48, %47 : vector<8x128xf32>
    %50 = arith.mulf %39, %23 : vector<8x128xf32>
    %51 = arith.mulf %31, %41 : vector<8x128xf32>
    %52 = arith.addf %50, %51 : vector<8x128xf32>
    %53 = math.tanh %52 : vector<8x128xf32>
    %54 = arith.mulf %49, %53 : vector<8x128xf32>
    %c0_31 = arith.constant 0 : index
    %c0_32 = arith.constant 0 : index
    %55 = vector.load %arg12[%c0_31, %c0_32] : memref<8x128xf32, #tpu.memory_space<vmem>>, vector<8x128xf32>
    tpu.vector_store %arg12[%c0_31, %c0_32], %54 {strides = array<i32>} : memref<8x128xf32, #tpu.memory_space<vmem>>, vector<8x128xf32>,
    %c0_33 = arith.constant 0 : index
    %c0_34 = arith.constant 0 : index
    %56 = vector.load %arg13[%c0_33, %c0_34] : memref<8x128xf32, #tpu.memory_space<vmem>>, vector<8x128xf32>
    tpu.vector_store %arg13[%c0_33, %c0_34], %52 {strides = array<i32>} : memref<8x128xf32, #tpu.memory_space<vmem>>, vector<8x128xf32>,
    %57 = arith.index_cast %c0_i32_14 : i32 to index
    %c0_35 = arith.constant 0 : index
    %c0_36 = arith.constant 0 : index
    %58 = vector.load %arg17[%57, %c0_35, %c0_36] : memref<8x8x128xf32, #tpu.memory_space<vmem>>, vector<1x8x128xf32>
    %59 = vector.shape_cast %58 : vector<1x8x128xf32> to vector<8x128xf32>
    %60 = vector.shape_cast %54 : vector<8x128xf32> to vector<1x8x128xf32>
    tpu.vector_store %arg17[%57, %c0_35, %c0_36], %60 {strides = array<i32>} : memref<8x8x128xf32, #tpu.memory_space<vmem>>, vector<1x8x128xf32>,
    %c1_i32 = arith.constant 1 : i32
    %61 = arith.index_cast %c1_i32 : i32 to index
    %c0_37 = arith.constant 0 : index
    %c0_38 = arith.constant 0 : index
    %62 = vector.load %arg16[%61, %c0_37, %c0_38] : memref<8x8x512xf32, #tpu.memory_space<vmem>>, vector<1x8x512xf32>
    %63 = vector.shape_cast %62 : vector<1x8x512xf32> to vector<8x512xf32>
    %c0_39 = arith.constant 0 : index
    %c0_40 = arith.constant 0 : index
    %64 = vector.load %arg12[%c0_39, %c0_40] : memref<8x128xf32, #tpu.memory_space<vmem>>, vector<8x128xf32>
    %65 = arith.truncf %64 : vector<8x128xf32> to vector<8x128xbf16>
    %cst_41 = arith.constant dense<0.000000e+00> : vector<8x512xf32>
    %66 = tpu.matmul %65, %3, %cst_41 {dimension_numbers = #tpu.dot_dimension_numbers<[1], [0], [0], [1], [0, 0, 1, 1], [], []>} : vector<8x128xbf16>, vector<128x512xbf16>, vector<8x512xf32> -> vector<8x512xf32>
    %67 = arith.addf %63, %66 : vector<8x512xf32>
    %c0_42 = arith.constant 0 : index
    %c0_43 = arith.constant 0 : index
    %68 = vector.load %arg13[%c0_42, %c0_43] : memref<8x128xf32, #tpu.memory_space<vmem>>, vector<8x128xf32>
    %69 = vector.extract_strided_slice %67 {offsets = [0, 0], sizes = [8, 128], strides = [1, 1]} : vector<8x512xf32> to vector<8x128xf32>
    %cst_44 = arith.constant 5.000000e-01 : f32
    %70 = vector.broadcast %cst_44 : f32 to vector<8x128xf32>
    %71 = arith.mulf %70, %69 : vector<8x128xf32>
    %72 = math.tanh %71 : vector<8x128xf32>
    %cst_45 = arith.constant 1.000000e+00 : f32
    %73 = vector.broadcast %cst_45 : f32 to vector<8x128xf32>
    %74 = arith.addf %73, %72 : vector<8x128xf32>
    %cst_46 = arith.constant 5.000000e-01 : f32
    %75 = vector.broadcast %cst_46 : f32 to vector<8x128xf32>
    %76 = arith.mulf %75, %74 : vector<8x128xf32>
    %77 = vector.extract_strided_slice %67 {offsets = [0, 128], sizes = [8, 128], strides = [1, 1]} : vector<8x512xf32> to vector<8x128xf32>
    %cst_47 = arith.constant 5.000000e-01 : f32
    %78 = vector.broadcast %cst_47 : f32 to vector<8x128xf32>
    %79 = arith.mulf %78, %77 : vector<8x128xf32>
    %80 = math.tanh %79 : vector<8x128xf32>
    %cst_48 = arith.constant 1.000000e+00 : f32
    %81 = vector.broadcast %cst_48 : f32 to vector<8x128xf32>
    %82 = arith.addf %81, %80 : vector<8x128xf32>
    %cst_49 = arith.constant 5.000000e-01 : f32
    %83 = vector.broadcast %cst_49 : f32 to vector<8x128xf32>
    %84 = arith.mulf %83, %82 : vector<8x128xf32>
    %85 = vector.extract_strided_slice %67 {offsets = [0, 256], sizes = [8, 128], strides = [1, 1]} : vector<8x512xf32> to vector<8x128xf32>
    %86 = math.tanh %85 : vector<8x128xf32>
    %87 = vector.extract_strided_slice %67 {offsets = [0, 384], sizes = [8, 128], strides = [1, 1]} : vector<8x512xf32> to vector<8x128xf32>
    %cst_50 = arith.constant 5.000000e-01 : f32
    %88 = vector.broadcast %cst_50 : f32 to vector<8x128xf32>
    %89 = arith.mulf %88, %87 : vector<8x128xf32>
    %90 = math.tanh %89 : vector<8x128xf32>
    %cst_51 = arith.constant 1.000000e+00 : f32
    %91 = vector.broadcast %cst_51 : f32 to vector<8x128xf32>
    %92 = arith.addf %91, %90 : vector<8x128xf32>
    %cst_52 = arith.constant 5.000000e-01 : f32
    %93 = vector.broadcast %cst_52 : f32 to vector<8x128xf32>
    %94 = arith.mulf %93, %92 : vector<8x128xf32>
    %95 = arith.mulf %84, %68 : vector<8x128xf32>
    %96 = arith.mulf %76, %86 : vector<8x128xf32>
    %97 = arith.addf %95, %96 : vector<8x128xf32>
    %98 = math.tanh %97 : vector<8x128xf32>
    %99 = arith.mulf %94, %98 : vector<8x128xf32>
    %c0_53 = arith.constant 0 : index
    %c0_54 = arith.constant 0 : index
    %100 = vector.load %arg12[%c0_53, %c0_54] : memref<8x128xf32, #tpu.memory_space<vmem>>, vector<8x128xf32>
    tpu.vector_store %arg12[%c0_53, %c0_54], %99 {strides = array<i32>} : memref<8x128xf32, #tpu.memory_space<vmem>>, vector<8x128xf32>,
    %c0_55 = arith.constant 0 : index
    %c0_56 = arith.constant 0 : index
    %101 = vector.load %arg13[%c0_55, %c0_56] : memref<8x128xf32, #tpu.memory_space<vmem>>, vector<8x128xf32>
    tpu.vector_store %arg13[%c0_55, %c0_56], %97 {strides = array<i32>} : memref<8x128xf32, #tpu.memory_space<vmem>>, vector<8x128xf32>,
    %102 = arith.index_cast %c1_i32 : i32 to index
    %c0_57 = arith.constant 0 : index
    %c0_58 = arith.constant 0 : index
    %103 = vector.load %arg17[%102, %c0_57, %c0_58] : memref<8x8x128xf32, #tpu.memory_space<vmem>>, vector<1x8x128xf32>
    %104 = vector.shape_cast %103 : vector<1x8x128xf32> to vector<8x128xf32>
    %105 = vector.shape_cast %99 : vector<8x128xf32> to vector<1x8x128xf32>
    tpu.vector_store %arg17[%102, %c0_57, %c0_58], %105 {strides = array<i32>} : memref<8x8x128xf32, #tpu.memory_space<vmem>>, vector<1x8x128xf32>,
    %c2_i32 = arith.constant 2 : i32
    %106 = arith.index_cast %c2_i32 : i32 to index
    %c0_59 = arith.constant 0 : index
    %c0_60 = arith.constant 0 : index
    %107 = vector.load %arg16[%106, %c0_59, %c0_60] : memref<8x8x512xf32, #tpu.memory_space<vmem>>, vector<1x8x512xf32>
    %108 = vector.shape_cast %107 : vector<1x8x512xf32> to vector<8x512xf32>
    %c0_61 = arith.constant 0 : index
    %c0_62 = arith.constant 0 : index
    %109 = vector.load %arg12[%c0_61, %c0_62] : memref<8x128xf32, #tpu.memory_space<vmem>>, vector<8x128xf32>
    %110 = arith.truncf %109 : vector<8x128xf32> to vector<8x128xbf16>
    %cst_63 = arith.constant dense<0.000000e+00> : vector<8x512xf32>
    %111 = tpu.matmul %110, %3, %cst_63 {dimension_numbers = #tpu.dot_dimension_numbers<[1], [0], [0], [1], [0, 0, 1, 1], [], []>} : vector<8x128xbf16>, vector<128x512xbf16>, vector<8x512xf32> -> vector<8x512xf32>
    %112 = arith.addf %108, %111 : vector<8x512xf32>
    %c0_64 = arith.constant 0 : index
    %c0_65 = arith.constant 0 : index
    %113 = vector.load %arg13[%c0_64, %c0_65] : memref<8x128xf32, #tpu.memory_space<vmem>>, vector<8x128xf32>
    %114 = vector.extract_strided_slice %112 {offsets = [0, 0], sizes = [8, 128], strides = [1, 1]} : vector<8x512xf32> to vector<8x128xf32>
    %cst_66 = arith.constant 5.000000e-01 : f32
    %115 = vector.broadcast %cst_66 : f32 to vector<8x128xf32>
    %116 = arith.mulf %115, %114 : vector<8x128xf32>
    %117 = math.tanh %116 : vector<8x128xf32>
    %cst_67 = arith.constant 1.000000e+00 : f32
    %118 = vector.broadcast %cst_67 : f32 to vector<8x128xf32>
    %119 = arith.addf %118, %117 : vector<8x128xf32>
    %cst_68 = arith.constant 5.000000e-01 : f32
    %120 = vector.broadcast %cst_68 : f32 to vector<8x128xf32>
    %121 = arith.mulf %120, %119 : vector<8x128xf32>
    %122 = vector.extract_strided_slice %112 {offsets = [0, 128], sizes = [8, 128], strides = [1, 1]} : vector<8x512xf32> to vector<8x128xf32>
    %cst_69 = arith.constant 5.000000e-01 : f32
    %123 = vector.broadcast %cst_69 : f32 to vector<8x128xf32>
    %124 = arith.mulf %123, %122 : vector<8x128xf32>
    %125 = math.tanh %124 : vector<8x128xf32>
    %cst_70 = arith.constant 1.000000e+00 : f32
    %126 = vector.broadcast %cst_70 : f32 to vector<8x128xf32>
    %127 = arith.addf %126, %125 : vector<8x128xf32>
    %cst_71 = arith.constant 5.000000e-01 : f32
    %128 = vector.broadcast %cst_71 : f32 to vector<8x128xf32>
    %129 = arith.mulf %128, %127 : vector<8x128xf32>
    %130 = vector.extract_strided_slice %112 {offsets = [0, 256], sizes = [8, 128], strides = [1, 1]} : vector<8x512xf32> to vector<8x128xf32>
    %131 = math.tanh %130 : vector<8x128xf32>
    %132 = vector.extract_strided_slice %112 {offsets = [0, 384], sizes = [8, 128], strides = [1, 1]} : vector<8x512xf32> to vector<8x128xf32>
    %cst_72 = arith.constant 5.000000e-01 : f32
    %133 = vector.broadcast %cst_72 : f32 to vector<8x128xf32>
    %134 = arith.mulf %133, %132 : vector<8x128xf32>
    %135 = math.tanh %134 : vector<8x128xf32>
    %cst_73 = arith.constant 1.000000e+00 : f32
    %136 = vector.broadcast %cst_73 : f32 to vector<8x128xf32>
    %137 = arith.addf %136, %135 : vector<8x128xf32>
    %cst_74 = arith.constant 5.000000e-01 : f32
    %138 = vector.broadcast %cst_74 : f32 to vector<8x128xf32>
    %139 = arith.mulf %138, %137 : vector<8x128xf32>
    %140 = arith.mulf %129, %113 : vector<8x128xf32>
    %141 = arith.mulf %121, %131 : vector<8x128xf32>
    %142 = arith.addf %140, %141 : vector<8x128xf32>
    %143 = math.tanh %142 : vector<8x128xf32>
    %144 = arith.mulf %139, %143 : vector<8x128xf32>
    %c0_75 = arith.constant 0 : index
    %c0_76 = arith.constant 0 : index
    %145 = vector.load %arg12[%c0_75, %c0_76] : memref<8x128xf32, #tpu.memory_space<vmem>>, vector<8x128xf32>
    tpu.vector_store %arg12[%c0_75, %c0_76], %144 {strides = array<i32>} : memref<8x128xf32, #tpu.memory_space<vmem>>, vector<8x128xf32>,
    %c0_77 = arith.constant 0 : index
    %c0_78 = arith.constant 0 : index
    %146 = vector.load %arg13[%c0_77, %c0_78] : memref<8x128xf32, #tpu.memory_space<vmem>>, vector<8x128xf32>
    tpu.vector_store %arg13[%c0_77, %c0_78], %142 {strides = array<i32>} : memref<8x128xf32, #tpu.memory_space<vmem>>, vector<8x128xf32>,
    %147 = arith.index_cast %c2_i32 : i32 to index
    %c0_79 = arith.constant 0 : index
    %c0_80 = arith.constant 0 : index
    %148 = vector.load %arg17[%147, %c0_79, %c0_80] : memref<8x8x128xf32, #tpu.memory_space<vmem>>, vector<1x8x128xf32>
    %149 = vector.shape_cast %148 : vector<1x8x128xf32> to vector<8x128xf32>
    %150 = vector.shape_cast %144 : vector<8x128xf32> to vector<1x8x128xf32>
    tpu.vector_store %arg17[%147, %c0_79, %c0_80], %150 {strides = array<i32>} : memref<8x8x128xf32, #tpu.memory_space<vmem>>, vector<1x8x128xf32>,
    %c3_i32 = arith.constant 3 : i32
    %151 = arith.index_cast %c3_i32 : i32 to index
    %c0_81 = arith.constant 0 : index
    %c0_82 = arith.constant 0 : index
    %152 = vector.load %arg16[%151, %c0_81, %c0_82] : memref<8x8x512xf32, #tpu.memory_space<vmem>>, vector<1x8x512xf32>
    %153 = vector.shape_cast %152 : vector<1x8x512xf32> to vector<8x512xf32>
    %c0_83 = arith.constant 0 : index
    %c0_84 = arith.constant 0 : index
    %154 = vector.load %arg12[%c0_83, %c0_84] : memref<8x128xf32, #tpu.memory_space<vmem>>, vector<8x128xf32>
    %155 = arith.truncf %154 : vector<8x128xf32> to vector<8x128xbf16>
    %cst_85 = arith.constant dense<0.000000e+00> : vector<8x512xf32>
    %156 = tpu.matmul %155, %3, %cst_85 {dimension_numbers = #tpu.dot_dimension_numbers<[1], [0], [0], [1], [0, 0, 1, 1], [], []>} : vector<8x128xbf16>, vector<128x512xbf16>, vector<8x512xf32> -> vector<8x512xf32>
    %157 = arith.addf %153, %156 : vector<8x512xf32>
    %c0_86 = arith.constant 0 : index
    %c0_87 = arith.constant 0 : index
    %158 = vector.load %arg13[%c0_86, %c0_87] : memref<8x128xf32, #tpu.memory_space<vmem>>, vector<8x128xf32>
    %159 = vector.extract_strided_slice %157 {offsets = [0, 0], sizes = [8, 128], strides = [1, 1]} : vector<8x512xf32> to vector<8x128xf32>
    %cst_88 = arith.constant 5.000000e-01 : f32
    %160 = vector.broadcast %cst_88 : f32 to vector<8x128xf32>
    %161 = arith.mulf %160, %159 : vector<8x128xf32>
    %162 = math.tanh %161 : vector<8x128xf32>
    %cst_89 = arith.constant 1.000000e+00 : f32
    %163 = vector.broadcast %cst_89 : f32 to vector<8x128xf32>
    %164 = arith.addf %163, %162 : vector<8x128xf32>
    %cst_90 = arith.constant 5.000000e-01 : f32
    %165 = vector.broadcast %cst_90 : f32 to vector<8x128xf32>
    %166 = arith.mulf %165, %164 : vector<8x128xf32>
    %167 = vector.extract_strided_slice %157 {offsets = [0, 128], sizes = [8, 128], strides = [1, 1]} : vector<8x512xf32> to vector<8x128xf32>
    %cst_91 = arith.constant 5.000000e-01 : f32
    %168 = vector.broadcast %cst_91 : f32 to vector<8x128xf32>
    %169 = arith.mulf %168, %167 : vector<8x128xf32>
    %170 = math.tanh %169 : vector<8x128xf32>
    %cst_92 = arith.constant 1.000000e+00 : f32
    %171 = vector.broadcast %cst_92 : f32 to vector<8x128xf32>
    %172 = arith.addf %171, %170 : vector<8x128xf32>
    %cst_93 = arith.constant 5.000000e-01 : f32
    %173 = vector.broadcast %cst_93 : f32 to vector<8x128xf32>
    %174 = arith.mulf %173, %172 : vector<8x128xf32>
    %175 = vector.extract_strided_slice %157 {offsets = [0, 256], sizes = [8, 128], strides = [1, 1]} : vector<8x512xf32> to vector<8x128xf32>
    %176 = math.tanh %175 : vector<8x128xf32>
    %177 = vector.extract_strided_slice %157 {offsets = [0, 384], sizes = [8, 128], strides = [1, 1]} : vector<8x512xf32> to vector<8x128xf32>
    %cst_94 = arith.constant 5.000000e-01 : f32
    %178 = vector.broadcast %cst_94 : f32 to vector<8x128xf32>
    %179 = arith.mulf %178, %177 : vector<8x128xf32>
    %180 = math.tanh %179 : vector<8x128xf32>
    %cst_95 = arith.constant 1.000000e+00 : f32
    %181 = vector.broadcast %cst_95 : f32 to vector<8x128xf32>
    %182 = arith.addf %181, %180 : vector<8x128xf32>
    %cst_96 = arith.constant 5.000000e-01 : f32
    %183 = vector.broadcast %cst_96 : f32 to vector<8x128xf32>
    %184 = arith.mulf %183, %182 : vector<8x128xf32>
    %185 = arith.mulf %174, %158 : vector<8x128xf32>
    %186 = arith.mulf %166, %176 : vector<8x128xf32>
    %187 = arith.addf %185, %186 : vector<8x128xf32>
    %188 = math.tanh %187 : vector<8x128xf32>
    %189 = arith.mulf %184, %188 : vector<8x128xf32>
    %c0_97 = arith.constant 0 : index
    %c0_98 = arith.constant 0 : index
    %190 = vector.load %arg12[%c0_97, %c0_98] : memref<8x128xf32, #tpu.memory_space<vmem>>, vector<8x128xf32>
    tpu.vector_store %arg12[%c0_97, %c0_98], %189 {strides = array<i32>} : memref<8x128xf32, #tpu.memory_space<vmem>>, vector<8x128xf32>,
    %c0_99 = arith.constant 0 : index
    %c0_100 = arith.constant 0 : index
    %191 = vector.load %arg13[%c0_99, %c0_100] : memref<8x128xf32, #tpu.memory_space<vmem>>, vector<8x128xf32>
    tpu.vector_store %arg13[%c0_99, %c0_100], %187 {strides = array<i32>} : memref<8x128xf32, #tpu.memory_space<vmem>>, vector<8x128xf32>,
    %192 = arith.index_cast %c3_i32 : i32 to index
    %c0_101 = arith.constant 0 : index
    %c0_102 = arith.constant 0 : index
    %193 = vector.load %arg17[%192, %c0_101, %c0_102] : memref<8x8x128xf32, #tpu.memory_space<vmem>>, vector<1x8x128xf32>
    %194 = vector.shape_cast %193 : vector<1x8x128xf32> to vector<8x128xf32>
    %195 = vector.shape_cast %189 : vector<8x128xf32> to vector<1x8x128xf32>
    tpu.vector_store %arg17[%192, %c0_101, %c0_102], %195 {strides = array<i32>} : memref<8x8x128xf32, #tpu.memory_space<vmem>>, vector<1x8x128xf32>,
    %c4_i32 = arith.constant 4 : i32
    %196 = arith.index_cast %c4_i32 : i32 to index
    %c0_103 = arith.constant 0 : index
    %c0_104 = arith.constant 0 : index
    %197 = vector.load %arg16[%196, %c0_103, %c0_104] : memref<8x8x512xf32, #tpu.memory_space<vmem>>, vector<1x8x512xf32>
    %198 = vector.shape_cast %197 : vector<1x8x512xf32> to vector<8x512xf32>
    %c0_105 = arith.constant 0 : index
    %c0_106 = arith.constant 0 : index
    %199 = vector.load %arg12[%c0_105, %c0_106] : memref<8x128xf32, #tpu.memory_space<vmem>>, vector<8x128xf32>
    %200 = arith.truncf %199 : vector<8x128xf32> to vector<8x128xbf16>
    %cst_107 = arith.constant dense<0.000000e+00> : vector<8x512xf32>
    %201 = tpu.matmul %200, %3, %cst_107 {dimension_numbers = #tpu.dot_dimension_numbers<[1], [0], [0], [1], [0, 0, 1, 1], [], []>} : vector<8x128xbf16>, vector<128x512xbf16>, vector<8x512xf32> -> vector<8x512xf32>
    %202 = arith.addf %198, %201 : vector<8x512xf32>
    %c0_108 = arith.constant 0 : index
    %c0_109 = arith.constant 0 : index
    %203 = vector.load %arg13[%c0_108, %c0_109] : memref<8x128xf32, #tpu.memory_space<vmem>>, vector<8x128xf32>
    %204 = vector.extract_strided_slice %202 {offsets = [0, 0], sizes = [8, 128], strides = [1, 1]} : vector<8x512xf32> to vector<8x128xf32>
    %cst_110 = arith.constant 5.000000e-01 : f32
    %205 = vector.broadcast %cst_110 : f32 to vector<8x128xf32>
    %206 = arith.mulf %205, %204 : vector<8x128xf32>
    %207 = math.tanh %206 : vector<8x128xf32>
    %cst_111 = arith.constant 1.000000e+00 : f32
    %208 = vector.broadcast %cst_111 : f32 to vector<8x128xf32>
    %209 = arith.addf %208, %207 : vector<8x128xf32>
    %cst_112 = arith.constant 5.000000e-01 : f32
    %210 = vector.broadcast %cst_112 : f32 to vector<8x128xf32>
    %211 = arith.mulf %210, %209 : vector<8x128xf32>
    %212 = vector.extract_strided_slice %202 {offsets = [0, 128], sizes = [8, 128], strides = [1, 1]} : vector<8x512xf32> to vector<8x128xf32>
    %cst_113 = arith.constant 5.000000e-01 : f32
    %213 = vector.broadcast %cst_113 : f32 to vector<8x128xf32>
    %214 = arith.mulf %213, %212 : vector<8x128xf32>
    %215 = math.tanh %214 : vector<8x128xf32>
    %cst_114 = arith.constant 1.000000e+00 : f32
    %216 = vector.broadcast %cst_114 : f32 to vector<8x128xf32>
    %217 = arith.addf %216, %215 : vector<8x128xf32>
    %cst_115 = arith.constant 5.000000e-01 : f32
    %218 = vector.broadcast %cst_115 : f32 to vector<8x128xf32>
    %219 = arith.mulf %218, %217 : vector<8x128xf32>
    %220 = vector.extract_strided_slice %202 {offsets = [0, 256], sizes = [8, 128], strides = [1, 1]} : vector<8x512xf32> to vector<8x128xf32>
    %221 = math.tanh %220 : vector<8x128xf32>
    %222 = vector.extract_strided_slice %202 {offsets = [0, 384], sizes = [8, 128], strides = [1, 1]} : vector<8x512xf32> to vector<8x128xf32>
    %cst_116 = arith.constant 5.000000e-01 : f32
    %223 = vector.broadcast %cst_116 : f32 to vector<8x128xf32>
    %224 = arith.mulf %223, %222 : vector<8x128xf32>
    %225 = math.tanh %224 : vector<8x128xf32>
    %cst_117 = arith.constant 1.000000e+00 : f32
    %226 = vector.broadcast %cst_117 : f32 to vector<8x128xf32>
    %227 = arith.addf %226, %225 : vector<8x128xf32>
    %cst_118 = arith.constant 5.000000e-01 : f32
    %228 = vector.broadcast %cst_118 : f32 to vector<8x128xf32>
    %229 = arith.mulf %228, %227 : vector<8x128xf32>
    %230 = arith.mulf %219, %203 : vector<8x128xf32>
    %231 = arith.mulf %211, %221 : vector<8x128xf32>
    %232 = arith.addf %230, %231 : vector<8x128xf32>
    %233 = math.tanh %232 : vector<8x128xf32>
    %234 = arith.mulf %229, %233 : vector<8x128xf32>
    %c0_119 = arith.constant 0 : index
    %c0_120 = arith.constant 0 : index
    %235 = vector.load %arg12[%c0_119, %c0_120] : memref<8x128xf32, #tpu.memory_space<vmem>>, vector<8x128xf32>
    tpu.vector_store %arg12[%c0_119, %c0_120], %234 {strides = array<i32>} : memref<8x128xf32, #tpu.memory_space<vmem>>, vector<8x128xf32>,
    %c0_121 = arith.constant 0 : index
    %c0_122 = arith.constant 0 : index
    %236 = vector.load %arg13[%c0_121, %c0_122] : memref<8x128xf32, #tpu.memory_space<vmem>>, vector<8x128xf32>
    tpu.vector_store %arg13[%c0_121, %c0_122], %232 {strides = array<i32>} : memref<8x128xf32, #tpu.memory_space<vmem>>, vector<8x128xf32>,
    %237 = arith.index_cast %c4_i32 : i32 to index
    %c0_123 = arith.constant 0 : index
    %c0_124 = arith.constant 0 : index
    %238 = vector.load %arg17[%237, %c0_123, %c0_124] : memref<8x8x128xf32, #tpu.memory_space<vmem>>, vector<1x8x128xf32>
    %239 = vector.shape_cast %238 : vector<1x8x128xf32> to vector<8x128xf32>
    %240 = vector.shape_cast %234 : vector<8x128xf32> to vector<1x8x128xf32>
    tpu.vector_store %arg17[%237, %c0_123, %c0_124], %240 {strides = array<i32>} : memref<8x8x128xf32, #tpu.memory_space<vmem>>, vector<1x8x128xf32>,
    %c5_i32 = arith.constant 5 : i32
    %241 = arith.index_cast %c5_i32 : i32 to index
    %c0_125 = arith.constant 0 : index
    %c0_126 = arith.constant 0 : index
    %242 = vector.load %arg16[%241, %c0_125, %c0_126] : memref<8x8x512xf32, #tpu.memory_space<vmem>>, vector<1x8x512xf32>
    %243 = vector.shape_cast %242 : vector<1x8x512xf32> to vector<8x512xf32>
    %c0_127 = arith.constant 0 : index
    %c0_128 = arith.constant 0 : index
    %244 = vector.load %arg12[%c0_127, %c0_128] : memref<8x128xf32, #tpu.memory_space<vmem>>, vector<8x128xf32>
    %245 = arith.truncf %244 : vector<8x128xf32> to vector<8x128xbf16>
    %cst_129 = arith.constant dense<0.000000e+00> : vector<8x512xf32>
    %246 = tpu.matmul %245, %3, %cst_129 {dimension_numbers = #tpu.dot_dimension_numbers<[1], [0], [0], [1], [0, 0, 1, 1], [], []>} : vector<8x128xbf16>, vector<128x512xbf16>, vector<8x512xf32> -> vector<8x512xf32>
    %247 = arith.addf %243, %246 : vector<8x512xf32>
    %c0_130 = arith.constant 0 : index
    %c0_131 = arith.constant 0 : index
    %248 = vector.load %arg13[%c0_130, %c0_131] : memref<8x128xf32, #tpu.memory_space<vmem>>, vector<8x128xf32>
    %249 = vector.extract_strided_slice %247 {offsets = [0, 0], sizes = [8, 128], strides = [1, 1]} : vector<8x512xf32> to vector<8x128xf32>
    %cst_132 = arith.constant 5.000000e-01 : f32
    %250 = vector.broadcast %cst_132 : f32 to vector<8x128xf32>
    %251 = arith.mulf %250, %249 : vector<8x128xf32>
    %252 = math.tanh %251 : vector<8x128xf32>
    %cst_133 = arith.constant 1.000000e+00 : f32
    %253 = vector.broadcast %cst_133 : f32 to vector<8x128xf32>
    %254 = arith.addf %253, %252 : vector<8x128xf32>
    %cst_134 = arith.constant 5.000000e-01 : f32
    %255 = vector.broadcast %cst_134 : f32 to vector<8x128xf32>
    %256 = arith.mulf %255, %254 : vector<8x128xf32>
    %257 = vector.extract_strided_slice %247 {offsets = [0, 128], sizes = [8, 128], strides = [1, 1]} : vector<8x512xf32> to vector<8x128xf32>
    %cst_135 = arith.constant 5.000000e-01 : f32
    %258 = vector.broadcast %cst_135 : f32 to vector<8x128xf32>
    %259 = arith.mulf %258, %257 : vector<8x128xf32>
    %260 = math.tanh %259 : vector<8x128xf32>
    %cst_136 = arith.constant 1.000000e+00 : f32
    %261 = vector.broadcast %cst_136 : f32 to vector<8x128xf32>
    %262 = arith.addf %261, %260 : vector<8x128xf32>
    %cst_137 = arith.constant 5.000000e-01 : f32
    %263 = vector.broadcast %cst_137 : f32 to vector<8x128xf32>
    %264 = arith.mulf %263, %262 : vector<8x128xf32>
    %265 = vector.extract_strided_slice %247 {offsets = [0, 256], sizes = [8, 128], strides = [1, 1]} : vector<8x512xf32> to vector<8x128xf32>
    %266 = math.tanh %265 : vector<8x128xf32>
    %267 = vector.extract_strided_slice %247 {offsets = [0, 384], sizes = [8, 128], strides = [1, 1]} : vector<8x512xf32> to vector<8x128xf32>
    %cst_138 = arith.constant 5.000000e-01 : f32
    %268 = vector.broadcast %cst_138 : f32 to vector<8x128xf32>
    %269 = arith.mulf %268, %267 : vector<8x128xf32>
    %270 = math.tanh %269 : vector<8x128xf32>
    %cst_139 = arith.constant 1.000000e+00 : f32
    %271 = vector.broadcast %cst_139 : f32 to vector<8x128xf32>
    %272 = arith.addf %271, %270 : vector<8x128xf32>
    %cst_140 = arith.constant 5.000000e-01 : f32
    %273 = vector.broadcast %cst_140 : f32 to vector<8x128xf32>
    %274 = arith.mulf %273, %272 : vector<8x128xf32>
    %275 = arith.mulf %264, %248 : vector<8x128xf32>
    %276 = arith.mulf %256, %266 : vector<8x128xf32>
    %277 = arith.addf %275, %276 : vector<8x128xf32>
    %278 = math.tanh %277 : vector<8x128xf32>
    %279 = arith.mulf %274, %278 : vector<8x128xf32>
    %c0_141 = arith.constant 0 : index
    %c0_142 = arith.constant 0 : index
    %280 = vector.load %arg12[%c0_141, %c0_142] : memref<8x128xf32, #tpu.memory_space<vmem>>, vector<8x128xf32>
    tpu.vector_store %arg12[%c0_141, %c0_142], %279 {strides = array<i32>} : memref<8x128xf32, #tpu.memory_space<vmem>>, vector<8x128xf32>,
    %c0_143 = arith.constant 0 : index
    %c0_144 = arith.constant 0 : index
    %281 = vector.load %arg13[%c0_143, %c0_144] : memref<8x128xf32, #tpu.memory_space<vmem>>, vector<8x128xf32>
    tpu.vector_store %arg13[%c0_143, %c0_144], %277 {strides = array<i32>} : memref<8x128xf32, #tpu.memory_space<vmem>>, vector<8x128xf32>,
    %282 = arith.index_cast %c5_i32 : i32 to index
    %c0_145 = arith.constant 0 : index
    %c0_146 = arith.constant 0 : index
    %283 = vector.load %arg17[%282, %c0_145, %c0_146] : memref<8x8x128xf32, #tpu.memory_space<vmem>>, vector<1x8x128xf32>
    %284 = vector.shape_cast %283 : vector<1x8x128xf32> to vector<8x128xf32>
    %285 = vector.shape_cast %279 : vector<8x128xf32> to vector<1x8x128xf32>
    tpu.vector_store %arg17[%282, %c0_145, %c0_146], %285 {strides = array<i32>} : memref<8x8x128xf32, #tpu.memory_space<vmem>>, vector<1x8x128xf32>,
    %c6_i32 = arith.constant 6 : i32
    %286 = arith.index_cast %c6_i32 : i32 to index
    %c0_147 = arith.constant 0 : index
    %c0_148 = arith.constant 0 : index
    %287 = vector.load %arg16[%286, %c0_147, %c0_148] : memref<8x8x512xf32, #tpu.memory_space<vmem>>, vector<1x8x512xf32>
    %288 = vector.shape_cast %287 : vector<1x8x512xf32> to vector<8x512xf32>
    %c0_149 = arith.constant 0 : index
    %c0_150 = arith.constant 0 : index
    %289 = vector.load %arg12[%c0_149, %c0_150] : memref<8x128xf32, #tpu.memory_space<vmem>>, vector<8x128xf32>
    %290 = arith.truncf %289 : vector<8x128xf32> to vector<8x128xbf16>
    %cst_151 = arith.constant dense<0.000000e+00> : vector<8x512xf32>
    %291 = tpu.matmul %290, %3, %cst_151 {dimension_numbers = #tpu.dot_dimension_numbers<[1], [0], [0], [1], [0, 0, 1, 1], [], []>} : vector<8x128xbf16>, vector<128x512xbf16>, vector<8x512xf32> -> vector<8x512xf32>
    %292 = arith.addf %288, %291 : vector<8x512xf32>
    %c0_152 = arith.constant 0 : index
    %c0_153 = arith.constant 0 : index
    %293 = vector.load %arg13[%c0_152, %c0_153] : memref<8x128xf32, #tpu.memory_space<vmem>>, vector<8x128xf32>
    %294 = vector.extract_strided_slice %292 {offsets = [0, 0], sizes = [8, 128], strides = [1, 1]} : vector<8x512xf32> to vector<8x128xf32>
    %cst_154 = arith.constant 5.000000e-01 : f32
    %295 = vector.broadcast %cst_154 : f32 to vector<8x128xf32>
    %296 = arith.mulf %295, %294 : vector<8x128xf32>
    %297 = math.tanh %296 : vector<8x128xf32>
    %cst_155 = arith.constant 1.000000e+00 : f32
    %298 = vector.broadcast %cst_155 : f32 to vector<8x128xf32>
    %299 = arith.addf %298, %297 : vector<8x128xf32>
    %cst_156 = arith.constant 5.000000e-01 : f32
    %300 = vector.broadcast %cst_156 : f32 to vector<8x128xf32>
    %301 = arith.mulf %300, %299 : vector<8x128xf32>
    %302 = vector.extract_strided_slice %292 {offsets = [0, 128], sizes = [8, 128], strides = [1, 1]} : vector<8x512xf32> to vector<8x128xf32>
    %cst_157 = arith.constant 5.000000e-01 : f32
    %303 = vector.broadcast %cst_157 : f32 to vector<8x128xf32>
    %304 = arith.mulf %303, %302 : vector<8x128xf32>
    %305 = math.tanh %304 : vector<8x128xf32>
    %cst_158 = arith.constant 1.000000e+00 : f32
    %306 = vector.broadcast %cst_158 : f32 to vector<8x128xf32>
    %307 = arith.addf %306, %305 : vector<8x128xf32>
    %cst_159 = arith.constant 5.000000e-01 : f32
    %308 = vector.broadcast %cst_159 : f32 to vector<8x128xf32>
    %309 = arith.mulf %308, %307 : vector<8x128xf32>
    %310 = vector.extract_strided_slice %292 {offsets = [0, 256], sizes = [8, 128], strides = [1, 1]} : vector<8x512xf32> to vector<8x128xf32>
    %311 = math.tanh %310 : vector<8x128xf32>
    %312 = vector.extract_strided_slice %292 {offsets = [0, 384], sizes = [8, 128], strides = [1, 1]} : vector<8x512xf32> to vector<8x128xf32>
    %cst_160 = arith.constant 5.000000e-01 : f32
    %313 = vector.broadcast %cst_160 : f32 to vector<8x128xf32>
    %314 = arith.mulf %313, %312 : vector<8x128xf32>
    %315 = math.tanh %314 : vector<8x128xf32>
    %cst_161 = arith.constant 1.000000e+00 : f32
    %316 = vector.broadcast %cst_161 : f32 to vector<8x128xf32>
    %317 = arith.addf %316, %315 : vector<8x128xf32>
    %cst_162 = arith.constant 5.000000e-01 : f32
    %318 = vector.broadcast %cst_162 : f32 to vector<8x128xf32>
    %319 = arith.mulf %318, %317 : vector<8x128xf32>
    %320 = arith.mulf %309, %293 : vector<8x128xf32>
    %321 = arith.mulf %301, %311 : vector<8x128xf32>
    %322 = arith.addf %320, %321 : vector<8x128xf32>
    %323 = math.tanh %322 : vector<8x128xf32>
    %324 = arith.mulf %319, %323 : vector<8x128xf32>
    %c0_163 = arith.constant 0 : index
    %c0_164 = arith.constant 0 : index
    %325 = vector.load %arg12[%c0_163, %c0_164] : memref<8x128xf32, #tpu.memory_space<vmem>>, vector<8x128xf32>
    tpu.vector_store %arg12[%c0_163, %c0_164], %324 {strides = array<i32>} : memref<8x128xf32, #tpu.memory_space<vmem>>, vector<8x128xf32>,
    %c0_165 = arith.constant 0 : index
    %c0_166 = arith.constant 0 : index
    %326 = vector.load %arg13[%c0_165, %c0_166] : memref<8x128xf32, #tpu.memory_space<vmem>>, vector<8x128xf32>
    tpu.vector_store %arg13[%c0_165, %c0_166], %322 {strides = array<i32>} : memref<8x128xf32, #tpu.memory_space<vmem>>, vector<8x128xf32>,
    %327 = arith.index_cast %c6_i32 : i32 to index
    %c0_167 = arith.constant 0 : index
    %c0_168 = arith.constant 0 : index
    %328 = vector.load %arg17[%327, %c0_167, %c0_168] : memref<8x8x128xf32, #tpu.memory_space<vmem>>, vector<1x8x128xf32>
    %329 = vector.shape_cast %328 : vector<1x8x128xf32> to vector<8x128xf32>
    %330 = vector.shape_cast %324 : vector<8x128xf32> to vector<1x8x128xf32>
    tpu.vector_store %arg17[%327, %c0_167, %c0_168], %330 {strides = array<i32>} : memref<8x8x128xf32, #tpu.memory_space<vmem>>, vector<1x8x128xf32>,
    %c7_i32 = arith.constant 7 : i32
    %331 = arith.index_cast %c7_i32 : i32 to index
    %c0_169 = arith.constant 0 : index
    %c0_170 = arith.constant 0 : index
    %332 = vector.load %arg16[%331, %c0_169, %c0_170] : memref<8x8x512xf32, #tpu.memory_space<vmem>>, vector<1x8x512xf32>
    %333 = vector.shape_cast %332 : vector<1x8x512xf32> to vector<8x512xf32>
    %c0_171 = arith.constant 0 : index
    %c0_172 = arith.constant 0 : index
    %334 = vector.load %arg12[%c0_171, %c0_172] : memref<8x128xf32, #tpu.memory_space<vmem>>, vector<8x128xf32>
    %335 = arith.truncf %334 : vector<8x128xf32> to vector<8x128xbf16>
    %cst_173 = arith.constant dense<0.000000e+00> : vector<8x512xf32>
    %336 = tpu.matmul %335, %3, %cst_173 {dimension_numbers = #tpu.dot_dimension_numbers<[1], [0], [0], [1], [0, 0, 1, 1], [], []>} : vector<8x128xbf16>, vector<128x512xbf16>, vector<8x512xf32> -> vector<8x512xf32>
    %337 = arith.addf %333, %336 : vector<8x512xf32>
    %c0_174 = arith.constant 0 : index
    %c0_175 = arith.constant 0 : index
    %338 = vector.load %arg13[%c0_174, %c0_175] : memref<8x128xf32, #tpu.memory_space<vmem>>, vector<8x128xf32>
    %339 = vector.extract_strided_slice %337 {offsets = [0, 0], sizes = [8, 128], strides = [1, 1]} : vector<8x512xf32> to vector<8x128xf32>
    %cst_176 = arith.constant 5.000000e-01 : f32
    %340 = vector.broadcast %cst_176 : f32 to vector<8x128xf32>
    %341 = arith.mulf %340, %339 : vector<8x128xf32>
    %342 = math.tanh %341 : vector<8x128xf32>
    %cst_177 = arith.constant 1.000000e+00 : f32
    %343 = vector.broadcast %cst_177 : f32 to vector<8x128xf32>
    %344 = arith.addf %343, %342 : vector<8x128xf32>
    %cst_178 = arith.constant 5.000000e-01 : f32
    %345 = vector.broadcast %cst_178 : f32 to vector<8x128xf32>
    %346 = arith.mulf %345, %344 : vector<8x128xf32>
    %347 = vector.extract_strided_slice %337 {offsets = [0, 128], sizes = [8, 128], strides = [1, 1]} : vector<8x512xf32> to vector<8x128xf32>
    %cst_179 = arith.constant 5.000000e-01 : f32
    %348 = vector.broadcast %cst_179 : f32 to vector<8x128xf32>
    %349 = arith.mulf %348, %347 : vector<8x128xf32>
    %350 = math.tanh %349 : vector<8x128xf32>
    %cst_180 = arith.constant 1.000000e+00 : f32
    %351 = vector.broadcast %cst_180 : f32 to vector<8x128xf32>
    %352 = arith.addf %351, %350 : vector<8x128xf32>
    %cst_181 = arith.constant 5.000000e-01 : f32
    %353 = vector.broadcast %cst_181 : f32 to vector<8x128xf32>
    %354 = arith.mulf %353, %352 : vector<8x128xf32>
    %355 = vector.extract_strided_slice %337 {offsets = [0, 256], sizes = [8, 128], strides = [1, 1]} : vector<8x512xf32> to vector<8x128xf32>
    %356 = math.tanh %355 : vector<8x128xf32>
    %357 = vector.extract_strided_slice %337 {offsets = [0, 384], sizes = [8, 128], strides = [1, 1]} : vector<8x512xf32> to vector<8x128xf32>
    %cst_182 = arith.constant 5.000000e-01 : f32
    %358 = vector.broadcast %cst_182 : f32 to vector<8x128xf32>
    %359 = arith.mulf %358, %357 : vector<8x128xf32>
    %360 = math.tanh %359 : vector<8x128xf32>
    %cst_183 = arith.constant 1.000000e+00 : f32
    %361 = vector.broadcast %cst_183 : f32 to vector<8x128xf32>
    %362 = arith.addf %361, %360 : vector<8x128xf32>
    %cst_184 = arith.constant 5.000000e-01 : f32
    %363 = vector.broadcast %cst_184 : f32 to vector<8x128xf32>
    %364 = arith.mulf %363, %362 : vector<8x128xf32>
    %365 = arith.mulf %354, %338 : vector<8x128xf32>
    %366 = arith.mulf %346, %356 : vector<8x128xf32>
    %367 = arith.addf %365, %366 : vector<8x128xf32>
    %368 = math.tanh %367 : vector<8x128xf32>
    %369 = arith.mulf %364, %368 : vector<8x128xf32>
    %c0_185 = arith.constant 0 : index
    %c0_186 = arith.constant 0 : index
    %370 = vector.load %arg12[%c0_185, %c0_186] : memref<8x128xf32, #tpu.memory_space<vmem>>, vector<8x128xf32>
    tpu.vector_store %arg12[%c0_185, %c0_186], %369 {strides = array<i32>} : memref<8x128xf32, #tpu.memory_space<vmem>>, vector<8x128xf32>,
    %c0_187 = arith.constant 0 : index
    %c0_188 = arith.constant 0 : index
    %371 = vector.load %arg13[%c0_187, %c0_188] : memref<8x128xf32, #tpu.memory_space<vmem>>, vector<8x128xf32>
    tpu.vector_store %arg13[%c0_187, %c0_188], %367 {strides = array<i32>} : memref<8x128xf32, #tpu.memory_space<vmem>>, vector<8x128xf32>,
    %372 = arith.index_cast %c7_i32 : i32 to index
    %c0_189 = arith.constant 0 : index
    %c0_190 = arith.constant 0 : index
    %373 = vector.load %arg17[%372, %c0_189, %c0_190] : memref<8x8x128xf32, #tpu.memory_space<vmem>>, vector<1x8x128xf32>
    %374 = vector.shape_cast %373 : vector<1x8x128xf32> to vector<8x128xf32>
    %375 = vector.shape_cast %369 : vector<8x128xf32> to vector<1x8x128xf32>
    tpu.vector_store %arg17[%372, %c0_189, %c0_190], %375 {strides = array<i32>} : memref<8x8x128xf32, #tpu.memory_space<vmem>>, vector<1x8x128xf32>,
    %c8_i32 = arith.constant 8 : i32
    %c0_191 = arith.constant 0 : index
    %c0_192 = arith.constant 0 : index
    %c0_193 = arith.constant 0 : index
    %376 = vector.load %arg17[%c0_191, %c0_192, %c0_193] : memref<8x8x128xf32, #tpu.memory_space<vmem>>, vector<8x8x128xf32>
    %377 = vector.shape_cast %376 : vector<8x8x128xf32> to vector<64x128xf32>
    %378 = arith.truncf %377 : vector<64x128xf32> to vector<64x128xbf16>
    %c0_194 = arith.constant 0 : index
    %c0_195 = arith.constant 0 : index
    %379 = vector.load %arg6[%c0_194, %c0_195] : memref<128x512xbf16, #tpu.memory_space<vmem>>, vector<128x512xbf16>
    %cst_196 = arith.constant dense<0.000000e+00> : vector<64x512xf32>
    %380 = tpu.matmul %378, %379, %cst_196 {dimension_numbers = #tpu.dot_dimension_numbers<[1], [0], [0], [1], [0, 0, 1, 1], [], []>} : vector<64x128xbf16>, vector<128x512xbf16>, vector<64x512xf32> -> vector<64x512xf32>
    %381 = vector.shape_cast %380 : vector<64x512xf32> to vector<8x8x512xf32>
    %c0_197 = arith.constant 0 : index
    %c0_198 = arith.constant 0 : index
    %382 = vector.load %arg8[%c0_197, %c0_198] : memref<1x512xf32, #tpu.memory_space<vmem>>, vector<1x512xf32>
    %383 = vector.shape_cast %382 : vector<1x512xf32> to vector<1x1x512xf32>
    %384 = vector.broadcast %383 : vector<1x1x512xf32> to vector<8x8x512xf32>
    %385 = arith.addf %381, %384 : vector<8x8x512xf32>
    %c0_199 = arith.constant 0 : index
    %c0_200 = arith.constant 0 : index
    %c0_201 = arith.constant 0 : index
    %386 = vector.load %arg16[%c0_199, %c0_200, %c0_201] : memref<8x8x512xf32, #tpu.memory_space<vmem>>, vector<8x8x512xf32>
    tpu.vector_store %arg16[%c0_199, %c0_200, %c0_201], %385 {strides = array<i32>} : memref<8x8x512xf32, #tpu.memory_space<vmem>>, vector<8x8x512xf32>,
    %c0_i32_202 = arith.constant 0 : i32
    %387 = arith.index_cast %c0_i32_202 : i32 to index
    %c0_203 = arith.constant 0 : index
    %c0_204 = arith.constant 0 : index
    %388 = vector.load %arg16[%387, %c0_203, %c0_204] : memref<8x8x512xf32, #tpu.memory_space<vmem>>, vector<1x8x512xf32>
    %389 = vector.shape_cast %388 : vector<1x8x512xf32> to vector<8x512xf32>
    %c0_205 = arith.constant 0 : index
    %c0_206 = arith.constant 0 : index
    %390 = vector.load %arg14[%c0_205, %c0_206] : memref<8x128xf32, #tpu.memory_space<vmem>>, vector<8x128xf32>
    %391 = arith.truncf %390 : vector<8x128xf32> to vector<8x128xbf16>
    %cst_207 = arith.constant dense<0.000000e+00> : vector<8x512xf32>
    %392 = tpu.matmul %391, %4, %cst_207 {dimension_numbers = #tpu.dot_dimension_numbers<[1], [0], [0], [1], [0, 0, 1, 1], [], []>} : vector<8x128xbf16>, vector<128x512xbf16>, vector<8x512xf32> -> vector<8x512xf32>
    %393 = arith.addf %389, %392 : vector<8x512xf32>
    %c0_208 = arith.constant 0 : index
    %c0_209 = arith.constant 0 : index
    %394 = vector.load %arg15[%c0_208, %c0_209] : memref<8x128xf32, #tpu.memory_space<vmem>>, vector<8x128xf32>
    %395 = vector.extract_strided_slice %393 {offsets = [0, 0], sizes = [8, 128], strides = [1, 1]} : vector<8x512xf32> to vector<8x128xf32>
    %cst_210 = arith.constant 5.000000e-01 : f32
    %396 = vector.broadcast %cst_210 : f32 to vector<8x128xf32>
    %397 = arith.mulf %396, %395 : vector<8x128xf32>
    %398 = math.tanh %397 : vector<8x128xf32>
    %cst_211 = arith.constant 1.000000e+00 : f32
    %399 = vector.broadcast %cst_211 : f32 to vector<8x128xf32>
    %400 = arith.addf %399, %398 : vector<8x128xf32>
    %cst_212 = arith.constant 5.000000e-01 : f32
    %401 = vector.broadcast %cst_212 : f32 to vector<8x128xf32>
    %402 = arith.mulf %401, %400 : vector<8x128xf32>
    %403 = vector.extract_strided_slice %393 {offsets = [0, 128], sizes = [8, 128], strides = [1, 1]} : vector<8x512xf32> to vector<8x128xf32>
    %cst_213 = arith.constant 5.000000e-01 : f32
    %404 = vector.broadcast %cst_213 : f32 to vector<8x128xf32>
    %405 = arith.mulf %404, %403 : vector<8x128xf32>
    %406 = math.tanh %405 : vector<8x128xf32>
    %cst_214 = arith.constant 1.000000e+00 : f32
    %407 = vector.broadcast %cst_214 : f32 to vector<8x128xf32>
    %408 = arith.addf %407, %406 : vector<8x128xf32>
    %cst_215 = arith.constant 5.000000e-01 : f32
    %409 = vector.broadcast %cst_215 : f32 to vector<8x128xf32>
    %410 = arith.mulf %409, %408 : vector<8x128xf32>
    %411 = vector.extract_strided_slice %393 {offsets = [0, 256], sizes = [8, 128], strides = [1, 1]} : vector<8x512xf32> to vector<8x128xf32>
    %412 = math.tanh %411 : vector<8x128xf32>
    %413 = vector.extract_strided_slice %393 {offsets = [0, 384], sizes = [8, 128], strides = [1, 1]} : vector<8x512xf32> to vector<8x128xf32>
    %cst_216 = arith.constant 5.000000e-01 : f32
    %414 = vector.broadcast %cst_216 : f32 to vector<8x128xf32>
    %415 = arith.mulf %414, %413 : vector<8x128xf32>
    %416 = math.tanh %415 : vector<8x128xf32>
    %cst_217 = arith.constant 1.000000e+00 : f32
    %417 = vector.broadcast %cst_217 : f32 to vector<8x128xf32>
    %418 = arith.addf %417, %416 : vector<8x128xf32>
    %cst_218 = arith.constant 5.000000e-01 : f32
    %419 = vector.broadcast %cst_218 : f32 to vector<8x128xf32>
    %420 = arith.mulf %419, %418 : vector<8x128xf32>
    %421 = arith.mulf %410, %394 : vector<8x128xf32>
    %422 = arith.mulf %402, %412 : vector<8x128xf32>
    %423 = arith.addf %421, %422 : vector<8x128xf32>
    %424 = math.tanh %423 : vector<8x128xf32>
    %425 = arith.mulf %420, %424 : vector<8x128xf32>
    %c0_219 = arith.constant 0 : index
    %c0_220 = arith.constant 0 : index
    %426 = vector.load %arg14[%c0_219, %c0_220] : memref<8x128xf32, #tpu.memory_space<vmem>>, vector<8x128xf32>
    tpu.vector_store %arg14[%c0_219, %c0_220], %425 {strides = array<i32>} : memref<8x128xf32, #tpu.memory_space<vmem>>, vector<8x128xf32>,
    %c0_221 = arith.constant 0 : index
    %c0_222 = arith.constant 0 : index
    %427 = vector.load %arg15[%c0_221, %c0_222] : memref<8x128xf32, #tpu.memory_space<vmem>>, vector<8x128xf32>
    tpu.vector_store %arg15[%c0_221, %c0_222], %423 {strides = array<i32>} : memref<8x128xf32, #tpu.memory_space<vmem>>, vector<8x128xf32>,
    %428 = arith.index_cast %c0_i32_202 : i32 to index
    %c0_223 = arith.constant 0 : index
    %c0_224 = arith.constant 0 : index
    %429 = vector.load %arg9[%428, %c0_223, %c0_224] : memref<8x8x128xf32, #tpu.memory_space<vmem>>, vector<1x8x128xf32>
    %430 = vector.shape_cast %429 : vector<1x8x128xf32> to vector<8x128xf32>
    %431 = vector.shape_cast %425 : vector<8x128xf32> to vector<1x8x128xf32>
    tpu.vector_store %arg9[%428, %c0_223, %c0_224], %431 {strides = array<i32>} : memref<8x8x128xf32, #tpu.memory_space<vmem>>, vector<1x8x128xf32>,
    %c1_i32_225 = arith.constant 1 : i32
    %432 = arith.index_cast %c1_i32_225 : i32 to index
    %c0_226 = arith.constant 0 : index
    %c0_227 = arith.constant 0 : index
    %433 = vector.load %arg16[%432, %c0_226, %c0_227] : memref<8x8x512xf32, #tpu.memory_space<vmem>>, vector<1x8x512xf32>
    %434 = vector.shape_cast %433 : vector<1x8x512xf32> to vector<8x512xf32>
    %c0_228 = arith.constant 0 : index
    %c0_229 = arith.constant 0 : index
    %435 = vector.load %arg14[%c0_228, %c0_229] : memref<8x128xf32, #tpu.memory_space<vmem>>, vector<8x128xf32>
    %436 = arith.truncf %435 : vector<8x128xf32> to vector<8x128xbf16>
    %cst_230 = arith.constant dense<0.000000e+00> : vector<8x512xf32>
    %437 = tpu.matmul %436, %4, %cst_230 {dimension_numbers = #tpu.dot_dimension_numbers<[1], [0], [0], [1], [0, 0, 1, 1], [], []>} : vector<8x128xbf16>, vector<128x512xbf16>, vector<8x512xf32> -> vector<8x512xf32>
    %438 = arith.addf %434, %437 : vector<8x512xf32>
    %c0_231 = arith.constant 0 : index
    %c0_232 = arith.constant 0 : index
    %439 = vector.load %arg15[%c0_231, %c0_232] : memref<8x128xf32, #tpu.memory_space<vmem>>, vector<8x128xf32>
    %440 = vector.extract_strided_slice %438 {offsets = [0, 0], sizes = [8, 128], strides = [1, 1]} : vector<8x512xf32> to vector<8x128xf32>
    %cst_233 = arith.constant 5.000000e-01 : f32
    %441 = vector.broadcast %cst_233 : f32 to vector<8x128xf32>
    %442 = arith.mulf %441, %440 : vector<8x128xf32>
    %443 = math.tanh %442 : vector<8x128xf32>
    %cst_234 = arith.constant 1.000000e+00 : f32
    %444 = vector.broadcast %cst_234 : f32 to vector<8x128xf32>
    %445 = arith.addf %444, %443 : vector<8x128xf32>
    %cst_235 = arith.constant 5.000000e-01 : f32
    %446 = vector.broadcast %cst_235 : f32 to vector<8x128xf32>
    %447 = arith.mulf %446, %445 : vector<8x128xf32>
    %448 = vector.extract_strided_slice %438 {offsets = [0, 128], sizes = [8, 128], strides = [1, 1]} : vector<8x512xf32> to vector<8x128xf32>
    %cst_236 = arith.constant 5.000000e-01 : f32
    %449 = vector.broadcast %cst_236 : f32 to vector<8x128xf32>
    %450 = arith.mulf %449, %448 : vector<8x128xf32>
    %451 = math.tanh %450 : vector<8x128xf32>
    %cst_237 = arith.constant 1.000000e+00 : f32
    %452 = vector.broadcast %cst_237 : f32 to vector<8x128xf32>
    %453 = arith.addf %452, %451 : vector<8x128xf32>
    %cst_238 = arith.constant 5.000000e-01 : f32
    %454 = vector.broadcast %cst_238 : f32 to vector<8x128xf32>
    %455 = arith.mulf %454, %453 : vector<8x128xf32>
    %456 = vector.extract_strided_slice %438 {offsets = [0, 256], sizes = [8, 128], strides = [1, 1]} : vector<8x512xf32> to vector<8x128xf32>
    %457 = math.tanh %456 : vector<8x128xf32>
    %458 = vector.extract_strided_slice %438 {offsets = [0, 384], sizes = [8, 128], strides = [1, 1]} : vector<8x512xf32> to vector<8x128xf32>
    %cst_239 = arith.constant 5.000000e-01 : f32
    %459 = vector.broadcast %cst_239 : f32 to vector<8x128xf32>
    %460 = arith.mulf %459, %458 : vector<8x128xf32>
    %461 = math.tanh %460 : vector<8x128xf32>
    %cst_240 = arith.constant 1.000000e+00 : f32
    %462 = vector.broadcast %cst_240 : f32 to vector<8x128xf32>
    %463 = arith.addf %462, %461 : vector<8x128xf32>
    %cst_241 = arith.constant 5.000000e-01 : f32
    %464 = vector.broadcast %cst_241 : f32 to vector<8x128xf32>
    %465 = arith.mulf %464, %463 : vector<8x128xf32>
    %466 = arith.mulf %455, %439 : vector<8x128xf32>
    %467 = arith.mulf %447, %457 : vector<8x128xf32>
    %468 = arith.addf %466, %467 : vector<8x128xf32>
    %469 = math.tanh %468 : vector<8x128xf32>
    %470 = arith.mulf %465, %469 : vector<8x128xf32>
    %c0_242 = arith.constant 0 : index
    %c0_243 = arith.constant 0 : index
    %471 = vector.load %arg14[%c0_242, %c0_243] : memref<8x128xf32, #tpu.memory_space<vmem>>, vector<8x128xf32>
    tpu.vector_store %arg14[%c0_242, %c0_243], %470 {strides = array<i32>} : memref<8x128xf32, #tpu.memory_space<vmem>>, vector<8x128xf32>,
    %c0_244 = arith.constant 0 : index
    %c0_245 = arith.constant 0 : index
    %472 = vector.load %arg15[%c0_244, %c0_245] : memref<8x128xf32, #tpu.memory_space<vmem>>, vector<8x128xf32>
    tpu.vector_store %arg15[%c0_244, %c0_245], %468 {strides = array<i32>} : memref<8x128xf32, #tpu.memory_space<vmem>>, vector<8x128xf32>,
    %473 = arith.index_cast %c1_i32_225 : i32 to index
    %c0_246 = arith.constant 0 : index
    %c0_247 = arith.constant 0 : index
    %474 = vector.load %arg9[%473, %c0_246, %c0_247] : memref<8x8x128xf32, #tpu.memory_space<vmem>>, vector<1x8x128xf32>
    %475 = vector.shape_cast %474 : vector<1x8x128xf32> to vector<8x128xf32>
    %476 = vector.shape_cast %470 : vector<8x128xf32> to vector<1x8x128xf32>
    tpu.vector_store %arg9[%473, %c0_246, %c0_247], %476 {strides = array<i32>} : memref<8x8x128xf32, #tpu.memory_space<vmem>>, vector<1x8x128xf32>,
    %c2_i32_248 = arith.constant 2 : i32
    %477 = arith.index_cast %c2_i32_248 : i32 to index
    %c0_249 = arith.constant 0 : index
    %c0_250 = arith.constant 0 : index
    %478 = vector.load %arg16[%477, %c0_249, %c0_250] : memref<8x8x512xf32, #tpu.memory_space<vmem>>, vector<1x8x512xf32>
    %479 = vector.shape_cast %478 : vector<1x8x512xf32> to vector<8x512xf32>
    %c0_251 = arith.constant 0 : index
    %c0_252 = arith.constant 0 : index
    %480 = vector.load %arg14[%c0_251, %c0_252] : memref<8x128xf32, #tpu.memory_space<vmem>>, vector<8x128xf32>
    %481 = arith.truncf %480 : vector<8x128xf32> to vector<8x128xbf16>
    %cst_253 = arith.constant dense<0.000000e+00> : vector<8x512xf32>
    %482 = tpu.matmul %481, %4, %cst_253 {dimension_numbers = #tpu.dot_dimension_numbers<[1], [0], [0], [1], [0, 0, 1, 1], [], []>} : vector<8x128xbf16>, vector<128x512xbf16>, vector<8x512xf32> -> vector<8x512xf32>
    %483 = arith.addf %479, %482 : vector<8x512xf32>
    %c0_254 = arith.constant 0 : index
    %c0_255 = arith.constant 0 : index
    %484 = vector.load %arg15[%c0_254, %c0_255] : memref<8x128xf32, #tpu.memory_space<vmem>>, vector<8x128xf32>
    %485 = vector.extract_strided_slice %483 {offsets = [0, 0], sizes = [8, 128], strides = [1, 1]} : vector<8x512xf32> to vector<8x128xf32>
    %cst_256 = arith.constant 5.000000e-01 : f32
    %486 = vector.broadcast %cst_256 : f32 to vector<8x128xf32>
    %487 = arith.mulf %486, %485 : vector<8x128xf32>
    %488 = math.tanh %487 : vector<8x128xf32>
    %cst_257 = arith.constant 1.000000e+00 : f32
    %489 = vector.broadcast %cst_257 : f32 to vector<8x128xf32>
    %490 = arith.addf %489, %488 : vector<8x128xf32>
    %cst_258 = arith.constant 5.000000e-01 : f32
    %491 = vector.broadcast %cst_258 : f32 to vector<8x128xf32>
    %492 = arith.mulf %491, %490 : vector<8x128xf32>
    %493 = vector.extract_strided_slice %483 {offsets = [0, 128], sizes = [8, 128], strides = [1, 1]} : vector<8x512xf32> to vector<8x128xf32>
    %cst_259 = arith.constant 5.000000e-01 : f32
    %494 = vector.broadcast %cst_259 : f32 to vector<8x128xf32>
    %495 = arith.mulf %494, %493 : vector<8x128xf32>
    %496 = math.tanh %495 : vector<8x128xf32>
    %cst_260 = arith.constant 1.000000e+00 : f32
    %497 = vector.broadcast %cst_260 : f32 to vector<8x128xf32>
    %498 = arith.addf %497, %496 : vector<8x128xf32>
    %cst_261 = arith.constant 5.000000e-01 : f32
    %499 = vector.broadcast %cst_261 : f32 to vector<8x128xf32>
    %500 = arith.mulf %499, %498 : vector<8x128xf32>
    %501 = vector.extract_strided_slice %483 {offsets = [0, 256], sizes = [8, 128], strides = [1, 1]} : vector<8x512xf32> to vector<8x128xf32>
    %502 = math.tanh %501 : vector<8x128xf32>
    %503 = vector.extract_strided_slice %483 {offsets = [0, 384], sizes = [8, 128], strides = [1, 1]} : vector<8x512xf32> to vector<8x128xf32>
    %cst_262 = arith.constant 5.000000e-01 : f32
    %504 = vector.broadcast %cst_262 : f32 to vector<8x128xf32>
    %505 = arith.mulf %504, %503 : vector<8x128xf32>
    %506 = math.tanh %505 : vector<8x128xf32>
    %cst_263 = arith.constant 1.000000e+00 : f32
    %507 = vector.broadcast %cst_263 : f32 to vector<8x128xf32>
    %508 = arith.addf %507, %506 : vector<8x128xf32>
    %cst_264 = arith.constant 5.000000e-01 : f32
    %509 = vector.broadcast %cst_264 : f32 to vector<8x128xf32>
    %510 = arith.mulf %509, %508 : vector<8x128xf32>
    %511 = arith.mulf %500, %484 : vector<8x128xf32>
    %512 = arith.mulf %492, %502 : vector<8x128xf32>
    %513 = arith.addf %511, %512 : vector<8x128xf32>
    %514 = math.tanh %513 : vector<8x128xf32>
    %515 = arith.mulf %510, %514 : vector<8x128xf32>
    %c0_265 = arith.constant 0 : index
    %c0_266 = arith.constant 0 : index
    %516 = vector.load %arg14[%c0_265, %c0_266] : memref<8x128xf32, #tpu.memory_space<vmem>>, vector<8x128xf32>
    tpu.vector_store %arg14[%c0_265, %c0_266], %515 {strides = array<i32>} : memref<8x128xf32, #tpu.memory_space<vmem>>, vector<8x128xf32>,
    %c0_267 = arith.constant 0 : index
    %c0_268 = arith.constant 0 : index
    %517 = vector.load %arg15[%c0_267, %c0_268] : memref<8x128xf32, #tpu.memory_space<vmem>>, vector<8x128xf32>
    tpu.vector_store %arg15[%c0_267, %c0_268], %513 {strides = array<i32>} : memref<8x128xf32, #tpu.memory_space<vmem>>, vector<8x128xf32>,
    %518 = arith.index_cast %c2_i32_248 : i32 to index
    %c0_269 = arith.constant 0 : index
    %c0_270 = arith.constant 0 : index
    %519 = vector.load %arg9[%518, %c0_269, %c0_270] : memref<8x8x128xf32, #tpu.memory_space<vmem>>, vector<1x8x128xf32>
    %520 = vector.shape_cast %519 : vector<1x8x128xf32> to vector<8x128xf32>
    %521 = vector.shape_cast %515 : vector<8x128xf32> to vector<1x8x128xf32>
    tpu.vector_store %arg9[%518, %c0_269, %c0_270], %521 {strides = array<i32>} : memref<8x8x128xf32, #tpu.memory_space<vmem>>, vector<1x8x128xf32>,
    %c3_i32_271 = arith.constant 3 : i32
    %522 = arith.index_cast %c3_i32_271 : i32 to index
    %c0_272 = arith.constant 0 : index
    %c0_273 = arith.constant 0 : index
    %523 = vector.load %arg16[%522, %c0_272, %c0_273] : memref<8x8x512xf32, #tpu.memory_space<vmem>>, vector<1x8x512xf32>
    %524 = vector.shape_cast %523 : vector<1x8x512xf32> to vector<8x512xf32>
    %c0_274 = arith.constant 0 : index
    %c0_275 = arith.constant 0 : index
    %525 = vector.load %arg14[%c0_274, %c0_275] : memref<8x128xf32, #tpu.memory_space<vmem>>, vector<8x128xf32>
    %526 = arith.truncf %525 : vector<8x128xf32> to vector<8x128xbf16>
    %cst_276 = arith.constant dense<0.000000e+00> : vector<8x512xf32>
    %527 = tpu.matmul %526, %4, %cst_276 {dimension_numbers = #tpu.dot_dimension_numbers<[1], [0], [0], [1], [0, 0, 1, 1], [], []>} : vector<8x128xbf16>, vector<128x512xbf16>, vector<8x512xf32> -> vector<8x512xf32>
    %528 = arith.addf %524, %527 : vector<8x512xf32>
    %c0_277 = arith.constant 0 : index
    %c0_278 = arith.constant 0 : index
    %529 = vector.load %arg15[%c0_277, %c0_278] : memref<8x128xf32, #tpu.memory_space<vmem>>, vector<8x128xf32>
    %530 = vector.extract_strided_slice %528 {offsets = [0, 0], sizes = [8, 128], strides = [1, 1]} : vector<8x512xf32> to vector<8x128xf32>
    %cst_279 = arith.constant 5.000000e-01 : f32
    %531 = vector.broadcast %cst_279 : f32 to vector<8x128xf32>
    %532 = arith.mulf %531, %530 : vector<8x128xf32>
    %533 = math.tanh %532 : vector<8x128xf32>
    %cst_280 = arith.constant 1.000000e+00 : f32
    %534 = vector.broadcast %cst_280 : f32 to vector<8x128xf32>
    %535 = arith.addf %534, %533 : vector<8x128xf32>
    %cst_281 = arith.constant 5.000000e-01 : f32
    %536 = vector.broadcast %cst_281 : f32 to vector<8x128xf32>
    %537 = arith.mulf %536, %535 : vector<8x128xf32>
    %538 = vector.extract_strided_slice %528 {offsets = [0, 128], sizes = [8, 128], strides = [1, 1]} : vector<8x512xf32> to vector<8x128xf32>
    %cst_282 = arith.constant 5.000000e-01 : f32
    %539 = vector.broadcast %cst_282 : f32 to vector<8x128xf32>
    %540 = arith.mulf %539, %538 : vector<8x128xf32>
    %541 = math.tanh %540 : vector<8x128xf32>
    %cst_283 = arith.constant 1.000000e+00 : f32
    %542 = vector.broadcast %cst_283 : f32 to vector<8x128xf32>
    %543 = arith.addf %542, %541 : vector<8x128xf32>
    %cst_284 = arith.constant 5.000000e-01 : f32
    %544 = vector.broadcast %cst_284 : f32 to vector<8x128xf32>
    %545 = arith.mulf %544, %543 : vector<8x128xf32>
    %546 = vector.extract_strided_slice %528 {offsets = [0, 256], sizes = [8, 128], strides = [1, 1]} : vector<8x512xf32> to vector<8x128xf32>
    %547 = math.tanh %546 : vector<8x128xf32>
    %548 = vector.extract_strided_slice %528 {offsets = [0, 384], sizes = [8, 128], strides = [1, 1]} : vector<8x512xf32> to vector<8x128xf32>
    %cst_285 = arith.constant 5.000000e-01 : f32
    %549 = vector.broadcast %cst_285 : f32 to vector<8x128xf32>
    %550 = arith.mulf %549, %548 : vector<8x128xf32>
    %551 = math.tanh %550 : vector<8x128xf32>
    %cst_286 = arith.constant 1.000000e+00 : f32
    %552 = vector.broadcast %cst_286 : f32 to vector<8x128xf32>
    %553 = arith.addf %552, %551 : vector<8x128xf32>
    %cst_287 = arith.constant 5.000000e-01 : f32
    %554 = vector.broadcast %cst_287 : f32 to vector<8x128xf32>
    %555 = arith.mulf %554, %553 : vector<8x128xf32>
    %556 = arith.mulf %545, %529 : vector<8x128xf32>
    %557 = arith.mulf %537, %547 : vector<8x128xf32>
    %558 = arith.addf %556, %557 : vector<8x128xf32>
    %559 = math.tanh %558 : vector<8x128xf32>
    %560 = arith.mulf %555, %559 : vector<8x128xf32>
    %c0_288 = arith.constant 0 : index
    %c0_289 = arith.constant 0 : index
    %561 = vector.load %arg14[%c0_288, %c0_289] : memref<8x128xf32, #tpu.memory_space<vmem>>, vector<8x128xf32>
    tpu.vector_store %arg14[%c0_288, %c0_289], %560 {strides = array<i32>} : memref<8x128xf32, #tpu.memory_space<vmem>>, vector<8x128xf32>,
    %c0_290 = arith.constant 0 : index
    %c0_291 = arith.constant 0 : index
    %562 = vector.load %arg15[%c0_290, %c0_291] : memref<8x128xf32, #tpu.memory_space<vmem>>, vector<8x128xf32>
    tpu.vector_store %arg15[%c0_290, %c0_291], %558 {strides = array<i32>} : memref<8x128xf32, #tpu.memory_space<vmem>>, vector<8x128xf32>,
    %563 = arith.index_cast %c3_i32_271 : i32 to index
    %c0_292 = arith.constant 0 : index
    %c0_293 = arith.constant 0 : index
    %564 = vector.load %arg9[%563, %c0_292, %c0_293] : memref<8x8x128xf32, #tpu.memory_space<vmem>>, vector<1x8x128xf32>
    %565 = vector.shape_cast %564 : vector<1x8x128xf32> to vector<8x128xf32>
    %566 = vector.shape_cast %560 : vector<8x128xf32> to vector<1x8x128xf32>
    tpu.vector_store %arg9[%563, %c0_292, %c0_293], %566 {strides = array<i32>} : memref<8x8x128xf32, #tpu.memory_space<vmem>>, vector<1x8x128xf32>,
    %c4_i32_294 = arith.constant 4 : i32
    %567 = arith.index_cast %c4_i32_294 : i32 to index
    %c0_295 = arith.constant 0 : index
    %c0_296 = arith.constant 0 : index
    %568 = vector.load %arg16[%567, %c0_295, %c0_296] : memref<8x8x512xf32, #tpu.memory_space<vmem>>, vector<1x8x512xf32>
    %569 = vector.shape_cast %568 : vector<1x8x512xf32> to vector<8x512xf32>
    %c0_297 = arith.constant 0 : index
    %c0_298 = arith.constant 0 : index
    %570 = vector.load %arg14[%c0_297, %c0_298] : memref<8x128xf32, #tpu.memory_space<vmem>>, vector<8x128xf32>
    %571 = arith.truncf %570 : vector<8x128xf32> to vector<8x128xbf16>
    %cst_299 = arith.constant dense<0.000000e+00> : vector<8x512xf32>
    %572 = tpu.matmul %571, %4, %cst_299 {dimension_numbers = #tpu.dot_dimension_numbers<[1], [0], [0], [1], [0, 0, 1, 1], [], []>} : vector<8x128xbf16>, vector<128x512xbf16>, vector<8x512xf32> -> vector<8x512xf32>
    %573 = arith.addf %569, %572 : vector<8x512xf32>
    %c0_300 = arith.constant 0 : index
    %c0_301 = arith.constant 0 : index
    %574 = vector.load %arg15[%c0_300, %c0_301] : memref<8x128xf32, #tpu.memory_space<vmem>>, vector<8x128xf32>
    %575 = vector.extract_strided_slice %573 {offsets = [0, 0], sizes = [8, 128], strides = [1, 1]} : vector<8x512xf32> to vector<8x128xf32>
    %cst_302 = arith.constant 5.000000e-01 : f32
    %576 = vector.broadcast %cst_302 : f32 to vector<8x128xf32>
    %577 = arith.mulf %576, %575 : vector<8x128xf32>
    %578 = math.tanh %577 : vector<8x128xf32>
    %cst_303 = arith.constant 1.000000e+00 : f32
    %579 = vector.broadcast %cst_303 : f32 to vector<8x128xf32>
    %580 = arith.addf %579, %578 : vector<8x128xf32>
    %cst_304 = arith.constant 5.000000e-01 : f32
    %581 = vector.broadcast %cst_304 : f32 to vector<8x128xf32>
    %582 = arith.mulf %581, %580 : vector<8x128xf32>
    %583 = vector.extract_strided_slice %573 {offsets = [0, 128], sizes = [8, 128], strides = [1, 1]} : vector<8x512xf32> to vector<8x128xf32>
    %cst_305 = arith.constant 5.000000e-01 : f32
    %584 = vector.broadcast %cst_305 : f32 to vector<8x128xf32>
    %585 = arith.mulf %584, %583 : vector<8x128xf32>
    %586 = math.tanh %585 : vector<8x128xf32>
    %cst_306 = arith.constant 1.000000e+00 : f32
    %587 = vector.broadcast %cst_306 : f32 to vector<8x128xf32>
    %588 = arith.addf %587, %586 : vector<8x128xf32>
    %cst_307 = arith.constant 5.000000e-01 : f32
    %589 = vector.broadcast %cst_307 : f32 to vector<8x128xf32>
    %590 = arith.mulf %589, %588 : vector<8x128xf32>
    %591 = vector.extract_strided_slice %573 {offsets = [0, 256], sizes = [8, 128], strides = [1, 1]} : vector<8x512xf32> to vector<8x128xf32>
    %592 = math.tanh %591 : vector<8x128xf32>
    %593 = vector.extract_strided_slice %573 {offsets = [0, 384], sizes = [8, 128], strides = [1, 1]} : vector<8x512xf32> to vector<8x128xf32>
    %cst_308 = arith.constant 5.000000e-01 : f32
    %594 = vector.broadcast %cst_308 : f32 to vector<8x128xf32>
    %595 = arith.mulf %594, %593 : vector<8x128xf32>
    %596 = math.tanh %595 : vector<8x128xf32>
    %cst_309 = arith.constant 1.000000e+00 : f32
    %597 = vector.broadcast %cst_309 : f32 to vector<8x128xf32>
    %598 = arith.addf %597, %596 : vector<8x128xf32>
    %cst_310 = arith.constant 5.000000e-01 : f32
    %599 = vector.broadcast %cst_310 : f32 to vector<8x128xf32>
    %600 = arith.mulf %599, %598 : vector<8x128xf32>
    %601 = arith.mulf %590, %574 : vector<8x128xf32>
    %602 = arith.mulf %582, %592 : vector<8x128xf32>
    %603 = arith.addf %601, %602 : vector<8x128xf32>
    %604 = math.tanh %603 : vector<8x128xf32>
    %605 = arith.mulf %600, %604 : vector<8x128xf32>
    %c0_311 = arith.constant 0 : index
    %c0_312 = arith.constant 0 : index
    %606 = vector.load %arg14[%c0_311, %c0_312] : memref<8x128xf32, #tpu.memory_space<vmem>>, vector<8x128xf32>
    tpu.vector_store %arg14[%c0_311, %c0_312], %605 {strides = array<i32>} : memref<8x128xf32, #tpu.memory_space<vmem>>, vector<8x128xf32>,
    %c0_313 = arith.constant 0 : index
    %c0_314 = arith.constant 0 : index
    %607 = vector.load %arg15[%c0_313, %c0_314] : memref<8x128xf32, #tpu.memory_space<vmem>>, vector<8x128xf32>
    tpu.vector_store %arg15[%c0_313, %c0_314], %603 {strides = array<i32>} : memref<8x128xf32, #tpu.memory_space<vmem>>, vector<8x128xf32>,
    %608 = arith.index_cast %c4_i32_294 : i32 to index
    %c0_315 = arith.constant 0 : index
    %c0_316 = arith.constant 0 : index
    %609 = vector.load %arg9[%608, %c0_315, %c0_316] : memref<8x8x128xf32, #tpu.memory_space<vmem>>, vector<1x8x128xf32>
    %610 = vector.shape_cast %609 : vector<1x8x128xf32> to vector<8x128xf32>
    %611 = vector.shape_cast %605 : vector<8x128xf32> to vector<1x8x128xf32>
    tpu.vector_store %arg9[%608, %c0_315, %c0_316], %611 {strides = array<i32>} : memref<8x8x128xf32, #tpu.memory_space<vmem>>, vector<1x8x128xf32>,
    %c5_i32_317 = arith.constant 5 : i32
    %612 = arith.index_cast %c5_i32_317 : i32 to index
    %c0_318 = arith.constant 0 : index
    %c0_319 = arith.constant 0 : index
    %613 = vector.load %arg16[%612, %c0_318, %c0_319] : memref<8x8x512xf32, #tpu.memory_space<vmem>>, vector<1x8x512xf32>
    %614 = vector.shape_cast %613 : vector<1x8x512xf32> to vector<8x512xf32>
    %c0_320 = arith.constant 0 : index
    %c0_321 = arith.constant 0 : index
    %615 = vector.load %arg14[%c0_320, %c0_321] : memref<8x128xf32, #tpu.memory_space<vmem>>, vector<8x128xf32>
    %616 = arith.truncf %615 : vector<8x128xf32> to vector<8x128xbf16>
    %cst_322 = arith.constant dense<0.000000e+00> : vector<8x512xf32>
    %617 = tpu.matmul %616, %4, %cst_322 {dimension_numbers = #tpu.dot_dimension_numbers<[1], [0], [0], [1], [0, 0, 1, 1], [], []>} : vector<8x128xbf16>, vector<128x512xbf16>, vector<8x512xf32> -> vector<8x512xf32>
    %618 = arith.addf %614, %617 : vector<8x512xf32>
    %c0_323 = arith.constant 0 : index
    %c0_324 = arith.constant 0 : index
    %619 = vector.load %arg15[%c0_323, %c0_324] : memref<8x128xf32, #tpu.memory_space<vmem>>, vector<8x128xf32>
    %620 = vector.extract_strided_slice %618 {offsets = [0, 0], sizes = [8, 128], strides = [1, 1]} : vector<8x512xf32> to vector<8x128xf32>
    %cst_325 = arith.constant 5.000000e-01 : f32
    %621 = vector.broadcast %cst_325 : f32 to vector<8x128xf32>
    %622 = arith.mulf %621, %620 : vector<8x128xf32>
    %623 = math.tanh %622 : vector<8x128xf32>
    %cst_326 = arith.constant 1.000000e+00 : f32
    %624 = vector.broadcast %cst_326 : f32 to vector<8x128xf32>
    %625 = arith.addf %624, %623 : vector<8x128xf32>
    %cst_327 = arith.constant 5.000000e-01 : f32
    %626 = vector.broadcast %cst_327 : f32 to vector<8x128xf32>
    %627 = arith.mulf %626, %625 : vector<8x128xf32>
    %628 = vector.extract_strided_slice %618 {offsets = [0, 128], sizes = [8, 128], strides = [1, 1]} : vector<8x512xf32> to vector<8x128xf32>
    %cst_328 = arith.constant 5.000000e-01 : f32
    %629 = vector.broadcast %cst_328 : f32 to vector<8x128xf32>
    %630 = arith.mulf %629, %628 : vector<8x128xf32>
    %631 = math.tanh %630 : vector<8x128xf32>
    %cst_329 = arith.constant 1.000000e+00 : f32
    %632 = vector.broadcast %cst_329 : f32 to vector<8x128xf32>
    %633 = arith.addf %632, %631 : vector<8x128xf32>
    %cst_330 = arith.constant 5.000000e-01 : f32
    %634 = vector.broadcast %cst_330 : f32 to vector<8x128xf32>
    %635 = arith.mulf %634, %633 : vector<8x128xf32>
    %636 = vector.extract_strided_slice %618 {offsets = [0, 256], sizes = [8, 128], strides = [1, 1]} : vector<8x512xf32> to vector<8x128xf32>
    %637 = math.tanh %636 : vector<8x128xf32>
    %638 = vector.extract_strided_slice %618 {offsets = [0, 384], sizes = [8, 128], strides = [1, 1]} : vector<8x512xf32> to vector<8x128xf32>
    %cst_331 = arith.constant 5.000000e-01 : f32
    %639 = vector.broadcast %cst_331 : f32 to vector<8x128xf32>
    %640 = arith.mulf %639, %638 : vector<8x128xf32>
    %641 = math.tanh %640 : vector<8x128xf32>
    %cst_332 = arith.constant 1.000000e+00 : f32
    %642 = vector.broadcast %cst_332 : f32 to vector<8x128xf32>
    %643 = arith.addf %642, %641 : vector<8x128xf32>
    %cst_333 = arith.constant 5.000000e-01 : f32
    %644 = vector.broadcast %cst_333 : f32 to vector<8x128xf32>
    %645 = arith.mulf %644, %643 : vector<8x128xf32>
    %646 = arith.mulf %635, %619 : vector<8x128xf32>
    %647 = arith.mulf %627, %637 : vector<8x128xf32>
    %648 = arith.addf %646, %647 : vector<8x128xf32>
    %649 = math.tanh %648 : vector<8x128xf32>
    %650 = arith.mulf %645, %649 : vector<8x128xf32>
    %c0_334 = arith.constant 0 : index
    %c0_335 = arith.constant 0 : index
    %651 = vector.load %arg14[%c0_334, %c0_335] : memref<8x128xf32, #tpu.memory_space<vmem>>, vector<8x128xf32>
    tpu.vector_store %arg14[%c0_334, %c0_335], %650 {strides = array<i32>} : memref<8x128xf32, #tpu.memory_space<vmem>>, vector<8x128xf32>,
    %c0_336 = arith.constant 0 : index
    %c0_337 = arith.constant 0 : index
    %652 = vector.load %arg15[%c0_336, %c0_337] : memref<8x128xf32, #tpu.memory_space<vmem>>, vector<8x128xf32>
    tpu.vector_store %arg15[%c0_336, %c0_337], %648 {strides = array<i32>} : memref<8x128xf32, #tpu.memory_space<vmem>>, vector<8x128xf32>,
    %653 = arith.index_cast %c5_i32_317 : i32 to index
    %c0_338 = arith.constant 0 : index
    %c0_339 = arith.constant 0 : index
    %654 = vector.load %arg9[%653, %c0_338, %c0_339] : memref<8x8x128xf32, #tpu.memory_space<vmem>>, vector<1x8x128xf32>
    %655 = vector.shape_cast %654 : vector<1x8x128xf32> to vector<8x128xf32>
    %656 = vector.shape_cast %650 : vector<8x128xf32> to vector<1x8x128xf32>
    tpu.vector_store %arg9[%653, %c0_338, %c0_339], %656 {strides = array<i32>} : memref<8x8x128xf32, #tpu.memory_space<vmem>>, vector<1x8x128xf32>,
    %c6_i32_340 = arith.constant 6 : i32
    %657 = arith.index_cast %c6_i32_340 : i32 to index
    %c0_341 = arith.constant 0 : index
    %c0_342 = arith.constant 0 : index
    %658 = vector.load %arg16[%657, %c0_341, %c0_342] : memref<8x8x512xf32, #tpu.memory_space<vmem>>, vector<1x8x512xf32>
    %659 = vector.shape_cast %658 : vector<1x8x512xf32> to vector<8x512xf32>
    %c0_343 = arith.constant 0 : index
    %c0_344 = arith.constant 0 : index
    %660 = vector.load %arg14[%c0_343, %c0_344] : memref<8x128xf32, #tpu.memory_space<vmem>>, vector<8x128xf32>
    %661 = arith.truncf %660 : vector<8x128xf32> to vector<8x128xbf16>
    %cst_345 = arith.constant dense<0.000000e+00> : vector<8x512xf32>
    %662 = tpu.matmul %661, %4, %cst_345 {dimension_numbers = #tpu.dot_dimension_numbers<[1], [0], [0], [1], [0, 0, 1, 1], [], []>} : vector<8x128xbf16>, vector<128x512xbf16>, vector<8x512xf32> -> vector<8x512xf32>
    %663 = arith.addf %659, %662 : vector<8x512xf32>
    %c0_346 = arith.constant 0 : index
    %c0_347 = arith.constant 0 : index
    %664 = vector.load %arg15[%c0_346, %c0_347] : memref<8x128xf32, #tpu.memory_space<vmem>>, vector<8x128xf32>
    %665 = vector.extract_strided_slice %663 {offsets = [0, 0], sizes = [8, 128], strides = [1, 1]} : vector<8x512xf32> to vector<8x128xf32>
    %cst_348 = arith.constant 5.000000e-01 : f32
    %666 = vector.broadcast %cst_348 : f32 to vector<8x128xf32>
    %667 = arith.mulf %666, %665 : vector<8x128xf32>
    %668 = math.tanh %667 : vector<8x128xf32>
    %cst_349 = arith.constant 1.000000e+00 : f32
    %669 = vector.broadcast %cst_349 : f32 to vector<8x128xf32>
    %670 = arith.addf %669, %668 : vector<8x128xf32>
    %cst_350 = arith.constant 5.000000e-01 : f32
    %671 = vector.broadcast %cst_350 : f32 to vector<8x128xf32>
    %672 = arith.mulf %671, %670 : vector<8x128xf32>
    %673 = vector.extract_strided_slice %663 {offsets = [0, 128], sizes = [8, 128], strides = [1, 1]} : vector<8x512xf32> to vector<8x128xf32>
    %cst_351 = arith.constant 5.000000e-01 : f32
    %674 = vector.broadcast %cst_351 : f32 to vector<8x128xf32>
    %675 = arith.mulf %674, %673 : vector<8x128xf32>
    %676 = math.tanh %675 : vector<8x128xf32>
    %cst_352 = arith.constant 1.000000e+00 : f32
    %677 = vector.broadcast %cst_352 : f32 to vector<8x128xf32>
    %678 = arith.addf %677, %676 : vector<8x128xf32>
    %cst_353 = arith.constant 5.000000e-01 : f32
    %679 = vector.broadcast %cst_353 : f32 to vector<8x128xf32>
    %680 = arith.mulf %679, %678 : vector<8x128xf32>
    %681 = vector.extract_strided_slice %663 {offsets = [0, 256], sizes = [8, 128], strides = [1, 1]} : vector<8x512xf32> to vector<8x128xf32>
    %682 = math.tanh %681 : vector<8x128xf32>
    %683 = vector.extract_strided_slice %663 {offsets = [0, 384], sizes = [8, 128], strides = [1, 1]} : vector<8x512xf32> to vector<8x128xf32>
    %cst_354 = arith.constant 5.000000e-01 : f32
    %684 = vector.broadcast %cst_354 : f32 to vector<8x128xf32>
    %685 = arith.mulf %684, %683 : vector<8x128xf32>
    %686 = math.tanh %685 : vector<8x128xf32>
    %cst_355 = arith.constant 1.000000e+00 : f32
    %687 = vector.broadcast %cst_355 : f32 to vector<8x128xf32>
    %688 = arith.addf %687, %686 : vector<8x128xf32>
    %cst_356 = arith.constant 5.000000e-01 : f32
    %689 = vector.broadcast %cst_356 : f32 to vector<8x128xf32>
    %690 = arith.mulf %689, %688 : vector<8x128xf32>
    %691 = arith.mulf %680, %664 : vector<8x128xf32>
    %692 = arith.mulf %672, %682 : vector<8x128xf32>
    %693 = arith.addf %691, %692 : vector<8x128xf32>
    %694 = math.tanh %693 : vector<8x128xf32>
    %695 = arith.mulf %690, %694 : vector<8x128xf32>
    %c0_357 = arith.constant 0 : index
    %c0_358 = arith.constant 0 : index
    %696 = vector.load %arg14[%c0_357, %c0_358] : memref<8x128xf32, #tpu.memory_space<vmem>>, vector<8x128xf32>
    tpu.vector_store %arg14[%c0_357, %c0_358], %695 {strides = array<i32>} : memref<8x128xf32, #tpu.memory_space<vmem>>, vector<8x128xf32>,
    %c0_359 = arith.constant 0 : index
    %c0_360 = arith.constant 0 : index
    %697 = vector.load %arg15[%c0_359, %c0_360] : memref<8x128xf32, #tpu.memory_space<vmem>>, vector<8x128xf32>
    tpu.vector_store %arg15[%c0_359, %c0_360], %693 {strides = array<i32>} : memref<8x128xf32, #tpu.memory_space<vmem>>, vector<8x128xf32>,
    %698 = arith.index_cast %c6_i32_340 : i32 to index
    %c0_361 = arith.constant 0 : index
    %c0_362 = arith.constant 0 : index
    %699 = vector.load %arg9[%698, %c0_361, %c0_362] : memref<8x8x128xf32, #tpu.memory_space<vmem>>, vector<1x8x128xf32>
    %700 = vector.shape_cast %699 : vector<1x8x128xf32> to vector<8x128xf32>
    %701 = vector.shape_cast %695 : vector<8x128xf32> to vector<1x8x128xf32>
    tpu.vector_store %arg9[%698, %c0_361, %c0_362], %701 {strides = array<i32>} : memref<8x8x128xf32, #tpu.memory_space<vmem>>, vector<1x8x128xf32>,
    %c7_i32_363 = arith.constant 7 : i32
    %702 = arith.index_cast %c7_i32_363 : i32 to index
    %c0_364 = arith.constant 0 : index
    %c0_365 = arith.constant 0 : index
    %703 = vector.load %arg16[%702, %c0_364, %c0_365] : memref<8x8x512xf32, #tpu.memory_space<vmem>>, vector<1x8x512xf32>
    %704 = vector.shape_cast %703 : vector<1x8x512xf32> to vector<8x512xf32>
    %c0_366 = arith.constant 0 : index
    %c0_367 = arith.constant 0 : index
    %705 = vector.load %arg14[%c0_366, %c0_367] : memref<8x128xf32, #tpu.memory_space<vmem>>, vector<8x128xf32>
    %706 = arith.truncf %705 : vector<8x128xf32> to vector<8x128xbf16>
    %cst_368 = arith.constant dense<0.000000e+00> : vector<8x512xf32>
    %707 = tpu.matmul %706, %4, %cst_368 {dimension_numbers = #tpu.dot_dimension_numbers<[1], [0], [0], [1], [0, 0, 1, 1], [], []>} : vector<8x128xbf16>, vector<128x512xbf16>, vector<8x512xf32> -> vector<8x512xf32>
    %708 = arith.addf %704, %707 : vector<8x512xf32>
    %c0_369 = arith.constant 0 : index
    %c0_370 = arith.constant 0 : index
    %709 = vector.load %arg15[%c0_369, %c0_370] : memref<8x128xf32, #tpu.memory_space<vmem>>, vector<8x128xf32>
    %710 = vector.extract_strided_slice %708 {offsets = [0, 0], sizes = [8, 128], strides = [1, 1]} : vector<8x512xf32> to vector<8x128xf32>
    %cst_371 = arith.constant 5.000000e-01 : f32
    %711 = vector.broadcast %cst_371 : f32 to vector<8x128xf32>
    %712 = arith.mulf %711, %710 : vector<8x128xf32>
    %713 = math.tanh %712 : vector<8x128xf32>
    %cst_372 = arith.constant 1.000000e+00 : f32
    %714 = vector.broadcast %cst_372 : f32 to vector<8x128xf32>
    %715 = arith.addf %714, %713 : vector<8x128xf32>
    %cst_373 = arith.constant 5.000000e-01 : f32
    %716 = vector.broadcast %cst_373 : f32 to vector<8x128xf32>
    %717 = arith.mulf %716, %715 : vector<8x128xf32>
    %718 = vector.extract_strided_slice %708 {offsets = [0, 128], sizes = [8, 128], strides = [1, 1]} : vector<8x512xf32> to vector<8x128xf32>
    %cst_374 = arith.constant 5.000000e-01 : f32
    %719 = vector.broadcast %cst_374 : f32 to vector<8x128xf32>
    %720 = arith.mulf %719, %718 : vector<8x128xf32>
    %721 = math.tanh %720 : vector<8x128xf32>
    %cst_375 = arith.constant 1.000000e+00 : f32
    %722 = vector.broadcast %cst_375 : f32 to vector<8x128xf32>
    %723 = arith.addf %722, %721 : vector<8x128xf32>
    %cst_376 = arith.constant 5.000000e-01 : f32
    %724 = vector.broadcast %cst_376 : f32 to vector<8x128xf32>
    %725 = arith.mulf %724, %723 : vector<8x128xf32>
    %726 = vector.extract_strided_slice %708 {offsets = [0, 256], sizes = [8, 128], strides = [1, 1]} : vector<8x512xf32> to vector<8x128xf32>
    %727 = math.tanh %726 : vector<8x128xf32>
    %728 = vector.extract_strided_slice %708 {offsets = [0, 384], sizes = [8, 128], strides = [1, 1]} : vector<8x512xf32> to vector<8x128xf32>
    %cst_377 = arith.constant 5.000000e-01 : f32
    %729 = vector.broadcast %cst_377 : f32 to vector<8x128xf32>
    %730 = arith.mulf %729, %728 : vector<8x128xf32>
    %731 = math.tanh %730 : vector<8x128xf32>
    %cst_378 = arith.constant 1.000000e+00 : f32
    %732 = vector.broadcast %cst_378 : f32 to vector<8x128xf32>
    %733 = arith.addf %732, %731 : vector<8x128xf32>
    %cst_379 = arith.constant 5.000000e-01 : f32
    %734 = vector.broadcast %cst_379 : f32 to vector<8x128xf32>
    %735 = arith.mulf %734, %733 : vector<8x128xf32>
    %736 = arith.mulf %725, %709 : vector<8x128xf32>
    %737 = arith.mulf %717, %727 : vector<8x128xf32>
    %738 = arith.addf %736, %737 : vector<8x128xf32>
    %739 = math.tanh %738 : vector<8x128xf32>
    %740 = arith.mulf %735, %739 : vector<8x128xf32>
    %c0_380 = arith.constant 0 : index
    %c0_381 = arith.constant 0 : index
    %741 = vector.load %arg14[%c0_380, %c0_381] : memref<8x128xf32, #tpu.memory_space<vmem>>, vector<8x128xf32>
    tpu.vector_store %arg14[%c0_380, %c0_381], %740 {strides = array<i32>} : memref<8x128xf32, #tpu.memory_space<vmem>>, vector<8x128xf32>,
    %c0_382 = arith.constant 0 : index
    %c0_383 = arith.constant 0 : index
    %742 = vector.load %arg15[%c0_382, %c0_383] : memref<8x128xf32, #tpu.memory_space<vmem>>, vector<8x128xf32>
    tpu.vector_store %arg15[%c0_382, %c0_383], %738 {strides = array<i32>} : memref<8x128xf32, #tpu.memory_space<vmem>>, vector<8x128xf32>,
    %743 = arith.index_cast %c7_i32_363 : i32 to index
    %c0_384 = arith.constant 0 : index
    %c0_385 = arith.constant 0 : index
    %744 = vector.load %arg9[%743, %c0_384, %c0_385] : memref<8x8x128xf32, #tpu.memory_space<vmem>>, vector<1x8x128xf32>
    %745 = vector.shape_cast %744 : vector<1x8x128xf32> to vector<8x128xf32>
    %746 = vector.shape_cast %740 : vector<8x128xf32> to vector<1x8x128xf32>
    tpu.vector_store %arg9[%743, %c0_384, %c0_385], %746 {strides = array<i32>} : memref<8x8x128xf32, #tpu.memory_space<vmem>>, vector<1x8x128xf32>,
    %c8_i32_386 = arith.constant 8 : i32
    %c0_i32_387 = arith.constant 0 : i32
    %747 = arith.cmpi eq, %arg1, %c0_i32_387 : i32
    %748 = arith.extui %747 : i1 to i32
    %c0_i32_388 = arith.constant 0 : i32
    %749 = arith.cmpi ne, %748, %c0_i32_388 : i32
    scf.if %749 {
      %c0_389 = arith.constant 0 : index
      %c0_390 = arith.constant 0 : index
      %750 = vector.load %arg12[%c0_389, %c0_390] : memref<8x128xf32, #tpu.memory_space<vmem>>, vector<8x128xf32>
      %c0_391 = arith.constant 0 : index
      %c0_392 = arith.constant 0 : index
      %751 = vector.load %arg10[%c0_391, %c0_392] : memref<8x128xf32, #tpu.memory_space<vmem>>, vector<8x128xf32>
      tpu.vector_store %arg10[%c0_391, %c0_392], %750 {strides = array<i32>} : memref<8x128xf32, #tpu.memory_space<vmem>>, vector<8x128xf32>,
      %c0_393 = arith.constant 0 : index
      %c0_394 = arith.constant 0 : index
      %752 = vector.load %arg14[%c0_393, %c0_394] : memref<8x128xf32, #tpu.memory_space<vmem>>, vector<8x128xf32>
      %c0_395 = arith.constant 0 : index
      %c0_396 = arith.constant 0 : index
      %753 = vector.load %arg11[%c0_395, %c0_396] : memref<8x128xf32, #tpu.memory_space<vmem>>, vector<8x128xf32>
      tpu.vector_store %arg11[%c0_395, %c0_396], %752 {strides = array<i32>} : memref<8x128xf32, #tpu.memory_space<vmem>>, vector<8x128xf32>,
    } else {
    }
    return
  }
  func.func @transform_0(%arg0: i32, %arg1: i32) -> (i32, i32, i32) {
    %c0_i32 = arith.constant 0 : i32
    %c0_i32_0 = arith.constant 0 : i32
    return %arg1, %arg0, %c0_i32 : i32, i32, i32
  }
  func.func @transform_1(%arg0: i32, %arg1: i32) -> (i32, i32) {
    %c0_i32 = arith.constant 0 : i32
    %c0_i32_0 = arith.constant 0 : i32
    %c0_i32_1 = arith.constant 0 : i32
    return %c0_i32, %c0_i32_0 : i32, i32
  }
  func.func @transform_2(%arg0: i32, %arg1: i32) -> (i32, i32) {
    %c0_i32 = arith.constant 0 : i32
    %c0_i32_0 = arith.constant 0 : i32
    %c0_i32_1 = arith.constant 0 : i32
    return %c0_i32, %c0_i32_0 : i32, i32
  }
  func.func @transform_3(%arg0: i32, %arg1: i32) -> (i32, i32) {
    %c0_i32 = arith.constant 0 : i32
    %c0_i32_0 = arith.constant 0 : i32
    %c0_i32_1 = arith.constant 0 : i32
    return %c0_i32, %c0_i32_0 : i32, i32
  }
  func.func @transform_4(%arg0: i32, %arg1: i32) -> (i32, i32) {
    %c0_i32 = arith.constant 0 : i32
    %c0_i32_0 = arith.constant 0 : i32
    %c0_i32_1 = arith.constant 0 : i32
    return %c0_i32, %c0_i32_0 : i32, i32
  }
  func.func @transform_5(%arg0: i32, %arg1: i32) -> (i32, i32) {
    %c0_i32 = arith.constant 0 : i32
    %c0_i32_0 = arith.constant 0 : i32
    %c0_i32_1 = arith.constant 0 : i32
    return %c0_i32, %c0_i32_0 : i32, i32
  }
  func.func @transform_6(%arg0: i32, %arg1: i32) -> (i32, i32) {
    %c0_i32 = arith.constant 0 : i32
    %c0_i32_0 = arith.constant 0 : i32
    %c0_i32_1 = arith.constant 0 : i32
    return %c0_i32, %c0_i32_0 : i32, i32
  }
  func.func @transform_7(%arg0: i32, %arg1: i32) -> (i32, i32, i32) {
    %c0_i32 = arith.constant 0 : i32
    %c0_i32_0 = arith.constant 0 : i32
    return %arg1, %arg0, %c0_i32 : i32, i32, i32
  }
  func.func @transform_8(%arg0: i32, %arg1: i32) -> (i32, i32) {
    %c0_i32 = arith.constant 0 : i32
    %c0_i32_0 = arith.constant 0 : i32
    return %arg0, %c0_i32 : i32, i32
  }
  func.func @transform_9(%arg0: i32, %arg1: i32) -> (i32, i32) {
    %c0_i32 = arith.constant 0 : i32
    %c0_i32_0 = arith.constant 0 : i32
    return %arg0, %c0_i32 : i32, i32
  }
}

module attributes {stable_mosaic.version = 11 : i64} {
  func.func @_decoder_kernel(%arg0: i32, %arg1: i32, %arg2: memref<8x8x128xf32, #tpu.memory_space<vmem>>, %arg3: memref<8x128xf32, #tpu.memory_space<vmem>>, %arg4: memref<8x128xf32, #tpu.memory_space<vmem>>, %arg5: memref<8x128xf32, #tpu.memory_space<vmem>>, %arg6: memref<128x128xbf16, #tpu.memory_space<vmem>>, %arg7: memref<128x128xbf16, #tpu.memory_space<vmem>>, %arg8: memref<1x128xf32, #tpu.memory_space<vmem>>, %arg9: memref<128x512xbf16, #tpu.memory_space<vmem>>, %arg10: memref<128x512xbf16, #tpu.memory_space<vmem>>, %arg11: memref<128x512xbf16, #tpu.memory_space<vmem>>, %arg12: memref<1x512xf32, #tpu.memory_space<vmem>>, %arg13: memref<128x512xbf16, #tpu.memory_space<vmem>>, %arg14: memref<128x512xbf16, #tpu.memory_space<vmem>>, %arg15: memref<1x512xf32, #tpu.memory_space<vmem>>, %arg16: memref<8x128xf32, #tpu.memory_space<vmem>>, %arg17: memref<1x8x1xf32, #tpu.memory_space<vmem>>, %arg18: memref<1x8x1xf32, #tpu.memory_space<vmem>>, %arg19: memref<8x128xf32, #tpu.memory_space<vmem>>, %arg20: memref<8x128xf32, #tpu.memory_space<vmem>>) attributes {dimension_semantics = [#tpu.dimension_semantics<parallel>, #tpu.dimension_semantics<arbitrary>], iteration_bounds = array<i64: 1, 1>, scalar_prefetch = 0 : i64, scratch_operands = 4 : i64, tpu.core_type = #tpu.core_type<tc>, window_params = [{transform_indices = @transform_0, window_bounds = array<i64: 8, 8, 128>}, {transform_indices = @transform_1, window_bounds = array<i64: 8, 128>}, {transform_indices = @transform_2, window_bounds = array<i64: 8, 128>}, {transform_indices = @transform_3, window_bounds = array<i64: 8, 128>}, {pipeline_mode = #tpu.pipeline_mode<synchronous>, transform_indices = @transform_4, window_bounds = array<i64: 128, 128>}, {pipeline_mode = #tpu.pipeline_mode<synchronous>, transform_indices = @transform_5, window_bounds = array<i64: 128, 128>}, {pipeline_mode = #tpu.pipeline_mode<synchronous>, transform_indices = @transform_6, window_bounds = array<i64: 1, 128>}, {pipeline_mode = #tpu.pipeline_mode<synchronous>, transform_indices = @transform_7, window_bounds = array<i64: 128, 512>}, {pipeline_mode = #tpu.pipeline_mode<synchronous>, transform_indices = @transform_8, window_bounds = array<i64: 128, 512>}, {pipeline_mode = #tpu.pipeline_mode<synchronous>, transform_indices = @transform_9, window_bounds = array<i64: 128, 512>}, {pipeline_mode = #tpu.pipeline_mode<synchronous>, transform_indices = @transform_10, window_bounds = array<i64: 1, 512>}, {pipeline_mode = #tpu.pipeline_mode<synchronous>, transform_indices = @transform_11, window_bounds = array<i64: 128, 512>}, {pipeline_mode = #tpu.pipeline_mode<synchronous>, transform_indices = @transform_12, window_bounds = array<i64: 128, 512>}, {pipeline_mode = #tpu.pipeline_mode<synchronous>, transform_indices = @transform_13, window_bounds = array<i64: 1, 512>}, {transform_indices = @transform_14, window_bounds = array<i64: 8, 128>}]} {
    %c0_i32 = arith.constant 0 : i32
    %0 = arith.cmpi eq, %arg1, %c0_i32 : i32
    %1 = arith.extui %0 : i1 to i32
    %c0_i32_0 = arith.constant 0 : i32
    %2 = arith.cmpi ne, %1, %c0_i32_0 : i32
    scf.if %2 {
      %cst_34 = arith.constant 0xFF800000 : f32
      %49 = vector.broadcast %cst_34 : f32 to vector<1x8x1xf32>
      %c0_35 = arith.constant 0 : index
      %c0_36 = arith.constant 0 : index
      %c0_37 = arith.constant 0 : index
      %50 = vector.load %arg17[%c0_35, %c0_36, %c0_37] : memref<1x8x1xf32, #tpu.memory_space<vmem>>, vector<1x8x1xf32>
      tpu.vector_store %arg17[%c0_35, %c0_36, %c0_37], %49 {strides = array<i32>} : memref<1x8x1xf32, #tpu.memory_space<vmem>>, vector<1x8x1xf32>,
      %cst_38 = arith.constant 0.000000e+00 : f32
      %51 = vector.broadcast %cst_38 : f32 to vector<1x8x1xf32>
      %c0_39 = arith.constant 0 : index
      %c0_40 = arith.constant 0 : index
      %c0_41 = arith.constant 0 : index
      %52 = vector.load %arg18[%c0_39, %c0_40, %c0_41] : memref<1x8x1xf32, #tpu.memory_space<vmem>>, vector<1x8x1xf32>
      tpu.vector_store %arg18[%c0_39, %c0_40, %c0_41], %51 {strides = array<i32>} : memref<1x8x1xf32, #tpu.memory_space<vmem>>, vector<1x8x1xf32>,
      %cst_42 = arith.constant 0.000000e+00 : f32
      %53 = vector.broadcast %cst_42 : f32 to vector<8x128xf32>
      %c0_43 = arith.constant 0 : index
      %c0_44 = arith.constant 0 : index
      %54 = vector.load %arg19[%c0_43, %c0_44] : memref<8x128xf32, #tpu.memory_space<vmem>>, vector<8x128xf32>
      tpu.vector_store %arg19[%c0_43, %c0_44], %53 {strides = array<i32>} : memref<8x128xf32, #tpu.memory_space<vmem>>, vector<8x128xf32>,
      %c0_45 = arith.constant 0 : index
      %c0_46 = arith.constant 0 : index
      %55 = vector.load %arg5[%c0_45, %c0_46] : memref<8x128xf32, #tpu.memory_space<vmem>>, vector<8x128xf32>
      %56 = arith.truncf %55 : vector<8x128xf32> to vector<8x128xbf16>
      %c0_47 = arith.constant 0 : index
      %c0_48 = arith.constant 0 : index
      %57 = vector.load %arg6[%c0_47, %c0_48] : memref<128x128xbf16, #tpu.memory_space<vmem>>, vector<128x128xbf16>
      %cst_49 = arith.constant dense<0.000000e+00> : vector<8x128xf32>
      %58 = tpu.matmul %56, %57, %cst_49 {dimension_numbers = #tpu.dot_dimension_numbers<[1], [0], [0], [1], [0, 0, 1, 1], [], []>} : vector<8x128xbf16>, vector<128x128xbf16>, vector<8x128xf32> -> vector<8x128xf32>
      %c0_50 = arith.constant 0 : index
      %c0_51 = arith.constant 0 : index
      %59 = vector.load %arg20[%c0_50, %c0_51] : memref<8x128xf32, #tpu.memory_space<vmem>>, vector<8x128xf32>
      tpu.vector_store %arg20[%c0_50, %c0_51], %58 {strides = array<i32>} : memref<8x128xf32, #tpu.memory_space<vmem>>, vector<8x128xf32>,
    } else {
    }
    %c0 = arith.constant 0 : index
    %c0_1 = arith.constant 0 : index
    %c0_2 = arith.constant 0 : index
    %3 = vector.load %arg2[%c0, %c0_1, %c0_2] : memref<8x8x128xf32, #tpu.memory_space<vmem>>, vector<8x8x128xf32>
    %4 = vector.shape_cast %3 : vector<8x8x128xf32> to vector<64x128xf32>
    %5 = arith.truncf %4 : vector<64x128xf32> to vector<64x128xbf16>
    %c0_3 = arith.constant 0 : index
    %c0_4 = arith.constant 0 : index
    %6 = vector.load %arg7[%c0_3, %c0_4] : memref<128x128xbf16, #tpu.memory_space<vmem>>, vector<128x128xbf16>
    %cst = arith.constant dense<0.000000e+00> : vector<64x128xf32>
    %7 = tpu.matmul %5, %6, %cst {dimension_numbers = #tpu.dot_dimension_numbers<[1], [0], [0], [1], [0, 0, 1, 1], [], []>} : vector<64x128xbf16>, vector<128x128xbf16>, vector<64x128xf32> -> vector<64x128xf32>
    %8 = vector.shape_cast %7 : vector<64x128xf32> to vector<8x8x128xf32>
    %c0_5 = arith.constant 0 : index
    %c0_6 = arith.constant 0 : index
    %9 = vector.load %arg20[%c0_5, %c0_6] : memref<8x128xf32, #tpu.memory_space<vmem>>, vector<8x128xf32>
    %10 = vector.shape_cast %9 : vector<8x128xf32> to vector<1x8x128xf32>
    %11 = vector.broadcast %10 : vector<1x8x128xf32> to vector<8x8x128xf32>
    %12 = arith.addf %8, %11 : vector<8x8x128xf32>
    %13 = math.tanh %12 : vector<8x8x128xf32>
    %c0_7 = arith.constant 0 : index
    %c0_8 = arith.constant 0 : index
    %14 = vector.load %arg8[%c0_7, %c0_8] : memref<1x128xf32, #tpu.memory_space<vmem>>, vector<1x128xf32>
    %15 = vector.shape_cast %14 : vector<1x128xf32> to vector<1x1x128xf32>
    %16 = vector.broadcast %15 : vector<1x1x128xf32> to vector<8x8x128xf32>
    %17 = arith.mulf %13, %16 : vector<8x8x128xf32>
    %cst_9 = arith.constant dense<0.000000e+00> : vector<8x8xf32>
    %18 = vector.multi_reduction <add>, %17, %cst_9 [2] : vector<8x8x128xf32> to vector<8x8xf32>
    %19 = vector.shape_cast %18 : vector<8x8xf32> to vector<8x8x1xf32>
    %cst_10 = arith.constant dense<0xFF800000> : vector<8x1xf32>
    %20 = vector.multi_reduction <maximumf>, %19, %cst_10 [0] : vector<8x8x1xf32> to vector<8x1xf32>
    %21 = vector.shape_cast %20 : vector<8x1xf32> to vector<1x8x1xf32>
    %c0_11 = arith.constant 0 : index
    %c0_12 = arith.constant 0 : index
    %c0_13 = arith.constant 0 : index
    %22 = vector.load %arg17[%c0_11, %c0_12, %c0_13] : memref<1x8x1xf32, #tpu.memory_space<vmem>>, vector<1x8x1xf32>
    %23 = arith.maximumf %22, %21 : vector<1x8x1xf32>
    %c0_14 = arith.constant 0 : index
    %c0_15 = arith.constant 0 : index
    %c0_16 = arith.constant 0 : index
    %24 = vector.load %arg17[%c0_14, %c0_15, %c0_16] : memref<1x8x1xf32, #tpu.memory_space<vmem>>, vector<1x8x1xf32>
    %25 = arith.subf %24, %23 : vector<1x8x1xf32>
    %26 = math.exp %25 : vector<1x8x1xf32>
    %27 = vector.broadcast %23 : vector<1x8x1xf32> to vector<8x8x1xf32>
    %28 = arith.subf %19, %27 : vector<8x8x1xf32>
    %29 = math.exp %28 : vector<8x8x1xf32>
    %c0_17 = arith.constant 0 : index
    %c0_18 = arith.constant 0 : index
    %c0_19 = arith.constant 0 : index
    %30 = vector.load %arg18[%c0_17, %c0_18, %c0_19] : memref<1x8x1xf32, #tpu.memory_space<vmem>>, vector<1x8x1xf32>
    %31 = arith.mulf %26, %30 : vector<1x8x1xf32>
    %cst_20 = arith.constant dense<0.000000e+00> : vector<8x1xf32>
    %32 = vector.multi_reduction <add>, %29, %cst_20 [0] : vector<8x8x1xf32> to vector<8x1xf32>
    %33 = vector.shape_cast %32 : vector<8x1xf32> to vector<1x8x1xf32>
    %34 = arith.addf %31, %33 : vector<1x8x1xf32>
    %c0_21 = arith.constant 0 : index
    %c0_22 = arith.constant 0 : index
    %c0_23 = arith.constant 0 : index
    %35 = vector.load %arg18[%c0_21, %c0_22, %c0_23] : memref<1x8x1xf32, #tpu.memory_space<vmem>>, vector<1x8x1xf32>
    tpu.vector_store %arg18[%c0_21, %c0_22, %c0_23], %34 {strides = array<i32>} : memref<1x8x1xf32, #tpu.memory_space<vmem>>, vector<1x8x1xf32>,
    %36 = vector.shape_cast %26 : vector<1x8x1xf32> to vector<8x1xf32>
    %c0_24 = arith.constant 0 : index
    %c0_25 = arith.constant 0 : index
    %37 = vector.load %arg19[%c0_24, %c0_25] : memref<8x128xf32, #tpu.memory_space<vmem>>, vector<8x128xf32>
    %38 = vector.broadcast %36 : vector<8x1xf32> to vector<8x128xf32>
    %39 = arith.mulf %38, %37 : vector<8x128xf32>
    %40 = vector.broadcast %29 : vector<8x8x1xf32> to vector<8x8x128xf32>
    %41 = arith.mulf %40, %3 : vector<8x8x128xf32>
    %cst_26 = arith.constant dense<0.000000e+00> : vector<8x128xf32>
    %42 = vector.multi_reduction <add>, %41, %cst_26 [0] : vector<8x8x128xf32> to vector<8x128xf32>
    %43 = arith.addf %39, %42 : vector<8x128xf32>
    %c0_27 = arith.constant 0 : index
    %c0_28 = arith.constant 0 : index
    %44 = vector.load %arg19[%c0_27, %c0_28] : memref<8x128xf32, #tpu.memory_space<vmem>>, vector<8x128xf32>
    tpu.vector_store %arg19[%c0_27, %c0_28], %43 {strides = array<i32>} : memref<8x128xf32, #tpu.memory_space<vmem>>, vector<8x128xf32>,
    %c0_29 = arith.constant 0 : index
    %c0_30 = arith.constant 0 : index
    %c0_31 = arith.constant 0 : index
    %45 = vector.load %arg17[%c0_29, %c0_30, %c0_31] : memref<1x8x1xf32, #tpu.memory_space<vmem>>, vector<1x8x1xf32>
    tpu.vector_store %arg17[%c0_29, %c0_30, %c0_31], %23 {strides = array<i32>} : memref<1x8x1xf32, #tpu.memory_space<vmem>>, vector<1x8x1xf32>,
    %c0_i32_32 = arith.constant 0 : i32
    %46 = arith.cmpi eq, %arg1, %c0_i32_32 : i32
    %47 = arith.extui %46 : i1 to i32
    %c0_i32_33 = arith.constant 0 : i32
    %48 = arith.cmpi ne, %47, %c0_i32_33 : i32
    scf.if %48 {
      %c0_34 = arith.constant 0 : index
      %c0_35 = arith.constant 0 : index
      %c0_36 = arith.constant 0 : index
      %49 = vector.load %arg18[%c0_34, %c0_35, %c0_36] : memref<1x8x1xf32, #tpu.memory_space<vmem>>, vector<1x8x1xf32>
      %50 = tpu.reciprocal %49 {approx = true} : vector<1x8x1xf32> -> vector<1x8x1xf32>
      %c0_37 = arith.constant 0 : index
      %c0_38 = arith.constant 0 : index
      %51 = vector.load %arg19[%c0_37, %c0_38] : memref<8x128xf32, #tpu.memory_space<vmem>>, vector<8x128xf32>
      %52 = vector.shape_cast %50 : vector<1x8x1xf32> to vector<8x1xf32>
      %53 = vector.broadcast %52 : vector<8x1xf32> to vector<8x128xf32>
      %54 = arith.mulf %51, %53 : vector<8x128xf32>
      %cst_39 = arith.constant 0.000000e+00 : f32
      %55 = vector.broadcast %cst_39 : f32 to vector<8x128xf32>
      %c0_40 = arith.constant 0 : index
      %c0_41 = arith.constant 0 : index
      %56 = vector.load %arg3[%c0_40, %c0_41] : memref<8x128xf32, #tpu.memory_space<vmem>>, vector<8x128xf32>
      %57 = arith.truncf %56 : vector<8x128xf32> to vector<8x128xbf16>
      %c0_42 = arith.constant 0 : index
      %c0_43 = arith.constant 0 : index
      %58 = vector.load %arg9[%c0_42, %c0_43] : memref<128x512xbf16, #tpu.memory_space<vmem>>, vector<128x512xbf16>
      %cst_44 = arith.constant dense<0.000000e+00> : vector<8x512xf32>
      %59 = tpu.matmul %57, %58, %cst_44 {dimension_numbers = #tpu.dot_dimension_numbers<[1], [0], [0], [1], [0, 0, 1, 1], [], []>} : vector<8x128xbf16>, vector<128x512xbf16>, vector<8x512xf32> -> vector<8x512xf32>
      %60 = arith.truncf %54 : vector<8x128xf32> to vector<8x128xbf16>
      %c0_45 = arith.constant 0 : index
      %c0_46 = arith.constant 0 : index
      %61 = vector.load %arg10[%c0_45, %c0_46] : memref<128x512xbf16, #tpu.memory_space<vmem>>, vector<128x512xbf16>
      %cst_47 = arith.constant dense<0.000000e+00> : vector<8x512xf32>
      %62 = tpu.matmul %60, %61, %cst_47 {dimension_numbers = #tpu.dot_dimension_numbers<[1], [0], [0], [1], [0, 0, 1, 1], [], []>} : vector<8x128xbf16>, vector<128x512xbf16>, vector<8x512xf32> -> vector<8x512xf32>
      %63 = arith.addf %59, %62 : vector<8x512xf32>
      %c0_48 = arith.constant 0 : index
      %c0_49 = arith.constant 0 : index
      %64 = vector.load %arg4[%c0_48, %c0_49] : memref<8x128xf32, #tpu.memory_space<vmem>>, vector<8x128xf32>
      %65 = arith.truncf %64 : vector<8x128xf32> to vector<8x128xbf16>
      %c0_50 = arith.constant 0 : index
      %c0_51 = arith.constant 0 : index
      %66 = vector.load %arg11[%c0_50, %c0_51] : memref<128x512xbf16, #tpu.memory_space<vmem>>, vector<128x512xbf16>
      %cst_52 = arith.constant dense<0.000000e+00> : vector<8x512xf32>
      %67 = tpu.matmul %65, %66, %cst_52 {dimension_numbers = #tpu.dot_dimension_numbers<[1], [0], [0], [1], [0, 0, 1, 1], [], []>} : vector<8x128xbf16>, vector<128x512xbf16>, vector<8x512xf32> -> vector<8x512xf32>
      %68 = arith.addf %63, %67 : vector<8x512xf32>
      %c0_53 = arith.constant 0 : index
      %c0_54 = arith.constant 0 : index
      %69 = vector.load %arg12[%c0_53, %c0_54] : memref<1x512xf32, #tpu.memory_space<vmem>>, vector<1x512xf32>
      %70 = vector.broadcast %69 : vector<1x512xf32> to vector<8x512xf32>
      %71 = arith.addf %68, %70 : vector<8x512xf32>
      %72 = vector.extract_strided_slice %71 {offsets = [0, 0], sizes = [8, 128], strides = [1, 1]} : vector<8x512xf32> to vector<8x128xf32>
      %cst_55 = arith.constant 5.000000e-01 : f32
      %73 = vector.broadcast %cst_55 : f32 to vector<8x128xf32>
      %74 = arith.mulf %73, %72 : vector<8x128xf32>
      %75 = math.tanh %74 : vector<8x128xf32>
      %cst_56 = arith.constant 1.000000e+00 : f32
      %76 = vector.broadcast %cst_56 : f32 to vector<8x128xf32>
      %77 = arith.addf %76, %75 : vector<8x128xf32>
      %cst_57 = arith.constant 5.000000e-01 : f32
      %78 = vector.broadcast %cst_57 : f32 to vector<8x128xf32>
      %79 = arith.mulf %78, %77 : vector<8x128xf32>
      %80 = vector.extract_strided_slice %71 {offsets = [0, 128], sizes = [8, 128], strides = [1, 1]} : vector<8x512xf32> to vector<8x128xf32>
      %cst_58 = arith.constant 5.000000e-01 : f32
      %81 = vector.broadcast %cst_58 : f32 to vector<8x128xf32>
      %82 = arith.mulf %81, %80 : vector<8x128xf32>
      %83 = math.tanh %82 : vector<8x128xf32>
      %cst_59 = arith.constant 1.000000e+00 : f32
      %84 = vector.broadcast %cst_59 : f32 to vector<8x128xf32>
      %85 = arith.addf %84, %83 : vector<8x128xf32>
      %cst_60 = arith.constant 5.000000e-01 : f32
      %86 = vector.broadcast %cst_60 : f32 to vector<8x128xf32>
      %87 = arith.mulf %86, %85 : vector<8x128xf32>
      %88 = vector.extract_strided_slice %71 {offsets = [0, 256], sizes = [8, 128], strides = [1, 1]} : vector<8x512xf32> to vector<8x128xf32>
      %89 = math.tanh %88 : vector<8x128xf32>
      %90 = vector.extract_strided_slice %71 {offsets = [0, 384], sizes = [8, 128], strides = [1, 1]} : vector<8x512xf32> to vector<8x128xf32>
      %cst_61 = arith.constant 5.000000e-01 : f32
      %91 = vector.broadcast %cst_61 : f32 to vector<8x128xf32>
      %92 = arith.mulf %91, %90 : vector<8x128xf32>
      %93 = math.tanh %92 : vector<8x128xf32>
      %cst_62 = arith.constant 1.000000e+00 : f32
      %94 = vector.broadcast %cst_62 : f32 to vector<8x128xf32>
      %95 = arith.addf %94, %93 : vector<8x128xf32>
      %cst_63 = arith.constant 5.000000e-01 : f32
      %96 = vector.broadcast %cst_63 : f32 to vector<8x128xf32>
      %97 = arith.mulf %96, %95 : vector<8x128xf32>
      %98 = arith.mulf %87, %55 : vector<8x128xf32>
      %99 = arith.mulf %79, %89 : vector<8x128xf32>
      %100 = arith.addf %98, %99 : vector<8x128xf32>
      %101 = math.tanh %100 : vector<8x128xf32>
      %102 = arith.mulf %97, %101 : vector<8x128xf32>
      %103 = arith.truncf %102 : vector<8x128xf32> to vector<8x128xbf16>
      %c0_64 = arith.constant 0 : index
      %c0_65 = arith.constant 0 : index
      %104 = vector.load %arg13[%c0_64, %c0_65] : memref<128x512xbf16, #tpu.memory_space<vmem>>, vector<128x512xbf16>
      %cst_66 = arith.constant dense<0.000000e+00> : vector<8x512xf32>
      %105 = tpu.matmul %103, %104, %cst_66 {dimension_numbers = #tpu.dot_dimension_numbers<[1], [0], [0], [1], [0, 0, 1, 1], [], []>} : vector<8x128xbf16>, vector<128x512xbf16>, vector<8x512xf32> -> vector<8x512xf32>
      %c0_67 = arith.constant 0 : index
      %c0_68 = arith.constant 0 : index
      %106 = vector.load %arg5[%c0_67, %c0_68] : memref<8x128xf32, #tpu.memory_space<vmem>>, vector<8x128xf32>
      %107 = arith.truncf %106 : vector<8x128xf32> to vector<8x128xbf16>
      %c0_69 = arith.constant 0 : index
      %c0_70 = arith.constant 0 : index
      %108 = vector.load %arg14[%c0_69, %c0_70] : memref<128x512xbf16, #tpu.memory_space<vmem>>, vector<128x512xbf16>
      %cst_71 = arith.constant dense<0.000000e+00> : vector<8x512xf32>
      %109 = tpu.matmul %107, %108, %cst_71 {dimension_numbers = #tpu.dot_dimension_numbers<[1], [0], [0], [1], [0, 0, 1, 1], [], []>} : vector<8x128xbf16>, vector<128x512xbf16>, vector<8x512xf32> -> vector<8x512xf32>
      %110 = arith.addf %105, %109 : vector<8x512xf32>
      %c0_72 = arith.constant 0 : index
      %c0_73 = arith.constant 0 : index
      %111 = vector.load %arg15[%c0_72, %c0_73] : memref<1x512xf32, #tpu.memory_space<vmem>>, vector<1x512xf32>
      %112 = vector.broadcast %111 : vector<1x512xf32> to vector<8x512xf32>
      %113 = arith.addf %110, %112 : vector<8x512xf32>
      %114 = vector.extract_strided_slice %113 {offsets = [0, 0], sizes = [8, 128], strides = [1, 1]} : vector<8x512xf32> to vector<8x128xf32>
      %cst_74 = arith.constant 5.000000e-01 : f32
      %115 = vector.broadcast %cst_74 : f32 to vector<8x128xf32>
      %116 = arith.mulf %115, %114 : vector<8x128xf32>
      %117 = math.tanh %116 : vector<8x128xf32>
      %cst_75 = arith.constant 1.000000e+00 : f32
      %118 = vector.broadcast %cst_75 : f32 to vector<8x128xf32>
      %119 = arith.addf %118, %117 : vector<8x128xf32>
      %cst_76 = arith.constant 5.000000e-01 : f32
      %120 = vector.broadcast %cst_76 : f32 to vector<8x128xf32>
      %121 = arith.mulf %120, %119 : vector<8x128xf32>
      %122 = vector.extract_strided_slice %113 {offsets = [0, 128], sizes = [8, 128], strides = [1, 1]} : vector<8x512xf32> to vector<8x128xf32>
      %cst_77 = arith.constant 5.000000e-01 : f32
      %123 = vector.broadcast %cst_77 : f32 to vector<8x128xf32>
      %124 = arith.mulf %123, %122 : vector<8x128xf32>
      %125 = math.tanh %124 : vector<8x128xf32>
      %cst_78 = arith.constant 1.000000e+00 : f32
      %126 = vector.broadcast %cst_78 : f32 to vector<8x128xf32>
      %127 = arith.addf %126, %125 : vector<8x128xf32>
      %cst_79 = arith.constant 5.000000e-01 : f32
      %128 = vector.broadcast %cst_79 : f32 to vector<8x128xf32>
      %129 = arith.mulf %128, %127 : vector<8x128xf32>
      %130 = vector.extract_strided_slice %113 {offsets = [0, 256], sizes = [8, 128], strides = [1, 1]} : vector<8x512xf32> to vector<8x128xf32>
      %131 = math.tanh %130 : vector<8x128xf32>
      %132 = vector.extract_strided_slice %113 {offsets = [0, 384], sizes = [8, 128], strides = [1, 1]} : vector<8x512xf32> to vector<8x128xf32>
      %cst_80 = arith.constant 5.000000e-01 : f32
      %133 = vector.broadcast %cst_80 : f32 to vector<8x128xf32>
      %134 = arith.mulf %133, %132 : vector<8x128xf32>
      %135 = math.tanh %134 : vector<8x128xf32>
      %cst_81 = arith.constant 1.000000e+00 : f32
      %136 = vector.broadcast %cst_81 : f32 to vector<8x128xf32>
      %137 = arith.addf %136, %135 : vector<8x128xf32>
      %cst_82 = arith.constant 5.000000e-01 : f32
      %138 = vector.broadcast %cst_82 : f32 to vector<8x128xf32>
      %139 = arith.mulf %138, %137 : vector<8x128xf32>
      %140 = arith.mulf %129, %55 : vector<8x128xf32>
      %141 = arith.mulf %121, %131 : vector<8x128xf32>
      %142 = arith.addf %140, %141 : vector<8x128xf32>
      %143 = math.tanh %142 : vector<8x128xf32>
      %144 = arith.mulf %139, %143 : vector<8x128xf32>
      %c0_83 = arith.constant 0 : index
      %c0_84 = arith.constant 0 : index
      %145 = vector.load %arg16[%c0_83, %c0_84] : memref<8x128xf32, #tpu.memory_space<vmem>>, vector<8x128xf32>
      tpu.vector_store %arg16[%c0_83, %c0_84], %144 {strides = array<i32>} : memref<8x128xf32, #tpu.memory_space<vmem>>, vector<8x128xf32>,
    } else {
    }
    return
  }
  func.func @transform_0(%arg0: i32, %arg1: i32) -> (i32, i32, i32) {
    %c0_i32 = arith.constant 0 : i32
    %c0_i32_0 = arith.constant 0 : i32
    return %arg1, %arg0, %c0_i32 : i32, i32, i32
  }
  func.func @transform_1(%arg0: i32, %arg1: i32) -> (i32, i32) {
    %c0_i32 = arith.constant 0 : i32
    %c0_i32_0 = arith.constant 0 : i32
    return %arg0, %c0_i32 : i32, i32
  }
  func.func @transform_2(%arg0: i32, %arg1: i32) -> (i32, i32) {
    %c0_i32 = arith.constant 0 : i32
    %c0_i32_0 = arith.constant 0 : i32
    return %arg0, %c0_i32 : i32, i32
  }
  func.func @transform_3(%arg0: i32, %arg1: i32) -> (i32, i32) {
    %c0_i32 = arith.constant 0 : i32
    %c0_i32_0 = arith.constant 0 : i32
    return %arg0, %c0_i32 : i32, i32
  }
  func.func @transform_4(%arg0: i32, %arg1: i32) -> (i32, i32) {
    %c0_i32 = arith.constant 0 : i32
    %c0_i32_0 = arith.constant 0 : i32
    %c0_i32_1 = arith.constant 0 : i32
    return %c0_i32, %c0_i32_0 : i32, i32
  }
  func.func @transform_5(%arg0: i32, %arg1: i32) -> (i32, i32) {
    %c0_i32 = arith.constant 0 : i32
    %c0_i32_0 = arith.constant 0 : i32
    %c0_i32_1 = arith.constant 0 : i32
    return %c0_i32, %c0_i32_0 : i32, i32
  }
  func.func @transform_6(%arg0: i32, %arg1: i32) -> (i32, i32) {
    %c0_i32 = arith.constant 0 : i32
    %c0_i32_0 = arith.constant 0 : i32
    %c0_i32_1 = arith.constant 0 : i32
    return %c0_i32, %c0_i32_0 : i32, i32
  }
  func.func @transform_7(%arg0: i32, %arg1: i32) -> (i32, i32) {
    %c0_i32 = arith.constant 0 : i32
    %c0_i32_0 = arith.constant 0 : i32
    %c0_i32_1 = arith.constant 0 : i32
    return %c0_i32, %c0_i32_0 : i32, i32
  }
  func.func @transform_8(%arg0: i32, %arg1: i32) -> (i32, i32) {
    %c0_i32 = arith.constant 0 : i32
    %c0_i32_0 = arith.constant 0 : i32
    %c0_i32_1 = arith.constant 0 : i32
    return %c0_i32, %c0_i32_0 : i32, i32
  }
  func.func @transform_9(%arg0: i32, %arg1: i32) -> (i32, i32) {
    %c0_i32 = arith.constant 0 : i32
    %c0_i32_0 = arith.constant 0 : i32
    %c0_i32_1 = arith.constant 0 : i32
    return %c0_i32, %c0_i32_0 : i32, i32
  }
  func.func @transform_10(%arg0: i32, %arg1: i32) -> (i32, i32) {
    %c0_i32 = arith.constant 0 : i32
    %c0_i32_0 = arith.constant 0 : i32
    %c0_i32_1 = arith.constant 0 : i32
    return %c0_i32, %c0_i32_0 : i32, i32
  }
  func.func @transform_11(%arg0: i32, %arg1: i32) -> (i32, i32) {
    %c0_i32 = arith.constant 0 : i32
    %c0_i32_0 = arith.constant 0 : i32
    %c0_i32_1 = arith.constant 0 : i32
    return %c0_i32, %c0_i32_0 : i32, i32
  }
  func.func @transform_12(%arg0: i32, %arg1: i32) -> (i32, i32) {
    %c0_i32 = arith.constant 0 : i32
    %c0_i32_0 = arith.constant 0 : i32
    %c0_i32_1 = arith.constant 0 : i32
    return %c0_i32, %c0_i32_0 : i32, i32
  }
  func.func @transform_13(%arg0: i32, %arg1: i32) -> (i32, i32) {
    %c0_i32 = arith.constant 0 : i32
    %c0_i32_0 = arith.constant 0 : i32
    %c0_i32_1 = arith.constant 0 : i32
    return %c0_i32, %c0_i32_0 : i32, i32
  }
  func.func @transform_14(%arg0: i32, %arg1: i32) -> (i32, i32) {
    %c0_i32 = arith.constant 0 : i32
    %c0_i32_0 = arith.constant 0 : i32
    return %arg0, %c0_i32 : i32, i32
  }
}

</mosaic_0001>

<llo_original>
// kernel: seq2seq_forward.3
$region0: #{seq2seq_forward.3}
  #allocation0 [shape = 'u32[]', space=smem, size = 0x4, offset = 0x4, fixed_abs, tag = 'smem constant byte address 0x4 - core index']
  #allocation1 [shape = 'u32[144,128]{1,0:T(1,128)}', space=vmem, size = 0x12000, scoped, tag = 'internal scratch']
  #allocation2 [shape = 'f32[1,8,1]{2,1,0:T(8,128)}', space=vmem, size = 0x1000, scoped, tag = 'scratch operand']
  #allocation3 [shape = 'f32[1,8,1]{2,1,0:T(8,128)}', space=vmem, size = 0x1000, scoped, tag = 'scratch operand']
  #allocation4 [shape = 'f32[8,128]{1,0:T(8,128)}', space=vmem, size = 0x1000, scoped, tag = 'scratch operand']
  #allocation5 [shape = 'f32[8,128]{1,0:T(8,128)}', space=vmem, size = 0x1000, scoped, tag = 'scratch operand']
  %s0 = inlined_call_operand.vmem [shape: f32[8,8,128], index: 0, kind: input, shape index: {}]
  %s1 = inlined_call_operand.vmem [shape: f32[8,128], index: 1, kind: input, shape index: {}]
  %s2 = inlined_call_operand.vmem [shape: f32[8,128], index: 2, kind: input, shape index: {}]
  %s3 = inlined_call_operand.vmem [shape: f32[8,128], index: 3, kind: input, shape index: {}]
  %s4 = inlined_call_operand.vmem [shape: bf16[128,128], index: 4, kind: input, shape index: {}]
  %s5 = inlined_call_operand.vmem [shape: bf16[128,128], index: 5, kind: input, shape index: {}]
  %s6 = inlined_call_operand.vmem [shape: f32[1,128], index: 6, kind: input, shape index: {}]
  %s7 = inlined_call_operand.vmem [shape: bf16[128,512], index: 7, kind: input, shape index: {}]
  %s8 = inlined_call_operand.vmem [shape: bf16[128,512], index: 8, kind: input, shape index: {}]
  %s9 = inlined_call_operand.vmem [shape: bf16[128,512], index: 9, kind: input, shape index: {}]
  %s10 = inlined_call_operand.vmem [shape: f32[1,512], index: 10, kind: input, shape index: {}]
  %s11 = inlined_call_operand.vmem [shape: bf16[128,512], index: 11, kind: input, shape index: {}]
  %s12 = inlined_call_operand.hbm [shape: bf16[128,512], index: 12, kind: input, shape index: {}]
  %s13 = inlined_call_operand.vmem [shape: f32[1,512], index: 13, kind: input, shape index: {}]
  %s14 = inlined_call_operand.vmem [shape: f32[8,128], index: 14, kind: output, shape index: {}]
  %s15 = sld [smem:[#allocation0]]
  $region78: #{seq2seq_forward.3} parent=0
    _
  %s17 = ssub.s32 1, %s15
  %s18 = scalar_select 0, %s17, %s15
  $region1: #{seq2seq_forward.3} parent=0
    #allocation6 [shape = 'u8[131072]{0}', space=vmem, size = 0x20000, scoped, tag = 'input window, operand 12, single buffered']
    #allocation7 [shape = 's32[1]{0}', space=sflag, size = 0x4, scoped, tag = 'scoped memory for seq2seq_forward.3']
    %19 = vsyncpa [#allocation7], 0
    // Predicated region
    $region2: #{seq2seq_forward.3} parent=1 // pred_check
      _
    $region3: #{seq2seq_forward.3} parent=1 // pred_check_branch
      %21 = sbr.rel (0) target = $region5
    $region4: #{seq2seq_forward.3} parent=1 // pred_region
      _
    $region5: #{seq2seq_forward.3} parent=1 // pred_fallthru
      _
    // Predicated region
    $region6: #{seq2seq_forward.3} parent=1 // pred_check
      _
    $region7: #{seq2seq_forward.3} parent=1 // pred_check_branch
      %23 = sbr.rel (0) target = $region9
    $region8: #{seq2seq_forward.3} parent=1 // pred_region
      _
    $region9: #{seq2seq_forward.3} parent=1 // pred_fallthru
      _
    // Predicated region
    $region10: #{seq2seq_forward.3} parent=1 // pred_check
      _
    $region11: #{seq2seq_forward.3} parent=1 // pred_check_branch
      %25 = sbr.rel (0) target = $region13
    $region12: #{seq2seq_forward.3} parent=1 // pred_region
      _
    $region13: #{seq2seq_forward.3} parent=1 // pred_fallthru
      _
    // Predicated region
    $region14: #{seq2seq_forward.3} parent=1 // pred_check
      _
    $region15: #{seq2seq_forward.3} parent=1 // pred_check_branch
      %27 = sbr.rel (0) target = $region17
    $region16: #{seq2seq_forward.3} parent=1 // pred_region
      _
    $region17: #{seq2seq_forward.3} parent=1 // pred_fallthru
      _
    // Predicated region
    $region18: #{seq2seq_forward.3} parent=1 // pred_check
      _
    $region19: #{seq2seq_forward.3} parent=1 // pred_check_branch
      %29 = sbr.rel (0) target = $region21
    $region20: #{seq2seq_forward.3} parent=1 // pred_region
      _
    $region21: #{seq2seq_forward.3} parent=1 // pred_fallthru
      _
    // Predicated region
    $region22: #{seq2seq_forward.3} parent=1 // pred_check
      _
    $region23: #{seq2seq_forward.3} parent=1 // pred_check_branch
      %31 = sbr.rel (0) target = $region25
    $region24: #{seq2seq_forward.3} parent=1 // pred_region
      _
    $region25: #{seq2seq_forward.3} parent=1 // pred_fallthru
      _
    // Predicated region
    $region26: #{seq2seq_forward.3} parent=1 // pred_check
      _
    $region27: #{seq2seq_forward.3} parent=1 // pred_check_branch
      %33 = sbr.rel (0) target = $region29
    $region28: #{seq2seq_forward.3} parent=1 // pred_region
      _
    $region29: #{seq2seq_forward.3} parent=1 // pred_fallthru
      _
    // Predicated region
    $region30: #{seq2seq_forward.3} parent=1 // pred_check
      _
    $region31: #{seq2seq_forward.3} parent=1 // pred_check_branch
      %35 = sbr.rel (0) target = $region33
    $region32: #{seq2seq_forward.3} parent=1 // pred_region
      _
    $region33: #{seq2seq_forward.3} parent=1 // pred_fallthru
      _
    // Predicated region
    $region34: #{seq2seq_forward.3} parent=1 // pred_check
      _
    $region35: #{seq2seq_forward.3} parent=1 // pred_check_branch
      %37 = sbr.rel (0) target = $region37
    $region36: #{seq2seq_forward.3} parent=1 // pred_region
      _
    $region37: #{seq2seq_forward.3} parent=1 // pred_fallthru
      _
    // Predicated region
    $region38: #{seq2seq_forward.3} parent=1 // pred_check
      _
    $region39: #{seq2seq_forward.3} parent=1 // pred_check_branch
      %39 = sbr.rel (0) target = $region41
    $region40: #{seq2seq_forward.3} parent=1 // pred_region
      _
    $region41: #{seq2seq_forward.3} parent=1 // pred_fallthru
      _
    // Predicated region
    $region42: #{seq2seq_forward.3} parent=1 // pred_check
      _
    $region43: #{seq2seq_forward.3} parent=1 // pred_check_branch
      %41 = sbr.rel (0) target = $region45
    $region44: #{seq2seq_forward.3} parent=1 // pred_region
      _
    $region45: #{seq2seq_forward.3} parent=1 // pred_fallthru
      _
    // Predicated region
    $region46: #{seq2seq_forward.3} parent=1 // pred_check
      _
    $region47: #{seq2seq_forward.3} parent=1 // pred_check_branch
      %43 = sbr.rel (0) target = $region49
    $region48: #{seq2seq_forward.3} parent=1 // pred_region
      _
    $region49: #{seq2seq_forward.3} parent=1 // pred_fallthru
      _
    // Predicated region
    $region50: #{seq2seq_forward.3} parent=1 // pred_check
      _
    $region51: #{seq2seq_forward.3} parent=1 // pred_check_branch
      %45 = sbr.rel (0) target = $region53
    $region52: #{seq2seq_forward.3} parent=1 // pred_region
      %s47 = ssub.s32 4096, 4096
      %48 = vsyncadd [#allocation7], %s47
      %s49 = sshll.u32 [#allocation6], 4
      %s50 = int_to_ptr.vmem [resolvable:$true] %s49
      %55 = dma.hbm_to_vmem [thread:$0]  %s12, 4096, %s50, [#allocation7], 256, 256, 16
    $region53: #{seq2seq_forward.3} parent=1 // pred_fallthru
      _
    // Predicated region
    $region54: #{seq2seq_forward.3} parent=1 // pred_check
      _
    $region55: #{seq2seq_forward.3} parent=1 // pred_check_branch
      %57 = sbr.rel (0) target = $region57
    $region56: #{seq2seq_forward.3} parent=1 // pred_region
      _
    $region57: #{seq2seq_forward.3} parent=1 // pred_fallthru
      _
    // Predicated region
    $region58: #{seq2seq_forward.3} parent=1 // pred_check
      _
    $region59: #{seq2seq_forward.3} parent=1 // pred_check_branch
      %59 = sbr.rel (0) target = $region61
    $region60: #{seq2seq_forward.3} parent=1 // pred_region
      %60 = dma.done [#allocation7], 4096
    $region61: #{seq2seq_forward.3} parent=1 // pred_fallthru
      _
    %p62 = scmp.eq.s32.totalorder 0, 0
    // Predicated region
    $region62: #{seq2seq_forward.3} parent=1 // pred_check
      %p63 = pneg %p62
    $region63: #{seq2seq_forward.3} parent=1 // pred_check_branch
      %65 = sbr.rel (%p63) target = $region65
    $region64: #{seq2seq_forward.3} parent=1 // pred_region
      %vm66 = vcmask 7168
      %67 = vst.msk [vmem:[#allocation2] sm:$0xff] %vm66, -inf
      %68 = vst.msk [vmem:[#allocation3] sm:$0xff] %vm66, 0.0
      %69 = vst [vmem:[#allocation4] sm:$0xff] 0.0
      %v70 = vld [vmem:[%s3] sm:$0xff]
      %v71 = vpack.c.bf16 %v70, %v70
      %v72 = vld [vmem:[%s4] sm:$0xf]
      %v73 = vld [vmem:[%s4 + $0x4] sm:$0xf]
      %v74 = vld [vmem:[%s4 + $0x8] sm:$0xf]
      %v75 = vld [vmem:[%s4 + $0xc] sm:$0xf]
      %v76 = vld [vmem:[%s4 + $0x10] sm:$0xf]
      %v77 = vld [vmem:[%s4 + $0x14] sm:$0xf]
      %v78 = vld [vmem:[%s4 + $0x18] sm:$0xf]
      %v79 = vld [vmem:[%s4 + $0x1c] sm:$0xf]
      %v80 = vld [vmem:[%s4 + $0x20] sm:$0xf]
      %v81 = vld [vmem:[%s4 + $0x24] sm:$0xf]
      %v82 = vld [vmem:[%s4 + $0x28] sm:$0xf]
      %v83 = vld [vmem:[%s4 + $0x2c] sm:$0xf]
      %v84 = vld [vmem:[%s4 + $0x30] sm:$0xf]
      %v85 = vld [vmem:[%s4 + $0x34] sm:$0xf]
      %v86 = vld [vmem:[%s4 + $0x38] sm:$0xf]
      %v87 = vld [vmem:[%s4 + $0x3c] sm:$0xf]
      %v104 = vunpack.c.l.b16 %v72
      %v105 = vunpack.c.l.b16 %v73
      %v106 = vunpack.c.l.b16 %v74
      %v107 = vunpack.c.l.b16 %v75
      %v108 = vunpack.c.l.b16 %v76
      %v109 = vunpack.c.l.b16 %v77
      %v110 = vunpack.c.l.b16 %v78
      %v111 = vunpack.c.l.b16 %v79
      %v112 = vunpack.c.l.b16 %v80
      %v113 = vunpack.c.l.b16 %v81
      %v114 = vunpack.c.l.b16 %v82
      %v115 = vunpack.c.l.b16 %v83
      %v116 = vunpack.c.l.b16 %v84
      %v117 = vunpack.c.l.b16 %v85
      %v118 = vunpack.c.l.b16 %v86
      %v119 = vunpack.c.l.b16 %v87
      %v120 = vpack.c.b16 %v105, %v104
      %v121 = vpack.c.b16 %v107, %v106
      %v122 = vpack.c.b16 %v109, %v108
      %v123 = vpack.c.b16 %v111, %v110
      %v124 = vpack.c.b16 %v113, %v112
      %v125 = vpack.c.b16 %v115, %v114
      %v126 = vpack.c.b16 %v117, %v116
      %v127 = vpack.c.b16 %v119, %v118
      %136 = vmatprep.subr.bf16.mxu0 0
      %137 = vmatpush1.bf16.msra.mxu0 %v127
      %138 = vmatprep.subr.bf16.mxu0 0
      %139 = vmatpush1.bf16.msra.mxu0 %v126
      %140 = vmatprep.subr.bf16.mxu0 0
      %141 = vmatpush1.bf16.msra.mxu0 %v125
      %142 = vmatprep.subr.bf16.mxu0 0
      %143 = vmatpush1.bf16.msra.mxu0 %v124
      %144 = vmatprep.subr.bf16.mxu0 0
      %145 = vmatpush1.bf16.msra.mxu0 %v123
      %146 = vmatprep.subr.bf16.mxu0 0
      %147 = vmatpush1.bf16.msra.mxu0 %v122
      %148 = vmatprep.subr.bf16.mxu0 0
      %149 = vmatpush1.bf16.msra.mxu0 %v121
      %150 = vmatprep.subr.bf16.mxu0 0
      %151 = vmatpush1.bf16.msra.mxu0 %v120
      %152 = vmatprep.subr.bf16.mxu0 0
      %153 = vmatpush2.bf16.msra.mxu0 0
      %154 = vmatprep.subr.bf16.mxu0 0
      %155 = vmatpush2.bf16.msra.mxu0 0
      %156 = vmatprep.subr.bf16.mxu0 0
      %157 = vmatpush2.bf16.msra.mxu0 0
      %158 = vmatprep.subr.bf16.mxu0 0
      %159 = vmatpush2.bf16.msra.mxu0 0
      %160 = vmatprep.subr.bf16.mxu0 0
      %161 = vmatpush2.bf16.msra.mxu0 0
      %162 = vmatprep.subr.bf16.mxu0 0
      %163 = vmatpush2.bf16.msra.mxu0 0
      %164 = vmatprep.subr.bf16.mxu0 0
      %165 = vmatpush2.bf16.msra.mxu0 0
      %166 = vmatprep.subr.bf16.mxu0 0
      %167 = vmatpush2.bf16.msra.mxu0 0
      %168 = vmatprep.mubr.bf16.mxu0 0
      %169 = vmatmul.mubr.bf16.gmra.mxu0 %v71
      %v170 = vpop.f32.mrf.mxu0
      %v171 = vadd.f32 0.0, %v170
      %v172 = vpop.f32.mrf.mxu0
      %v173 = vpop.f32.mrf.mxu0
      %v174 = vpop.f32.mrf.mxu0
      %175 = vdwg.mxu0
      %176 = vst [vmem:[#allocation5] sm:$0xff] %v171
    $region65: #{seq2seq_forward.3} parent=1 // pred_fallthru
      _
    %v177 = vld [vmem:[%s0] sm:$0xff]
    %v178 = vld [vmem:[%s0 + $0x8] sm:$0xff]
    %v179 = vld [vmem:[%s0 + $0x10] sm:$0xff]
    %v180 = vld [vmem:[%s0 + $0x18] sm:$0xff]
    %v181 = vld [vmem:[%s0 + $0x20] sm:$0xff]
    %v182 = vld [vmem:[%s0 + $0x28] sm:$0xff]
    %v183 = vld [vmem:[%s0 + $0x30] sm:$0xff]
    %v184 = vld [vmem:[%s0 + $0x38] sm:$0xff]
    %v185 = vpack.c.bf16 %v178, %v177
    %v186 = vpack.c.bf16 %v180, %v179
    %v187 = vpack.c.bf16 %v182, %v181
    %v188 = vpack.c.bf16 %v184, %v183
    %v189 = vld [vmem:[%s5] sm:$0xf]
    %v190 = vld [vmem:[%s5 + $0x4] sm:$0xf]
    %v191 = vld [vmem:[%s5 + $0x8] sm:$0xf]
    %v192 = vld [vmem:[%s5 + $0xc] sm:$0xf]
    %v193 = vld [vmem:[%s5 + $0x10] sm:$0xf]
    %v194 = vld [vmem:[%s5 + $0x14] sm:$0xf]
    %v195 = vld [vmem:[%s5 + $0x18] sm:$0xf]
    %v196 = vld [vmem:[%s5 + $0x1c] sm:$0xf]
    %v197 = vld [vmem:[%s5 + $0x20] sm:$0xf]
    %v198 = vld [vmem:[%s5 + $0x24] sm:$0xf]
    %v199 = vld [vmem:[%s5 + $0x28] sm:$0xf]
    %v200 = vld [vmem:[%s5 + $0x2c] sm:$0xf]
    %v201 = vld [vmem:[%s5 + $0x30] sm:$0xf]
    %v202 = vld [vmem:[%s5 + $0x34] sm:$0xf]
    %v203 = vld [vmem:[%s5 + $0x38] sm:$0xf]
    %v204 = vld [vmem:[%s5 + $0x3c] sm:$0xf]
    %v221 = vunpack.c.l.b16 %v189
    %v222 = vunpack.c.l.b16 %v190
    %v223 = vunpack.c.l.b16 %v191
    %v224 = vunpack.c.l.b16 %v192
    %v225 = vunpack.c.l.b16 %v193
    %v226 = vunpack.c.l.b16 %v194
    %v227 = vunpack.c.l.b16 %v195
    %v228 = vunpack.c.l.b16 %v196
    %v229 = vunpack.c.l.b16 %v197
    %v230 = vunpack.c.l.b16 %v198
    %v231 = vunpack.c.l.b16 %v199
    %v232 = vunpack.c.l.b16 %v200
    %v233 = vunpack.c.l.b16 %v201
    %v234 = vunpack.c.l.b16 %v202
    %v235 = vunpack.c.l.b16 %v203
    %v236 = vunpack.c.l.b16 %v204
    %v237 = vpack.c.b16 %v222, %v221
    %v238 = vpack.c.b16 %v224, %v223
    %v239 = vpack.c.b16 %v226, %v225
    %v240 = vpack.c.b16 %v228, %v227
    %v241 = vpack.c.b16 %v230, %v229
    %v242 = vpack.c.b16 %v232, %v231
    %v243 = vpack.c.b16 %v234, %v233
    %v244 = vpack.c.b16 %v236, %v235
    %253 = vmatprep.subr.bf16.mxu0 0
    %254 = vmatpush1.bf16.msra.mxu0 %v244
    %255 = vmatprep.subr.bf16.mxu0 0
    %256 = vmatpush1.bf16.msra.mxu0 %v243
    %257 = vmatprep.subr.bf16.mxu0 0
    %258 = vmatpush1.bf16.msra.mxu0 %v242
    %259 = vmatprep.subr.bf16.mxu0 0
    %260 = vmatpush1.bf16.msra.mxu0 %v241
    %261 = vmatprep.subr.bf16.mxu0 0
    %262 = vmatpush1.bf16.msra.mxu0 %v240
    %263 = vmatprep.subr.bf16.mxu0 0
    %264 = vmatpush1.bf16.msra.mxu0 %v239
    %265 = vmatprep.subr.bf16.mxu0 0
    %266 = vmatpush1.bf16.msra.mxu0 %v238
    %267 = vmatprep.subr.bf16.mxu0 0
    %268 = vmatpush1.bf16.msra.mxu0 %v237
    %269 = vmatprep.subr.bf16.mxu0 0
    %270 = vmatpush2.bf16.msra.mxu0 0
    %271 = vmatprep.subr.bf16.mxu0 0
    %272 = vmatpush2.bf16.msra.mxu0 0
    %273 = vmatprep.subr.bf16.mxu0 0
    %274 = vmatpush2.bf16.msra.mxu0 0
    %275 = vmatprep.subr.bf16.mxu0 0
    %276 = vmatpush2.bf16.msra.mxu0 0
    %277 = vmatprep.subr.bf16.mxu0 0
    %278 = vmatpush2.bf16.msra.mxu0 0
    %279 = vmatprep.subr.bf16.mxu0 0
    %280 = vmatpush2.bf16.msra.mxu0 0
    %281 = vmatprep.subr.bf16.mxu0 0
    %282 = vmatpush2.bf16.msra.mxu0 0
    %283 = vmatprep.subr.bf16.mxu0 0
    %284 = vmatpush2.bf16.msra.mxu0 0
    %285 = vmatprep.mubr.bf16.mxu0 0
    %286 = vmatmul.mubr.bf16.gmra.mxu0 %v185
    %v287 = vpop.f32.mrf.mxu0
    %v288 = vadd.f32 0.0, %v287
    %v289 = vpop.f32.mrf.mxu0
    %v290 = vpop.f32.mrf.mxu0
    %v291 = vadd.f32 0.0, %v290
    %v292 = vpop.f32.mrf.mxu0
    %293 = vmatprep.mubr.bf16.mxu0 0
    %294 = vmatmul.mubr.bf16.gmra.mxu0 %v186
    %v295 = vpop.f32.mrf.mxu0
    %v296 = vadd.f32 0.0, %v295
    %v297 = vpop.f32.mrf.mxu0
    %v298 = vpop.f32.mrf.mxu0
    %v299 = vadd.f32 0.0, %v298
    %v300 = vpop.f32.mrf.mxu0
    %301 = vmatprep.mubr.bf16.mxu0 0
    %302 = vmatmul.mubr.bf16.gmra.mxu0 %v187
    %v303 = vpop.f32.mrf.mxu0
    %v304 = vadd.f32 0.0, %v303
    %v305 = vpop.f32.mrf.mxu0
    %v306 = vpop.f32.mrf.mxu0
    %v307 = vadd.f32 0.0, %v306
    %v308 = vpop.f32.mrf.mxu0
    %309 = vmatprep.mubr.bf16.mxu0 0
    %310 = vmatmul.mubr.bf16.gmra.mxu0 %v188
    %v311 = vpop.f32.mrf.mxu0
    %v312 = vadd.f32 0.0, %v311
    %v313 = vpop.f32.mrf.mxu0
    %v314 = vpop.f32.mrf.mxu0
    %v315 = vadd.f32 0.0, %v314
    %v316 = vpop.f32.mrf.mxu0
    %317 = vdwg.mxu0
    %v318 = vld [vmem:[#allocation5] sm:$0xff]
    %v319 = vadd.f32 %v288, %v318
    %v320 = vadd.f32 %v291, %v318
    %v321 = vadd.f32 %v296, %v318
    %v322 = vadd.f32 %v299, %v318
    %v323 = vadd.f32 %v304, %v318
    %v324 = vadd.f32 %v307, %v318
    %v325 = vadd.f32 %v312, %v318
    %v326 = vadd.f32 %v315, %v318
    %v327 = vtanh.pop %v319
    %v328 = vtanh.pop %v320
    %v329 = vtanh.pop %v321
    %v330 = vtanh.pop %v322
    %v331 = vtanh.pop %v323
    %v332 = vtanh.pop %v324
    %v333 = vtanh.pop %v325
    %v334 = vtanh.pop %v326
    %v335 = vld [vmem:[%s6] sm:$0x1]
    %v337 = vlaneseq
    %v338 = vshrl.u32 %v337, 7
    %v339 = vsub.s32 0, %v338
    %v340 = vrot.slane %v335, %v339
    %v342 = vmul.f32 %v327, %v340
    %v343 = vmul.f32 %v328, %v340
    %v344 = vmul.f32 %v329, %v340
    %v345 = vmul.f32 %v330, %v340
    %v346 = vmul.f32 %v331, %v340
    %v347 = vmul.f32 %v332, %v340
    %v348 = vmul.f32 %v333, %v340
    %v349 = vmul.f32 %v334, %v340
    %350 = vadd.xlane.f32.xlu0 %v342
    %v351 = vpop.xlane.xlu0 %350
    %352 = vadd.xlane.f32.xlu0 %v343
    %v353 = vpop.xlane.xlu0 %352
    %354 = vadd.xlane.f32.xlu0 %v344
    %v355 = vpop.xlane.xlu0 %354
    %356 = vadd.xlane.f32.xlu0 %v345
    %v357 = vpop.xlane.xlu0 %356
    %358 = vadd.xlane.f32.xlu0 %v346
    %v359 = vpop.xlane.xlu0 %358
    %360 = vadd.xlane.f32.xlu0 %v347
    %v361 = vpop.xlane.xlu0 %360
    %362 = vadd.xlane.f32.xlu0 %v348
    %v363 = vpop.xlane.xlu0 %362
    %364 = vadd.xlane.f32.xlu0 %v349
    %v365 = vpop.xlane.xlu0 %364
    %v366 = vmax.f32 %v351, %v359
    %v367 = vmax.f32 %v353, %v361
    %v368 = vmax.f32 %v355, %v363
    %v369 = vmax.f32 %v357, %v365
    %v370 = vmax.f32 %v366, %v367
    %v371 = vmax.f32 %v368, %v369
    %v372 = vmax.f32 %v370, %v371
    %v373 = vld [vmem:[#allocation2] sm:$0xff]
    %v374 = vmax.f32 %v373, %v372
    %v375 = vsub.f32 %v373, %v374
    %v376 = vmul.f32 %v375, 1.442695
    %v377 = vpow.pop %v376
    %v378 = vsub.f32 %v351, %v374
    %v379 = vsub.f32 %v353, %v374
    %v380 = vsub.f32 %v355, %v374
    %v381 = vsub.f32 %v357, %v374
    %v382 = vsub.f32 %v359, %v374
    %v383 = vsub.f32 %v361, %v374
    %v384 = vsub.f32 %v363, %v374
    %v385 = vsub.f32 %v365, %v374
    %v386 = vmul.f32 %v378, 1.442695
    %v387 = vpow.pop %v386
    %v388 = vmul.f32 %v379, 1.442695
    %v389 = vpow.pop %v388
    %v390 = vmul.f32 %v380, 1.442695
    %v391 = vpow.pop %v390
    %v392 = vmul.f32 %v381, 1.442695
    %v393 = vpow.pop %v392
    %v394 = vmul.f32 %v382, 1.442695
    %v395 = vpow.pop %v394
    %v396 = vmul.f32 %v383, 1.442695
    %v397 = vpow.pop %v396
    %v398 = vmul.f32 %v384, 1.442695
    %v399 = vpow.pop %v398
    %v400 = vmul.f32 %v385, 1.442695
    %v401 = vpow.pop %v400
    %v402 = vld [vmem:[#allocation3] sm:$0xff]
    %v403 = vmul.f32 %v377, %v402
    %vm404 = vcmask 7168
    %v405 = vsel %vm404, %v387, 0.0
    %v406 = vsel %vm404, %v389, 0.0
    %v407 = vadd.f32 %v405, %v406
    %v408 = vsel %vm404, %v391, 0.0
    %v409 = vadd.f32 %v407, %v408
    %v410 = vsel %vm404, %v393, 0.0
    %v411 = vadd.f32 %v409, %v410
    %v412 = vsel %vm404, %v395, 0.0
    %v413 = vadd.f32 %v411, %v412
    %v414 = vsel %vm404, %v397, 0.0
    %v415 = vadd.f32 %v413, %v414
    %v416 = vsel %vm404, %v399, 0.0
    %v417 = vadd.f32 %v415, %v416
    %v418 = vsel %vm404, %v401, 0.0
    %v419 = vadd.f32 %v417, %v418
    %v420 = vadd.f32 %v403, %v419
    %421 = vst.msk [vmem:[#allocation3] sm:$0xff] %vm404, %v420
    %v422 = vld [vmem:[#allocation4] sm:$0xff]
    %424 = vset.pattern.permute.xlu0 0
    %425 = vperm.xlu0 %424, %v377
    %v426 = vpop.permute.xlu0 %425
    %v428 = vmul.f32 %v426, %v422
    %430 = vset.pattern.permute.xlu0 0
    %431 = vperm.xlu0 %430, %v387
    %v432 = vpop.permute.xlu0 %431
    %435 = vset.pattern.permute.xlu0 0
    %436 = vperm.xlu0 %435, %v389
    %v437 = vpop.permute.xlu0 %436
    %440 = vset.pattern.permute.xlu0 0
    %441 = vperm.xlu0 %440, %v391
    %v442 = vpop.permute.xlu0 %441
    %445 = vset.pattern.permute.xlu0 0
    %446 = vperm.xlu0 %445, %v393
    %v447 = vpop.permute.xlu0 %446
    %450 = vset.pattern.permute.xlu0 0
    %451 = vperm.xlu0 %450, %v395
    %v452 = vpop.permute.xlu0 %451
    %455 = vset.pattern.permute.xlu0 0
    %456 = vperm.xlu0 %455, %v397
    %v457 = vpop.permute.xlu0 %456
    %460 = vset.pattern.permute.xlu0 0
    %461 = vperm.xlu0 %460, %v399
    %v462 = vpop.permute.xlu0 %461
    %465 = vset.pattern.permute.xlu0 0
    %466 = vperm.xlu0 %465, %v401
    %v467 = vpop.permute.xlu0 %466
    %v469 = vmul.f32 %v432, %v177
    %v470 = vmul.f32 %v437, %v178
    %v471 = vmul.f32 %v442, %v179
    %v472 = vmul.f32 %v447, %v180
    %v473 = vmul.f32 %v452, %v181
    %v474 = vmul.f32 %v457, %v182
    %v475 = vmul.f32 %v462, %v183
    %v476 = vmul.f32 %v467, %v184
    %v477 = vadd.f32 %v469, %v470
    %v478 = vadd.f32 %v477, %v471
    %v479 = vadd.f32 %v478, %v472
    %v480 = vadd.f32 %v479, %v473
    %v481 = vadd.f32 %v480, %v474
    %v482 = vadd.f32 %v481, %v475
    %v483 = vadd.f32 %v482, %v476
    %v484 = vadd.f32 %v428, %v483
    %485 = vst [vmem:[#allocation4] sm:$0xff] %v484
    %486 = vst.msk [vmem:[#allocation2] sm:$0xff] %vm404, %v374
    // Predicated region
    $region66: #{seq2seq_forward.3} parent=1 // pred_check
      %p487 = pneg %p62
    $region67: #{seq2seq_forward.3} parent=1 // pred_check_branch
      %489 = sbr.rel (%p487) target = $region69
    $region68: #{seq2seq_forward.3} parent=1 // pred_region
      %v490 = vld [vmem:[#allocation3] sm:$0xff]
      %v491 = vrcp.pop %v490
      %v492 = vld [vmem:[#allocation4] sm:$0xff]
      %494 = vset.pattern.permute.xlu0 0
      %495 = vperm.xlu0 %494, %v491
      %v496 = vpop.permute.xlu0 %495
      %v498 = vmul.f32 %v492, %v496
      %v499 = vld [vmem:[%s1] sm:$0xff]
      %v500 = vpack.c.bf16 %v499, %v499
      %v501 = vld [vmem:[%s7] sm:$0xff]
      %v502 = vld [vmem:[%s7 + $0x8] sm:$0xff]
      %v503 = vld [vmem:[%s7 + $0x10] sm:$0xff]
      %v504 = vld [vmem:[%s7 + $0x18] sm:$0xff]
      %v505 = vld [vmem:[%s7 + $0x20] sm:$0xff]
      %v506 = vld [vmem:[%s7 + $0x28] sm:$0xff]
      %v507 = vld [vmem:[%s7 + $0x30] sm:$0xff]
      %v508 = vld [vmem:[%s7 + $0x38] sm:$0xff]
      %v509 = vld [vmem:[%s7 + $0x40] sm:$0xff]
      %v510 = vld [vmem:[%s7 + $0x48] sm:$0xff]
      %v511 = vld [vmem:[%s7 + $0x50] sm:$0xff]
      %v512 = vld [vmem:[%s7 + $0x58] sm:$0xff]
      %v513 = vld [vmem:[%s7 + $0x60] sm:$0xff]
      %v514 = vld [vmem:[%s7 + $0x68] sm:$0xff]
      %v515 = vld [vmem:[%s7 + $0x70] sm:$0xff]
      %v516 = vld [vmem:[%s7 + $0x78] sm:$0xff]
      %v517 = vld [vmem:[%s7 + $0x80] sm:$0xff]
      %v518 = vld [vmem:[%s7 + $0x88] sm:$0xff]
      %v519 = vld [vmem:[%s7 + $0x90] sm:$0xff]
      %v520 = vld [vmem:[%s7 + $0x98] sm:$0xff]
      %v521 = vld [vmem:[%s7 + $0xa0] sm:$0xff]
      %v522 = vld [vmem:[%s7 + $0xa8] sm:$0xff]
      %v523 = vld [vmem:[%s7 + $0xb0] sm:$0xff]
      %v524 = vld [vmem:[%s7 + $0xb8] sm:$0xff]
      %v525 = vld [vmem:[%s7 + $0xc0] sm:$0xff]
      %v526 = vld [vmem:[%s7 + $0xc8] sm:$0xff]
      %v527 = vld [vmem:[%s7 + $0xd0] sm:$0xff]
      %v528 = vld [vmem:[%s7 + $0xd8] sm:$0xff]
      %v529 = vld [vmem:[%s7 + $0xe0] sm:$0xff]
      %v530 = vld [vmem:[%s7 + $0xe8] sm:$0xff]
      %v531 = vld [vmem:[%s7 + $0xf0] sm:$0xff]
      %v532 = vld [vmem:[%s7 + $0xf8] sm:$0xff]
      %v533 = vpack.c.bf16 %v498, %v498
      %v534 = vld [vmem:[%s8] sm:$0xff]
      %v535 = vld [vmem:[%s8 + $0x8] sm:$0xff]
      %v536 = vld [vmem:[%s8 + $0x10] sm:$0xff]
      %v537 = vld [vmem:[%s8 + $0x18] sm:$0xff]
      %v538 = vld [vmem:[%s8 + $0x20] sm:$0xff]
      %v539 = vld [vmem:[%s8 + $0x28] sm:$0xff]
      %v540 = vld [vmem:[%s8 + $0x30] sm:$0xff]
      %v541 = vld [vmem:[%s8 + $0x38] sm:$0xff]
      %v542 = vld [vmem:[%s8 + $0x40] sm:$0xff]
      %v543 = vld [vmem:[%s8 + $0x48] sm:$0xff]
      %v544 = vld [vmem:[%s8 + $0x50] sm:$0xff]
      %v545 = vld [vmem:[%s8 + $0x58] sm:$0xff]
      %v546 = vld [vmem:[%s8 + $0x60] sm:$0xff]
      %v547 = vld [vmem:[%s8 + $0x68] sm:$0xff]
      %v548 = vld [vmem:[%s8 + $0x70] sm:$0xff]
      %v549 = vld [vmem:[%s8 + $0x78] sm:$0xff]
      %v550 = vld [vmem:[%s8 + $0x80] sm:$0xff]
      %v551 = vld [vmem:[%s8 + $0x88] sm:$0xff]
      %v552 = vld [vmem:[%s8 + $0x90] sm:$0xff]
      %v553 = vld [vmem:[%s8 + $0x98] sm:$0xff]
      %v554 = vld [vmem:[%s8 + $0xa0] sm:$0xff]
      %v555 = vld [vmem:[%s8 + $0xa8] sm:$0xff]
      %v556 = vld [vmem:[%s8 + $0xb0] sm:$0xff]
      %v557 = vld [vmem:[%s8 + $0xb8] sm:$0xff]
      %v558 = vld [vmem:[%s8 + $0xc0] sm:$0xff]
      %v559 = vld [vmem:[%s8 + $0xc8] sm:$0xff]
      %v560 = vld [vmem:[%s8 + $0xd0] sm:$0xff]
      %v561 = vld [vmem:[%s8 + $0xd8] sm:$0xff]
      %v562 = vld [vmem:[%s8 + $0xe0] sm:$0xff]
      %v563 = vld [vmem:[%s8 + $0xe8] sm:$0xff]
      %v564 = vld [vmem:[%s8 + $0xf0] sm:$0xff]
      %v565 = vld [vmem:[%s8 + $0xf8] sm:$0xff]
      %v598 = vunpack.c.l.b16 %v534
      %v599 = vunpack.c.h.b16 %v534
      %v600 = vunpack.c.l.b16 %v535
      %v601 = vunpack.c.h.b16 %v535
      %v602 = vunpack.c.l.b16 %v536
      %v603 = vunpack.c.h.b16 %v536
      %v604 = vunpack.c.l.b16 %v537
      %v605 = vunpack.c.h.b16 %v537
      %v606 = vunpack.c.l.b16 %v538
      %v607 = vunpack.c.h.b16 %v538
      %v608 = vunpack.c.l.b16 %v539
      %v609 = vunpack.c.h.b16 %v539
      %v610 = vunpack.c.l.b16 %v540
      %v611 = vunpack.c.h.b16 %v540
      %v612 = vunpack.c.l.b16 %v541
      %v613 = vunpack.c.h.b16 %v541
      %v614 = vunpack.c.l.b16 %v542
      %v615 = vunpack.c.h.b16 %v542
      %v616 = vunpack.c.l.b16 %v543
      %v617 = vunpack.c.h.b16 %v543
      %v618 = vunpack.c.l.b16 %v544
      %v619 = vunpack.c.h.b16 %v544
      %v620 = vunpack.c.l.b16 %v545
      %v621 = vunpack.c.h.b16 %v545
      %v622 = vunpack.c.l.b16 %v546
      %v623 = vunpack.c.h.b16 %v546
      %v624 = vunpack.c.l.b16 %v547
      %v625 = vunpack.c.h.b16 %v547
      %v626 = vunpack.c.l.b16 %v548
      %v627 = vunpack.c.h.b16 %v548
      %v628 = vunpack.c.l.b16 %v549
      %v629 = vunpack.c.h.b16 %v549
      %v630 = vunpack.c.l.b16 %v550
      %v631 = vunpack.c.h.b16 %v550
      %v632 = vunpack.c.l.b16 %v551
      %v633 = vunpack.c.h.b16 %v551
      %v634 = vunpack.c.l.b16 %v552
      %v635 = vunpack.c.h.b16 %v552
      %v636 = vunpack.c.l.b16 %v553
      %v637 = vunpack.c.h.b16 %v553
      %v638 = vunpack.c.l.b16 %v554
      %v639 = vunpack.c.h.b16 %v554
      %v640 = vunpack.c.l.b16 %v555
      %v641 = vunpack.c.h.b16 %v555
      %v642 = vunpack.c.l.b16 %v556
      %v643 = vunpack.c.h.b16 %v556
      %v644 = vunpack.c.l.b16 %v557
      %v645 = vunpack.c.h.b16 %v557
      %v646 = vunpack.c.l.b16 %v558
      %v647 = vunpack.c.h.b16 %v558
      %v648 = vunpack.c.l.b16 %v559
      %v649 = vunpack.c.h.b16 %v559
      %v650 = vunpack.c.l.b16 %v560
      %v651 = vunpack.c.h.b16 %v560
      %v652 = vunpack.c.l.b16 %v561
      %v653 = vunpack.c.h.b16 %v561
      %v654 = vunpack.c.l.b16 %v562
      %v655 = vunpack.c.h.b16 %v562
      %v656 = vunpack.c.l.b16 %v563
      %v657 = vunpack.c.h.b16 %v563
      %v658 = vunpack.c.l.b16 %v564
      %v659 = vunpack.c.h.b16 %v564
      %v660 = vunpack.c.l.b16 %v565
      %v661 = vunpack.c.h.b16 %v565
      %v662 = vpack.c.b16 %v602, %v598
      %v663 = vpack.c.b16 %v603, %v599
      %v664 = vpack.c.b16 %v604, %v600
      %v665 = vpack.c.b16 %v605, %v601
      %v666 = vpack.c.b16 %v610, %v606
      %v667 = vpack.c.b16 %v611, %v607
      %v668 = vpack.c.b16 %v612, %v608
      %v669 = vpack.c.b16 %v613, %v609
      %v670 = vpack.c.b16 %v618, %v614
      %v671 = vpack.c.b16 %v619, %v615
      %v672 = vpack.c.b16 %v620, %v616
      %v673 = vpack.c.b16 %v621, %v617
      %v674 = vpack.c.b16 %v626, %v622
      %v675 = vpack.c.b16 %v627, %v623
      %v676 = vpack.c.b16 %v628, %v624
      %v677 = vpack.c.b16 %v629, %v625
      %v678 = vpack.c.b16 %v634, %v630
      %v679 = vpack.c.b16 %v635, %v631
      %v680 = vpack.c.b16 %v636, %v632
      %v681 = vpack.c.b16 %v637, %v633
      %v682 = vpack.c.b16 %v642, %v638
      %v683 = vpack.c.b16 %v643, %v639
      %v684 = vpack.c.b16 %v644, %v640
      %v685 = vpack.c.b16 %v645, %v641
      %v686 = vpack.c.b16 %v650, %v646
      %v687 = vpack.c.b16 %v651, %v647
      %v688 = vpack.c.b16 %v652, %v648
      %v689 = vpack.c.b16 %v653, %v649
      %v690 = vpack.c.b16 %v658, %v654
      %v691 = vpack.c.b16 %v659, %v655
      %v692 = vpack.c.b16 %v660, %v656
      %v693 = vpack.c.b16 %v661, %v657
      %726 = vmatprep.subr.bf16.mxu0 %v691
      %727 = vmatpush1.bf16.msra.mxu0 %v690
      %728 = vmatprep.subr.bf16.mxu0 %v687
      %729 = vmatpush1.bf16.msra.mxu0 %v686
      %730 = vmatprep.subr.bf16.mxu0 %v683
      %731 = vmatpush1.bf16.msra.mxu0 %v682
      %732 = vmatprep.subr.bf16.mxu0 %v679
      %733 = vmatpush1.bf16.msra.mxu0 %v678
      %734 = vmatprep.subr.bf16.mxu0 %v675
      %735 = vmatpush1.bf16.msra.mxu0 %v674
      %736 = vmatprep.subr.bf16.mxu0 %v671
      %737 = vmatpush1.bf16.msra.mxu0 %v670
      %738 = vmatprep.subr.bf16.mxu0 %v667
      %739 = vmatpush1.bf16.msra.mxu0 %v666
      %740 = vmatprep.subr.bf16.mxu0 %v663
      %741 = vmatpush1.bf16.msra.mxu0 %v662
      %742 = vmatprep.subr.bf16.mxu0 0
      %743 = vmatpush2.bf16.msra.mxu0 0
      %744 = vmatprep.subr.bf16.mxu0 0
      %745 = vmatpush2.bf16.msra.mxu0 0
      %746 = vmatprep.subr.bf16.mxu0 0
      %747 = vmatpush2.bf16.msra.mxu0 0
      %748 = vmatprep.subr.bf16.mxu0 0
      %749 = vmatpush2.bf16.msra.mxu0 0
      %750 = vmatprep.subr.bf16.mxu0 0
      %751 = vmatpush2.bf16.msra.mxu0 0
      %752 = vmatprep.subr.bf16.mxu0 0
      %753 = vmatpush2.bf16.msra.mxu0 0
      %754 = vmatprep.subr.bf16.mxu0 0
      %755 = vmatpush2.bf16.msra.mxu0 0
      %756 = vmatprep.subr.bf16.mxu0 0
      %757 = vmatpush2.bf16.msra.mxu0 0
      %758 = vmatprep.mubr.bf16.mxu0 0
      %759 = vmatmul.mubr.bf16.gmra.mxu0 %v533
      %v760 = vpop.f32.mrf.mxu0
      %v761 = vadd.f32 0.0, %v760
      %v762 = vpop.f32.mrf.mxu0
      %v763 = vadd.f32 0.0, %v762
      %v764 = vpop.f32.mrf.mxu0
      %v765 = vpop.f32.mrf.mxu0
      %766 = vdwg.mxu0
      %767 = vmatprep.subr.bf16.mxu0 %v693
      %768 = vmatpush1.bf16.msra.mxu0 %v692
      %769 = vmatprep.subr.bf16.mxu0 %v689
      %770 = vmatpush1.bf16.msra.mxu0 %v688
      %771 = vmatprep.subr.bf16.mxu0 %v685
      %772 = vmatpush1.bf16.msra.mxu0 %v684
      %773 = vmatprep.subr.bf16.mxu0 %v681
      %774 = vmatpush1.bf16.msra.mxu0 %v680
      %775 = vmatprep.subr.bf16.mxu0 %v677
      %776 = vmatpush1.bf16.msra.mxu0 %v676
      %777 = vmatprep.subr.bf16.mxu0 %v673
      %778 = vmatpush1.bf16.msra.mxu0 %v672
      %779 = vmatprep.subr.bf16.mxu0 %v669
      %780 = vmatpush1.bf16.msra.mxu0 %v668
      %781 = vmatprep.subr.bf16.mxu0 %v665
      %782 = vmatpush1.bf16.msra.mxu0 %v664
      %783 = vmatprep.subr.bf16.mxu0 0
      %784 = vmatpush2.bf16.msra.mxu0 0
      %785 = vmatprep.subr.bf16.mxu0 0
      %786 = vmatpush2.bf16.msra.mxu0 0
      %787 = vmatprep.subr.bf16.mxu0 0
      %788 = vmatpush2.bf16.msra.mxu0 0
      %789 = vmatprep.subr.bf16.mxu0 0
      %790 = vmatpush2.bf16.msra.mxu0 0
      %791 = vmatprep.subr.bf16.mxu0 0
      %792 = vmatpush2.bf16.msra.mxu0 0
      %793 = vmatprep.subr.bf16.mxu0 0
      %794 = vmatpush2.bf16.msra.mxu0 0
      %795 = vmatprep.subr.bf16.mxu0 0
      %796 = vmatpush2.bf16.msra.mxu0 0
      %797 = vmatprep.subr.bf16.mxu0 0
      %798 = vmatpush2.bf16.msra.mxu0 0
      %799 = vmatprep.mubr.bf16.mxu0 0
      %800 = vmatmul.mubr.bf16.gmra.mxu0 %v533
      %v801 = vpop.f32.mrf.mxu0
      %v802 = vadd.f32 0.0, %v801
      %v803 = vpop.f32.mrf.mxu0
      %v804 = vadd.f32 0.0, %v803
      %v805 = vpop.f32.mrf.mxu0
      %v806 = vpop.f32.mrf.mxu0
      %807 = vdwg.mxu0
      %v840 = vunpack.c.l.b16 %v501
      %v841 = vunpack.c.h.b16 %v501
      %v842 = vunpack.c.l.b16 %v502
      %v843 = vunpack.c.h.b16 %v502
      %v844 = vunpack.c.l.b16 %v503
      %v845 = vunpack.c.h.b16 %v503
      %v846 = vunpack.c.l.b16 %v504
      %v847 = vunpack.c.h.b16 %v504
      %v848 = vunpack.c.l.b16 %v505
      %v849 = vunpack.c.h.b16 %v505
      %v850 = vunpack.c.l.b16 %v506
      %v851 = vunpack.c.h.b16 %v506
      %v852 = vunpack.c.l.b16 %v507
      %v853 = vunpack.c.h.b16 %v507
      %v854 = vunpack.c.l.b16 %v508
      %v855 = vunpack.c.h.b16 %v508
      %v856 = vunpack.c.l.b16 %v509
      %v857 = vunpack.c.h.b16 %v509
      %v858 = vunpack.c.l.b16 %v510
      %v859 = vunpack.c.h.b16 %v510
      %v860 = vunpack.c.l.b16 %v511
      %v861 = vunpack.c.h.b16 %v511
      %v862 = vunpack.c.l.b16 %v512
      %v863 = vunpack.c.h.b16 %v512
      %v864 = vunpack.c.l.b16 %v513
      %v865 = vunpack.c.h.b16 %v513
      %v866 = vunpack.c.l.b16 %v514
      %v867 = vunpack.c.h.b16 %v514
      %v868 = vunpack.c.l.b16 %v515
      %v869 = vunpack.c.h.b16 %v515
      %v870 = vunpack.c.l.b16 %v516
      %v871 = vunpack.c.h.b16 %v516
      %v872 = vunpack.c.l.b16 %v517
      %v873 = vunpack.c.h.b16 %v517
      %v874 = vunpack.c.l.b16 %v518
      %v875 = vunpack.c.h.b16 %v518
      %v876 = vunpack.c.l.b16 %v519
      %v877 = vunpack.c.h.b16 %v519
      %v878 = vunpack.c.l.b16 %v520
      %v879 = vunpack.c.h.b16 %v520
      %v880 = vunpack.c.l.b16 %v521
      %v881 = vunpack.c.h.b16 %v521
      %v882 = vunpack.c.l.b16 %v522
      %v883 = vunpack.c.h.b16 %v522
      %v884 = vunpack.c.l.b16 %v523
      %v885 = vunpack.c.h.b16 %v523
      %v886 = vunpack.c.l.b16 %v524
      %v887 = vunpack.c.h.b16 %v524
      %v888 = vunpack.c.l.b16 %v525
      %v889 = vunpack.c.h.b16 %v525
      %v890 = vunpack.c.l.b16 %v526
      %v891 = vunpack.c.h.b16 %v526
      %v892 = vunpack.c.l.b16 %v527
      %v893 = vunpack.c.h.b16 %v527
      %v894 = vunpack.c.l.b16 %v528
      %v895 = vunpack.c.h.b16 %v528
      %v896 = vunpack.c.l.b16 %v529
      %v897 = vunpack.c.h.b16 %v529
      %v898 = vunpack.c.l.b16 %v530
      %v899 = vunpack.c.h.b16 %v530
      %v900 = vunpack.c.l.b16 %v531
      %v901 = vunpack.c.h.b16 %v531
      %v902 = vunpack.c.l.b16 %v532
      %v903 = vunpack.c.h.b16 %v532
      %v904 = vpack.c.b16 %v844, %v840
      %v905 = vpack.c.b16 %v845, %v841
      %v906 = vpack.c.b16 %v846, %v842
      %v907 = vpack.c.b16 %v847, %v843
      %v908 = vpack.c.b16 %v852, %v848
      %v909 = vpack.c.b16 %v853, %v849
      %v910 = vpack.c.b16 %v854, %v850
      %v911 = vpack.c.b16 %v855, %v851
      %v912 = vpack.c.b16 %v860, %v856
      %v913 = vpack.c.b16 %v861, %v857
      %v914 = vpack.c.b16 %v862, %v858
      %v915 = vpack.c.b16 %v863, %v859
      %v916 = vpack.c.b16 %v868, %v864
      %v917 = vpack.c.b16 %v869, %v865
      %v918 = vpack.c.b16 %v870, %v866
      %v919 = vpack.c.b16 %v871, %v867
      %v920 = vpack.c.b16 %v876, %v872
      %v921 = vpack.c.b16 %v877, %v873
      %v922 = vpack.c.b16 %v878, %v874
      %v923 = vpack.c.b16 %v879, %v875
      %v924 = vpack.c.b16 %v884, %v880
      %v925 = vpack.c.b16 %v885, %v881
      %v926 = vpack.c.b16 %v886, %v882
      %v927 = vpack.c.b16 %v887, %v883
      %v928 = vpack.c.b16 %v892, %v888
      %v929 = vpack.c.b16 %v893, %v889
      %v930 = vpack.c.b16 %v894, %v890
      %v931 = vpack.c.b16 %v895, %v891
      %v932 = vpack.c.b16 %v900, %v896
      %v933 = vpack.c.b16 %v901, %v897
      %v934 = vpack.c.b16 %v902, %v898
      %v935 = vpack.c.b16 %v903, %v899
      %968 = vmatprep.subr.bf16.mxu0 %v933
      %969 = vmatpush1.bf16.msra.mxu0 %v932
      %970 = vmatprep.subr.bf16.mxu0 %v929
      %971 = vmatpush1.bf16.msra.mxu0 %v928
      %972 = vmatprep.subr.bf16.mxu0 %v925
      %973 = vmatpush1.bf16.msra.mxu0 %v924
      %974 = vmatprep.subr.bf16.mxu0 %v921
      %975 = vmatpush1.bf16.msra.mxu0 %v920
      %976 = vmatprep.subr.bf16.mxu0 %v917
      %977 = vmatpush1.bf16.msra.mxu0 %v916
      %978 = vmatprep.subr.bf16.mxu0 %v913
      %979 = vmatpush1.bf16.msra.mxu0 %v912
      %980 = vmatprep.subr.bf16.mxu0 %v909
      %981 = vmatpush1.bf16.msra.mxu0 %v908
      %982 = vmatprep.subr.bf16.mxu0 %v905
      %983 = vmatpush1.bf16.msra.mxu0 %v904
      %984 = vmatprep.subr.bf16.mxu0 0
      %985 = vmatpush2.bf16.msra.mxu0 0
      %986 = vmatprep.subr.bf16.mxu0 0
      %987 = vmatpush2.bf16.msra.mxu0 0
      %988 = vmatprep.subr.bf16.mxu0 0
      %989 = vmatpush2.bf16.msra.mxu0 0
      %990 = vmatprep.subr.bf16.mxu0 0
      %991 = vmatpush2.bf16.msra.mxu0 0
      %992 = vmatprep.subr.bf16.mxu0 0
      %993 = vmatpush2.bf16.msra.mxu0 0
      %994 = vmatprep.subr.bf16.mxu0 0
      %995 = vmatpush2.bf16.msra.mxu0 0
      %996 = vmatprep.subr.bf16.mxu0 0
      %997 = vmatpush2.bf16.msra.mxu0 0
      %998 = vmatprep.subr.bf16.mxu0 0
      %999 = vmatpush2.bf16.msra.mxu0 0
      %1000 = vmatprep.mubr.bf16.mxu0 0
      %1001 = vmatmul.mubr.bf16.gmra.mxu0 %v500
      %v1002 = vpop.f32.mrf.mxu0
      %v1003 = vadd.f32 %v761, %v1002
      %v1004 = vpop.f32.mrf.mxu0
      %v1005 = vadd.f32 %v763, %v1004
      %v1006 = vpop.f32.mrf.mxu0
      %v1007 = vpop.f32.mrf.mxu0
      %1008 = vdwg.mxu0
      %1009 = vmatprep.subr.bf16.mxu0 %v935
      %1010 = vmatpush1.bf16.msra.mxu0 %v934
      %1011 = vmatprep.subr.bf16.mxu0 %v931
      %1012 = vmatpush1.bf16.msra.mxu0 %v930
      %1013 = vmatprep.subr.bf16.mxu0 %v927
      %1014 = vmatpush1.bf16.msra.mxu0 %v926
      %1015 = vmatprep.subr.bf16.mxu0 %v923
      %1016 = vmatpush1.bf16.msra.mxu0 %v922
      %1017 = vmatprep.subr.bf16.mxu0 %v919
      %1018 = vmatpush1.bf16.msra.mxu0 %v918
      %1019 = vmatprep.subr.bf16.mxu0 %v915
      %1020 = vmatpush1.bf16.msra.mxu0 %v914
      %1021 = vmatprep.subr.bf16.mxu0 %v911
      %1022 = vmatpush1.bf16.msra.mxu0 %v910
      %1023 = vmatprep.subr.bf16.mxu0 %v907
      %1024 = vmatpush1.bf16.msra.mxu0 %v906
      %1025 = vmatprep.subr.bf16.mxu0 0
      %1026 = vmatpush2.bf16.msra.mxu0 0
      %1027 = vmatprep.subr.bf16.mxu0 0
      %1028 = vmatpush2.bf16.msra.mxu0 0
      %1029 = vmatprep.subr.bf16.mxu0 0
      %1030 = vmatpush2.bf16.msra.mxu0 0
      %1031 = vmatprep.subr.bf16.mxu0 0
      %1032 = vmatpush2.bf16.msra.mxu0 0
      %1033 = vmatprep.subr.bf16.mxu0 0
      %1034 = vmatpush2.bf16.msra.mxu0 0
      %1035 = vmatprep.subr.bf16.mxu0 0
      %1036 = vmatpush2.bf16.msra.mxu0 0
      %1037 = vmatprep.subr.bf16.mxu0 0
      %1038 = vmatpush2.bf16.msra.mxu0 0
      %1039 = vmatprep.subr.bf16.mxu0 0
      %1040 = vmatpush2.bf16.msra.mxu0 0
      %1041 = vmatprep.mubr.bf16.mxu0 0
      %1042 = vmatmul.mubr.bf16.gmra.mxu0 %v500
      %v1043 = vpop.f32.mrf.mxu0
      %v1044 = vadd.f32 %v802, %v1043
      %v1045 = vpop.f32.mrf.mxu0
      %v1046 = vadd.f32 %v804, %v1045
      %v1047 = vpop.f32.mrf.mxu0
      %v1048 = vpop.f32.mrf.mxu0
      %1049 = vdwg.mxu0
      %v1050 = vld [vmem:[%s2] sm:$0xff]
      %v1051 = vpack.c.bf16 %v1050, %v1050
      %v1052 = vld [vmem:[%s9] sm:$0xff]
      %v1053 = vld [vmem:[%s9 + $0x8] sm:$0xff]
      %v1054 = vld [vmem:[%s9 + $0x10] sm:$0xff]
      %v1055 = vld [vmem:[%s9 + $0x18] sm:$0xff]
      %v1056 = vld [vmem:[%s9 + $0x20] sm:$0xff]
      %v1057 = vld [vmem:[%s9 + $0x28] sm:$0xff]
      %v1058 = vld [vmem:[%s9 + $0x30] sm:$0xff]
      %v1059 = vld [vmem:[%s9 + $0x38] sm:$0xff]
      %v1060 = vld [vmem:[%s9 + $0x40] sm:$0xff]
      %v1061 = vld [vmem:[%s9 + $0x48] sm:$0xff]
      %v1062 = vld [vmem:[%s9 + $0x50] sm:$0xff]
      %v1063 = vld [vmem:[%s9 + $0x58] sm:$0xff]
      %v1064 = vld [vmem:[%s9 + $0x60] sm:$0xff]
      %v1065 = vld [vmem:[%s9 + $0x68] sm:$0xff]
      %v1066 = vld [vmem:[%s9 + $0x70] sm:$0xff]
      %v1067 = vld [vmem:[%s9 + $0x78] sm:$0xff]
      %v1068 = vld [vmem:[%s9 + $0x80] sm:$0xff]
      %v1069 = vld [vmem:[%s9 + $0x88] sm:$0xff]
      %v1070 = vld [vmem:[%s9 + $0x90] sm:$0xff]
      %v1071 = vld [vmem:[%s9 + $0x98] sm:$0xff]
      %v1072 = vld [vmem:[%s9 + $0xa0] sm:$0xff]
      %v1073 = vld [vmem:[%s9 + $0xa8] sm:$0xff]
      %v1074 = vld [vmem:[%s9 + $0xb0] sm:$0xff]
      %v1075 = vld [vmem:[%s9 + $0xb8] sm:$0xff]
      %v1076 = vld [vmem:[%s9 + $0xc0] sm:$0xff]
      %v1077 = vld [vmem:[%s9 + $0xc8] sm:$0xff]
      %v1078 = vld [vmem:[%s9 + $0xd0] sm:$0xff]
      %v1079 = vld [vmem:[%s9 + $0xd8] sm:$0xff]
      %v1080 = vld [vmem:[%s9 + $0xe0] sm:$0xff]
      %v1081 = vld [vmem:[%s9 + $0xe8] sm:$0xff]
      %v1082 = vld [vmem:[%s9 + $0xf0] sm:$0xff]
      %v1083 = vld [vmem:[%s9 + $0xf8] sm:$0xff]
      %v1116 = vunpack.c.l.b16 %v1052
      %v1117 = vunpack.c.h.b16 %v1052
      %v1118 = vunpack.c.l.b16 %v1053
      %v1119 = vunpack.c.h.b16 %v1053
      %v1120 = vunpack.c.l.b16 %v1054
      %v1121 = vunpack.c.h.b16 %v1054
      %v1122 = vunpack.c.l.b16 %v1055
      %v1123 = vunpack.c.h.b16 %v1055
      %v1124 = vunpack.c.l.b16 %v1056
      %v1125 = vunpack.c.h.b16 %v1056
      %v1126 = vunpack.c.l.b16 %v1057
      %v1127 = vunpack.c.h.b16 %v1057
      %v1128 = vunpack.c.l.b16 %v1058
      %v1129 = vunpack.c.h.b16 %v1058
      %v1130 = vunpack.c.l.b16 %v1059
      %v1131 = vunpack.c.h.b16 %v1059
      %v1132 = vunpack.c.l.b16 %v1060
      %v1133 = vunpack.c.h.b16 %v1060
      %v1134 = vunpack.c.l.b16 %v1061
      %v1135 = vunpack.c.h.b16 %v1061
      %v1136 = vunpack.c.l.b16 %v1062
      %v1137 = vunpack.c.h.b16 %v1062
      %v1138 = vunpack.c.l.b16 %v1063
      %v1139 = vunpack.c.h.b16 %v1063
      %v1140 = vunpack.c.l.b16 %v1064
      %v1141 = vunpack.c.h.b16 %v1064
      %v1142 = vunpack.c.l.b16 %v1065
      %v1143 = vunpack.c.h.b16 %v1065
      %v1144 = vunpack.c.l.b16 %v1066
      %v1145 = vunpack.c.h.b16 %v1066
      %v1146 = vunpack.c.l.b16 %v1067
      %v1147 = vunpack.c.h.b16 %v1067
      %v1148 = vunpack.c.l.b16 %v1068
      %v1149 = vunpack.c.h.b16 %v1068
      %v1150 = vunpack.c.l.b16 %v1069
      %v1151 = vunpack.c.h.b16 %v1069
      %v1152 = vunpack.c.l.b16 %v1070
      %v1153 = vunpack.c.h.b16 %v1070
      %v1154 = vunpack.c.l.b16 %v1071
      %v1155 = vunpack.c.h.b16 %v1071
      %v1156 = vunpack.c.l.b16 %v1072
      %v1157 = vunpack.c.h.b16 %v1072
      %v1158 = vunpack.c.l.b16 %v1073
      %v1159 = vunpack.c.h.b16 %v1073
      %v1160 = vunpack.c.l.b16 %v1074
      %v1161 = vunpack.c.h.b16 %v1074
      %v1162 = vunpack.c.l.b16 %v1075
      %v1163 = vunpack.c.h.b16 %v1075
      %v1164 = vunpack.c.l.b16 %v1076
      %v1165 = vunpack.c.h.b16 %v1076
      %v1166 = vunpack.c.l.b16 %v1077
      %v1167 = vunpack.c.h.b16 %v1077
      %v1168 = vunpack.c.l.b16 %v1078
      %v1169 = vunpack.c.h.b16 %v1078
      %v1170 = vunpack.c.l.b16 %v1079
      %v1171 = vunpack.c.h.b16 %v1079
      %v1172 = vunpack.c.l.b16 %v1080
      %v1173 = vunpack.c.h.b16 %v1080
      %v1174 = vunpack.c.l.b16 %v1081
      %v1175 = vunpack.c.h.b16 %v1081
      %v1176 = vunpack.c.l.b16 %v1082
      %v1177 = vunpack.c.h.b16 %v1082
      %v1178 = vunpack.c.l.b16 %v1083
      %v1179 = vunpack.c.h.b16 %v1083
      %v1180 = vpack.c.b16 %v1120, %v1116
      %v1181 = vpack.c.b16 %v1121, %v1117
      %v1182 = vpack.c.b16 %v1122, %v1118
      %v1183 = vpack.c.b16 %v1123, %v1119
      %v1184 = vpack.c.b16 %v1128, %v1124
      %v1185 = vpack.c.b16 %v1129, %v1125
      %v1186 = vpack.c.b16 %v1130, %v1126
      %v1187 = vpack.c.b16 %v1131, %v1127
      %v1188 = vpack.c.b16 %v1136, %v1132
      %v1189 = vpack.c.b16 %v1137, %v1133
      %v1190 = vpack.c.b16 %v1138, %v1134
      %v1191 = vpack.c.b16 %v1139, %v1135
      %v1192 = vpack.c.b16 %v1144, %v1140
      %v1193 = vpack.c.b16 %v1145, %v1141
      %v1194 = vpack.c.b16 %v1146, %v1142
      %v1195 = vpack.c.b16 %v1147, %v1143
      %v1196 = vpack.c.b16 %v1152, %v1148
      %v1197 = vpack.c.b16 %v1153, %v1149
      %v1198 = vpack.c.b16 %v1154, %v1150
      %v1199 = vpack.c.b16 %v1155, %v1151
      %v1200 = vpack.c.b16 %v1160, %v1156
      %v1201 = vpack.c.b16 %v1161, %v1157
      %v1202 = vpack.c.b16 %v1162, %v1158
      %v1203 = vpack.c.b16 %v1163, %v1159
      %v1204 = vpack.c.b16 %v1168, %v1164
      %v1205 = vpack.c.b16 %v1169, %v1165
      %v1206 = vpack.c.b16 %v1170, %v1166
      %v1207 = vpack.c.b16 %v1171, %v1167
      %v1208 = vpack.c.b16 %v1176, %v1172
      %v1209 = vpack.c.b16 %v1177, %v1173
      %v1210 = vpack.c.b16 %v1178, %v1174
      %v1211 = vpack.c.b16 %v1179, %v1175
      %1244 = vmatprep.subr.bf16.mxu0 %v1209
      %1245 = vmatpush1.bf16.msra.mxu0 %v1208
      %1246 = vmatprep.subr.bf16.mxu0 %v1205
      %1247 = vmatpush1.bf16.msra.mxu0 %v1204
      %1248 = vmatprep.subr.bf16.mxu0 %v1201
      %1249 = vmatpush1.bf16.msra.mxu0 %v1200
      %1250 = vmatprep.subr.bf16.mxu0 %v1197
      %1251 = vmatpush1.bf16.msra.mxu0 %v1196
      %1252 = vmatprep.subr.bf16.mxu0 %v1193
      %1253 = vmatpush1.bf16.msra.mxu0 %v1192
      %1254 = vmatprep.subr.bf16.mxu0 %v1189
      %1255 = vmatpush1.bf16.msra.mxu0 %v1188
      %1256 = vmatprep.subr.bf16.mxu0 %v1185
      %1257 = vmatpush1.bf16.msra.mxu0 %v1184
      %1258 = vmatprep.subr.bf16.mxu0 %v1181
      %1259 = vmatpush1.bf16.msra.mxu0 %v1180
      %1260 = vmatprep.subr.bf16.mxu0 0
      %1261 = vmatpush2.bf16.msra.mxu0 0
      %1262 = vmatprep.subr.bf16.mxu0 0
      %1263 = vmatpush2.bf16.msra.mxu0 0
      %1264 = vmatprep.subr.bf16.mxu0 0
      %1265 = vmatpush2.bf16.msra.mxu0 0
      %1266 = vmatprep.subr.bf16.mxu0 0
      %1267 = vmatpush2.bf16.msra.mxu0 0
      %1268 = vmatprep.subr.bf16.mxu0 0
      %1269 = vmatpush2.bf16.msra.mxu0 0
      %1270 = vmatprep.subr.bf16.mxu0 0
      %1271 = vmatpush2.bf16.msra.mxu0 0
      %1272 = vmatprep.subr.bf16.mxu0 0
      %1273 = vmatpush2.bf16.msra.mxu0 0
      %1274 = vmatprep.subr.bf16.mxu0 0
      %1275 = vmatpush2.bf16.msra.mxu0 0
      %1276 = vmatprep.mubr.bf16.mxu0 0
      %1277 = vmatmul.mubr.bf16.gmra.mxu0 %v1051
      %v1278 = vpop.f32.mrf.mxu0
      %v1279 = vadd.f32 0.0, %v1278
      %v1280 = vpop.f32.mrf.mxu0
      %v1281 = vadd.f32 0.0, %v1280
      %v1282 = vpop.f32.mrf.mxu0
      %v1283 = vpop.f32.mrf.mxu0
      %1284 = vdwg.mxu0
      %1285 = vmatprep.subr.bf16.mxu0 %v1211
      %1286 = vmatpush1.bf16.msra.mxu0 %v1210
      %1287 = vmatprep.subr.bf16.mxu0 %v1207
      %1288 = vmatpush1.bf16.msra.mxu0 %v1206
      %1289 = vmatprep.subr.bf16.mxu0 %v1203
      %1290 = vmatpush1.bf16.msra.mxu0 %v1202
      %1291 = vmatprep.subr.bf16.mxu0 %v1199
      %1292 = vmatpush1.bf16.msra.mxu0 %v1198
      %1293 = vmatprep.subr.bf16.mxu0 %v1195
      %1294 = vmatpush1.bf16.msra.mxu0 %v1194
      %1295 = vmatprep.subr.bf16.mxu0 %v1191
      %1296 = vmatpush1.bf16.msra.mxu0 %v1190
      %1297 = vmatprep.subr.bf16.mxu0 %v1187
      %1298 = vmatpush1.bf16.msra.mxu0 %v1186
      %1299 = vmatprep.subr.bf16.mxu0 %v1183
      %1300 = vmatpush1.bf16.msra.mxu0 %v1182
      %1301 = vmatprep.subr.bf16.mxu0 0
      %1302 = vmatpush2.bf16.msra.mxu0 0
      %1303 = vmatprep.subr.bf16.mxu0 0
      %1304 = vmatpush2.bf16.msra.mxu0 0
      %1305 = vmatprep.subr.bf16.mxu0 0
      %1306 = vmatpush2.bf16.msra.mxu0 0
      %1307 = vmatprep.subr.bf16.mxu0 0
      %1308 = vmatpush2.bf16.msra.mxu0 0
      %1309 = vmatprep.subr.bf16.mxu0 0
      %1310 = vmatpush2.bf16.msra.mxu0 0
      %1311 = vmatprep.subr.bf16.mxu0 0
      %1312 = vmatpush2.bf16.msra.mxu0 0
      %1313 = vmatprep.subr.bf16.mxu0 0
      %1314 = vmatpush2.bf16.msra.mxu0 0
      %1315 = vmatprep.subr.bf16.mxu0 0
      %1316 = vmatpush2.bf16.msra.mxu0 0
      %1317 = vmatprep.mubr.bf16.mxu0 0
      %1318 = vmatmul.mubr.bf16.gmra.mxu0 %v1051
      %v1319 = vpop.f32.mrf.mxu0
      %v1320 = vadd.f32 0.0, %v1319
      %v1321 = vpop.f32.mrf.mxu0
      %v1322 = vadd.f32 0.0, %v1321
      %v1323 = vpop.f32.mrf.mxu0
      %v1324 = vpop.f32.mrf.mxu0
      %1325 = vdwg.mxu0
      %v1326 = vadd.f32 %v1003, %v1279
      %v1327 = vadd.f32 %v1005, %v1281
      %v1328 = vadd.f32 %v1044, %v1320
      %v1329 = vadd.f32 %v1046, %v1322
      %v1330 = vld [vmem:[%s10] sm:$0xf]
      %v1332 = vlaneseq
      %v1333 = vshrl.u32 %v1332, 7
      %v1334 = vsub.s32 0, %v1333
      %v1335 = vrot.slane %v1330, %v1334
      %v1336 = vlaneseq
      %v1337 = vshrl.u32 %v1336, 7
      %v1338 = vsub.s32 1, %v1337
      %v1339 = vrot.slane %v1330, %v1338
      %v1340 = vlaneseq
      %v1341 = vshrl.u32 %v1340, 7
      %v1342 = vsub.s32 2, %v1341
      %v1343 = vrot.slane %v1330, %v1342
      %v1344 = vlaneseq
      %v1345 = vshrl.u32 %v1344, 7
      %v1346 = vsub.s32 3, %v1345
      %v1347 = vrot.slane %v1330, %v1346
      %v1352 = vadd.f32 %v1326, %v1335
      %v1353 = vadd.f32 %v1327, %v1339
      %v1354 = vadd.f32 %v1328, %v1343
      %v1355 = vadd.f32 %v1329, %v1347
      %v1356 = vmul.f32 %v1352, 0.5
      %v1357 = vtanh.pop %v1356
      %v1358 = vadd.f32 %v1357, 1.0
      %v1359 = vmul.f32 %v1358, 0.5
      %v1360 = vmul.f32 %v1353, 0.5
      %v1361 = vtanh.pop %v1360
      %v1362 = vadd.f32 %v1361, 1.0
      %v1363 = vmul.f32 %v1362, 0.5
      %v1364 = vtanh.pop %v1354
      %v1365 = vmul.f32 %v1355, 0.5
      %v1366 = vtanh.pop %v1365
      %v1367 = vadd.f32 %v1366, 1.0
      %v1368 = vmul.f32 %v1367, 0.5
      %v1369 = vmul.f32 %v1363, 0.0
      %v1370 = vmul.f32 %v1359, %v1364
      %v1371 = vadd.f32 %v1369, %v1370
      %v1372 = vtanh.pop %v1371
      %v1373 = vmul.f32 %v1368, %v1372
      %v1374 = vpack.c.bf16 %v1373, %v1373
      %v1375 = vld [vmem:[%s11] sm:$0xff]
      %v1376 = vld [vmem:[%s11 + $0x8] sm:$0xff]
      %v1377 = vld [vmem:[%s11 + $0x10] sm:$0xff]
      %v1378 = vld [vmem:[%s11 + $0x18] sm:$0xff]
      %v1379 = vld [vmem:[%s11 + $0x20] sm:$0xff]
      %v1380 = vld [vmem:[%s11 + $0x28] sm:$0xff]
      %v1381 = vld [vmem:[%s11 + $0x30] sm:$0xff]
      %v1382 = vld [vmem:[%s11 + $0x38] sm:$0xff]
      %v1383 = vld [vmem:[%s11 + $0x40] sm:$0xff]
      %v1384 = vld [vmem:[%s11 + $0x48] sm:$0xff]
      %v1385 = vld [vmem:[%s11 + $0x50] sm:$0xff]
      %v1386 = vld [vmem:[%s11 + $0x58] sm:$0xff]
      %v1387 = vld [vmem:[%s11 + $0x60] sm:$0xff]
      %v1388 = vld [vmem:[%s11 + $0x68] sm:$0xff]
      %v1389 = vld [vmem:[%s11 + $0x70] sm:$0xff]
      %v1390 = vld [vmem:[%s11 + $0x78] sm:$0xff]
      %v1391 = vld [vmem:[%s11 + $0x80] sm:$0xff]
      %v1392 = vld [vmem:[%s11 + $0x88] sm:$0xff]
      %v1393 = vld [vmem:[%s11 + $0x90] sm:$0xff]
      %v1394 = vld [vmem:[%s11 + $0x98] sm:$0xff]
      %v1395 = vld [vmem:[%s11 + $0xa0] sm:$0xff]
      %v1396 = vld [vmem:[%s11 + $0xa8] sm:$0xff]
      %v1397 = vld [vmem:[%s11 + $0xb0] sm:$0xff]
      %v1398 = vld [vmem:[%s11 + $0xb8] sm:$0xff]
      %v1399 = vld [vmem:[%s11 + $0xc0] sm:$0xff]
      %v1400 = vld [vmem:[%s11 + $0xc8] sm:$0xff]
      %v1401 = vld [vmem:[%s11 + $0xd0] sm:$0xff]
      %v1402 = vld [vmem:[%s11 + $0xd8] sm:$0xff]
      %v1403 = vld [vmem:[%s11 + $0xe0] sm:$0xff]
      %v1404 = vld [vmem:[%s11 + $0xe8] sm:$0xff]
      %v1405 = vld [vmem:[%s11 + $0xf0] sm:$0xff]
      %v1406 = vld [vmem:[%s11 + $0xf8] sm:$0xff]
      %v1407 = vld [vmem:[%s3] sm:$0xff]
      %v1408 = vpack.c.bf16 %v1407, %v1407
      %v1409 = vld [vmem:[#allocation6] sm:$0xff]
      %v1410 = vld [vmem:[#allocation6 + $0x8] sm:$0xff]
      %v1411 = vld [vmem:[#allocation6 + $0x10] sm:$0xff]
      %v1412 = vld [vmem:[#allocation6 + $0x18] sm:$0xff]
      %v1413 = vld [vmem:[#allocation6 + $0x20] sm:$0xff]
      %v1414 = vld [vmem:[#allocation6 + $0x28] sm:$0xff]
      %v1415 = vld [vmem:[#allocation6 + $0x30] sm:$0xff]
      %v1416 = vld [vmem:[#allocation6 + $0x38] sm:$0xff]
      %v1417 = vld [vmem:[#allocation6 + $0x40] sm:$0xff]
      %v1418 = vld [vmem:[#allocation6 + $0x48] sm:$0xff]
      %v1419 = vld [vmem:[#allocation6 + $0x50] sm:$0xff]
      %v1420 = vld [vmem:[#allocation6 + $0x58] sm:$0xff]
      %v1421 = vld [vmem:[#allocation6 + $0x60] sm:$0xff]
      %v1422 = vld [vmem:[#allocation6 + $0x68] sm:$0xff]
      %v1423 = vld [vmem:[#allocation6 + $0x70] sm:$0xff]
      %v1424 = vld [vmem:[#allocation6 + $0x78] sm:$0xff]
      %v1425 = vld [vmem:[#allocation6 + $0x80] sm:$0xff]
      %v1426 = vld [vmem:[#allocation6 + $0x88] sm:$0xff]
      %v1427 = vld [vmem:[#allocation6 + $0x90] sm:$0xff]
      %v1428 = vld [vmem:[#allocation6 + $0x98] sm:$0xff]
      %v1429 = vld [vmem:[#allocation6 + $0xa0] sm:$0xff]
      %v1430 = vld [vmem:[#allocation6 + $0xa8] sm:$0xff]
      %v1431 = vld [vmem:[#allocation6 + $0xb0] sm:$0xff]
      %v1432 = vld [vmem:[#allocation6 + $0xb8] sm:$0xff]
      %v1433 = vld [vmem:[#allocation6 + $0xc0] sm:$0xff]
      %v1434 = vld [vmem:[#allocation6 + $0xc8] sm:$0xff]
      %v1435 = vld [vmem:[#allocation6 + $0xd0] sm:$0xff]
      %v1436 = vld [vmem:[#allocation6 + $0xd8] sm:$0xff]
      %v1437 = vld [vmem:[#allocation6 + $0xe0] sm:$0xff]
      %v1438 = vld [vmem:[#allocation6 + $0xe8] sm:$0xff]
      %v1439 = vld [vmem:[#allocation6 + $0xf0] sm:$0xff]
      %v1440 = vld [vmem:[#allocation6 + $0xf8] sm:$0xff]
      %v1473 = vunpack.c.l.b16 %v1409
      %v1474 = vunpack.c.h.b16 %v1409
      %v1475 = vunpack.c.l.b16 %v1410
      %v1476 = vunpack.c.h.b16 %v1410
      %v1477 = vunpack.c.l.b16 %v1411
      %v1478 = vunpack.c.h.b16 %v1411
      %v1479 = vunpack.c.l.b16 %v1412
      %v1480 = vunpack.c.h.b16 %v1412
      %v1481 = vunpack.c.l.b16 %v1413
      %v1482 = vunpack.c.h.b16 %v1413
      %v1483 = vunpack.c.l.b16 %v1414
      %v1484 = vunpack.c.h.b16 %v1414
      %v1485 = vunpack.c.l.b16 %v1415
      %v1486 = vunpack.c.h.b16 %v1415
      %v1487 = vunpack.c.l.b16 %v1416
      %v1488 = vunpack.c.h.b16 %v1416
      %v1489 = vunpack.c.l.b16 %v1417
      %v1490 = vunpack.c.h.b16 %v1417
      %v1491 = vunpack.c.l.b16 %v1418
      %v1492 = vunpack.c.h.b16 %v1418
      %v1493 = vunpack.c.l.b16 %v1419
      %v1494 = vunpack.c.h.b16 %v1419
      %v1495 = vunpack.c.l.b16 %v1420
      %v1496 = vunpack.c.h.b16 %v1420
      %v1497 = vunpack.c.l.b16 %v1421
      %v1498 = vunpack.c.h.b16 %v1421
      %v1499 = vunpack.c.l.b16 %v1422
      %v1500 = vunpack.c.h.b16 %v1422
      %v1501 = vunpack.c.l.b16 %v1423
      %v1502 = vunpack.c.h.b16 %v1423
      %v1503 = vunpack.c.l.b16 %v1424
      %v1504 = vunpack.c.h.b16 %v1424
      %v1505 = vunpack.c.l.b16 %v1425
      %v1506 = vunpack.c.h.b16 %v1425
      %v1507 = vunpack.c.l.b16 %v1426
      %v1508 = vunpack.c.h.b16 %v1426
      %v1509 = vunpack.c.l.b16 %v1427
      %v1510 = vunpack.c.h.b16 %v1427
      %v1511 = vunpack.c.l.b16 %v1428
      %v1512 = vunpack.c.h.b16 %v1428
      %v1513 = vunpack.c.l.b16 %v1429
      %v1514 = vunpack.c.h.b16 %v1429
      %v1515 = vunpack.c.l.b16 %v1430
      %v1516 = vunpack.c.h.b16 %v1430
      %v1517 = vunpack.c.l.b16 %v1431
      %v1518 = vunpack.c.h.b16 %v1431
      %v1519 = vunpack.c.l.b16 %v1432
      %v1520 = vunpack.c.h.b16 %v1432
      %v1521 = vunpack.c.l.b16 %v1433
      %v1522 = vunpack.c.h.b16 %v1433
      %v1523 = vunpack.c.l.b16 %v1434
      %v1524 = vunpack.c.h.b16 %v1434
      %v1525 = vunpack.c.l.b16 %v1435
      %v1526 = vunpack.c.h.b16 %v1435
      %v1527 = vunpack.c.l.b16 %v1436
      %v1528 = vunpack.c.h.b16 %v1436
      %v1529 = vunpack.c.l.b16 %v1437
      %v1530 = vunpack.c.h.b16 %v1437
      %v1531 = vunpack.c.l.b16 %v1438
      %v1532 = vunpack.c.h.b16 %v1438
      %v1533 = vunpack.c.l.b16 %v1439
      %v1534 = vunpack.c.h.b16 %v1439
      %v1535 = vunpack.c.l.b16 %v1440
      %v1536 = vunpack.c.h.b16 %v1440
      %v1537 = vpack.c.b16 %v1477, %v1473
      %v1538 = vpack.c.b16 %v1478, %v1474
      %v1539 = vpack.c.b16 %v1479, %v1475
      %v1540 = vpack.c.b16 %v1480, %v1476
      %v1541 = vpack.c.b16 %v1485, %v1481
      %v1542 = vpack.c.b16 %v1486, %v1482
      %v1543 = vpack.c.b16 %v1487, %v1483
      %v1544 = vpack.c.b16 %v1488, %v1484
      %v1545 = vpack.c.b16 %v1493, %v1489
      %v1546 = vpack.c.b16 %v1494, %v1490
      %v1547 = vpack.c.b16 %v1495, %v1491
      %v1548 = vpack.c.b16 %v1496, %v1492
      %v1549 = vpack.c.b16 %v1501, %v1497
      %v1550 = vpack.c.b16 %v1502, %v1498
      %v1551 = vpack.c.b16 %v1503, %v1499
      %v1552 = vpack.c.b16 %v1504, %v1500
      %v1553 = vpack.c.b16 %v1509, %v1505
      %v1554 = vpack.c.b16 %v1510, %v1506
      %v1555 = vpack.c.b16 %v1511, %v1507
      %v1556 = vpack.c.b16 %v1512, %v1508
      %v1557 = vpack.c.b16 %v1517, %v1513
      %v1558 = vpack.c.b16 %v1518, %v1514
      %v1559 = vpack.c.b16 %v1519, %v1515
      %v1560 = vpack.c.b16 %v1520, %v1516
      %v1561 = vpack.c.b16 %v1525, %v1521
      %v1562 = vpack.c.b16 %v1526, %v1522
      %v1563 = vpack.c.b16 %v1527, %v1523
      %v1564 = vpack.c.b16 %v1528, %v1524
      %v1565 = vpack.c.b16 %v1533, %v1529
      %v1566 = vpack.c.b16 %v1534, %v1530
      %v1567 = vpack.c.b16 %v1535, %v1531
      %v1568 = vpack.c.b16 %v1536, %v1532
      %1601 = vmatprep.subr.bf16.mxu0 %v1566
      %1602 = vmatpush1.bf16.msra.mxu0 %v1565
      %1603 = vmatprep.subr.bf16.mxu0 %v1562
      %1604 = vmatpush1.bf16.msra.mxu0 %v1561
      %1605 = vmatprep.subr.bf16.mxu0 %v1558
      %1606 = vmatpush1.bf16.msra.mxu0 %v1557
      %1607 = vmatprep.subr.bf16.mxu0 %v1554
      %1608 = vmatpush1.bf16.msra.mxu0 %v1553
      %1609 = vmatprep.subr.bf16.mxu0 %v1550
      %1610 = vmatpush1.bf16.msra.mxu0 %v1549
      %1611 = vmatprep.subr.bf16.mxu0 %v1546
      %1612 = vmatpush1.bf16.msra.mxu0 %v1545
      %1613 = vmatprep.subr.bf16.mxu0 %v1542
      %1614 = vmatpush1.bf16.msra.mxu0 %v1541
      %1615 = vmatprep.subr.bf16.mxu0 %v1538
      %1616 = vmatpush1.bf16.msra.mxu0 %v1537
      %1617 = vmatprep.subr.bf16.mxu0 0
      %1618 = vmatpush2.bf16.msra.mxu0 0
      %1619 = vmatprep.subr.bf16.mxu0 0
      %1620 = vmatpush2.bf16.msra.mxu0 0
      %1621 = vmatprep.subr.bf16.mxu0 0
      %1622 = vmatpush2.bf16.msra.mxu0 0
      %1623 = vmatprep.subr.bf16.mxu0 0
      %1624 = vmatpush2.bf16.msra.mxu0 0
      %1625 = vmatprep.subr.bf16.mxu0 0
      %1626 = vmatpush2.bf16.msra.mxu0 0
      %1627 = vmatprep.subr.bf16.mxu0 0
      %1628 = vmatpush2.bf16.msra.mxu0 0
      %1629 = vmatprep.subr.bf16.mxu0 0
      %1630 = vmatpush2.bf16.msra.mxu0 0
      %1631 = vmatprep.subr.bf16.mxu0 0
      %1632 = vmatpush2.bf16.msra.mxu0 0
      %1633 = vmatprep.mubr.bf16.mxu0 0
      %1634 = vmatmul.mubr.bf16.gmra.mxu0 %v1408
      %v1635 = vpop.f32.mrf.mxu0
      %v1636 = vadd.f32 0.0, %v1635
      %v1637 = vpop.f32.mrf.mxu0
      %v1638 = vadd.f32 0.0, %v1637
      %v1639 = vpop.f32.mrf.mxu0
      %v1640 = vpop.f32.mrf.mxu0
      %1641 = vdwg.mxu0
      %1642 = vmatprep.subr.bf16.mxu0 %v1568
      %1643 = vmatpush1.bf16.msra.mxu0 %v1567
      %1644 = vmatprep.subr.bf16.mxu0 %v1564
      %1645 = vmatpush1.bf16.msra.mxu0 %v1563
      %1646 = vmatprep.subr.bf16.mxu0 %v1560
      %1647 = vmatpush1.bf16.msra.mxu0 %v1559
      %1648 = vmatprep.subr.bf16.mxu0 %v1556
      %1649 = vmatpush1.bf16.msra.mxu0 %v1555
      %1650 = vmatprep.subr.bf16.mxu0 %v1552
      %1651 = vmatpush1.bf16.msra.mxu0 %v1551
      %1652 = vmatprep.subr.bf16.mxu0 %v1548
      %1653 = vmatpush1.bf16.msra.mxu0 %v1547
      %1654 = vmatprep.subr.bf16.mxu0 %v1544
      %1655 = vmatpush1.bf16.msra.mxu0 %v1543
      %1656 = vmatprep.subr.bf16.mxu0 %v1540
      %1657 = vmatpush1.bf16.msra.mxu0 %v1539
      %1658 = vmatprep.subr.bf16.mxu0 0
      %1659 = vmatpush2.bf16.msra.mxu0 0
      %1660 = vmatprep.subr.bf16.mxu0 0
      %1661 = vmatpush2.bf16.msra.mxu0 0
      %1662 = vmatprep.subr.bf16.mxu0 0
      %1663 = vmatpush2.bf16.msra.mxu0 0
      %1664 = vmatprep.subr.bf16.mxu0 0
      %1665 = vmatpush2.bf16.msra.mxu0 0
      %1666 = vmatprep.subr.bf16.mxu0 0
      %1667 = vmatpush2.bf16.msra.mxu0 0
      %1668 = vmatprep.subr.bf16.mxu0 0
      %1669 = vmatpush2.bf16.msra.mxu0 0
      %1670 = vmatprep.subr.bf16.mxu0 0
      %1671 = vmatpush2.bf16.msra.mxu0 0
      %1672 = vmatprep.subr.bf16.mxu0 0
      %1673 = vmatpush2.bf16.msra.mxu0 0
      %1674 = vmatprep.mubr.bf16.mxu0 0
      %1675 = vmatmul.mubr.bf16.gmra.mxu0 %v1408
      %v1676 = vpop.f32.mrf.mxu0
      %v1677 = vadd.f32 0.0, %v1676
      %v1678 = vpop.f32.mrf.mxu0
      %v1679 = vadd.f32 0.0, %v1678
      %v1680 = vpop.f32.mrf.mxu0
      %v1681 = vpop.f32.mrf.mxu0
      %1682 = vdwg.mxu0
      %v1715 = vunpack.c.l.b16 %v1375
      %v1716 = vunpack.c.h.b16 %v1375
      %v1717 = vunpack.c.l.b16 %v1376
      %v1718 = vunpack.c.h.b16 %v1376
      %v1719 = vunpack.c.l.b16 %v1377
      %v1720 = vunpack.c.h.b16 %v1377
      %v1721 = vunpack.c.l.b16 %v1378
      %v1722 = vunpack.c.h.b16 %v1378
      %v1723 = vunpack.c.l.b16 %v1379
      %v1724 = vunpack.c.h.b16 %v1379
      %v1725 = vunpack.c.l.b16 %v1380
      %v1726 = vunpack.c.h.b16 %v1380
      %v1727 = vunpack.c.l.b16 %v1381
      %v1728 = vunpack.c.h.b16 %v1381
      %v1729 = vunpack.c.l.b16 %v1382
      %v1730 = vunpack.c.h.b16 %v1382
      %v1731 = vunpack.c.l.b16 %v1383
      %v1732 = vunpack.c.h.b16 %v1383
      %v1733 = vunpack.c.l.b16 %v1384
      %v1734 = vunpack.c.h.b16 %v1384
      %v1735 = vunpack.c.l.b16 %v1385
      %v1736 = vunpack.c.h.b16 %v1385
      %v1737 = vunpack.c.l.b16 %v1386
      %v1738 = vunpack.c.h.b16 %v1386
      %v1739 = vunpack.c.l.b16 %v1387
      %v1740 = vunpack.c.h.b16 %v1387
      %v1741 = vunpack.c.l.b16 %v1388
      %v1742 = vunpack.c.h.b16 %v1388
      %v1743 = vunpack.c.l.b16 %v1389
      %v1744 = vunpack.c.h.b16 %v1389
      %v1745 = vunpack.c.l.b16 %v1390
      %v1746 = vunpack.c.h.b16 %v1390
      %v1747 = vunpack.c.l.b16 %v1391
      %v1748 = vunpack.c.h.b16 %v1391
      %v1749 = vunpack.c.l.b16 %v1392
      %v1750 = vunpack.c.h.b16 %v1392
      %v1751 = vunpack.c.l.b16 %v1393
      %v1752 = vunpack.c.h.b16 %v1393
      %v1753 = vunpack.c.l.b16 %v1394
      %v1754 = vunpack.c.h.b16 %v1394
      %v1755 = vunpack.c.l.b16 %v1395
      %v1756 = vunpack.c.h.b16 %v1395
      %v1757 = vunpack.c.l.b16 %v1396
      %v1758 = vunpack.c.h.b16 %v1396
      %v1759 = vunpack.c.l.b16 %v1397
      %v1760 = vunpack.c.h.b16 %v1397
      %v1761 = vunpack.c.l.b16 %v1398
      %v1762 = vunpack.c.h.b16 %v1398
      %v1763 = vunpack.c.l.b16 %v1399
      %v1764 = vunpack.c.h.b16 %v1399
      %v1765 = vunpack.c.l.b16 %v1400
      %v1766 = vunpack.c.h.b16 %v1400
      %v1767 = vunpack.c.l.b16 %v1401
      %v1768 = vunpack.c.h.b16 %v1401
      %v1769 = vunpack.c.l.b16 %v1402
      %v1770 = vunpack.c.h.b16 %v1402
      %v1771 = vunpack.c.l.b16 %v1403
      %v1772 = vunpack.c.h.b16 %v1403
      %v1773 = vunpack.c.l.b16 %v1404
      %v1774 = vunpack.c.h.b16 %v1404
      %v1775 = vunpack.c.l.b16 %v1405
      %v1776 = vunpack.c.h.b16 %v1405
      %v1777 = vunpack.c.l.b16 %v1406
      %v1778 = vunpack.c.h.b16 %v1406
      %v1779 = vpack.c.b16 %v1719, %v1715
      %v1780 = vpack.c.b16 %v1720, %v1716
      %v1781 = vpack.c.b16 %v1721, %v1717
      %v1782 = vpack.c.b16 %v1722, %v1718
      %v1783 = vpack.c.b16 %v1727, %v1723
      %v1784 = vpack.c.b16 %v1728, %v1724
      %v1785 = vpack.c.b16 %v1729, %v1725
      %v1786 = vpack.c.b16 %v1730, %v1726
      %v1787 = vpack.c.b16 %v1735, %v1731
      %v1788 = vpack.c.b16 %v1736, %v1732
      %v1789 = vpack.c.b16 %v1737, %v1733
      %v1790 = vpack.c.b16 %v1738, %v1734
      %v1791 = vpack.c.b16 %v1743, %v1739
      %v1792 = vpack.c.b16 %v1744, %v1740
      %v1793 = vpack.c.b16 %v1745, %v1741
      %v1794 = vpack.c.b16 %v1746, %v1742
      %v1795 = vpack.c.b16 %v1751, %v1747
      %v1796 = vpack.c.b16 %v1752, %v1748
      %v1797 = vpack.c.b16 %v1753, %v1749
      %v1798 = vpack.c.b16 %v1754, %v1750
      %v1799 = vpack.c.b16 %v1759, %v1755
      %v1800 = vpack.c.b16 %v1760, %v1756
      %v1801 = vpack.c.b16 %v1761, %v1757
      %v1802 = vpack.c.b16 %v1762, %v1758
      %v1803 = vpack.c.b16 %v1767, %v1763
      %v1804 = vpack.c.b16 %v1768, %v1764
      %v1805 = vpack.c.b16 %v1769, %v1765
      %v1806 = vpack.c.b16 %v1770, %v1766
      %v1807 = vpack.c.b16 %v1775, %v1771
      %v1808 = vpack.c.b16 %v1776, %v1772
      %v1809 = vpack.c.b16 %v1777, %v1773
      %v1810 = vpack.c.b16 %v1778, %v1774
      %1843 = vmatprep.subr.bf16.mxu0 %v1808
      %1844 = vmatpush1.bf16.msra.mxu0 %v1807
      %1845 = vmatprep.subr.bf16.mxu0 %v1804
      %1846 = vmatpush1.bf16.msra.mxu0 %v1803
      %1847 = vmatprep.subr.bf16.mxu0 %v1800
      %1848 = vmatpush1.bf16.msra.mxu0 %v1799
      %1849 = vmatprep.subr.bf16.mxu0 %v1796
      %1850 = vmatpush1.bf16.msra.mxu0 %v1795
      %1851 = vmatprep.subr.bf16.mxu0 %v1792
      %1852 = vmatpush1.bf16.msra.mxu0 %v1791
      %1853 = vmatprep.subr.bf16.mxu0 %v1788
      %1854 = vmatpush1.bf16.msra.mxu0 %v1787
      %1855 = vmatprep.subr.bf16.mxu0 %v1784
      %1856 = vmatpush1.bf16.msra.mxu0 %v1783
      %1857 = vmatprep.subr.bf16.mxu0 %v1780
      %1858 = vmatpush1.bf16.msra.mxu0 %v1779
      %1859 = vmatprep.subr.bf16.mxu0 0
      %1860 = vmatpush2.bf16.msra.mxu0 0
      %1861 = vmatprep.subr.bf16.mxu0 0
      %1862 = vmatpush2.bf16.msra.mxu0 0
      %1863 = vmatprep.subr.bf16.mxu0 0
      %1864 = vmatpush2.bf16.msra.mxu0 0
      %1865 = vmatprep.subr.bf16.mxu0 0
      %1866 = vmatpush2.bf16.msra.mxu0 0
      %1867 = vmatprep.subr.bf16.mxu0 0
      %1868 = vmatpush2.bf16.msra.mxu0 0
      %1869 = vmatprep.subr.bf16.mxu0 0
      %1870 = vmatpush2.bf16.msra.mxu0 0
      %1871 = vmatprep.subr.bf16.mxu0 0
      %1872 = vmatpush2.bf16.msra.mxu0 0
      %1873 = vmatprep.subr.bf16.mxu0 0
      %1874 = vmatpush2.bf16.msra.mxu0 0
      %1875 = vmatprep.mubr.bf16.mxu0 0
      %1876 = vmatmul.mubr.bf16.gmra.mxu0 %v1374
      %v1877 = vpop.f32.mrf.mxu0
      %v1878 = vadd.f32 %v1636, %v1877
      %v1879 = vpop.f32.mrf.mxu0
      %v1880 = vadd.f32 %v1638, %v1879
      %v1881 = vpop.f32.mrf.mxu0
      %v1882 = vpop.f32.mrf.mxu0
      %1883 = vdwg.mxu0
      %1884 = vmatprep.subr.bf16.mxu0 %v1810
      %1885 = vmatpush1.bf16.msra.mxu0 %v1809
      %1886 = vmatprep.subr.bf16.mxu0 %v1806
      %1887 = vmatpush1.bf16.msra.mxu0 %v1805
      %1888 = vmatprep.subr.bf16.mxu0 %v1802
      %1889 = vmatpush1.bf16.msra.mxu0 %v1801
      %1890 = vmatprep.subr.bf16.mxu0 %v1798
      %1891 = vmatpush1.bf16.msra.mxu0 %v1797
      %1892 = vmatprep.subr.bf16.mxu0 %v1794
      %1893 = vmatpush1.bf16.msra.mxu0 %v1793
      %1894 = vmatprep.subr.bf16.mxu0 %v1790
      %1895 = vmatpush1.bf16.msra.mxu0 %v1789
      %1896 = vmatprep.subr.bf16.mxu0 %v1786
      %1897 = vmatpush1.bf16.msra.mxu0 %v1785
      %1898 = vmatprep.subr.bf16.mxu0 %v1782
      %1899 = vmatpush1.bf16.msra.mxu0 %v1781
      %1900 = vmatprep.subr.bf16.mxu0 0
      %1901 = vmatpush2.bf16.msra.mxu0 0
      %1902 = vmatprep.subr.bf16.mxu0 0
      %1903 = vmatpush2.bf16.msra.mxu0 0
      %1904 = vmatprep.subr.bf16.mxu0 0
      %1905 = vmatpush2.bf16.msra.mxu0 0
      %1906 = vmatprep.subr.bf16.mxu0 0
      %1907 = vmatpush2.bf16.msra.mxu0 0
      %1908 = vmatprep.subr.bf16.mxu0 0
      %1909 = vmatpush2.bf16.msra.mxu0 0
      %1910 = vmatprep.subr.bf16.mxu0 0
      %1911 = vmatpush2.bf16.msra.mxu0 0
      %1912 = vmatprep.subr.bf16.mxu0 0
      %1913 = vmatpush2.bf16.msra.mxu0 0
      %1914 = vmatprep.subr.bf16.mxu0 0
      %1915 = vmatpush2.bf16.msra.mxu0 0
      %1916 = vmatprep.mubr.bf16.mxu0 0
      %1917 = vmatmul.mubr.bf16.gmra.mxu0 %v1374
      %v1918 = vpop.f32.mrf.mxu0
      %v1919 = vadd.f32 %v1677, %v1918
      %v1920 = vpop.f32.mrf.mxu0
      %v1921 = vadd.f32 %v1679, %v1920
      %v1922 = vpop.f32.mrf.mxu0
      %v1923 = vpop.f32.mrf.mxu0
      %1924 = vdwg.mxu0
      %v1925 = vld [vmem:[%s13] sm:$0xf]
      %v1927 = vlaneseq
      %v1928 = vshrl.u32 %v1927, 7
      %v1929 = vsub.s32 0, %v1928
      %v1930 = vrot.slane %v1925, %v1929
      %v1931 = vlaneseq
      %v1932 = vshrl.u32 %v1931, 7
      %v1933 = vsub.s32 1, %v1932
      %v1934 = vrot.slane %v1925, %v1933
      %v1935 = vlaneseq
      %v1936 = vshrl.u32 %v1935, 7
      %v1937 = vsub.s32 2, %v1936
      %v1938 = vrot.slane %v1925, %v1937
      %v1939 = vlaneseq
      %v1940 = vshrl.u32 %v1939, 7
      %v1941 = vsub.s32 3, %v1940
      %v1942 = vrot.slane %v1925, %v1941
      %v1947 = vadd.f32 %v1878, %v1930
      %v1948 = vadd.f32 %v1880, %v1934
      %v1949 = vadd.f32 %v1919, %v1938
      %v1950 = vadd.f32 %v1921, %v1942
      %v1951 = vmul.f32 %v1947, 0.5
      %v1952 = vtanh.pop %v1951
      %v1953 = vadd.f32 %v1952, 1.0
      %v1954 = vmul.f32 %v1953, 0.5
      %v1955 = vmul.f32 %v1948, 0.5
      %v1956 = vtanh.pop %v1955
      %v1957 = vadd.f32 %v1956, 1.0
      %v1958 = vmul.f32 %v1957, 0.5
      %v1959 = vtanh.pop %v1949
      %v1960 = vmul.f32 %v1950, 0.5
      %v1961 = vtanh.pop %v1960
      %v1962 = vadd.f32 %v1961, 1.0
      %v1963 = vmul.f32 %v1962, 0.5
      %v1964 = vmul.f32 %v1958, 0.0
      %v1965 = vmul.f32 %v1954, %v1959
      %v1966 = vadd.f32 %v1964, %v1965
      %v1967 = vtanh.pop %v1966
      %v1968 = vmul.f32 %v1963, %v1967
      %1969 = vst [vmem:[%s14] sm:$0xff] %v1968
    $region69: #{seq2seq_forward.3} parent=1 // pred_fallthru
      _
    // Predicated region
    $region70: #{seq2seq_forward.3} parent=1 // pred_check
      _
    $region71: #{seq2seq_forward.3} parent=1 // pred_check_branch
      %1971 = sbr.rel (0) target = $region73
    $region72: #{seq2seq_forward.3} parent=1 // pred_region
      _
    $region73: #{seq2seq_forward.3} parent=1 // pred_fallthru
      _
    // Predicated region
    $region74: #{seq2seq_forward.3} parent=1 // pred_check
      _
    $region75: #{seq2seq_forward.3} parent=1 // pred_check_branch
      %1973 = sbr.rel (0) target = $region77
    $region76: #{seq2seq_forward.3} parent=1 // pred_region
      _
    $region77: #{seq2seq_forward.3} parent=1 // pred_fallthru
      _
    %1974 = vsyncpa [#allocation7], 1

// kernel: seq2seq_forward.2
$region0: #{seq2seq_forward.2}
  #allocation0 [shape = 'u32[]', space=smem, size = 0x4, offset = 0x4, fixed_abs, tag = 'smem constant byte address 0x4 - core index']
  #allocation1 [shape = 'u32[144,128]{1,0:T(1,128)}', space=vmem, size = 0x12000, scoped, tag = 'internal scratch']
  #allocation2 [shape = 'f32[8,128]{1,0:T(8,128)}', space=vmem, size = 0x1000, scoped, tag = 'scratch operand']
  #allocation3 [shape = 'f32[8,128]{1,0:T(8,128)}', space=vmem, size = 0x1000, scoped, tag = 'scratch operand']
  #allocation4 [shape = 'f32[8,128]{1,0:T(8,128)}', space=vmem, size = 0x1000, scoped, tag = 'scratch operand']
  #allocation5 [shape = 'f32[8,128]{1,0:T(8,128)}', space=vmem, size = 0x1000, scoped, tag = 'scratch operand']
  #allocation6 [shape = 'f32[8,8,512]{2,1,0:T(8,128)}', space=vmem, size = 0x20000, scoped, tag = 'scratch operand']
  #allocation7 [shape = 'f32[8,8,128]{2,1,0:T(8,128)}', space=vmem, size = 0x8000, scoped, tag = 'scratch operand']
  %s0 = inlined_call_operand.vmem [shape: f32[8,8,128], index: 0, kind: input, shape index: {}]
  %s1 = inlined_call_operand.hbm [shape: bf16[128,512], index: 1, kind: input, shape index: {}]
  %s2 = inlined_call_operand.hbm [shape: bf16[128,512], index: 2, kind: input, shape index: {}]
  %s3 = inlined_call_operand.vmem [shape: f32[1,512], index: 3, kind: input, shape index: {}]
  %s4 = inlined_call_operand.hbm [shape: bf16[128,512], index: 4, kind: input, shape index: {}]
  %s5 = inlined_call_operand.hbm [shape: bf16[128,512], index: 5, kind: input, shape index: {}]
  %s6 = inlined_call_operand.vmem [shape: f32[1,512], index: 6, kind: input, shape index: {}]
  %s7 = inlined_call_operand.vmem [shape: f32[8,8,128], index: 7, kind: output, shape index: {0}]
  %s8 = inlined_call_operand.vmem [shape: f32[8,128], index: 8, kind: output, shape index: {1}]
  %s9 = inlined_call_operand.vmem [shape: f32[8,128], index: 9, kind: output, shape index: {2}]
  %10 = xla_tuple %s7, %s8, %s9
  %s11 = sld [smem:[#allocation0]]
  $region78: #{seq2seq_forward.2} parent=0
    _
  %s13 = ssub.s32 1, %s11
  %s14 = scalar_select 0, %s13, %s11
  $region1: #{seq2seq_forward.2} parent=0
    #allocation8 [shape = 'u8[131072]{0}', space=vmem, size = 0x20000, scoped, tag = 'input window, operand 1, single buffered']
    #allocation9 [shape = 's32[1]{0}', space=sflag, size = 0x4, scoped, tag = 'scoped memory for seq2seq_forward.2']
    #allocation10 [shape = 'u8[131072]{0}', space=vmem, size = 0x20000, scoped, tag = 'input window, operand 2, single buffered']
    #allocation11 [shape = 's32[1]{0}', space=sflag, size = 0x4, scoped, tag = 'scoped memory for seq2seq_forward.2']
    #allocation12 [shape = 'u8[131072]{0}', space=vmem, size = 0x20000, scoped, tag = 'input window, operand 4, single buffered']
    #allocation13 [shape = 'u8[131072]{0}', space=vmem, size = 0x20000, scoped, tag = 'input window, operand 5, single buffered']
    #allocation14 [shape = 's32[1]{0}', space=sflag, size = 0x4, scoped, tag = 'scoped memory for seq2seq_forward.2']
    %15 = vsyncpa [#allocation9], 0
    %16 = vsyncpa [#allocation11], 0
    %17 = vsyncpa [#allocation14], 0
    // Predicated region
    $region2: #{seq2seq_forward.2} parent=1 // pred_check
      _
    $region3: #{seq2seq_forward.2} parent=1 // pred_check_branch
      %19 = sbr.rel (0) target = $region5
    $region4: #{seq2seq_forward.2} parent=1 // pred_region
      _
    $region5: #{seq2seq_forward.2} parent=1 // pred_fallthru
      _
    // Predicated region
    $region6: #{seq2seq_forward.2} parent=1 // pred_check
      _
    $region7: #{seq2seq_forward.2} parent=1 // pred_check_branch
      %21 = sbr.rel (0) target = $region9
    $region8: #{seq2seq_forward.2} parent=1 // pred_region
      %s23 = ssub.s32 4096, 4096
      %24 = vsyncadd [#allocation9], %s23
      %s25 = sshll.u32 [#allocation8], 4
      %s26 = int_to_ptr.vmem [resolvable:$true] %s25
      %31 = dma.hbm_to_vmem [thread:$0]  %s1, 4096, %s26, [#allocation9], 256, 256, 16
    $region9: #{seq2seq_forward.2} parent=1 // pred_fallthru
      _
    // Predicated region
    $region10: #{seq2seq_forward.2} parent=1 // pred_check
      _
    $region11: #{seq2seq_forward.2} parent=1 // pred_check_branch
      %33 = sbr.rel (0) target = $region13
    $region12: #{seq2seq_forward.2} parent=1 // pred_region
      %s35 = ssub.s32 4096, 4096
      %36 = vsyncadd [#allocation11], %s35
      %s37 = sshll.u32 [#allocation10], 4
      %s38 = int_to_ptr.vmem [resolvable:$true] %s37
      %43 = dma.hbm_to_vmem [thread:$0]  %s2, 4096, %s38, [#allocation11], 256, 256, 16
    $region13: #{seq2seq_forward.2} parent=1 // pred_fallthru
      _
    // Predicated region
    $region14: #{seq2seq_forward.2} parent=1 // pred_check
      _
    $region15: #{seq2seq_forward.2} parent=1 // pred_check_branch
      %45 = sbr.rel (0) target = $region17
    $region16: #{seq2seq_forward.2} parent=1 // pred_region
      _
    $region17: #{seq2seq_forward.2} parent=1 // pred_fallthru
      _
    // Predicated region
    $region18: #{seq2seq_forward.2} parent=1 // pred_check
      _
    $region19: #{seq2seq_forward.2} parent=1 // pred_check_branch
      %47 = sbr.rel (0) target = $region21
    $region20: #{seq2seq_forward.2} parent=1 // pred_region
      %s49 = ssub.s32 4096, 4096
      %50 = vsyncadd [#allocation11], %s49
      %s51 = sshll.u32 [#allocation12], 4
      %s52 = int_to_ptr.vmem [resolvable:$true] %s51
      %57 = dma.hbm_to_vmem [thread:$0]  %s4, 4096, %s52, [#allocation11], 256, 256, 16
    $region21: #{seq2seq_forward.2} parent=1 // pred_fallthru
      _
    // Predicated region
    $region22: #{seq2seq_forward.2} parent=1 // pred_check
      _
    $region23: #{seq2seq_forward.2} parent=1 // pred_check_branch
      %59 = sbr.rel (0) target = $region25
    $region24: #{seq2seq_forward.2} parent=1 // pred_region
      %s61 = ssub.s32 4096, 4096
      %62 = vsyncadd [#allocation14], %s61
      %s63 = sshll.u32 [#allocation13], 4
      %s64 = int_to_ptr.vmem [resolvable:$true] %s63
      %69 = dma.hbm_to_vmem [thread:$0]  %s5, 4096, %s64, [#allocation14], 256, 256, 16
    $region25: #{seq2seq_forward.2} parent=1 // pred_fallthru
      _
    // Predicated region
    $region26: #{seq2seq_forward.2} parent=1 // pred_check
      _
    $region27: #{seq2seq_forward.2} parent=1 // pred_check_branch
      %71 = sbr.rel (0) target = $region29
    $region28: #{seq2seq_forward.2} parent=1 // pred_region
      _
    $region29: #{seq2seq_forward.2} parent=1 // pred_fallthru
      _
    // Predicated region
    $region30: #{seq2seq_forward.2} parent=1 // pred_check
      _
    $region31: #{seq2seq_forward.2} parent=1 // pred_check_branch
      %73 = sbr.rel (0) target = $region33
    $region32: #{seq2seq_forward.2} parent=1 // pred_region
      %74 = dma.done [#allocation9], 4096
    $region33: #{seq2seq_forward.2} parent=1 // pred_fallthru
      _
    // Predicated region
    $region34: #{seq2seq_forward.2} parent=1 // pred_check
      _
    $region35: #{seq2seq_forward.2} parent=1 // pred_check_branch
      %76 = sbr.rel (0) target = $region37
    $region36: #{seq2seq_forward.2} parent=1 // pred_region
      %77 = dma.done [#allocation11], 4096
    $region37: #{seq2seq_forward.2} parent=1 // pred_fallthru
      _
    // Predicated region
    $region38: #{seq2seq_forward.2} parent=1 // pred_check
      _
    $region39: #{seq2seq_forward.2} parent=1 // pred_check_branch
      %79 = sbr.rel (0) target = $region41
    $region40: #{seq2seq_forward.2} parent=1 // pred_region
      %80 = dma.done [#allocation11], 4096
    $region41: #{seq2seq_forward.2} parent=1 // pred_fallthru
      _
    // Predicated region
    $region42: #{seq2seq_forward.2} parent=1 // pred_check
      _
    $region43: #{seq2seq_forward.2} parent=1 // pred_check_branch
      %82 = sbr.rel (0) target = $region45
    $region44: #{seq2seq_forward.2} parent=1 // pred_region
      %83 = dma.done [#allocation14], 4096
    $region45: #{seq2seq_forward.2} parent=1 // pred_fallthru
      _
    %p85 = scmp.eq.s32.totalorder 0, 0
    // Predicated region
    $region46: #{seq2seq_forward.2} parent=1 // pred_check
      %p86 = pneg %p85
    $region47: #{seq2seq_forward.2} parent=1 // pred_check_branch
      %88 = sbr.rel (%p86) target = $region49
    $region48: #{seq2seq_forward.2} parent=1 // pred_region
      %89 = vst [vmem:[#allocation2] sm:$0xff] 0.0
      %90 = vst [vmem:[#allocation3] sm:$0xff] 0.0
      %91 = vst [vmem:[#allocation4] sm:$0xff] 0.0
      %92 = vst [vmem:[#allocation5] sm:$0xff] 0.0
    $region49: #{seq2seq_forward.2} parent=1 // pred_fallthru
      _
    %v93 = vld [vmem:[#allocation10] sm:$0xff]
    %v94 = vld [vmem:[#allocation10 + $0x8] sm:$0xff]
    %v95 = vld [vmem:[#allocation10 + $0x10] sm:$0xff]
    %v96 = vld [vmem:[#allocation10 + $0x18] sm:$0xff]
    %v97 = vld [vmem:[#allocation10 + $0x20] sm:$0xff]
    %v98 = vld [vmem:[#allocation10 + $0x28] sm:$0xff]
    %v99 = vld [vmem:[#allocation10 + $0x30] sm:$0xff]
    %v100 = vld [vmem:[#allocation10 + $0x38] sm:$0xff]
    %v101 = vld [vmem:[#allocation10 + $0x40] sm:$0xff]
    %v102 = vld [vmem:[#allocation10 + $0x48] sm:$0xff]
    %v103 = vld [vmem:[#allocation10 + $0x50] sm:$0xff]
    %v104 = vld [vmem:[#allocation10 + $0x58] sm:$0xff]
    %v105 = vld [vmem:[#allocation10 + $0x60] sm:$0xff]
    %v106 = vld [vmem:[#allocation10 + $0x68] sm:$0xff]
    %v107 = vld [vmem:[#allocation10 + $0x70] sm:$0xff]
    %v108 = vld [vmem:[#allocation10 + $0x78] sm:$0xff]
    %v109 = vld [vmem:[#allocation10 + $0x80] sm:$0xff]
    %v110 = vld [vmem:[#allocation10 + $0x88] sm:$0xff]
    %v111 = vld [vmem:[#allocation10 + $0x90] sm:$0xff]
    %v112 = vld [vmem:[#allocation10 + $0x98] sm:$0xff]
    %v113 = vld [vmem:[#allocation10 + $0xa0] sm:$0xff]
    %v114 = vld [vmem:[#allocation10 + $0xa8] sm:$0xff]
    %v115 = vld [vmem:[#allocation10 + $0xb0] sm:$0xff]
    %v116 = vld [vmem:[#allocation10 + $0xb8] sm:$0xff]
    %v117 = vld [vmem:[#allocation10 + $0xc0] sm:$0xff]
    %v118 = vld [vmem:[#allocation10 + $0xc8] sm:$0xff]
    %v119 = vld [vmem:[#allocation10 + $0xd0] sm:$0xff]
    %v120 = vld [vmem:[#allocation10 + $0xd8] sm:$0xff]
    %v121 = vld [vmem:[#allocation10 + $0xe0] sm:$0xff]
    %v122 = vld [vmem:[#allocation10 + $0xe8] sm:$0xff]
    %v123 = vld [vmem:[#allocation10 + $0xf0] sm:$0xff]
    %v124 = vld [vmem:[#allocation10 + $0xf8] sm:$0xff]
    %v125 = vld [vmem:[#allocation13] sm:$0xff]
    %v126 = vld [vmem:[#allocation13 + $0x8] sm:$0xff]
    %v127 = vld [vmem:[#allocation13 + $0x10] sm:$0xff]
    %v128 = vld [vmem:[#allocation13 + $0x18] sm:$0xff]
    %v129 = vld [vmem:[#allocation13 + $0x20] sm:$0xff]
    %v130 = vld [vmem:[#allocation13 + $0x28] sm:$0xff]
    %v131 = vld [vmem:[#allocation13 + $0x30] sm:$0xff]
    %v132 = vld [vmem:[#allocation13 + $0x38] sm:$0xff]
    %v133 = vld [vmem:[#allocation13 + $0x40] sm:$0xff]
    %v134 = vld [vmem:[#allocation13 + $0x48] sm:$0xff]
    %v135 = vld [vmem:[#allocation13 + $0x50] sm:$0xff]
    %v136 = vld [vmem:[#allocation13 + $0x58] sm:$0xff]
    %v137 = vld [vmem:[#allocation13 + $0x60] sm:$0xff]
    %v138 = vld [vmem:[#allocation13 + $0x68] sm:$0xff]
    %v139 = vld [vmem:[#allocation13 + $0x70] sm:$0xff]
    %v140 = vld [vmem:[#allocation13 + $0x78] sm:$0xff]
    %v141 = vld [vmem:[#allocation13 + $0x80] sm:$0xff]
    %v142 = vld [vmem:[#allocation13 + $0x88] sm:$0xff]
    %v143 = vld [vmem:[#allocation13 + $0x90] sm:$0xff]
    %v144 = vld [vmem:[#allocation13 + $0x98] sm:$0xff]
    %v145 = vld [vmem:[#allocation13 + $0xa0] sm:$0xff]
    %v146 = vld [vmem:[#allocation13 + $0xa8] sm:$0xff]
    %v147 = vld [vmem:[#allocation13 + $0xb0] sm:$0xff]
    %v148 = vld [vmem:[#allocation13 + $0xb8] sm:$0xff]
    %v149 = vld [vmem:[#allocation13 + $0xc0] sm:$0xff]
    %v150 = vld [vmem:[#allocation13 + $0xc8] sm:$0xff]
    %v151 = vld [vmem:[#allocation13 + $0xd0] sm:$0xff]
    %v152 = vld [vmem:[#allocation13 + $0xd8] sm:$0xff]
    %v153 = vld [vmem:[#allocation13 + $0xe0] sm:$0xff]
    %v154 = vld [vmem:[#allocation13 + $0xe8] sm:$0xff]
    %v155 = vld [vmem:[#allocation13 + $0xf0] sm:$0xff]
    %v156 = vld [vmem:[#allocation13 + $0xf8] sm:$0xff]
    %v157 = vld [vmem:[%s0] sm:$0xff]
    %v158 = vld [vmem:[%s0 + $0x8] sm:$0xff]
    %v159 = vld [vmem:[%s0 + $0x10] sm:$0xff]
    %v160 = vld [vmem:[%s0 + $0x18] sm:$0xff]
    %v161 = vld [vmem:[%s0 + $0x20] sm:$0xff]
    %v162 = vld [vmem:[%s0 + $0x28] sm:$0xff]
    %v163 = vld [vmem:[%s0 + $0x30] sm:$0xff]
    %v164 = vld [vmem:[%s0 + $0x38] sm:$0xff]
    %v165 = vpack.c.bf16 %v158, %v157
    %v166 = vpack.c.bf16 %v160, %v159
    %v167 = vpack.c.bf16 %v162, %v161
    %v168 = vpack.c.bf16 %v164, %v163
    %v169 = vld [vmem:[#allocation8] sm:$0xff]
    %v170 = vld [vmem:[#allocation8 + $0x8] sm:$0xff]
    %v171 = vld [vmem:[#allocation8 + $0x10] sm:$0xff]
    %v172 = vld [vmem:[#allocation8 + $0x18] sm:$0xff]
    %v173 = vld [vmem:[#allocation8 + $0x20] sm:$0xff]
    %v174 = vld [vmem:[#allocation8 + $0x28] sm:$0xff]
    %v175 = vld [vmem:[#allocation8 + $0x30] sm:$0xff]
    %v176 = vld [vmem:[#allocation8 + $0x38] sm:$0xff]
    %v177 = vld [vmem:[#allocation8 + $0x40] sm:$0xff]
    %v178 = vld [vmem:[#allocation8 + $0x48] sm:$0xff]
    %v179 = vld [vmem:[#allocation8 + $0x50] sm:$0xff]
    %v180 = vld [vmem:[#allocation8 + $0x58] sm:$0xff]
    %v181 = vld [vmem:[#allocation8 + $0x60] sm:$0xff]
    %v182 = vld [vmem:[#allocation8 + $0x68] sm:$0xff]
    %v183 = vld [vmem:[#allocation8 + $0x70] sm:$0xff]
    %v184 = vld [vmem:[#allocation8 + $0x78] sm:$0xff]
    %v185 = vld [vmem:[#allocation8 + $0x80] sm:$0xff]
    %v186 = vld [vmem:[#allocation8 + $0x88] sm:$0xff]
    %v187 = vld [vmem:[#allocation8 + $0x90] sm:$0xff]
    %v188 = vld [vmem:[#allocation8 + $0x98] sm:$0xff]
    %v189 = vld [vmem:[#allocation8 + $0xa0] sm:$0xff]
    %v190 = vld [vmem:[#allocation8 + $0xa8] sm:$0xff]
    %v191 = vld [vmem:[#allocation8 + $0xb0] sm:$0xff]
    %v192 = vld [vmem:[#allocation8 + $0xb8] sm:$0xff]
    %v193 = vld [vmem:[#allocation8 + $0xc0] sm:$0xff]
    %v194 = vld [vmem:[#allocation8 + $0xc8] sm:$0xff]
    %v195 = vld [vmem:[#allocation8 + $0xd0] sm:$0xff]
    %v196 = vld [vmem:[#allocation8 + $0xd8] sm:$0xff]
    %v197 = vld [vmem:[#allocation8 + $0xe0] sm:$0xff]
    %v198 = vld [vmem:[#allocation8 + $0xe8] sm:$0xff]
    %v199 = vld [vmem:[#allocation8 + $0xf0] sm:$0xff]
    %v200 = vld [vmem:[#allocation8 + $0xf8] sm:$0xff]
    %v233 = vunpack.c.l.b16 %v169
    %v234 = vunpack.c.h.b16 %v169
    %v235 = vunpack.c.l.b16 %v170
    %v236 = vunpack.c.h.b16 %v170
    %v237 = vunpack.c.l.b16 %v171
    %v238 = vunpack.c.h.b16 %v171
    %v239 = vunpack.c.l.b16 %v172
    %v240 = vunpack.c.h.b16 %v172
    %v241 = vunpack.c.l.b16 %v173
    %v242 = vunpack.c.h.b16 %v173
    %v243 = vunpack.c.l.b16 %v174
    %v244 = vunpack.c.h.b16 %v174
    %v245 = vunpack.c.l.b16 %v175
    %v246 = vunpack.c.h.b16 %v175
    %v247 = vunpack.c.l.b16 %v176
    %v248 = vunpack.c.h.b16 %v176
    %v249 = vunpack.c.l.b16 %v177
    %v250 = vunpack.c.h.b16 %v177
    %v251 = vunpack.c.l.b16 %v178
    %v252 = vunpack.c.h.b16 %v178
    %v253 = vunpack.c.l.b16 %v179
    %v254 = vunpack.c.h.b16 %v179
    %v255 = vunpack.c.l.b16 %v180
    %v256 = vunpack.c.h.b16 %v180
    %v257 = vunpack.c.l.b16 %v181
    %v258 = vunpack.c.h.b16 %v181
    %v259 = vunpack.c.l.b16 %v182
    %v260 = vunpack.c.h.b16 %v182
    %v261 = vunpack.c.l.b16 %v183
    %v262 = vunpack.c.h.b16 %v183
    %v263 = vunpack.c.l.b16 %v184
    %v264 = vunpack.c.h.b16 %v184
    %v265 = vunpack.c.l.b16 %v185
    %v266 = vunpack.c.h.b16 %v185
    %v267 = vunpack.c.l.b16 %v186
    %v268 = vunpack.c.h.b16 %v186
    %v269 = vunpack.c.l.b16 %v187
    %v270 = vunpack.c.h.b16 %v187
    %v271 = vunpack.c.l.b16 %v188
    %v272 = vunpack.c.h.b16 %v188
    %v273 = vunpack.c.l.b16 %v189
    %v274 = vunpack.c.h.b16 %v189
    %v275 = vunpack.c.l.b16 %v190
    %v276 = vunpack.c.h.b16 %v190
    %v277 = vunpack.c.l.b16 %v191
    %v278 = vunpack.c.h.b16 %v191
    %v279 = vunpack.c.l.b16 %v192
    %v280 = vunpack.c.h.b16 %v192
    %v281 = vunpack.c.l.b16 %v193
    %v282 = vunpack.c.h.b16 %v193
    %v283 = vunpack.c.l.b16 %v194
    %v284 = vunpack.c.h.b16 %v194
    %v285 = vunpack.c.l.b16 %v195
    %v286 = vunpack.c.h.b16 %v195
    %v287 = vunpack.c.l.b16 %v196
    %v288 = vunpack.c.h.b16 %v196
    %v289 = vunpack.c.l.b16 %v197
    %v290 = vunpack.c.h.b16 %v197
    %v291 = vunpack.c.l.b16 %v198
    %v292 = vunpack.c.h.b16 %v198
    %v293 = vunpack.c.l.b16 %v199
    %v294 = vunpack.c.h.b16 %v199
    %v295 = vunpack.c.l.b16 %v200
    %v296 = vunpack.c.h.b16 %v200
    %v297 = vpack.c.b16 %v237, %v233
    %v298 = vpack.c.b16 %v238, %v234
    %v299 = vpack.c.b16 %v239, %v235
    %v300 = vpack.c.b16 %v240, %v236
    %v301 = vpack.c.b16 %v245, %v241
    %v302 = vpack.c.b16 %v246, %v242
    %v303 = vpack.c.b16 %v247, %v243
    %v304 = vpack.c.b16 %v248, %v244
    %v305 = vpack.c.b16 %v253, %v249
    %v306 = vpack.c.b16 %v254, %v250
    %v307 = vpack.c.b16 %v255, %v251
    %v308 = vpack.c.b16 %v256, %v252
    %v309 = vpack.c.b16 %v261, %v257
    %v310 = vpack.c.b16 %v262, %v258
    %v311 = vpack.c.b16 %v263, %v259
    %v312 = vpack.c.b16 %v264, %v260
    %v313 = vpack.c.b16 %v269, %v265
    %v314 = vpack.c.b16 %v270, %v266
    %v315 = vpack.c.b16 %v271, %v267
    %v316 = vpack.c.b16 %v272, %v268
    %v317 = vpack.c.b16 %v277, %v273
    %v318 = vpack.c.b16 %v278, %v274
    %v319 = vpack.c.b16 %v279, %v275
    %v320 = vpack.c.b16 %v280, %v276
    %v321 = vpack.c.b16 %v285, %v281
    %v322 = vpack.c.b16 %v286, %v282
    %v323 = vpack.c.b16 %v287, %v283
    %v324 = vpack.c.b16 %v288, %v284
    %v325 = vpack.c.b16 %v293, %v289
    %v326 = vpack.c.b16 %v294, %v290
    %v327 = vpack.c.b16 %v295, %v291
    %v328 = vpack.c.b16 %v296, %v292
    %361 = vmatprep.subr.bf16.mxu0 %v326
    %362 = vmatpush1.bf16.msra.mxu0 %v325
    %363 = vmatprep.subr.bf16.mxu0 %v322
    %364 = vmatpush1.bf16.msra.mxu0 %v321
    %365 = vmatprep.subr.bf16.mxu0 %v318
    %366 = vmatpush1.bf16.msra.mxu0 %v317
    %367 = vmatprep.subr.bf16.mxu0 %v314
    %368 = vmatpush1.bf16.msra.mxu0 %v313
    %369 = vmatprep.subr.bf16.mxu0 %v310
    %370 = vmatpush1.bf16.msra.mxu0 %v309
    %371 = vmatprep.subr.bf16.mxu0 %v306
    %372 = vmatpush1.bf16.msra.mxu0 %v305
    %373 = vmatprep.subr.bf16.mxu0 %v302
    %374 = vmatpush1.bf16.msra.mxu0 %v301
    %375 = vmatprep.subr.bf16.mxu0 %v298
    %376 = vmatpush1.bf16.msra.mxu0 %v297
    %377 = vmatprep.subr.bf16.mxu0 0
    %378 = vmatpush2.bf16.msra.mxu0 0
    %379 = vmatprep.subr.bf16.mxu0 0
    %380 = vmatpush2.bf16.msra.mxu0 0
    %381 = vmatprep.subr.bf16.mxu0 0
    %382 = vmatpush2.bf16.msra.mxu0 0
    %383 = vmatprep.subr.bf16.mxu0 0
    %384 = vmatpush2.bf16.msra.mxu0 0
    %385 = vmatprep.subr.bf16.mxu0 0
    %386 = vmatpush2.bf16.msra.mxu0 0
    %387 = vmatprep.subr.bf16.mxu0 0
    %388 = vmatpush2.bf16.msra.mxu0 0
    %389 = vmatprep.subr.bf16.mxu0 0
    %390 = vmatpush2.bf16.msra.mxu0 0
    %391 = vmatprep.subr.bf16.mxu0 0
    %392 = vmatpush2.bf16.msra.mxu0 0
    %393 = vmatprep.mubr.bf16.mxu0 0
    %394 = vmatmul.mubr.bf16.gmra.mxu0 %v165
    %v395 = vpop.f32.mrf.mxu0
    %v396 = vadd.f32 0.0, %v395
    %v397 = vpop.f32.mrf.mxu0
    %v398 = vadd.f32 0.0, %v397
    %v399 = vpop.f32.mrf.mxu0
    %v400 = vadd.f32 0.0, %v399
    %v401 = vpop.f32.mrf.mxu0
    %v402 = vadd.f32 0.0, %v401
    %403 = vmatprep.mubr.bf16.mxu0 0
    %404 = vmatmul.mubr.bf16.gmra.mxu0 %v166
    %v405 = vpop.f32.mrf.mxu0
    %v406 = vadd.f32 0.0, %v405
    %v407 = vpop.f32.mrf.mxu0
    %v408 = vadd.f32 0.0, %v407
    %v409 = vpop.f32.mrf.mxu0
    %v410 = vadd.f32 0.0, %v409
    %v411 = vpop.f32.mrf.mxu0
    %v412 = vadd.f32 0.0, %v411
    %413 = vmatprep.mubr.bf16.mxu0 0
    %414 = vmatmul.mubr.bf16.gmra.mxu0 %v167
    %v415 = vpop.f32.mrf.mxu0
    %v416 = vadd.f32 0.0, %v415
    %v417 = vpop.f32.mrf.mxu0
    %v418 = vadd.f32 0.0, %v417
    %v419 = vpop.f32.mrf.mxu0
    %v420 = vadd.f32 0.0, %v419
    %v421 = vpop.f32.mrf.mxu0
    %v422 = vadd.f32 0.0, %v421
    %423 = vmatprep.mubr.bf16.mxu0 0
    %424 = vmatmul.mubr.bf16.gmra.mxu0 %v168
    %v425 = vpop.f32.mrf.mxu0
    %v426 = vadd.f32 0.0, %v425
    %v427 = vpop.f32.mrf.mxu0
    %v428 = vadd.f32 0.0, %v427
    %v429 = vpop.f32.mrf.mxu0
    %v430 = vadd.f32 0.0, %v429
    %v431 = vpop.f32.mrf.mxu0
    %v432 = vadd.f32 0.0, %v431
    %433 = vdwg.mxu0
    %434 = vmatprep.subr.bf16.mxu0 %v328
    %435 = vmatpush1.bf16.msra.mxu0 %v327
    %436 = vmatprep.subr.bf16.mxu0 %v324
    %437 = vmatpush1.bf16.msra.mxu0 %v323
    %438 = vmatprep.subr.bf16.mxu0 %v320
    %439 = vmatpush1.bf16.msra.mxu0 %v319
    %440 = vmatprep.subr.bf16.mxu0 %v316
    %441 = vmatpush1.bf16.msra.mxu0 %v315
    %442 = vmatprep.subr.bf16.mxu0 %v312
    %443 = vmatpush1.bf16.msra.mxu0 %v311
    %444 = vmatprep.subr.bf16.mxu0 %v308
    %445 = vmatpush1.bf16.msra.mxu0 %v307
    %446 = vmatprep.subr.bf16.mxu0 %v304
    %447 = vmatpush1.bf16.msra.mxu0 %v303
    %448 = vmatprep.subr.bf16.mxu0 %v300
    %449 = vmatpush1.bf16.msra.mxu0 %v299
    %450 = vmatprep.subr.bf16.mxu0 0
    %451 = vmatpush2.bf16.msra.mxu0 0
    %452 = vmatprep.subr.bf16.mxu0 0
    %453 = vmatpush2.bf16.msra.mxu0 0
    %454 = vmatprep.subr.bf16.mxu0 0
    %455 = vmatpush2.bf16.msra.mxu0 0
    %456 = vmatprep.subr.bf16.mxu0 0
    %457 = vmatpush2.bf16.msra.mxu0 0
    %458 = vmatprep.subr.bf16.mxu0 0
    %459 = vmatpush2.bf16.msra.mxu0 0
    %460 = vmatprep.subr.bf16.mxu0 0
    %461 = vmatpush2.bf16.msra.mxu0 0
    %462 = vmatprep.subr.bf16.mxu0 0
    %463 = vmatpush2.bf16.msra.mxu0 0
    %464 = vmatprep.subr.bf16.mxu0 0
    %465 = vmatpush2.bf16.msra.mxu0 0
    %466 = vmatprep.mubr.bf16.mxu0 0
    %467 = vmatmul.mubr.bf16.gmra.mxu0 %v165
    %v468 = vpop.f32.mrf.mxu0
    %v469 = vadd.f32 0.0, %v468
    %v470 = vpop.f32.mrf.mxu0
    %v471 = vadd.f32 0.0, %v470
    %v472 = vpop.f32.mrf.mxu0
    %v473 = vadd.f32 0.0, %v472
    %v474 = vpop.f32.mrf.mxu0
    %v475 = vadd.f32 0.0, %v474
    %476 = vmatprep.mubr.bf16.mxu0 0
    %477 = vmatmul.mubr.bf16.gmra.mxu0 %v166
    %v478 = vpop.f32.mrf.mxu0
    %v479 = vadd.f32 0.0, %v478
    %v480 = vpop.f32.mrf.mxu0
    %v481 = vadd.f32 0.0, %v480
    %v482 = vpop.f32.mrf.mxu0
    %v483 = vadd.f32 0.0, %v482
    %v484 = vpop.f32.mrf.mxu0
    %v485 = vadd.f32 0.0, %v484
    %486 = vmatprep.mubr.bf16.mxu0 0
    %487 = vmatmul.mubr.bf16.gmra.mxu0 %v167
    %v488 = vpop.f32.mrf.mxu0
    %v489 = vadd.f32 0.0, %v488
    %v490 = vpop.f32.mrf.mxu0
    %v491 = vadd.f32 0.0, %v490
    %v492 = vpop.f32.mrf.mxu0
    %v493 = vadd.f32 0.0, %v492
    %v494 = vpop.f32.mrf.mxu0
    %v495 = vadd.f32 0.0, %v494
    %496 = vmatprep.mubr.bf16.mxu0 0
    %497 = vmatmul.mubr.bf16.gmra.mxu0 %v168
    %v498 = vpop.f32.mrf.mxu0
    %v499 = vadd.f32 0.0, %v498
    %v500 = vpop.f32.mrf.mxu0
    %v501 = vadd.f32 0.0, %v500
    %v502 = vpop.f32.mrf.mxu0
    %v503 = vadd.f32 0.0, %v502
    %v504 = vpop.f32.mrf.mxu0
    %v505 = vadd.f32 0.0, %v504
    %506 = vdwg.mxu0
    %v507 = vld [vmem:[%s3] sm:$0xf]
    %v509 = vlaneseq
    %v510 = vshrl.u32 %v509, 7
    %v511 = vsub.s32 0, %v510
    %v512 = vrot.slane %v507, %v511
    %v513 = vlaneseq
    %v514 = vshrl.u32 %v513, 7
    %v515 = vsub.s32 1, %v514
    %v516 = vrot.slane %v507, %v515
    %v517 = vlaneseq
    %v518 = vshrl.u32 %v517, 7
    %v519 = vsub.s32 2, %v518
    %v520 = vrot.slane %v507, %v519
    %v521 = vlaneseq
    %v522 = vshrl.u32 %v521, 7
    %v523 = vsub.s32 3, %v522
    %v524 = vrot.slane %v507, %v523
    %v529 = vadd.f32 %v396, %v512
    %v530 = vadd.f32 %v398, %v516
    %v531 = vadd.f32 %v469, %v520
    %v532 = vadd.f32 %v471, %v524
    %v533 = vadd.f32 %v400, %v512
    %v534 = vadd.f32 %v402, %v516
    %v535 = vadd.f32 %v473, %v520
    %v536 = vadd.f32 %v475, %v524
    %v537 = vadd.f32 %v406, %v512
    %v538 = vadd.f32 %v408, %v516
    %v539 = vadd.f32 %v479, %v520
    %v540 = vadd.f32 %v481, %v524
    %v541 = vadd.f32 %v410, %v512
    %v542 = vadd.f32 %v412, %v516
    %v543 = vadd.f32 %v483, %v520
    %v544 = vadd.f32 %v485, %v524
    %v545 = vadd.f32 %v416, %v512
    %v546 = vadd.f32 %v418, %v516
    %v547 = vadd.f32 %v489, %v520
    %v548 = vadd.f32 %v491, %v524
    %v549 = vadd.f32 %v420, %v512
    %v550 = vadd.f32 %v422, %v516
    %v551 = vadd.f32 %v493, %v520
    %v552 = vadd.f32 %v495, %v524
    %v553 = vadd.f32 %v426, %v512
    %v554 = vadd.f32 %v428, %v516
    %v555 = vadd.f32 %v499, %v520
    %v556 = vadd.f32 %v501, %v524
    %v557 = vadd.f32 %v430, %v512
    %v558 = vadd.f32 %v432, %v516
    %v559 = vadd.f32 %v503, %v520
    %v560 = vadd.f32 %v505, %v524
    %561 = vst [vmem:[#allocation6] sm:$0xff] %v529
    %562 = vst [vmem:[#allocation6 + $0x8] sm:$0xff] %v530
    %563 = vst [vmem:[#allocation6 + $0x10] sm:$0xff] %v531
    %564 = vst [vmem:[#allocation6 + $0x18] sm:$0xff] %v532
    %565 = vst [vmem:[#allocation6 + $0x20] sm:$0xff] %v533
    %566 = vst [vmem:[#allocation6 + $0x28] sm:$0xff] %v534
    %567 = vst [vmem:[#allocation6 + $0x30] sm:$0xff] %v535
    %568 = vst [vmem:[#allocation6 + $0x38] sm:$0xff] %v536
    %569 = vst [vmem:[#allocation6 + $0x40] sm:$0xff] %v537
    %570 = vst [vmem:[#allocation6 + $0x48] sm:$0xff] %v538
    %571 = vst [vmem:[#allocation6 + $0x50] sm:$0xff] %v539
    %572 = vst [vmem:[#allocation6 + $0x58] sm:$0xff] %v540
    %573 = vst [vmem:[#allocation6 + $0x60] sm:$0xff] %v541
    %574 = vst [vmem:[#allocation6 + $0x68] sm:$0xff] %v542
    %575 = vst [vmem:[#allocation6 + $0x70] sm:$0xff] %v543
    %576 = vst [vmem:[#allocation6 + $0x78] sm:$0xff] %v544
    %577 = vst [vmem:[#allocation6 + $0x80] sm:$0xff] %v545
    %578 = vst [vmem:[#allocation6 + $0x88] sm:$0xff] %v546
    %579 = vst [vmem:[#allocation6 + $0x90] sm:$0xff] %v547
    %580 = vst [vmem:[#allocation6 + $0x98] sm:$0xff] %v548
    %581 = vst [vmem:[#allocation6 + $0xa0] sm:$0xff] %v549
    %582 = vst [vmem:[#allocation6 + $0xa8] sm:$0xff] %v550
    %583 = vst [vmem:[#allocation6 + $0xb0] sm:$0xff] %v551
    %584 = vst [vmem:[#allocation6 + $0xb8] sm:$0xff] %v552
    %585 = vst [vmem:[#allocation6 + $0xc0] sm:$0xff] %v553
    %586 = vst [vmem:[#allocation6 + $0xc8] sm:$0xff] %v554
    %587 = vst [vmem:[#allocation6 + $0xd0] sm:$0xff] %v555
    %588 = vst [vmem:[#allocation6 + $0xd8] sm:$0xff] %v556
    %589 = vst [vmem:[#allocation6 + $0xe0] sm:$0xff] %v557
    %590 = vst [vmem:[#allocation6 + $0xe8] sm:$0xff] %v558
    %591 = vst [vmem:[#allocation6 + $0xf0] sm:$0xff] %v559
    %592 = vst [vmem:[#allocation6 + $0xf8] sm:$0xff] %v560
    %v593 = vld [vmem:[#allocation6] sm:$0xff]
    %v594 = vld [vmem:[#allocation6 + $0x8] sm:$0xff]
    %v595 = vld [vmem:[#allocation6 + $0x10] sm:$0xff]
    %v596 = vld [vmem:[#allocation6 + $0x18] sm:$0xff]
    %v597 = vld [vmem:[#allocation2] sm:$0xff]
    %v598 = vpack.c.bf16 %v597, %v597
    %v631 = vunpack.c.l.b16 %v93
    %v632 = vunpack.c.h.b16 %v93
    %v633 = vunpack.c.l.b16 %v94
    %v634 = vunpack.c.h.b16 %v94
    %v635 = vunpack.c.l.b16 %v95
    %v636 = vunpack.c.h.b16 %v95
    %v637 = vunpack.c.l.b16 %v96
    %v638 = vunpack.c.h.b16 %v96
    %v639 = vunpack.c.l.b16 %v97
    %v640 = vunpack.c.h.b16 %v97
    %v641 = vunpack.c.l.b16 %v98
    %v642 = vunpack.c.h.b16 %v98
    %v643 = vunpack.c.l.b16 %v99
    %v644 = vunpack.c.h.b16 %v99
    %v645 = vunpack.c.l.b16 %v100
    %v646 = vunpack.c.h.b16 %v100
    %v647 = vunpack.c.l.b16 %v101
    %v648 = vunpack.c.h.b16 %v101
    %v649 = vunpack.c.l.b16 %v102
    %v650 = vunpack.c.h.b16 %v102
    %v651 = vunpack.c.l.b16 %v103
    %v652 = vunpack.c.h.b16 %v103
    %v653 = vunpack.c.l.b16 %v104
    %v654 = vunpack.c.h.b16 %v104
    %v655 = vunpack.c.l.b16 %v105
    %v656 = vunpack.c.h.b16 %v105
    %v657 = vunpack.c.l.b16 %v106
    %v658 = vunpack.c.h.b16 %v106
    %v659 = vunpack.c.l.b16 %v107
    %v660 = vunpack.c.h.b16 %v107
    %v661 = vunpack.c.l.b16 %v108
    %v662 = vunpack.c.h.b16 %v108
    %v663 = vunpack.c.l.b16 %v109
    %v664 = vunpack.c.h.b16 %v109
    %v665 = vunpack.c.l.b16 %v110
    %v666 = vunpack.c.h.b16 %v110
    %v667 = vunpack.c.l.b16 %v111
    %v668 = vunpack.c.h.b16 %v111
    %v669 = vunpack.c.l.b16 %v112
    %v670 = vunpack.c.h.b16 %v112
    %v671 = vunpack.c.l.b16 %v113
    %v672 = vunpack.c.h.b16 %v113
    %v673 = vunpack.c.l.b16 %v114
    %v674 = vunpack.c.h.b16 %v114
    %v675 = vunpack.c.l.b16 %v115
    %v676 = vunpack.c.h.b16 %v115
    %v677 = vunpack.c.l.b16 %v116
    %v678 = vunpack.c.h.b16 %v116
    %v679 = vunpack.c.l.b16 %v117
    %v680 = vunpack.c.h.b16 %v117
    %v681 = vunpack.c.l.b16 %v118
    %v682 = vunpack.c.h.b16 %v118
    %v683 = vunpack.c.l.b16 %v119
    %v684 = vunpack.c.h.b16 %v119
    %v685 = vunpack.c.l.b16 %v120
    %v686 = vunpack.c.h.b16 %v120
    %v687 = vunpack.c.l.b16 %v121
    %v688 = vunpack.c.h.b16 %v121
    %v689 = vunpack.c.l.b16 %v122
    %v690 = vunpack.c.h.b16 %v122
    %v691 = vunpack.c.l.b16 %v123
    %v692 = vunpack.c.h.b16 %v123
    %v693 = vunpack.c.l.b16 %v124
    %v694 = vunpack.c.h.b16 %v124
    %v695 = vpack.c.b16 %v635, %v631
    %v696 = vpack.c.b16 %v636, %v632
    %v697 = vpack.c.b16 %v637, %v633
    %v698 = vpack.c.b16 %v638, %v634
    %v699 = vpack.c.b16 %v643, %v639
    %v700 = vpack.c.b16 %v644, %v640
    %v701 = vpack.c.b16 %v645, %v641
    %v702 = vpack.c.b16 %v646, %v642
    %v703 = vpack.c.b16 %v651, %v647
    %v704 = vpack.c.b16 %v652, %v648
    %v705 = vpack.c.b16 %v653, %v649
    %v706 = vpack.c.b16 %v654, %v650
    %v707 = vpack.c.b16 %v659, %v655
    %v708 = vpack.c.b16 %v660, %v656
    %v709 = vpack.c.b16 %v661, %v657
    %v710 = vpack.c.b16 %v662, %v658
    %v711 = vpack.c.b16 %v667, %v663
    %v712 = vpack.c.b16 %v668, %v664
    %v713 = vpack.c.b16 %v669, %v665
    %v714 = vpack.c.b16 %v670, %v666
    %v715 = vpack.c.b16 %v675, %v671
    %v716 = vpack.c.b16 %v676, %v672
    %v717 = vpack.c.b16 %v677, %v673
    %v718 = vpack.c.b16 %v678, %v674
    %v719 = vpack.c.b16 %v683, %v679
    %v720 = vpack.c.b16 %v684, %v680
    %v721 = vpack.c.b16 %v685, %v681
    %v722 = vpack.c.b16 %v686, %v682
    %v723 = vpack.c.b16 %v691, %v687
    %v724 = vpack.c.b16 %v692, %v688
    %v725 = vpack.c.b16 %v693, %v689
    %v726 = vpack.c.b16 %v694, %v690
    %759 = vmatprep.subr.bf16.mxu0 %v724
    %760 = vmatpush1.bf16.msra.mxu0 %v723
    %761 = vmatprep.subr.bf16.mxu0 %v720
    %762 = vmatpush1.bf16.msra.mxu0 %v719
    %763 = vmatprep.subr.bf16.mxu0 %v716
    %764 = vmatpush1.bf16.msra.mxu0 %v715
    %765 = vmatprep.subr.bf16.mxu0 %v712
    %766 = vmatpush1.bf16.msra.mxu0 %v711
    %767 = vmatprep.subr.bf16.mxu0 %v708
    %768 = vmatpush1.bf16.msra.mxu0 %v707
    %769 = vmatprep.subr.bf16.mxu0 %v704
    %770 = vmatpush1.bf16.msra.mxu0 %v703
    %771 = vmatprep.subr.bf16.mxu0 %v700
    %772 = vmatpush1.bf16.msra.mxu0 %v699
    %773 = vmatprep.subr.bf16.mxu0 %v696
    %774 = vmatpush1.bf16.msra.mxu0 %v695
    %775 = vmatprep.subr.bf16.mxu0 0
    %776 = vmatpush2.bf16.msra.mxu0 0
    %777 = vmatprep.subr.bf16.mxu0 0
    %778 = vmatpush2.bf16.msra.mxu0 0
    %779 = vmatprep.subr.bf16.mxu0 0
    %780 = vmatpush2.bf16.msra.mxu0 0
    %781 = vmatprep.subr.bf16.mxu0 0
    %782 = vmatpush2.bf16.msra.mxu0 0
    %783 = vmatprep.subr.bf16.mxu0 0
    %784 = vmatpush2.bf16.msra.mxu0 0
    %785 = vmatprep.subr.bf16.mxu0 0
    %786 = vmatpush2.bf16.msra.mxu0 0
    %787 = vmatprep.subr.bf16.mxu0 0
    %788 = vmatpush2.bf16.msra.mxu0 0
    %789 = vmatprep.subr.bf16.mxu0 0
    %790 = vmatpush2.bf16.msra.mxu0 0
    %791 = vmatprep.mubr.bf16.mxu0 0
    %792 = vmatmul.mubr.bf16.gmra.mxu0 %v598
    %v793 = vpop.f32.mrf.mxu0
    %v794 = vadd.f32 0.0, %v793
    %v795 = vpop.f32.mrf.mxu0
    %v796 = vadd.f32 0.0, %v795
    %v797 = vpop.f32.mrf.mxu0
    %v798 = vpop.f32.mrf.mxu0
    %799 = vdwg.mxu0
    %800 = vmatprep.subr.bf16.mxu0 %v726
    %801 = vmatpush1.bf16.msra.mxu0 %v725
    %802 = vmatprep.subr.bf16.mxu0 %v722
    %803 = vmatpush1.bf16.msra.mxu0 %v721
    %804 = vmatprep.subr.bf16.mxu0 %v718
    %805 = vmatpush1.bf16.msra.mxu0 %v717
    %806 = vmatprep.subr.bf16.mxu0 %v714
    %807 = vmatpush1.bf16.msra.mxu0 %v713
    %808 = vmatprep.subr.bf16.mxu0 %v710
    %809 = vmatpush1.bf16.msra.mxu0 %v709
    %810 = vmatprep.subr.bf16.mxu0 %v706
    %811 = vmatpush1.bf16.msra.mxu0 %v705
    %812 = vmatprep.subr.bf16.mxu0 %v702
    %813 = vmatpush1.bf16.msra.mxu0 %v701
    %814 = vmatprep.subr.bf16.mxu0 %v698
    %815 = vmatpush1.bf16.msra.mxu0 %v697
    %816 = vmatprep.subr.bf16.mxu0 0
    %817 = vmatpush2.bf16.msra.mxu0 0
    %818 = vmatprep.subr.bf16.mxu0 0
    %819 = vmatpush2.bf16.msra.mxu0 0
    %820 = vmatprep.subr.bf16.mxu0 0
    %821 = vmatpush2.bf16.msra.mxu0 0
    %822 = vmatprep.subr.bf16.mxu0 0
    %823 = vmatpush2.bf16.msra.mxu0 0
    %824 = vmatprep.subr.bf16.mxu0 0
    %825 = vmatpush2.bf16.msra.mxu0 0
    %826 = vmatprep.subr.bf16.mxu0 0
    %827 = vmatpush2.bf16.msra.mxu0 0
    %828 = vmatprep.subr.bf16.mxu0 0
    %829 = vmatpush2.bf16.msra.mxu0 0
    %830 = vmatprep.subr.bf16.mxu0 0
    %831 = vmatpush2.bf16.msra.mxu0 0
    %832 = vmatprep.mubr.bf16.mxu0 0
    %833 = vmatmul.mubr.bf16.gmra.mxu0 %v598
    %v834 = vpop.f32.mrf.mxu0
    %v835 = vadd.f32 0.0, %v834
    %v836 = vpop.f32.mrf.mxu0
    %v837 = vadd.f32 0.0, %v836
    %v838 = vpop.f32.mrf.mxu0
    %v839 = vpop.f32.mrf.mxu0
    %840 = vdwg.mxu0
    %v841 = vadd.f32 %v593, %v794
    %v842 = vadd.f32 %v594, %v796
    %v843 = vadd.f32 %v595, %v835
    %v844 = vadd.f32 %v596, %v837
    %v845 = vld [vmem:[#allocation3] sm:$0xff]
    %v846 = vmul.f32 %v841, 0.5
    %v847 = vtanh.pop %v846
    %v848 = vadd.f32 %v847, 1.0
    %v849 = vmul.f32 %v848, 0.5
    %v850 = vmul.f32 %v842, 0.5
    %v851 = vtanh.pop %v850
    %v852 = vadd.f32 %v851, 1.0
    %v853 = vmul.f32 %v852, 0.5
    %v854 = vtanh.pop %v843
    %v855 = vmul.f32 %v844, 0.5
    %v856 = vtanh.pop %v855
    %v857 = vadd.f32 %v856, 1.0
    %v858 = vmul.f32 %v857, 0.5
    %v859 = vmul.f32 %v853, %v845
    %v860 = vmul.f32 %v849, %v854
    %v861 = vadd.f32 %v859, %v860
    %v862 = vtanh.pop %v861
    %v863 = vmul.f32 %v858, %v862
    %864 = vst [vmem:[#allocation2] sm:$0xff] %v863
    %865 = vst [vmem:[#allocation3] sm:$0xff] %v861
    %866 = vst [vmem:[#allocation7] sm:$0xff] %v863
    %s867 = scalar_lea.vmem [#allocation6], 32
    %v868 = vld [vmem:[%s867] sm:$0xff]
    %v869 = vld [vmem:[%s867 + $0x8] sm:$0xff]
    %v870 = vld [vmem:[%s867 + $0x10] sm:$0xff]
    %v871 = vld [vmem:[%s867 + $0x18] sm:$0xff]
    %v872 = vld [vmem:[#allocation2] sm:$0xff]
    %v873 = vpack.c.bf16 %v872, %v872
    %874 = vmatprep.subr.bf16.mxu0 %v724
    %875 = vmatpush1.bf16.msra.mxu0 %v723
    %876 = vmatprep.subr.bf16.mxu0 %v720
    %877 = vmatpush1.bf16.msra.mxu0 %v719
    %878 = vmatprep.subr.bf16.mxu0 %v716
    %879 = vmatpush1.bf16.msra.mxu0 %v715
    %880 = vmatprep.subr.bf16.mxu0 %v712
    %881 = vmatpush1.bf16.msra.mxu0 %v711
    %882 = vmatprep.subr.bf16.mxu0 %v708
    %883 = vmatpush1.bf16.msra.mxu0 %v707
    %884 = vmatprep.subr.bf16.mxu0 %v704
    %885 = vmatpush1.bf16.msra.mxu0 %v703
    %886 = vmatprep.subr.bf16.mxu0 %v700
    %887 = vmatpush1.bf16.msra.mxu0 %v699
    %888 = vmatprep.subr.bf16.mxu0 %v696
    %889 = vmatpush1.bf16.msra.mxu0 %v695
    %890 = vmatprep.subr.bf16.mxu0 0
    %891 = vmatpush2.bf16.msra.mxu0 0
    %892 = vmatprep.subr.bf16.mxu0 0
    %893 = vmatpush2.bf16.msra.mxu0 0
    %894 = vmatprep.subr.bf16.mxu0 0
    %895 = vmatpush2.bf16.msra.mxu0 0
    %896 = vmatprep.subr.bf16.mxu0 0
    %897 = vmatpush2.bf16.msra.mxu0 0
    %898 = vmatprep.subr.bf16.mxu0 0
    %899 = vmatpush2.bf16.msra.mxu0 0
    %900 = vmatprep.subr.bf16.mxu0 0
    %901 = vmatpush2.bf16.msra.mxu0 0
    %902 = vmatprep.subr.bf16.mxu0 0
    %903 = vmatpush2.bf16.msra.mxu0 0
    %904 = vmatprep.subr.bf16.mxu0 0
    %905 = vmatpush2.bf16.msra.mxu0 0
    %906 = vmatprep.mubr.bf16.mxu0 0
    %907 = vmatmul.mubr.bf16.gmra.mxu0 %v873
    %v908 = vpop.f32.mrf.mxu0
    %v909 = vadd.f32 0.0, %v908
    %v910 = vpop.f32.mrf.mxu0
    %v911 = vadd.f32 0.0, %v910
    %v912 = vpop.f32.mrf.mxu0
    %v913 = vpop.f32.mrf.mxu0
    %914 = vdwg.mxu0
    %915 = vmatprep.subr.bf16.mxu0 %v726
    %916 = vmatpush1.bf16.msra.mxu0 %v725
    %917 = vmatprep.subr.bf16.mxu0 %v722
    %918 = vmatpush1.bf16.msra.mxu0 %v721
    %919 = vmatprep.subr.bf16.mxu0 %v718
    %920 = vmatpush1.bf16.msra.mxu0 %v717
    %921 = vmatprep.subr.bf16.mxu0 %v714
    %922 = vmatpush1.bf16.msra.mxu0 %v713
    %923 = vmatprep.subr.bf16.mxu0 %v710
    %924 = vmatpush1.bf16.msra.mxu0 %v709
    %925 = vmatprep.subr.bf16.mxu0 %v706
    %926 = vmatpush1.bf16.msra.mxu0 %v705
    %927 = vmatprep.subr.bf16.mxu0 %v702
    %928 = vmatpush1.bf16.msra.mxu0 %v701
    %929 = vmatprep.subr.bf16.mxu0 %v698
    %930 = vmatpush1.bf16.msra.mxu0 %v697
    %931 = vmatprep.subr.bf16.mxu0 0
    %932 = vmatpush2.bf16.msra.mxu0 0
    %933 = vmatprep.subr.bf16.mxu0 0
    %934 = vmatpush2.bf16.msra.mxu0 0
    %935 = vmatprep.subr.bf16.mxu0 0
    %936 = vmatpush2.bf16.msra.mxu0 0
    %937 = vmatprep.subr.bf16.mxu0 0
    %938 = vmatpush2.bf16.msra.mxu0 0
    %939 = vmatprep.subr.bf16.mxu0 0
    %940 = vmatpush2.bf16.msra.mxu0 0
    %941 = vmatprep.subr.bf16.mxu0 0
    %942 = vmatpush2.bf16.msra.mxu0 0
    %943 = vmatprep.subr.bf16.mxu0 0
    %944 = vmatpush2.bf16.msra.mxu0 0
    %945 = vmatprep.subr.bf16.mxu0 0
    %946 = vmatpush2.bf16.msra.mxu0 0
    %947 = vmatprep.mubr.bf16.mxu0 0
    %948 = vmatmul.mubr.bf16.gmra.mxu0 %v873
    %v949 = vpop.f32.mrf.mxu0
    %v950 = vadd.f32 0.0, %v949
    %v951 = vpop.f32.mrf.mxu0
    %v952 = vadd.f32 0.0, %v951
    %v953 = vpop.f32.mrf.mxu0
    %v954 = vpop.f32.mrf.mxu0
    %955 = vdwg.mxu0
    %v956 = vadd.f32 %v868, %v909
    %v957 = vadd.f32 %v869, %v911
    %v958 = vadd.f32 %v870, %v950
    %v959 = vadd.f32 %v871, %v952
    %v960 = vld [vmem:[#allocation3] sm:$0xff]
    %v961 = vmul.f32 %v956, 0.5
    %v962 = vtanh.pop %v961
    %v963 = vadd.f32 %v962, 1.0
    %v964 = vmul.f32 %v963, 0.5
    %v965 = vmul.f32 %v957, 0.5
    %v966 = vtanh.pop %v965
    %v967 = vadd.f32 %v966, 1.0
    %v968 = vmul.f32 %v967, 0.5
    %v969 = vtanh.pop %v958
    %v970 = vmul.f32 %v959, 0.5
    %v971 = vtanh.pop %v970
    %v972 = vadd.f32 %v971, 1.0
    %v973 = vmul.f32 %v972, 0.5
    %v974 = vmul.f32 %v968, %v960
    %v975 = vmul.f32 %v964, %v969
    %v976 = vadd.f32 %v974, %v975
    %v977 = vtanh.pop %v976
    %v978 = vmul.f32 %v973, %v977
    %979 = vst [vmem:[#allocation2] sm:$0xff] %v978
    %980 = vst [vmem:[#allocation3] sm:$0xff] %v976
    %s981 = scalar_lea.vmem [#allocation7], 8
    %982 = vst [vmem:[%s981] sm:$0xff] %v978
    %s983 = scalar_lea.vmem [#allocation6], 64
    %v984 = vld [vmem:[%s983] sm:$0xff]
    %v985 = vld [vmem:[%s983 + $0x8] sm:$0xff]
    %v986 = vld [vmem:[%s983 + $0x10] sm:$0xff]
    %v987 = vld [vmem:[%s983 + $0x18] sm:$0xff]
    %v988 = vld [vmem:[#allocation2] sm:$0xff]
    %v989 = vpack.c.bf16 %v988, %v988
    %990 = vmatprep.subr.bf16.mxu0 %v724
    %991 = vmatpush1.bf16.msra.mxu0 %v723
    %992 = vmatprep.subr.bf16.mxu0 %v720
    %993 = vmatpush1.bf16.msra.mxu0 %v719
    %994 = vmatprep.subr.bf16.mxu0 %v716
    %995 = vmatpush1.bf16.msra.mxu0 %v715
    %996 = vmatprep.subr.bf16.mxu0 %v712
    %997 = vmatpush1.bf16.msra.mxu0 %v711
    %998 = vmatprep.subr.bf16.mxu0 %v708
    %999 = vmatpush1.bf16.msra.mxu0 %v707
    %1000 = vmatprep.subr.bf16.mxu0 %v704
    %1001 = vmatpush1.bf16.msra.mxu0 %v703
    %1002 = vmatprep.subr.bf16.mxu0 %v700
    %1003 = vmatpush1.bf16.msra.mxu0 %v699
    %1004 = vmatprep.subr.bf16.mxu0 %v696
    %1005 = vmatpush1.bf16.msra.mxu0 %v695
    %1006 = vmatprep.subr.bf16.mxu0 0
    %1007 = vmatpush2.bf16.msra.mxu0 0
    %1008 = vmatprep.subr.bf16.mxu0 0
    %1009 = vmatpush2.bf16.msra.mxu0 0
    %1010 = vmatprep.subr.bf16.mxu0 0
    %1011 = vmatpush2.bf16.msra.mxu0 0
    %1012 = vmatprep.subr.bf16.mxu0 0
    %1013 = vmatpush2.bf16.msra.mxu0 0
    %1014 = vmatprep.subr.bf16.mxu0 0
    %1015 = vmatpush2.bf16.msra.mxu0 0
    %1016 = vmatprep.subr.bf16.mxu0 0
    %1017 = vmatpush2.bf16.msra.mxu0 0
    %1018 = vmatprep.subr.bf16.mxu0 0
    %1019 = vmatpush2.bf16.msra.mxu0 0
    %1020 = vmatprep.subr.bf16.mxu0 0
    %1021 = vmatpush2.bf16.msra.mxu0 0
    %1022 = vmatprep.mubr.bf16.mxu0 0
    %1023 = vmatmul.mubr.bf16.gmra.mxu0 %v989
    %v1024 = vpop.f32.mrf.mxu0
    %v1025 = vadd.f32 0.0, %v1024
    %v1026 = vpop.f32.mrf.mxu0
    %v1027 = vadd.f32 0.0, %v1026
    %v1028 = vpop.f32.mrf.mxu0
    %v1029 = vpop.f32.mrf.mxu0
    %1030 = vdwg.mxu0
    %1031 = vmatprep.subr.bf16.mxu0 %v726
    %1032 = vmatpush1.bf16.msra.mxu0 %v725
    %1033 = vmatprep.subr.bf16.mxu0 %v722
    %1034 = vmatpush1.bf16.msra.mxu0 %v721
    %1035 = vmatprep.subr.bf16.mxu0 %v718
    %1036 = vmatpush1.bf16.msra.mxu0 %v717
    %1037 = vmatprep.subr.bf16.mxu0 %v714
    %1038 = vmatpush1.bf16.msra.mxu0 %v713
    %1039 = vmatprep.subr.bf16.mxu0 %v710
    %1040 = vmatpush1.bf16.msra.mxu0 %v709
    %1041 = vmatprep.subr.bf16.mxu0 %v706
    %1042 = vmatpush1.bf16.msra.mxu0 %v705
    %1043 = vmatprep.subr.bf16.mxu0 %v702
    %1044 = vmatpush1.bf16.msra.mxu0 %v701
    %1045 = vmatprep.subr.bf16.mxu0 %v698
    %1046 = vmatpush1.bf16.msra.mxu0 %v697
    %1047 = vmatprep.subr.bf16.mxu0 0
    %1048 = vmatpush2.bf16.msra.mxu0 0
    %1049 = vmatprep.subr.bf16.mxu0 0
    %1050 = vmatpush2.bf16.msra.mxu0 0
    %1051 = vmatprep.subr.bf16.mxu0 0
    %1052 = vmatpush2.bf16.msra.mxu0 0
    %1053 = vmatprep.subr.bf16.mxu0 0
    %1054 = vmatpush2.bf16.msra.mxu0 0
    %1055 = vmatprep.subr.bf16.mxu0 0
    %1056 = vmatpush2.bf16.msra.mxu0 0
    %1057 = vmatprep.subr.bf16.mxu0 0
    %1058 = vmatpush2.bf16.msra.mxu0 0
    %1059 = vmatprep.subr.bf16.mxu0 0
    %1060 = vmatpush2.bf16.msra.mxu0 0
    %1061 = vmatprep.subr.bf16.mxu0 0
    %1062 = vmatpush2.bf16.msra.mxu0 0
    %1063 = vmatprep.mubr.bf16.mxu0 0
    %1064 = vmatmul.mubr.bf16.gmra.mxu0 %v989
    %v1065 = vpop.f32.mrf.mxu0
    %v1066 = vadd.f32 0.0, %v1065
    %v1067 = vpop.f32.mrf.mxu0
    %v1068 = vadd.f32 0.0, %v1067
    %v1069 = vpop.f32.mrf.mxu0
    %v1070 = vpop.f32.mrf.mxu0
    %1071 = vdwg.mxu0
    %v1072 = vadd.f32 %v984, %v1025
    %v1073 = vadd.f32 %v985, %v1027
    %v1074 = vadd.f32 %v986, %v1066
    %v1075 = vadd.f32 %v987, %v1068
    %v1076 = vld [vmem:[#allocation3] sm:$0xff]
    %v1077 = vmul.f32 %v1072, 0.5
    %v1078 = vtanh.pop %v1077
    %v1079 = vadd.f32 %v1078, 1.0
    %v1080 = vmul.f32 %v1079, 0.5
    %v1081 = vmul.f32 %v1073, 0.5
    %v1082 = vtanh.pop %v1081
    %v1083 = vadd.f32 %v1082, 1.0
    %v1084 = vmul.f32 %v1083, 0.5
    %v1085 = vtanh.pop %v1074
    %v1086 = vmul.f32 %v1075, 0.5
    %v1087 = vtanh.pop %v1086
    %v1088 = vadd.f32 %v1087, 1.0
    %v1089 = vmul.f32 %v1088, 0.5
    %v1090 = vmul.f32 %v1084, %v1076
    %v1091 = vmul.f32 %v1080, %v1085
    %v1092 = vadd.f32 %v1090, %v1091
    %v1093 = vtanh.pop %v1092
    %v1094 = vmul.f32 %v1089, %v1093
    %1095 = vst [vmem:[#allocation2] sm:$0xff] %v1094
    %1096 = vst [vmem:[#allocation3] sm:$0xff] %v1092
    %s1097 = scalar_lea.vmem [#allocation7], 16
    %1098 = vst [vmem:[%s1097] sm:$0xff] %v1094
    %s1099 = scalar_lea.vmem [#allocation6], 96
    %v1100 = vld [vmem:[%s1099] sm:$0xff]
    %v1101 = vld [vmem:[%s1099 + $0x8] sm:$0xff]
    %v1102 = vld [vmem:[%s1099 + $0x10] sm:$0xff]
    %v1103 = vld [vmem:[%s1099 + $0x18] sm:$0xff]
    %v1104 = vld [vmem:[#allocation2] sm:$0xff]
    %v1105 = vpack.c.bf16 %v1104, %v1104
    %1106 = vmatprep.subr.bf16.mxu0 %v724
    %1107 = vmatpush1.bf16.msra.mxu0 %v723
    %1108 = vmatprep.subr.bf16.mxu0 %v720
    %1109 = vmatpush1.bf16.msra.mxu0 %v719
    %1110 = vmatprep.subr.bf16.mxu0 %v716
    %1111 = vmatpush1.bf16.msra.mxu0 %v715
    %1112 = vmatprep.subr.bf16.mxu0 %v712
    %1113 = vmatpush1.bf16.msra.mxu0 %v711
    %1114 = vmatprep.subr.bf16.mxu0 %v708
    %1115 = vmatpush1.bf16.msra.mxu0 %v707
    %1116 = vmatprep.subr.bf16.mxu0 %v704
    %1117 = vmatpush1.bf16.msra.mxu0 %v703
    %1118 = vmatprep.subr.bf16.mxu0 %v700
    %1119 = vmatpush1.bf16.msra.mxu0 %v699
    %1120 = vmatprep.subr.bf16.mxu0 %v696
    %1121 = vmatpush1.bf16.msra.mxu0 %v695
    %1122 = vmatprep.subr.bf16.mxu0 0
    %1123 = vmatpush2.bf16.msra.mxu0 0
    %1124 = vmatprep.subr.bf16.mxu0 0
    %1125 = vmatpush2.bf16.msra.mxu0 0
    %1126 = vmatprep.subr.bf16.mxu0 0
    %1127 = vmatpush2.bf16.msra.mxu0 0
    %1128 = vmatprep.subr.bf16.mxu0 0
    %1129 = vmatpush2.bf16.msra.mxu0 0
    %1130 = vmatprep.subr.bf16.mxu0 0
    %1131 = vmatpush2.bf16.msra.mxu0 0
    %1132 = vmatprep.subr.bf16.mxu0 0
    %1133 = vmatpush2.bf16.msra.mxu0 0
    %1134 = vmatprep.subr.bf16.mxu0 0
    %1135 = vmatpush2.bf16.msra.mxu0 0
    %1136 = vmatprep.subr.bf16.mxu0 0
    %1137 = vmatpush2.bf16.msra.mxu0 0
    %1138 = vmatprep.mubr.bf16.mxu0 0
    %1139 = vmatmul.mubr.bf16.gmra.mxu0 %v1105
    %v1140 = vpop.f32.mrf.mxu0
    %v1141 = vadd.f32 0.0, %v1140
    %v1142 = vpop.f32.mrf.mxu0
    %v1143 = vadd.f32 0.0, %v1142
    %v1144 = vpop.f32.mrf.mxu0
    %v1145 = vpop.f32.mrf.mxu0
    %1146 = vdwg.mxu0
    %1147 = vmatprep.subr.bf16.mxu0 %v726
    %1148 = vmatpush1.bf16.msra.mxu0 %v725
    %1149 = vmatprep.subr.bf16.mxu0 %v722
    %1150 = vmatpush1.bf16.msra.mxu0 %v721
    %1151 = vmatprep.subr.bf16.mxu0 %v718
    %1152 = vmatpush1.bf16.msra.mxu0 %v717
    %1153 = vmatprep.subr.bf16.mxu0 %v714
    %1154 = vmatpush1.bf16.msra.mxu0 %v713
    %1155 = vmatprep.subr.bf16.mxu0 %v710
    %1156 = vmatpush1.bf16.msra.mxu0 %v709
    %1157 = vmatprep.subr.bf16.mxu0 %v706
    %1158 = vmatpush1.bf16.msra.mxu0 %v705
    %1159 = vmatprep.subr.bf16.mxu0 %v702
    %1160 = vmatpush1.bf16.msra.mxu0 %v701
    %1161 = vmatprep.subr.bf16.mxu0 %v698
    %1162 = vmatpush1.bf16.msra.mxu0 %v697
    %1163 = vmatprep.subr.bf16.mxu0 0
    %1164 = vmatpush2.bf16.msra.mxu0 0
    %1165 = vmatprep.subr.bf16.mxu0 0
    %1166 = vmatpush2.bf16.msra.mxu0 0
    %1167 = vmatprep.subr.bf16.mxu0 0
    %1168 = vmatpush2.bf16.msra.mxu0 0
    %1169 = vmatprep.subr.bf16.mxu0 0
    %1170 = vmatpush2.bf16.msra.mxu0 0
    %1171 = vmatprep.subr.bf16.mxu0 0
    %1172 = vmatpush2.bf16.msra.mxu0 0
    %1173 = vmatprep.subr.bf16.mxu0 0
    %1174 = vmatpush2.bf16.msra.mxu0 0
    %1175 = vmatprep.subr.bf16.mxu0 0
    %1176 = vmatpush2.bf16.msra.mxu0 0
    %1177 = vmatprep.subr.bf16.mxu0 0
    %1178 = vmatpush2.bf16.msra.mxu0 0
    %1179 = vmatprep.mubr.bf16.mxu0 0
    %1180 = vmatmul.mubr.bf16.gmra.mxu0 %v1105
    %v1181 = vpop.f32.mrf.mxu0
    %v1182 = vadd.f32 0.0, %v1181
    %v1183 = vpop.f32.mrf.mxu0
    %v1184 = vadd.f32 0.0, %v1183
    %v1185 = vpop.f32.mrf.mxu0
    %v1186 = vpop.f32.mrf.mxu0
    %1187 = vdwg.mxu0
    %v1188 = vadd.f32 %v1100, %v1141
    %v1189 = vadd.f32 %v1101, %v1143
    %v1190 = vadd.f32 %v1102, %v1182
    %v1191 = vadd.f32 %v1103, %v1184
    %v1192 = vld [vmem:[#allocation3] sm:$0xff]
    %v1193 = vmul.f32 %v1188, 0.5
    %v1194 = vtanh.pop %v1193
    %v1195 = vadd.f32 %v1194, 1.0
    %v1196 = vmul.f32 %v1195, 0.5
    %v1197 = vmul.f32 %v1189, 0.5
    %v1198 = vtanh.pop %v1197
    %v1199 = vadd.f32 %v1198, 1.0
    %v1200 = vmul.f32 %v1199, 0.5
    %v1201 = vtanh.pop %v1190
    %v1202 = vmul.f32 %v1191, 0.5
    %v1203 = vtanh.pop %v1202
    %v1204 = vadd.f32 %v1203, 1.0
    %v1205 = vmul.f32 %v1204, 0.5
    %v1206 = vmul.f32 %v1200, %v1192
    %v1207 = vmul.f32 %v1196, %v1201
    %v1208 = vadd.f32 %v1206, %v1207
    %v1209 = vtanh.pop %v1208
    %v1210 = vmul.f32 %v1205, %v1209
    %1211 = vst [vmem:[#allocation2] sm:$0xff] %v1210
    %1212 = vst [vmem:[#allocation3] sm:$0xff] %v1208
    %s1213 = scalar_lea.vmem [#allocation7], 24
    %1214 = vst [vmem:[%s1213] sm:$0xff] %v1210
    %s1215 = scalar_lea.vmem [#allocation6], 128
    %v1216 = vld [vmem:[%s1215] sm:$0xff]
    %v1217 = vld [vmem:[%s1215 + $0x8] sm:$0xff]
    %v1218 = vld [vmem:[%s1215 + $0x10] sm:$0xff]
    %v1219 = vld [vmem:[%s1215 + $0x18] sm:$0xff]
    %v1220 = vld [vmem:[#allocation2] sm:$0xff]
    %v1221 = vpack.c.bf16 %v1220, %v1220
    %1222 = vmatprep.subr.bf16.mxu0 %v724
    %1223 = vmatpush1.bf16.msra.mxu0 %v723
    %1224 = vmatprep.subr.bf16.mxu0 %v720
    %1225 = vmatpush1.bf16.msra.mxu0 %v719
    %1226 = vmatprep.subr.bf16.mxu0 %v716
    %1227 = vmatpush1.bf16.msra.mxu0 %v715
    %1228 = vmatprep.subr.bf16.mxu0 %v712
    %1229 = vmatpush1.bf16.msra.mxu0 %v711
    %1230 = vmatprep.subr.bf16.mxu0 %v708
    %1231 = vmatpush1.bf16.msra.mxu0 %v707
    %1232 = vmatprep.subr.bf16.mxu0 %v704
    %1233 = vmatpush1.bf16.msra.mxu0 %v703
    %1234 = vmatprep.subr.bf16.mxu0 %v700
    %1235 = vmatpush1.bf16.msra.mxu0 %v699
    %1236 = vmatprep.subr.bf16.mxu0 %v696
    %1237 = vmatpush1.bf16.msra.mxu0 %v695
    %1238 = vmatprep.subr.bf16.mxu0 0
    %1239 = vmatpush2.bf16.msra.mxu0 0
    %1240 = vmatprep.subr.bf16.mxu0 0
    %1241 = vmatpush2.bf16.msra.mxu0 0
    %1242 = vmatprep.subr.bf16.mxu0 0
    %1243 = vmatpush2.bf16.msra.mxu0 0
    %1244 = vmatprep.subr.bf16.mxu0 0
    %1245 = vmatpush2.bf16.msra.mxu0 0
    %1246 = vmatprep.subr.bf16.mxu0 0
    %1247 = vmatpush2.bf16.msra.mxu0 0
    %1248 = vmatprep.subr.bf16.mxu0 0
    %1249 = vmatpush2.bf16.msra.mxu0 0
    %1250 = vmatprep.subr.bf16.mxu0 0
    %1251 = vmatpush2.bf16.msra.mxu0 0
    %1252 = vmatprep.subr.bf16.mxu0 0
    %1253 = vmatpush2.bf16.msra.mxu0 0
    %1254 = vmatprep.mubr.bf16.mxu0 0
    %1255 = vmatmul.mubr.bf16.gmra.mxu0 %v1221
    %v1256 = vpop.f32.mrf.mxu0
    %v1257 = vadd.f32 0.0, %v1256
    %v1258 = vpop.f32.mrf.mxu0
    %v1259 = vadd.f32 0.0, %v1258
    %v1260 = vpop.f32.mrf.mxu0
    %v1261 = vpop.f32.mrf.mxu0
    %1262 = vdwg.mxu0
    %1263 = vmatprep.subr.bf16.mxu0 %v726
    %1264 = vmatpush1.bf16.msra.mxu0 %v725
    %1265 = vmatprep.subr.bf16.mxu0 %v722
    %1266 = vmatpush1.bf16.msra.mxu0 %v721
    %1267 = vmatprep.subr.bf16.mxu0 %v718
    %1268 = vmatpush1.bf16.msra.mxu0 %v717
    %1269 = vmatprep.subr.bf16.mxu0 %v714
    %1270 = vmatpush1.bf16.msra.mxu0 %v713
    %1271 = vmatprep.subr.bf16.mxu0 %v710
    %1272 = vmatpush1.bf16.msra.mxu0 %v709
    %1273 = vmatprep.subr.bf16.mxu0 %v706
    %1274 = vmatpush1.bf16.msra.mxu0 %v705
    %1275 = vmatprep.subr.bf16.mxu0 %v702
    %1276 = vmatpush1.bf16.msra.mxu0 %v701
    %1277 = vmatprep.subr.bf16.mxu0 %v698
    %1278 = vmatpush1.bf16.msra.mxu0 %v697
    %1279 = vmatprep.subr.bf16.mxu0 0
    %1280 = vmatpush2.bf16.msra.mxu0 0
    %1281 = vmatprep.subr.bf16.mxu0 0
    %1282 = vmatpush2.bf16.msra.mxu0 0
    %1283 = vmatprep.subr.bf16.mxu0 0
    %1284 = vmatpush2.bf16.msra.mxu0 0
    %1285 = vmatprep.subr.bf16.mxu0 0
    %1286 = vmatpush2.bf16.msra.mxu0 0
    %1287 = vmatprep.subr.bf16.mxu0 0
    %1288 = vmatpush2.bf16.msra.mxu0 0
    %1289 = vmatprep.subr.bf16.mxu0 0
    %1290 = vmatpush2.bf16.msra.mxu0 0
    %1291 = vmatprep.subr.bf16.mxu0 0
    %1292 = vmatpush2.bf16.msra.mxu0 0
    %1293 = vmatprep.subr.bf16.mxu0 0
    %1294 = vmatpush2.bf16.msra.mxu0 0
    %1295 = vmatprep.mubr.bf16.mxu0 0
    %1296 = vmatmul.mubr.bf16.gmra.mxu0 %v1221
    %v1297 = vpop.f32.mrf.mxu0
    %v1298 = vadd.f32 0.0, %v1297
    %v1299 = vpop.f32.mrf.mxu0
    %v1300 = vadd.f32 0.0, %v1299
    %v1301 = vpop.f32.mrf.mxu0
    %v1302 = vpop.f32.mrf.mxu0
    %1303 = vdwg.mxu0
    %v1304 = vadd.f32 %v1216, %v1257
    %v1305 = vadd.f32 %v1217, %v1259
    %v1306 = vadd.f32 %v1218, %v1298
    %v1307 = vadd.f32 %v1219, %v1300
    %v1308 = vld [vmem:[#allocation3] sm:$0xff]
    %v1309 = vmul.f32 %v1304, 0.5
    %v1310 = vtanh.pop %v1309
    %v1311 = vadd.f32 %v1310, 1.0
    %v1312 = vmul.f32 %v1311, 0.5
    %v1313 = vmul.f32 %v1305, 0.5
    %v1314 = vtanh.pop %v1313
    %v1315 = vadd.f32 %v1314, 1.0
    %v1316 = vmul.f32 %v1315, 0.5
    %v1317 = vtanh.pop %v1306
    %v1318 = vmul.f32 %v1307, 0.5
    %v1319 = vtanh.pop %v1318
    %v1320 = vadd.f32 %v1319, 1.0
    %v1321 = vmul.f32 %v1320, 0.5
    %v1322 = vmul.f32 %v1316, %v1308
    %v1323 = vmul.f32 %v1312, %v1317
    %v1324 = vadd.f32 %v1322, %v1323
    %v1325 = vtanh.pop %v1324
    %v1326 = vmul.f32 %v1321, %v1325
    %1327 = vst [vmem:[#allocation2] sm:$0xff] %v1326
    %1328 = vst [vmem:[#allocation3] sm:$0xff] %v1324
    %s1329 = scalar_lea.vmem [#allocation7], 32
    %1330 = vst [vmem:[%s1329] sm:$0xff] %v1326
    %s1331 = scalar_lea.vmem [#allocation6], 160
    %v1332 = vld [vmem:[%s1331] sm:$0xff]
    %v1333 = vld [vmem:[%s1331 + $0x8] sm:$0xff]
    %v1334 = vld [vmem:[%s1331 + $0x10] sm:$0xff]
    %v1335 = vld [vmem:[%s1331 + $0x18] sm:$0xff]
    %v1336 = vld [vmem:[#allocation2] sm:$0xff]
    %v1337 = vpack.c.bf16 %v1336, %v1336
    %1338 = vmatprep.subr.bf16.mxu0 %v724
    %1339 = vmatpush1.bf16.msra.mxu0 %v723
    %1340 = vmatprep.subr.bf16.mxu0 %v720
    %1341 = vmatpush1.bf16.msra.mxu0 %v719
    %1342 = vmatprep.subr.bf16.mxu0 %v716
    %1343 = vmatpush1.bf16.msra.mxu0 %v715
    %1344 = vmatprep.subr.bf16.mxu0 %v712
    %1345 = vmatpush1.bf16.msra.mxu0 %v711
    %1346 = vmatprep.subr.bf16.mxu0 %v708
    %1347 = vmatpush1.bf16.msra.mxu0 %v707
    %1348 = vmatprep.subr.bf16.mxu0 %v704
    %1349 = vmatpush1.bf16.msra.mxu0 %v703
    %1350 = vmatprep.subr.bf16.mxu0 %v700
    %1351 = vmatpush1.bf16.msra.mxu0 %v699
    %1352 = vmatprep.subr.bf16.mxu0 %v696
    %1353 = vmatpush1.bf16.msra.mxu0 %v695
    %1354 = vmatprep.subr.bf16.mxu0 0
    %1355 = vmatpush2.bf16.msra.mxu0 0
    %1356 = vmatprep.subr.bf16.mxu0 0
    %1357 = vmatpush2.bf16.msra.mxu0 0
    %1358 = vmatprep.subr.bf16.mxu0 0
    %1359 = vmatpush2.bf16.msra.mxu0 0
    %1360 = vmatprep.subr.bf16.mxu0 0
    %1361 = vmatpush2.bf16.msra.mxu0 0
    %1362 = vmatprep.subr.bf16.mxu0 0
    %1363 = vmatpush2.bf16.msra.mxu0 0
    %1364 = vmatprep.subr.bf16.mxu0 0
    %1365 = vmatpush2.bf16.msra.mxu0 0
    %1366 = vmatprep.subr.bf16.mxu0 0
    %1367 = vmatpush2.bf16.msra.mxu0 0
    %1368 = vmatprep.subr.bf16.mxu0 0
    %1369 = vmatpush2.bf16.msra.mxu0 0
    %1370 = vmatprep.mubr.bf16.mxu0 0
    %1371 = vmatmul.mubr.bf16.gmra.mxu0 %v1337
    %v1372 = vpop.f32.mrf.mxu0
    %v1373 = vadd.f32 0.0, %v1372
    %v1374 = vpop.f32.mrf.mxu0
    %v1375 = vadd.f32 0.0, %v1374
    %v1376 = vpop.f32.mrf.mxu0
    %v1377 = vpop.f32.mrf.mxu0
    %1378 = vdwg.mxu0
    %1379 = vmatprep.subr.bf16.mxu0 %v726
    %1380 = vmatpush1.bf16.msra.mxu0 %v725
    %1381 = vmatprep.subr.bf16.mxu0 %v722
    %1382 = vmatpush1.bf16.msra.mxu0 %v721
    %1383 = vmatprep.subr.bf16.mxu0 %v718
    %1384 = vmatpush1.bf16.msra.mxu0 %v717
    %1385 = vmatprep.subr.bf16.mxu0 %v714
    %1386 = vmatpush1.bf16.msra.mxu0 %v713
    %1387 = vmatprep.subr.bf16.mxu0 %v710
    %1388 = vmatpush1.bf16.msra.mxu0 %v709
    %1389 = vmatprep.subr.bf16.mxu0 %v706
    %1390 = vmatpush1.bf16.msra.mxu0 %v705
    %1391 = vmatprep.subr.bf16.mxu0 %v702
    %1392 = vmatpush1.bf16.msra.mxu0 %v701
    %1393 = vmatprep.subr.bf16.mxu0 %v698
    %1394 = vmatpush1.bf16.msra.mxu0 %v697
    %1395 = vmatprep.subr.bf16.mxu0 0
    %1396 = vmatpush2.bf16.msra.mxu0 0
    %1397 = vmatprep.subr.bf16.mxu0 0
    %1398 = vmatpush2.bf16.msra.mxu0 0
    %1399 = vmatprep.subr.bf16.mxu0 0
    %1400 = vmatpush2.bf16.msra.mxu0 0
    %1401 = vmatprep.subr.bf16.mxu0 0
    %1402 = vmatpush2.bf16.msra.mxu0 0
    %1403 = vmatprep.subr.bf16.mxu0 0
    %1404 = vmatpush2.bf16.msra.mxu0 0
    %1405 = vmatprep.subr.bf16.mxu0 0
    %1406 = vmatpush2.bf16.msra.mxu0 0
    %1407 = vmatprep.subr.bf16.mxu0 0
    %1408 = vmatpush2.bf16.msra.mxu0 0
    %1409 = vmatprep.subr.bf16.mxu0 0
    %1410 = vmatpush2.bf16.msra.mxu0 0
    %1411 = vmatprep.mubr.bf16.mxu0 0
    %1412 = vmatmul.mubr.bf16.gmra.mxu0 %v1337
    %v1413 = vpop.f32.mrf.mxu0
    %v1414 = vadd.f32 0.0, %v1413
    %v1415 = vpop.f32.mrf.mxu0
    %v1416 = vadd.f32 0.0, %v1415
    %v1417 = vpop.f32.mrf.mxu0
    %v1418 = vpop.f32.mrf.mxu0
    %1419 = vdwg.mxu0
    %v1420 = vadd.f32 %v1332, %v1373
    %v1421 = vadd.f32 %v1333, %v1375
    %v1422 = vadd.f32 %v1334, %v1414
    %v1423 = vadd.f32 %v1335, %v1416
    %v1424 = vld [vmem:[#allocation3] sm:$0xff]
    %v1425 = vmul.f32 %v1420, 0.5
    %v1426 = vtanh.pop %v1425
    %v1427 = vadd.f32 %v1426, 1.0
    %v1428 = vmul.f32 %v1427, 0.5
    %v1429 = vmul.f32 %v1421, 0.5
    %v1430 = vtanh.pop %v1429
    %v1431 = vadd.f32 %v1430, 1.0
    %v1432 = vmul.f32 %v1431, 0.5
    %v1433 = vtanh.pop %v1422
    %v1434 = vmul.f32 %v1423, 0.5
    %v1435 = vtanh.pop %v1434
    %v1436 = vadd.f32 %v1435, 1.0
    %v1437 = vmul.f32 %v1436, 0.5
    %v1438 = vmul.f32 %v1432, %v1424
    %v1439 = vmul.f32 %v1428, %v1433
    %v1440 = vadd.f32 %v1438, %v1439
    %v1441 = vtanh.pop %v1440
    %v1442 = vmul.f32 %v1437, %v1441
    %1443 = vst [vmem:[#allocation2] sm:$0xff] %v1442
    %1444 = vst [vmem:[#allocation3] sm:$0xff] %v1440
    %s1445 = scalar_lea.vmem [#allocation7], 40
    %1446 = vst [vmem:[%s1445] sm:$0xff] %v1442
    %s1447 = scalar_lea.vmem [#allocation6], 192
    %v1448 = vld [vmem:[%s1447] sm:$0xff]
    %v1449 = vld [vmem:[%s1447 + $0x8] sm:$0xff]
    %v1450 = vld [vmem:[%s1447 + $0x10] sm:$0xff]
    %v1451 = vld [vmem:[%s1447 + $0x18] sm:$0xff]
    %v1452 = vld [vmem:[#allocation2] sm:$0xff]
    %v1453 = vpack.c.bf16 %v1452, %v1452
    %1454 = vmatprep.subr.bf16.mxu0 %v724
    %1455 = vmatpush1.bf16.msra.mxu0 %v723
    %1456 = vmatprep.subr.bf16.mxu0 %v720
    %1457 = vmatpush1.bf16.msra.mxu0 %v719
    %1458 = vmatprep.subr.bf16.mxu0 %v716
    %1459 = vmatpush1.bf16.msra.mxu0 %v715
    %1460 = vmatprep.subr.bf16.mxu0 %v712
    %1461 = vmatpush1.bf16.msra.mxu0 %v711
    %1462 = vmatprep.subr.bf16.mxu0 %v708
    %1463 = vmatpush1.bf16.msra.mxu0 %v707
    %1464 = vmatprep.subr.bf16.mxu0 %v704
    %1465 = vmatpush1.bf16.msra.mxu0 %v703
    %1466 = vmatprep.subr.bf16.mxu0 %v700
    %1467 = vmatpush1.bf16.msra.mxu0 %v699
    %1468 = vmatprep.subr.bf16.mxu0 %v696
    %1469 = vmatpush1.bf16.msra.mxu0 %v695
    %1470 = vmatprep.subr.bf16.mxu0 0
    %1471 = vmatpush2.bf16.msra.mxu0 0
    %1472 = vmatprep.subr.bf16.mxu0 0
    %1473 = vmatpush2.bf16.msra.mxu0 0
    %1474 = vmatprep.subr.bf16.mxu0 0
    %1475 = vmatpush2.bf16.msra.mxu0 0
    %1476 = vmatprep.subr.bf16.mxu0 0
    %1477 = vmatpush2.bf16.msra.mxu0 0
    %1478 = vmatprep.subr.bf16.mxu0 0
    %1479 = vmatpush2.bf16.msra.mxu0 0
    %1480 = vmatprep.subr.bf16.mxu0 0
    %1481 = vmatpush2.bf16.msra.mxu0 0
    %1482 = vmatprep.subr.bf16.mxu0 0
    %1483 = vmatpush2.bf16.msra.mxu0 0
    %1484 = vmatprep.subr.bf16.mxu0 0
    %1485 = vmatpush2.bf16.msra.mxu0 0
    %1486 = vmatprep.mubr.bf16.mxu0 0
    %1487 = vmatmul.mubr.bf16.gmra.mxu0 %v1453
    %v1488 = vpop.f32.mrf.mxu0
    %v1489 = vadd.f32 0.0, %v1488
    %v1490 = vpop.f32.mrf.mxu0
    %v1491 = vadd.f32 0.0, %v1490
    %v1492 = vpop.f32.mrf.mxu0
    %v1493 = vpop.f32.mrf.mxu0
    %1494 = vdwg.mxu0
    %1495 = vmatprep.subr.bf16.mxu0 %v726
    %1496 = vmatpush1.bf16.msra.mxu0 %v725
    %1497 = vmatprep.subr.bf16.mxu0 %v722
    %1498 = vmatpush1.bf16.msra.mxu0 %v721
    %1499 = vmatprep.subr.bf16.mxu0 %v718
    %1500 = vmatpush1.bf16.msra.mxu0 %v717
    %1501 = vmatprep.subr.bf16.mxu0 %v714
    %1502 = vmatpush1.bf16.msra.mxu0 %v713
    %1503 = vmatprep.subr.bf16.mxu0 %v710
    %1504 = vmatpush1.bf16.msra.mxu0 %v709
    %1505 = vmatprep.subr.bf16.mxu0 %v706
    %1506 = vmatpush1.bf16.msra.mxu0 %v705
    %1507 = vmatprep.subr.bf16.mxu0 %v702
    %1508 = vmatpush1.bf16.msra.mxu0 %v701
    %1509 = vmatprep.subr.bf16.mxu0 %v698
    %1510 = vmatpush1.bf16.msra.mxu0 %v697
    %1511 = vmatprep.subr.bf16.mxu0 0
    %1512 = vmatpush2.bf16.msra.mxu0 0
    %1513 = vmatprep.subr.bf16.mxu0 0
    %1514 = vmatpush2.bf16.msra.mxu0 0
    %1515 = vmatprep.subr.bf16.mxu0 0
    %1516 = vmatpush2.bf16.msra.mxu0 0
    %1517 = vmatprep.subr.bf16.mxu0 0
    %1518 = vmatpush2.bf16.msra.mxu0 0
    %1519 = vmatprep.subr.bf16.mxu0 0
    %1520 = vmatpush2.bf16.msra.mxu0 0
    %1521 = vmatprep.subr.bf16.mxu0 0
    %1522 = vmatpush2.bf16.msra.mxu0 0
    %1523 = vmatprep.subr.bf16.mxu0 0
    %1524 = vmatpush2.bf16.msra.mxu0 0
    %1525 = vmatprep.subr.bf16.mxu0 0
    %1526 = vmatpush2.bf16.msra.mxu0 0
    %1527 = vmatprep.mubr.bf16.mxu0 0
    %1528 = vmatmul.mubr.bf16.gmra.mxu0 %v1453
    %v1529 = vpop.f32.mrf.mxu0
    %v1530 = vadd.f32 0.0, %v1529
    %v1531 = vpop.f32.mrf.mxu0
    %v1532 = vadd.f32 0.0, %v1531
    %v1533 = vpop.f32.mrf.mxu0
    %v1534 = vpop.f32.mrf.mxu0
    %1535 = vdwg.mxu0
    %v1536 = vadd.f32 %v1448, %v1489
    %v1537 = vadd.f32 %v1449, %v1491
    %v1538 = vadd.f32 %v1450, %v1530
    %v1539 = vadd.f32 %v1451, %v1532
    %v1540 = vld [vmem:[#allocation3] sm:$0xff]
    %v1541 = vmul.f32 %v1536, 0.5
    %v1542 = vtanh.pop %v1541
    %v1543 = vadd.f32 %v1542, 1.0
    %v1544 = vmul.f32 %v1543, 0.5
    %v1545 = vmul.f32 %v1537, 0.5
    %v1546 = vtanh.pop %v1545
    %v1547 = vadd.f32 %v1546, 1.0
    %v1548 = vmul.f32 %v1547, 0.5
    %v1549 = vtanh.pop %v1538
    %v1550 = vmul.f32 %v1539, 0.5
    %v1551 = vtanh.pop %v1550
    %v1552 = vadd.f32 %v1551, 1.0
    %v1553 = vmul.f32 %v1552, 0.5
    %v1554 = vmul.f32 %v1548, %v1540
    %v1555 = vmul.f32 %v1544, %v1549
    %v1556 = vadd.f32 %v1554, %v1555
    %v1557 = vtanh.pop %v1556
    %v1558 = vmul.f32 %v1553, %v1557
    %1559 = vst [vmem:[#allocation2] sm:$0xff] %v1558
    %1560 = vst [vmem:[#allocation3] sm:$0xff] %v1556
    %s1561 = scalar_lea.vmem [#allocation7], 48
    %1562 = vst [vmem:[%s1561] sm:$0xff] %v1558
    %s1563 = scalar_lea.vmem [#allocation6], 224
    %v1564 = vld [vmem:[%s1563] sm:$0xff]
    %v1565 = vld [vmem:[%s1563 + $0x8] sm:$0xff]
    %v1566 = vld [vmem:[%s1563 + $0x10] sm:$0xff]
    %v1567 = vld [vmem:[%s1563 + $0x18] sm:$0xff]
    %v1568 = vld [vmem:[#allocation2] sm:$0xff]
    %v1569 = vpack.c.bf16 %v1568, %v1568
    %1570 = vmatprep.subr.bf16.mxu0 %v724
    %1571 = vmatpush1.bf16.msra.mxu0 %v723
    %1572 = vmatprep.subr.bf16.mxu0 %v720
    %1573 = vmatpush1.bf16.msra.mxu0 %v719
    %1574 = vmatprep.subr.bf16.mxu0 %v716
    %1575 = vmatpush1.bf16.msra.mxu0 %v715
    %1576 = vmatprep.subr.bf16.mxu0 %v712
    %1577 = vmatpush1.bf16.msra.mxu0 %v711
    %1578 = vmatprep.subr.bf16.mxu0 %v708
    %1579 = vmatpush1.bf16.msra.mxu0 %v707
    %1580 = vmatprep.subr.bf16.mxu0 %v704
    %1581 = vmatpush1.bf16.msra.mxu0 %v703
    %1582 = vmatprep.subr.bf16.mxu0 %v700
    %1583 = vmatpush1.bf16.msra.mxu0 %v699
    %1584 = vmatprep.subr.bf16.mxu0 %v696
    %1585 = vmatpush1.bf16.msra.mxu0 %v695
    %1586 = vmatprep.subr.bf16.mxu0 0
    %1587 = vmatpush2.bf16.msra.mxu0 0
    %1588 = vmatprep.subr.bf16.mxu0 0
    %1589 = vmatpush2.bf16.msra.mxu0 0
    %1590 = vmatprep.subr.bf16.mxu0 0
    %1591 = vmatpush2.bf16.msra.mxu0 0
    %1592 = vmatprep.subr.bf16.mxu0 0
    %1593 = vmatpush2.bf16.msra.mxu0 0
    %1594 = vmatprep.subr.bf16.mxu0 0
    %1595 = vmatpush2.bf16.msra.mxu0 0
    %1596 = vmatprep.subr.bf16.mxu0 0
    %1597 = vmatpush2.bf16.msra.mxu0 0
    %1598 = vmatprep.subr.bf16.mxu0 0
    %1599 = vmatpush2.bf16.msra.mxu0 0
    %1600 = vmatprep.subr.bf16.mxu0 0
    %1601 = vmatpush2.bf16.msra.mxu0 0
    %1602 = vmatprep.mubr.bf16.mxu0 0
    %1603 = vmatmul.mubr.bf16.gmra.mxu0 %v1569
    %v1604 = vpop.f32.mrf.mxu0
    %v1605 = vadd.f32 0.0, %v1604
    %v1606 = vpop.f32.mrf.mxu0
    %v1607 = vadd.f32 0.0, %v1606
    %v1608 = vpop.f32.mrf.mxu0
    %v1609 = vpop.f32.mrf.mxu0
    %1610 = vdwg.mxu0
    %1611 = vmatprep.subr.bf16.mxu0 %v726
    %1612 = vmatpush1.bf16.msra.mxu0 %v725
    %1613 = vmatprep.subr.bf16.mxu0 %v722
    %1614 = vmatpush1.bf16.msra.mxu0 %v721
    %1615 = vmatprep.subr.bf16.mxu0 %v718
    %1616 = vmatpush1.bf16.msra.mxu0 %v717
    %1617 = vmatprep.subr.bf16.mxu0 %v714
    %1618 = vmatpush1.bf16.msra.mxu0 %v713
    %1619 = vmatprep.subr.bf16.mxu0 %v710
    %1620 = vmatpush1.bf16.msra.mxu0 %v709
    %1621 = vmatprep.subr.bf16.mxu0 %v706
    %1622 = vmatpush1.bf16.msra.mxu0 %v705
    %1623 = vmatprep.subr.bf16.mxu0 %v702
    %1624 = vmatpush1.bf16.msra.mxu0 %v701
    %1625 = vmatprep.subr.bf16.mxu0 %v698
    %1626 = vmatpush1.bf16.msra.mxu0 %v697
    %1627 = vmatprep.subr.bf16.mxu0 0
    %1628 = vmatpush2.bf16.msra.mxu0 0
    %1629 = vmatprep.subr.bf16.mxu0 0
    %1630 = vmatpush2.bf16.msra.mxu0 0
    %1631 = vmatprep.subr.bf16.mxu0 0
    %1632 = vmatpush2.bf16.msra.mxu0 0
    %1633 = vmatprep.subr.bf16.mxu0 0
    %1634 = vmatpush2.bf16.msra.mxu0 0
    %1635 = vmatprep.subr.bf16.mxu0 0
    %1636 = vmatpush2.bf16.msra.mxu0 0
    %1637 = vmatprep.subr.bf16.mxu0 0
    %1638 = vmatpush2.bf16.msra.mxu0 0
    %1639 = vmatprep.subr.bf16.mxu0 0
    %1640 = vmatpush2.bf16.msra.mxu0 0
    %1641 = vmatprep.subr.bf16.mxu0 0
    %1642 = vmatpush2.bf16.msra.mxu0 0
    %1643 = vmatprep.mubr.bf16.mxu0 0
    %1644 = vmatmul.mubr.bf16.gmra.mxu0 %v1569
    %v1645 = vpop.f32.mrf.mxu0
    %v1646 = vadd.f32 0.0, %v1645
    %v1647 = vpop.f32.mrf.mxu0
    %v1648 = vadd.f32 0.0, %v1647
    %v1649 = vpop.f32.mrf.mxu0
    %v1650 = vpop.f32.mrf.mxu0
    %1651 = vdwg.mxu0
    %v1652 = vadd.f32 %v1564, %v1605
    %v1653 = vadd.f32 %v1565, %v1607
    %v1654 = vadd.f32 %v1566, %v1646
    %v1655 = vadd.f32 %v1567, %v1648
    %v1656 = vld [vmem:[#allocation3] sm:$0xff]
    %v1657 = vmul.f32 %v1652, 0.5
    %v1658 = vtanh.pop %v1657
    %v1659 = vadd.f32 %v1658, 1.0
    %v1660 = vmul.f32 %v1659, 0.5
    %v1661 = vmul.f32 %v1653, 0.5
    %v1662 = vtanh.pop %v1661
    %v1663 = vadd.f32 %v1662, 1.0
    %v1664 = vmul.f32 %v1663, 0.5
    %v1665 = vtanh.pop %v1654
    %v1666 = vmul.f32 %v1655, 0.5
    %v1667 = vtanh.pop %v1666
    %v1668 = vadd.f32 %v1667, 1.0
    %v1669 = vmul.f32 %v1668, 0.5
    %v1670 = vmul.f32 %v1664, %v1656
    %v1671 = vmul.f32 %v1660, %v1665
    %v1672 = vadd.f32 %v1670, %v1671
    %v1673 = vtanh.pop %v1672
    %v1674 = vmul.f32 %v1669, %v1673
    %1675 = vst [vmem:[#allocation2] sm:$0xff] %v1674
    %1676 = vst [vmem:[#allocation3] sm:$0xff] %v1672
    %s1677 = scalar_lea.vmem [#allocation7], 56
    %1678 = vst [vmem:[%s1677] sm:$0xff] %v1674
    %v1679 = vld [vmem:[#allocation7] sm:$0xff]
    %v1680 = vld [vmem:[#allocation7 + $0x8] sm:$0xff]
    %v1681 = vld [vmem:[#allocation7 + $0x10] sm:$0xff]
    %v1682 = vld [vmem:[#allocation7 + $0x18] sm:$0xff]
    %v1683 = vld [vmem:[#allocation7 + $0x20] sm:$0xff]
    %v1684 = vld [vmem:[#allocation7 + $0x28] sm:$0xff]
    %v1685 = vld [vmem:[#allocation7 + $0x30] sm:$0xff]
    %v1686 = vld [vmem:[#allocation7 + $0x38] sm:$0xff]
    %v1687 = vpack.c.bf16 %v1680, %v1679
    %v1688 = vpack.c.bf16 %v1682, %v1681
    %v1689 = vpack.c.bf16 %v1684, %v1683
    %v1690 = vpack.c.bf16 %v1686, %v1685
    %v1691 = vld [vmem:[#allocation12] sm:$0xff]
    %v1692 = vld [vmem:[#allocation12 + $0x8] sm:$0xff]
    %v1693 = vld [vmem:[#allocation12 + $0x10] sm:$0xff]
    %v1694 = vld [vmem:[#allocation12 + $0x18] sm:$0xff]
    %v1695 = vld [vmem:[#allocation12 + $0x20] sm:$0xff]
    %v1696 = vld [vmem:[#allocation12 + $0x28] sm:$0xff]
    %v1697 = vld [vmem:[#allocation12 + $0x30] sm:$0xff]
    %v1698 = vld [vmem:[#allocation12 + $0x38] sm:$0xff]
    %v1699 = vld [vmem:[#allocation12 + $0x40] sm:$0xff]
    %v1700 = vld [vmem:[#allocation12 + $0x48] sm:$0xff]
    %v1701 = vld [vmem:[#allocation12 + $0x50] sm:$0xff]
    %v1702 = vld [vmem:[#allocation12 + $0x58] sm:$0xff]
    %v1703 = vld [vmem:[#allocation12 + $0x60] sm:$0xff]
    %v1704 = vld [vmem:[#allocation12 + $0x68] sm:$0xff]
    %v1705 = vld [vmem:[#allocation12 + $0x70] sm:$0xff]
    %v1706 = vld [vmem:[#allocation12 + $0x78] sm:$0xff]
    %v1707 = vld [vmem:[#allocation12 + $0x80] sm:$0xff]
    %v1708 = vld [vmem:[#allocation12 + $0x88] sm:$0xff]
    %v1709 = vld [vmem:[#allocation12 + $0x90] sm:$0xff]
    %v1710 = vld [vmem:[#allocation12 + $0x98] sm:$0xff]
    %v1711 = vld [vmem:[#allocation12 + $0xa0] sm:$0xff]
    %v1712 = vld [vmem:[#allocation12 + $0xa8] sm:$0xff]
    %v1713 = vld [vmem:[#allocation12 + $0xb0] sm:$0xff]
    %v1714 = vld [vmem:[#allocation12 + $0xb8] sm:$0xff]
    %v1715 = vld [vmem:[#allocation12 + $0xc0] sm:$0xff]
    %v1716 = vld [vmem:[#allocation12 + $0xc8] sm:$0xff]
    %v1717 = vld [vmem:[#allocation12 + $0xd0] sm:$0xff]
    %v1718 = vld [vmem:[#allocation12 + $0xd8] sm:$0xff]
    %v1719 = vld [vmem:[#allocation12 + $0xe0] sm:$0xff]
    %v1720 = vld [vmem:[#allocation12 + $0xe8] sm:$0xff]
    %v1721 = vld [vmem:[#allocation12 + $0xf0] sm:$0xff]
    %v1722 = vld [vmem:[#allocation12 + $0xf8] sm:$0xff]
    %v1755 = vunpack.c.l.b16 %v1691
    %v1756 = vunpack.c.h.b16 %v1691
    %v1757 = vunpack.c.l.b16 %v1692
    %v1758 = vunpack.c.h.b16 %v1692
    %v1759 = vunpack.c.l.b16 %v1693
    %v1760 = vunpack.c.h.b16 %v1693
    %v1761 = vunpack.c.l.b16 %v1694
    %v1762 = vunpack.c.h.b16 %v1694
    %v1763 = vunpack.c.l.b16 %v1695
    %v1764 = vunpack.c.h.b16 %v1695
    %v1765 = vunpack.c.l.b16 %v1696
    %v1766 = vunpack.c.h.b16 %v1696
    %v1767 = vunpack.c.l.b16 %v1697
    %v1768 = vunpack.c.h.b16 %v1697
    %v1769 = vunpack.c.l.b16 %v1698
    %v1770 = vunpack.c.h.b16 %v1698
    %v1771 = vunpack.c.l.b16 %v1699
    %v1772 = vunpack.c.h.b16 %v1699
    %v1773 = vunpack.c.l.b16 %v1700
    %v1774 = vunpack.c.h.b16 %v1700
    %v1775 = vunpack.c.l.b16 %v1701
    %v1776 = vunpack.c.h.b16 %v1701
    %v1777 = vunpack.c.l.b16 %v1702
    %v1778 = vunpack.c.h.b16 %v1702
    %v1779 = vunpack.c.l.b16 %v1703
    %v1780 = vunpack.c.h.b16 %v1703
    %v1781 = vunpack.c.l.b16 %v1704
    %v1782 = vunpack.c.h.b16 %v1704
    %v1783 = vunpack.c.l.b16 %v1705
    %v1784 = vunpack.c.h.b16 %v1705
    %v1785 = vunpack.c.l.b16 %v1706
    %v1786 = vunpack.c.h.b16 %v1706
    %v1787 = vunpack.c.l.b16 %v1707
    %v1788 = vunpack.c.h.b16 %v1707
    %v1789 = vunpack.c.l.b16 %v1708
    %v1790 = vunpack.c.h.b16 %v1708
    %v1791 = vunpack.c.l.b16 %v1709
    %v1792 = vunpack.c.h.b16 %v1709
    %v1793 = vunpack.c.l.b16 %v1710
    %v1794 = vunpack.c.h.b16 %v1710
    %v1795 = vunpack.c.l.b16 %v1711
    %v1796 = vunpack.c.h.b16 %v1711
    %v1797 = vunpack.c.l.b16 %v1712
    %v1798 = vunpack.c.h.b16 %v1712
    %v1799 = vunpack.c.l.b16 %v1713
    %v1800 = vunpack.c.h.b16 %v1713
    %v1801 = vunpack.c.l.b16 %v1714
    %v1802 = vunpack.c.h.b16 %v1714
    %v1803 = vunpack.c.l.b16 %v1715
    %v1804 = vunpack.c.h.b16 %v1715
    %v1805 = vunpack.c.l.b16 %v1716
    %v1806 = vunpack.c.h.b16 %v1716
    %v1807 = vunpack.c.l.b16 %v1717
    %v1808 = vunpack.c.h.b16 %v1717
    %v1809 = vunpack.c.l.b16 %v1718
    %v1810 = vunpack.c.h.b16 %v1718
    %v1811 = vunpack.c.l.b16 %v1719
    %v1812 = vunpack.c.h.b16 %v1719
    %v1813 = vunpack.c.l.b16 %v1720
    %v1814 = vunpack.c.h.b16 %v1720
    %v1815 = vunpack.c.l.b16 %v1721
    %v1816 = vunpack.c.h.b16 %v1721
    %v1817 = vunpack.c.l.b16 %v1722
    %v1818 = vunpack.c.h.b16 %v1722
    %v1819 = vpack.c.b16 %v1759, %v1755
    %v1820 = vpack.c.b16 %v1760, %v1756
    %v1821 = vpack.c.b16 %v1761, %v1757
    %v1822 = vpack.c.b16 %v1762, %v1758
    %v1823 = vpack.c.b16 %v1767, %v1763
    %v1824 = vpack.c.b16 %v1768, %v1764
    %v1825 = vpack.c.b16 %v1769, %v1765
    %v1826 = vpack.c.b16 %v1770, %v1766
    %v1827 = vpack.c.b16 %v1775, %v1771
    %v1828 = vpack.c.b16 %v1776, %v1772
    %v1829 = vpack.c.b16 %v1777, %v1773
    %v1830 = vpack.c.b16 %v1778, %v1774
    %v1831 = vpack.c.b16 %v1783, %v1779
    %v1832 = vpack.c.b16 %v1784, %v1780
    %v1833 = vpack.c.b16 %v1785, %v1781
    %v1834 = vpack.c.b16 %v1786, %v1782
    %v1835 = vpack.c.b16 %v1791, %v1787
    %v1836 = vpack.c.b16 %v1792, %v1788
    %v1837 = vpack.c.b16 %v1793, %v1789
    %v1838 = vpack.c.b16 %v1794, %v1790
    %v1839 = vpack.c.b16 %v1799, %v1795
    %v1840 = vpack.c.b16 %v1800, %v1796
    %v1841 = vpack.c.b16 %v1801, %v1797
    %v1842 = vpack.c.b16 %v1802, %v1798
    %v1843 = vpack.c.b16 %v1807, %v1803
    %v1844 = vpack.c.b16 %v1808, %v1804
    %v1845 = vpack.c.b16 %v1809, %v1805
    %v1846 = vpack.c.b16 %v1810, %v1806
    %v1847 = vpack.c.b16 %v1815, %v1811
    %v1848 = vpack.c.b16 %v1816, %v1812
    %v1849 = vpack.c.b16 %v1817, %v1813
    %v1850 = vpack.c.b16 %v1818, %v1814
    %1883 = vmatprep.subr.bf16.mxu0 %v1848
    %1884 = vmatpush1.bf16.msra.mxu0 %v1847
    %1885 = vmatprep.subr.bf16.mxu0 %v1844
    %1886 = vmatpush1.bf16.msra.mxu0 %v1843
    %1887 = vmatprep.subr.bf16.mxu0 %v1840
    %1888 = vmatpush1.bf16.msra.mxu0 %v1839
    %1889 = vmatprep.subr.bf16.mxu0 %v1836
    %1890 = vmatpush1.bf16.msra.mxu0 %v1835
    %1891 = vmatprep.subr.bf16.mxu0 %v1832
    %1892 = vmatpush1.bf16.msra.mxu0 %v1831
    %1893 = vmatprep.subr.bf16.mxu0 %v1828
    %1894 = vmatpush1.bf16.msra.mxu0 %v1827
    %1895 = vmatprep.subr.bf16.mxu0 %v1824
    %1896 = vmatpush1.bf16.msra.mxu0 %v1823
    %1897 = vmatprep.subr.bf16.mxu0 %v1820
    %1898 = vmatpush1.bf16.msra.mxu0 %v1819
    %1899 = vmatprep.subr.bf16.mxu0 0
    %1900 = vmatpush2.bf16.msra.mxu0 0
    %1901 = vmatprep.subr.bf16.mxu0 0
    %1902 = vmatpush2.bf16.msra.mxu0 0
    %1903 = vmatprep.subr.bf16.mxu0 0
    %1904 = vmatpush2.bf16.msra.mxu0 0
    %1905 = vmatprep.subr.bf16.mxu0 0
    %1906 = vmatpush2.bf16.msra.mxu0 0
    %1907 = vmatprep.subr.bf16.mxu0 0
    %1908 = vmatpush2.bf16.msra.mxu0 0
    %1909 = vmatprep.subr.bf16.mxu0 0
    %1910 = vmatpush2.bf16.msra.mxu0 0
    %1911 = vmatprep.subr.bf16.mxu0 0
    %1912 = vmatpush2.bf16.msra.mxu0 0
    %1913 = vmatprep.subr.bf16.mxu0 0
    %1914 = vmatpush2.bf16.msra.mxu0 0
    %1915 = vmatprep.mubr.bf16.mxu0 0
    %1916 = vmatmul.mubr.bf16.gmra.mxu0 %v1687
    %v1917 = vpop.f32.mrf.mxu0
    %v1918 = vadd.f32 0.0, %v1917
    %v1919 = vpop.f32.mrf.mxu0
    %v1920 = vadd.f32 0.0, %v1919
    %v1921 = vpop.f32.mrf.mxu0
    %v1922 = vadd.f32 0.0, %v1921
    %v1923 = vpop.f32.mrf.mxu0
    %v1924 = vadd.f32 0.0, %v1923
    %1925 = vmatprep.mubr.bf16.mxu0 0
    %1926 = vmatmul.mubr.bf16.gmra.mxu0 %v1688
    %v1927 = vpop.f32.mrf.mxu0
    %v1928 = vadd.f32 0.0, %v1927
    %v1929 = vpop.f32.mrf.mxu0
    %v1930 = vadd.f32 0.0, %v1929
    %v1931 = vpop.f32.mrf.mxu0
    %v1932 = vadd.f32 0.0, %v1931
    %v1933 = vpop.f32.mrf.mxu0
    %v1934 = vadd.f32 0.0, %v1933
    %1935 = vmatprep.mubr.bf16.mxu0 0
    %1936 = vmatmul.mubr.bf16.gmra.mxu0 %v1689
    %v1937 = vpop.f32.mrf.mxu0
    %v1938 = vadd.f32 0.0, %v1937
    %v1939 = vpop.f32.mrf.mxu0
    %v1940 = vadd.f32 0.0, %v1939
    %v1941 = vpop.f32.mrf.mxu0
    %v1942 = vadd.f32 0.0, %v1941
    %v1943 = vpop.f32.mrf.mxu0
    %v1944 = vadd.f32 0.0, %v1943
    %1945 = vmatprep.mubr.bf16.mxu0 0
    %1946 = vmatmul.mubr.bf16.gmra.mxu0 %v1690
    %v1947 = vpop.f32.mrf.mxu0
    %v1948 = vadd.f32 0.0, %v1947
    %v1949 = vpop.f32.mrf.mxu0
    %v1950 = vadd.f32 0.0, %v1949
    %v1951 = vpop.f32.mrf.mxu0
    %v1952 = vadd.f32 0.0, %v1951
    %v1953 = vpop.f32.mrf.mxu0
    %v1954 = vadd.f32 0.0, %v1953
    %1955 = vdwg.mxu0
    %1956 = vmatprep.subr.bf16.mxu0 %v1850
    %1957 = vmatpush1.bf16.msra.mxu0 %v1849
    %1958 = vmatprep.subr.bf16.mxu0 %v1846
    %1959 = vmatpush1.bf16.msra.mxu0 %v1845
    %1960 = vmatprep.subr.bf16.mxu0 %v1842
    %1961 = vmatpush1.bf16.msra.mxu0 %v1841
    %1962 = vmatprep.subr.bf16.mxu0 %v1838
    %1963 = vmatpush1.bf16.msra.mxu0 %v1837
    %1964 = vmatprep.subr.bf16.mxu0 %v1834
    %1965 = vmatpush1.bf16.msra.mxu0 %v1833
    %1966 = vmatprep.subr.bf16.mxu0 %v1830
    %1967 = vmatpush1.bf16.msra.mxu0 %v1829
    %1968 = vmatprep.subr.bf16.mxu0 %v1826
    %1969 = vmatpush1.bf16.msra.mxu0 %v1825
    %1970 = vmatprep.subr.bf16.mxu0 %v1822
    %1971 = vmatpush1.bf16.msra.mxu0 %v1821
    %1972 = vmatprep.subr.bf16.mxu0 0
    %1973 = vmatpush2.bf16.msra.mxu0 0
    %1974 = vmatprep.subr.bf16.mxu0 0
    %1975 = vmatpush2.bf16.msra.mxu0 0
    %1976 = vmatprep.subr.bf16.mxu0 0
    %1977 = vmatpush2.bf16.msra.mxu0 0
    %1978 = vmatprep.subr.bf16.mxu0 0
    %1979 = vmatpush2.bf16.msra.mxu0 0
    %1980 = vmatprep.subr.bf16.mxu0 0
    %1981 = vmatpush2.bf16.msra.mxu0 0
    %1982 = vmatprep.subr.bf16.mxu0 0
    %1983 = vmatpush2.bf16.msra.mxu0 0
    %1984 = vmatprep.subr.bf16.mxu0 0
    %1985 = vmatpush2.bf16.msra.mxu0 0
    %1986 = vmatprep.subr.bf16.mxu0 0
    %1987 = vmatpush2.bf16.msra.mxu0 0
    %1988 = vmatprep.mubr.bf16.mxu0 0
    %1989 = vmatmul.mubr.bf16.gmra.mxu0 %v1687
    %v1990 = vpop.f32.mrf.mxu0
    %v1991 = vadd.f32 0.0, %v1990
    %v1992 = vpop.f32.mrf.mxu0
    %v1993 = vadd.f32 0.0, %v1992
    %v1994 = vpop.f32.mrf.mxu0
    %v1995 = vadd.f32 0.0, %v1994
    %v1996 = vpop.f32.mrf.mxu0
    %v1997 = vadd.f32 0.0, %v1996
    %1998 = vmatprep.mubr.bf16.mxu0 0
    %1999 = vmatmul.mubr.bf16.gmra.mxu0 %v1688
    %v2000 = vpop.f32.mrf.mxu0
    %v2001 = vadd.f32 0.0, %v2000
    %v2002 = vpop.f32.mrf.mxu0
    %v2003 = vadd.f32 0.0, %v2002
    %v2004 = vpop.f32.mrf.mxu0
    %v2005 = vadd.f32 0.0, %v2004
    %v2006 = vpop.f32.mrf.mxu0
    %v2007 = vadd.f32 0.0, %v2006
    %2008 = vmatprep.mubr.bf16.mxu0 0
    %2009 = vmatmul.mubr.bf16.gmra.mxu0 %v1689
    %v2010 = vpop.f32.mrf.mxu0
    %v2011 = vadd.f32 0.0, %v2010
    %v2012 = vpop.f32.mrf.mxu0
    %v2013 = vadd.f32 0.0, %v2012
    %v2014 = vpop.f32.mrf.mxu0
    %v2015 = vadd.f32 0.0, %v2014
    %v2016 = vpop.f32.mrf.mxu0
    %v2017 = vadd.f32 0.0, %v2016
    %2018 = vmatprep.mubr.bf16.mxu0 0
    %2019 = vmatmul.mubr.bf16.gmra.mxu0 %v1690
    %v2020 = vpop.f32.mrf.mxu0
    %v2021 = vadd.f32 0.0, %v2020
    %v2022 = vpop.f32.mrf.mxu0
    %v2023 = vadd.f32 0.0, %v2022
    %v2024 = vpop.f32.mrf.mxu0
    %v2025 = vadd.f32 0.0, %v2024
    %v2026 = vpop.f32.mrf.mxu0
    %v2027 = vadd.f32 0.0, %v2026
    %2028 = vdwg.mxu0
    %v2029 = vld [vmem:[%s6] sm:$0xf]
    %v2031 = vlaneseq
    %v2032 = vshrl.u32 %v2031, 7
    %v2033 = vsub.s32 0, %v2032
    %v2034 = vrot.slane %v2029, %v2033
    %v2035 = vlaneseq
    %v2036 = vshrl.u32 %v2035, 7
    %v2037 = vsub.s32 1, %v2036
    %v2038 = vrot.slane %v2029, %v2037
    %v2039 = vlaneseq
    %v2040 = vshrl.u32 %v2039, 7
    %v2041 = vsub.s32 2, %v2040
    %v2042 = vrot.slane %v2029, %v2041
    %v2043 = vlaneseq
    %v2044 = vshrl.u32 %v2043, 7
    %v2045 = vsub.s32 3, %v2044
    %v2046 = vrot.slane %v2029, %v2045
    %v2051 = vadd.f32 %v1918, %v2034
    %v2052 = vadd.f32 %v1920, %v2038
    %v2053 = vadd.f32 %v1991, %v2042
    %v2054 = vadd.f32 %v1993, %v2046
    %v2055 = vadd.f32 %v1922, %v2034
    %v2056 = vadd.f32 %v1924, %v2038
    %v2057 = vadd.f32 %v1995, %v2042
    %v2058 = vadd.f32 %v1997, %v2046
    %v2059 = vadd.f32 %v1928, %v2034
    %v2060 = vadd.f32 %v1930, %v2038
    %v2061 = vadd.f32 %v2001, %v2042
    %v2062 = vadd.f32 %v2003, %v2046
    %v2063 = vadd.f32 %v1932, %v2034
    %v2064 = vadd.f32 %v1934, %v2038
    %v2065 = vadd.f32 %v2005, %v2042
    %v2066 = vadd.f32 %v2007, %v2046
    %v2067 = vadd.f32 %v1938, %v2034
    %v2068 = vadd.f32 %v1940, %v2038
    %v2069 = vadd.f32 %v2011, %v2042
    %v2070 = vadd.f32 %v2013, %v2046
    %v2071 = vadd.f32 %v1942, %v2034
    %v2072 = vadd.f32 %v1944, %v2038
    %v2073 = vadd.f32 %v2015, %v2042
    %v2074 = vadd.f32 %v2017, %v2046
    %v2075 = vadd.f32 %v1948, %v2034
    %v2076 = vadd.f32 %v1950, %v2038
    %v2077 = vadd.f32 %v2021, %v2042
    %v2078 = vadd.f32 %v2023, %v2046
    %v2079 = vadd.f32 %v1952, %v2034
    %v2080 = vadd.f32 %v1954, %v2038
    %v2081 = vadd.f32 %v2025, %v2042
    %v2082 = vadd.f32 %v2027, %v2046
    %2083 = vst [vmem:[#allocation6] sm:$0xff] %v2051
    %2084 = vst [vmem:[#allocation6 + $0x8] sm:$0xff] %v2052
    %2085 = vst [vmem:[#allocation6 + $0x10] sm:$0xff] %v2053
    %2086 = vst [vmem:[#allocation6 + $0x18] sm:$0xff] %v2054
    %2087 = vst [vmem:[#allocation6 + $0x20] sm:$0xff] %v2055
    %2088 = vst [vmem:[#allocation6 + $0x28] sm:$0xff] %v2056
    %2089 = vst [vmem:[#allocation6 + $0x30] sm:$0xff] %v2057
    %2090 = vst [vmem:[#allocation6 + $0x38] sm:$0xff] %v2058
    %2091 = vst [vmem:[#allocation6 + $0x40] sm:$0xff] %v2059
    %2092 = vst [vmem:[#allocation6 + $0x48] sm:$0xff] %v2060
    %2093 = vst [vmem:[#allocation6 + $0x50] sm:$0xff] %v2061
    %2094 = vst [vmem:[#allocation6 + $0x58] sm:$0xff] %v2062
    %2095 = vst [vmem:[#allocation6 + $0x60] sm:$0xff] %v2063
    %2096 = vst [vmem:[#allocation6 + $0x68] sm:$0xff] %v2064
    %2097 = vst [vmem:[#allocation6 + $0x70] sm:$0xff] %v2065
    %2098 = vst [vmem:[#allocation6 + $0x78] sm:$0xff] %v2066
    %2099 = vst [vmem:[#allocation6 + $0x80] sm:$0xff] %v2067
    %2100 = vst [vmem:[#allocation6 + $0x88] sm:$0xff] %v2068
    %2101 = vst [vmem:[#allocation6 + $0x90] sm:$0xff] %v2069
    %2102 = vst [vmem:[#allocation6 + $0x98] sm:$0xff] %v2070
    %2103 = vst [vmem:[#allocation6 + $0xa0] sm:$0xff] %v2071
    %2104 = vst [vmem:[#allocation6 + $0xa8] sm:$0xff] %v2072
    %2105 = vst [vmem:[#allocation6 + $0xb0] sm:$0xff] %v2073
    %2106 = vst [vmem:[#allocation6 + $0xb8] sm:$0xff] %v2074
    %2107 = vst [vmem:[#allocation6 + $0xc0] sm:$0xff] %v2075
    %2108 = vst [vmem:[#allocation6 + $0xc8] sm:$0xff] %v2076
    %2109 = vst [vmem:[#allocation6 + $0xd0] sm:$0xff] %v2077
    %2110 = vst [vmem:[#allocation6 + $0xd8] sm:$0xff] %v2078
    %2111 = vst [vmem:[#allocation6 + $0xe0] sm:$0xff] %v2079
    %2112 = vst [vmem:[#allocation6 + $0xe8] sm:$0xff] %v2080
    %2113 = vst [vmem:[#allocation6 + $0xf0] sm:$0xff] %v2081
    %2114 = vst [vmem:[#allocation6 + $0xf8] sm:$0xff] %v2082
    %v2115 = vld [vmem:[#allocation6] sm:$0xff]
    %v2116 = vld [vmem:[#allocation6 + $0x8] sm:$0xff]
    %v2117 = vld [vmem:[#allocation6 + $0x10] sm:$0xff]
    %v2118 = vld [vmem:[#allocation6 + $0x18] sm:$0xff]
    %v2119 = vld [vmem:[#allocation4] sm:$0xff]
    %v2120 = vpack.c.bf16 %v2119, %v2119
    %v2153 = vunpack.c.l.b16 %v125
    %v2154 = vunpack.c.h.b16 %v125
    %v2155 = vunpack.c.l.b16 %v126
    %v2156 = vunpack.c.h.b16 %v126
    %v2157 = vunpack.c.l.b16 %v127
    %v2158 = vunpack.c.h.b16 %v127
    %v2159 = vunpack.c.l.b16 %v128
    %v2160 = vunpack.c.h.b16 %v128
    %v2161 = vunpack.c.l.b16 %v129
    %v2162 = vunpack.c.h.b16 %v129
    %v2163 = vunpack.c.l.b16 %v130
    %v2164 = vunpack.c.h.b16 %v130
    %v2165 = vunpack.c.l.b16 %v131
    %v2166 = vunpack.c.h.b16 %v131
    %v2167 = vunpack.c.l.b16 %v132
    %v2168 = vunpack.c.h.b16 %v132
    %v2169 = vunpack.c.l.b16 %v133
    %v2170 = vunpack.c.h.b16 %v133
    %v2171 = vunpack.c.l.b16 %v134
    %v2172 = vunpack.c.h.b16 %v134
    %v2173 = vunpack.c.l.b16 %v135
    %v2174 = vunpack.c.h.b16 %v135
    %v2175 = vunpack.c.l.b16 %v136
    %v2176 = vunpack.c.h.b16 %v136
    %v2177 = vunpack.c.l.b16 %v137
    %v2178 = vunpack.c.h.b16 %v137
    %v2179 = vunpack.c.l.b16 %v138
    %v2180 = vunpack.c.h.b16 %v138
    %v2181 = vunpack.c.l.b16 %v139
    %v2182 = vunpack.c.h.b16 %v139
    %v2183 = vunpack.c.l.b16 %v140
    %v2184 = vunpack.c.h.b16 %v140
    %v2185 = vunpack.c.l.b16 %v141
    %v2186 = vunpack.c.h.b16 %v141
    %v2187 = vunpack.c.l.b16 %v142
    %v2188 = vunpack.c.h.b16 %v142
    %v2189 = vunpack.c.l.b16 %v143
    %v2190 = vunpack.c.h.b16 %v143
    %v2191 = vunpack.c.l.b16 %v144
    %v2192 = vunpack.c.h.b16 %v144
    %v2193 = vunpack.c.l.b16 %v145
    %v2194 = vunpack.c.h.b16 %v145
    %v2195 = vunpack.c.l.b16 %v146
    %v2196 = vunpack.c.h.b16 %v146
    %v2197 = vunpack.c.l.b16 %v147
    %v2198 = vunpack.c.h.b16 %v147
    %v2199 = vunpack.c.l.b16 %v148
    %v2200 = vunpack.c.h.b16 %v148
    %v2201 = vunpack.c.l.b16 %v149
    %v2202 = vunpack.c.h.b16 %v149
    %v2203 = vunpack.c.l.b16 %v150
    %v2204 = vunpack.c.h.b16 %v150
    %v2205 = vunpack.c.l.b16 %v151
    %v2206 = vunpack.c.h.b16 %v151
    %v2207 = vunpack.c.l.b16 %v152
    %v2208 = vunpack.c.h.b16 %v152
    %v2209 = vunpack.c.l.b16 %v153
    %v2210 = vunpack.c.h.b16 %v153
    %v2211 = vunpack.c.l.b16 %v154
    %v2212 = vunpack.c.h.b16 %v154
    %v2213 = vunpack.c.l.b16 %v155
    %v2214 = vunpack.c.h.b16 %v155
    %v2215 = vunpack.c.l.b16 %v156
    %v2216 = vunpack.c.h.b16 %v156
    %v2217 = vpack.c.b16 %v2157, %v2153
    %v2218 = vpack.c.b16 %v2158, %v2154
    %v2219 = vpack.c.b16 %v2159, %v2155
    %v2220 = vpack.c.b16 %v2160, %v2156
    %v2221 = vpack.c.b16 %v2165, %v2161
    %v2222 = vpack.c.b16 %v2166, %v2162
    %v2223 = vpack.c.b16 %v2167, %v2163
    %v2224 = vpack.c.b16 %v2168, %v2164
    %v2225 = vpack.c.b16 %v2173, %v2169
    %v2226 = vpack.c.b16 %v2174, %v2170
    %v2227 = vpack.c.b16 %v2175, %v2171
    %v2228 = vpack.c.b16 %v2176, %v2172
    %v2229 = vpack.c.b16 %v2181, %v2177
    %v2230 = vpack.c.b16 %v2182, %v2178
    %v2231 = vpack.c.b16 %v2183, %v2179
    %v2232 = vpack.c.b16 %v2184, %v2180
    %v2233 = vpack.c.b16 %v2189, %v2185
    %v2234 = vpack.c.b16 %v2190, %v2186
    %v2235 = vpack.c.b16 %v2191, %v2187
    %v2236 = vpack.c.b16 %v2192, %v2188
    %v2237 = vpack.c.b16 %v2197, %v2193
    %v2238 = vpack.c.b16 %v2198, %v2194
    %v2239 = vpack.c.b16 %v2199, %v2195
    %v2240 = vpack.c.b16 %v2200, %v2196
    %v2241 = vpack.c.b16 %v2205, %v2201
    %v2242 = vpack.c.b16 %v2206, %v2202
    %v2243 = vpack.c.b16 %v2207, %v2203
    %v2244 = vpack.c.b16 %v2208, %v2204
    %v2245 = vpack.c.b16 %v2213, %v2209
    %v2246 = vpack.c.b16 %v2214, %v2210
    %v2247 = vpack.c.b16 %v2215, %v2211
    %v2248 = vpack.c.b16 %v2216, %v2212
    %2281 = vmatprep.subr.bf16.mxu0 %v2246
    %2282 = vmatpush1.bf16.msra.mxu0 %v2245
    %2283 = vmatprep.subr.bf16.mxu0 %v2242
    %2284 = vmatpush1.bf16.msra.mxu0 %v2241
    %2285 = vmatprep.subr.bf16.mxu0 %v2238
    %2286 = vmatpush1.bf16.msra.mxu0 %v2237
    %2287 = vmatprep.subr.bf16.mxu0 %v2234
    %2288 = vmatpush1.bf16.msra.mxu0 %v2233
    %2289 = vmatprep.subr.bf16.mxu0 %v2230
    %2290 = vmatpush1.bf16.msra.mxu0 %v2229
    %2291 = vmatprep.subr.bf16.mxu0 %v2226
    %2292 = vmatpush1.bf16.msra.mxu0 %v2225
    %2293 = vmatprep.subr.bf16.mxu0 %v2222
    %2294 = vmatpush1.bf16.msra.mxu0 %v2221
    %2295 = vmatprep.subr.bf16.mxu0 %v2218
    %2296 = vmatpush1.bf16.msra.mxu0 %v2217
    %2297 = vmatprep.subr.bf16.mxu0 0
    %2298 = vmatpush2.bf16.msra.mxu0 0
    %2299 = vmatprep.subr.bf16.mxu0 0
    %2300 = vmatpush2.bf16.msra.mxu0 0
    %2301 = vmatprep.subr.bf16.mxu0 0
    %2302 = vmatpush2.bf16.msra.mxu0 0
    %2303 = vmatprep.subr.bf16.mxu0 0
    %2304 = vmatpush2.bf16.msra.mxu0 0
    %2305 = vmatprep.subr.bf16.mxu0 0
    %2306 = vmatpush2.bf16.msra.mxu0 0
    %2307 = vmatprep.subr.bf16.mxu0 0
    %2308 = vmatpush2.bf16.msra.mxu0 0
    %2309 = vmatprep.subr.bf16.mxu0 0
    %2310 = vmatpush2.bf16.msra.mxu0 0
    %2311 = vmatprep.subr.bf16.mxu0 0
    %2312 = vmatpush2.bf16.msra.mxu0 0
    %2313 = vmatprep.mubr.bf16.mxu0 0
    %2314 = vmatmul.mubr.bf16.gmra.mxu0 %v2120
    %v2315 = vpop.f32.mrf.mxu0
    %v2316 = vadd.f32 0.0, %v2315
    %v2317 = vpop.f32.mrf.mxu0
    %v2318 = vadd.f32 0.0, %v2317
    %v2319 = vpop.f32.mrf.mxu0
    %v2320 = vpop.f32.mrf.mxu0
    %2321 = vdwg.mxu0
    %2322 = vmatprep.subr.bf16.mxu0 %v2248
    %2323 = vmatpush1.bf16.msra.mxu0 %v2247
    %2324 = vmatprep.subr.bf16.mxu0 %v2244
    %2325 = vmatpush1.bf16.msra.mxu0 %v2243
    %2326 = vmatprep.subr.bf16.mxu0 %v2240
    %2327 = vmatpush1.bf16.msra.mxu0 %v2239
    %2328 = vmatprep.subr.bf16.mxu0 %v2236
    %2329 = vmatpush1.bf16.msra.mxu0 %v2235
    %2330 = vmatprep.subr.bf16.mxu0 %v2232
    %2331 = vmatpush1.bf16.msra.mxu0 %v2231
    %2332 = vmatprep.subr.bf16.mxu0 %v2228
    %2333 = vmatpush1.bf16.msra.mxu0 %v2227
    %2334 = vmatprep.subr.bf16.mxu0 %v2224
    %2335 = vmatpush1.bf16.msra.mxu0 %v2223
    %2336 = vmatprep.subr.bf16.mxu0 %v2220
    %2337 = vmatpush1.bf16.msra.mxu0 %v2219
    %2338 = vmatprep.subr.bf16.mxu0 0
    %2339 = vmatpush2.bf16.msra.mxu0 0
    %2340 = vmatprep.subr.bf16.mxu0 0
    %2341 = vmatpush2.bf16.msra.mxu0 0
    %2342 = vmatprep.subr.bf16.mxu0 0
    %2343 = vmatpush2.bf16.msra.mxu0 0
    %2344 = vmatprep.subr.bf16.mxu0 0
    %2345 = vmatpush2.bf16.msra.mxu0 0
    %2346 = vmatprep.subr.bf16.mxu0 0
    %2347 = vmatpush2.bf16.msra.mxu0 0
    %2348 = vmatprep.subr.bf16.mxu0 0
    %2349 = vmatpush2.bf16.msra.mxu0 0
    %2350 = vmatprep.subr.bf16.mxu0 0
    %2351 = vmatpush2.bf16.msra.mxu0 0
    %2352 = vmatprep.subr.bf16.mxu0 0
    %2353 = vmatpush2.bf16.msra.mxu0 0
    %2354 = vmatprep.mubr.bf16.mxu0 0
    %2355 = vmatmul.mubr.bf16.gmra.mxu0 %v2120
    %v2356 = vpop.f32.mrf.mxu0
    %v2357 = vadd.f32 0.0, %v2356
    %v2358 = vpop.f32.mrf.mxu0
    %v2359 = vadd.f32 0.0, %v2358
    %v2360 = vpop.f32.mrf.mxu0
    %v2361 = vpop.f32.mrf.mxu0
    %2362 = vdwg.mxu0
    %v2363 = vadd.f32 %v2115, %v2316
    %v2364 = vadd.f32 %v2116, %v2318
    %v2365 = vadd.f32 %v2117, %v2357
    %v2366 = vadd.f32 %v2118, %v2359
    %v2367 = vld [vmem:[#allocation5] sm:$0xff]
    %v2368 = vmul.f32 %v2363, 0.5
    %v2369 = vtanh.pop %v2368
    %v2370 = vadd.f32 %v2369, 1.0
    %v2371 = vmul.f32 %v2370, 0.5
    %v2372 = vmul.f32 %v2364, 0.5
    %v2373 = vtanh.pop %v2372
    %v2374 = vadd.f32 %v2373, 1.0
    %v2375 = vmul.f32 %v2374, 0.5
    %v2376 = vtanh.pop %v2365
    %v2377 = vmul.f32 %v2366, 0.5
    %v2378 = vtanh.pop %v2377
    %v2379 = vadd.f32 %v2378, 1.0
    %v2380 = vmul.f32 %v2379, 0.5
    %v2381 = vmul.f32 %v2375, %v2367
    %v2382 = vmul.f32 %v2371, %v2376
    %v2383 = vadd.f32 %v2381, %v2382
    %v2384 = vtanh.pop %v2383
    %v2385 = vmul.f32 %v2380, %v2384
    %2386 = vst [vmem:[#allocation4] sm:$0xff] %v2385
    %2387 = vst [vmem:[#allocation5] sm:$0xff] %v2383
    %2388 = vst [vmem:[%s7] sm:$0xff] %v2385
    %v2389 = vld [vmem:[%s867] sm:$0xff]
    %v2390 = vld [vmem:[%s867 + $0x8] sm:$0xff]
    %v2391 = vld [vmem:[%s867 + $0x10] sm:$0xff]
    %v2392 = vld [vmem:[%s867 + $0x18] sm:$0xff]
    %v2393 = vld [vmem:[#allocation4] sm:$0xff]
    %v2394 = vpack.c.bf16 %v2393, %v2393
    %2395 = vmatprep.subr.bf16.mxu0 %v2246
    %2396 = vmatpush1.bf16.msra.mxu0 %v2245
    %2397 = vmatprep.subr.bf16.mxu0 %v2242
    %2398 = vmatpush1.bf16.msra.mxu0 %v2241
    %2399 = vmatprep.subr.bf16.mxu0 %v2238
    %2400 = vmatpush1.bf16.msra.mxu0 %v2237
    %2401 = vmatprep.subr.bf16.mxu0 %v2234
    %2402 = vmatpush1.bf16.msra.mxu0 %v2233
    %2403 = vmatprep.subr.bf16.mxu0 %v2230
    %2404 = vmatpush1.bf16.msra.mxu0 %v2229
    %2405 = vmatprep.subr.bf16.mxu0 %v2226
    %2406 = vmatpush1.bf16.msra.mxu0 %v2225
    %2407 = vmatprep.subr.bf16.mxu0 %v2222
    %2408 = vmatpush1.bf16.msra.mxu0 %v2221
    %2409 = vmatprep.subr.bf16.mxu0 %v2218
    %2410 = vmatpush1.bf16.msra.mxu0 %v2217
    %2411 = vmatprep.subr.bf16.mxu0 0
    %2412 = vmatpush2.bf16.msra.mxu0 0
    %2413 = vmatprep.subr.bf16.mxu0 0
    %2414 = vmatpush2.bf16.msra.mxu0 0
    %2415 = vmatprep.subr.bf16.mxu0 0
    %2416 = vmatpush2.bf16.msra.mxu0 0
    %2417 = vmatprep.subr.bf16.mxu0 0
    %2418 = vmatpush2.bf16.msra.mxu0 0
    %2419 = vmatprep.subr.bf16.mxu0 0
    %2420 = vmatpush2.bf16.msra.mxu0 0
    %2421 = vmatprep.subr.bf16.mxu0 0
    %2422 = vmatpush2.bf16.msra.mxu0 0
    %2423 = vmatprep.subr.bf16.mxu0 0
    %2424 = vmatpush2.bf16.msra.mxu0 0
    %2425 = vmatprep.subr.bf16.mxu0 0
    %2426 = vmatpush2.bf16.msra.mxu0 0
    %2427 = vmatprep.mubr.bf16.mxu0 0
    %2428 = vmatmul.mubr.bf16.gmra.mxu0 %v2394
    %v2429 = vpop.f32.mrf.mxu0
    %v2430 = vadd.f32 0.0, %v2429
    %v2431 = vpop.f32.mrf.mxu0
    %v2432 = vadd.f32 0.0, %v2431
    %v2433 = vpop.f32.mrf.mxu0
    %v2434 = vpop.f32.mrf.mxu0
    %2435 = vdwg.mxu0
    %2436 = vmatprep.subr.bf16.mxu0 %v2248
    %2437 = vmatpush1.bf16.msra.mxu0 %v2247
    %2438 = vmatprep.subr.bf16.mxu0 %v2244
    %2439 = vmatpush1.bf16.msra.mxu0 %v2243
    %2440 = vmatprep.subr.bf16.mxu0 %v2240
    %2441 = vmatpush1.bf16.msra.mxu0 %v2239
    %2442 = vmatprep.subr.bf16.mxu0 %v2236
    %2443 = vmatpush1.bf16.msra.mxu0 %v2235
    %2444 = vmatprep.subr.bf16.mxu0 %v2232
    %2445 = vmatpush1.bf16.msra.mxu0 %v2231
    %2446 = vmatprep.subr.bf16.mxu0 %v2228
    %2447 = vmatpush1.bf16.msra.mxu0 %v2227
    %2448 = vmatprep.subr.bf16.mxu0 %v2224
    %2449 = vmatpush1.bf16.msra.mxu0 %v2223
    %2450 = vmatprep.subr.bf16.mxu0 %v2220
    %2451 = vmatpush1.bf16.msra.mxu0 %v2219
    %2452 = vmatprep.subr.bf16.mxu0 0
    %2453 = vmatpush2.bf16.msra.mxu0 0
    %2454 = vmatprep.subr.bf16.mxu0 0
    %2455 = vmatpush2.bf16.msra.mxu0 0
    %2456 = vmatprep.subr.bf16.mxu0 0
    %2457 = vmatpush2.bf16.msra.mxu0 0
    %2458 = vmatprep.subr.bf16.mxu0 0
    %2459 = vmatpush2.bf16.msra.mxu0 0
    %2460 = vmatprep.subr.bf16.mxu0 0
    %2461 = vmatpush2.bf16.msra.mxu0 0
    %2462 = vmatprep.subr.bf16.mxu0 0
    %2463 = vmatpush2.bf16.msra.mxu0 0
    %2464 = vmatprep.subr.bf16.mxu0 0
    %2465 = vmatpush2.bf16.msra.mxu0 0
    %2466 = vmatprep.subr.bf16.mxu0 0
    %2467 = vmatpush2.bf16.msra.mxu0 0
    %2468 = vmatprep.mubr.bf16.mxu0 0
    %2469 = vmatmul.mubr.bf16.gmra.mxu0 %v2394
    %v2470 = vpop.f32.mrf.mxu0
    %v2471 = vadd.f32 0.0, %v2470
    %v2472 = vpop.f32.mrf.mxu0
    %v2473 = vadd.f32 0.0, %v2472
    %v2474 = vpop.f32.mrf.mxu0
    %v2475 = vpop.f32.mrf.mxu0
    %2476 = vdwg.mxu0
    %v2477 = vadd.f32 %v2389, %v2430
    %v2478 = vadd.f32 %v2390, %v2432
    %v2479 = vadd.f32 %v2391, %v2471
    %v2480 = vadd.f32 %v2392, %v2473
    %v2481 = vld [vmem:[#allocation5] sm:$0xff]
    %v2482 = vmul.f32 %v2477, 0.5
    %v2483 = vtanh.pop %v2482
    %v2484 = vadd.f32 %v2483, 1.0
    %v2485 = vmul.f32 %v2484, 0.5
    %v2486 = vmul.f32 %v2478, 0.5
    %v2487 = vtanh.pop %v2486
    %v2488 = vadd.f32 %v2487, 1.0
    %v2489 = vmul.f32 %v2488, 0.5
    %v2490 = vtanh.pop %v2479
    %v2491 = vmul.f32 %v2480, 0.5
    %v2492 = vtanh.pop %v2491
    %v2493 = vadd.f32 %v2492, 1.0
    %v2494 = vmul.f32 %v2493, 0.5
    %v2495 = vmul.f32 %v2489, %v2481
    %v2496 = vmul.f32 %v2485, %v2490
    %v2497 = vadd.f32 %v2495, %v2496
    %v2498 = vtanh.pop %v2497
    %v2499 = vmul.f32 %v2494, %v2498
    %2500 = vst [vmem:[#allocation4] sm:$0xff] %v2499
    %2501 = vst [vmem:[#allocation5] sm:$0xff] %v2497
    %s2502 = scalar_lea.vmem %s7, 8
    %2503 = vst [vmem:[%s2502] sm:$0xff] %v2499
    %v2504 = vld [vmem:[%s983] sm:$0xff]
    %v2505 = vld [vmem:[%s983 + $0x8] sm:$0xff]
    %v2506 = vld [vmem:[%s983 + $0x10] sm:$0xff]
    %v2507 = vld [vmem:[%s983 + $0x18] sm:$0xff]
    %v2508 = vld [vmem:[#allocation4] sm:$0xff]
    %v2509 = vpack.c.bf16 %v2508, %v2508
    %2510 = vmatprep.subr.bf16.mxu0 %v2246
    %2511 = vmatpush1.bf16.msra.mxu0 %v2245
    %2512 = vmatprep.subr.bf16.mxu0 %v2242
    %2513 = vmatpush1.bf16.msra.mxu0 %v2241
    %2514 = vmatprep.subr.bf16.mxu0 %v2238
    %2515 = vmatpush1.bf16.msra.mxu0 %v2237
    %2516 = vmatprep.subr.bf16.mxu0 %v2234
    %2517 = vmatpush1.bf16.msra.mxu0 %v2233
    %2518 = vmatprep.subr.bf16.mxu0 %v2230
    %2519 = vmatpush1.bf16.msra.mxu0 %v2229
    %2520 = vmatprep.subr.bf16.mxu0 %v2226
    %2521 = vmatpush1.bf16.msra.mxu0 %v2225
    %2522 = vmatprep.subr.bf16.mxu0 %v2222
    %2523 = vmatpush1.bf16.msra.mxu0 %v2221
    %2524 = vmatprep.subr.bf16.mxu0 %v2218
    %2525 = vmatpush1.bf16.msra.mxu0 %v2217
    %2526 = vmatprep.subr.bf16.mxu0 0
    %2527 = vmatpush2.bf16.msra.mxu0 0
    %2528 = vmatprep.subr.bf16.mxu0 0
    %2529 = vmatpush2.bf16.msra.mxu0 0
    %2530 = vmatprep.subr.bf16.mxu0 0
    %2531 = vmatpush2.bf16.msra.mxu0 0
    %2532 = vmatprep.subr.bf16.mxu0 0
    %2533 = vmatpush2.bf16.msra.mxu0 0
    %2534 = vmatprep.subr.bf16.mxu0 0
    %2535 = vmatpush2.bf16.msra.mxu0 0
    %2536 = vmatprep.subr.bf16.mxu0 0
    %2537 = vmatpush2.bf16.msra.mxu0 0
    %2538 = vmatprep.subr.bf16.mxu0 0
    %2539 = vmatpush2.bf16.msra.mxu0 0
    %2540 = vmatprep.subr.bf16.mxu0 0
    %2541 = vmatpush2.bf16.msra.mxu0 0
    %2542 = vmatprep.mubr.bf16.mxu0 0
    %2543 = vmatmul.mubr.bf16.gmra.mxu0 %v2509
    %v2544 = vpop.f32.mrf.mxu0
    %v2545 = vadd.f32 0.0, %v2544
    %v2546 = vpop.f32.mrf.mxu0
    %v2547 = vadd.f32 0.0, %v2546
    %v2548 = vpop.f32.mrf.mxu0
    %v2549 = vpop.f32.mrf.mxu0
    %2550 = vdwg.mxu0
    %2551 = vmatprep.subr.bf16.mxu0 %v2248
    %2552 = vmatpush1.bf16.msra.mxu0 %v2247
    %2553 = vmatprep.subr.bf16.mxu0 %v2244
    %2554 = vmatpush1.bf16.msra.mxu0 %v2243
    %2555 = vmatprep.subr.bf16.mxu0 %v2240
    %2556 = vmatpush1.bf16.msra.mxu0 %v2239
    %2557 = vmatprep.subr.bf16.mxu0 %v2236
    %2558 = vmatpush1.bf16.msra.mxu0 %v2235
    %2559 = vmatprep.subr.bf16.mxu0 %v2232
    %2560 = vmatpush1.bf16.msra.mxu0 %v2231
    %2561 = vmatprep.subr.bf16.mxu0 %v2228
    %2562 = vmatpush1.bf16.msra.mxu0 %v2227
    %2563 = vmatprep.subr.bf16.mxu0 %v2224
    %2564 = vmatpush1.bf16.msra.mxu0 %v2223
    %2565 = vmatprep.subr.bf16.mxu0 %v2220
    %2566 = vmatpush1.bf16.msra.mxu0 %v2219
    %2567 = vmatprep.subr.bf16.mxu0 0
    %2568 = vmatpush2.bf16.msra.mxu0 0
    %2569 = vmatprep.subr.bf16.mxu0 0
    %2570 = vmatpush2.bf16.msra.mxu0 0
    %2571 = vmatprep.subr.bf16.mxu0 0
    %2572 = vmatpush2.bf16.msra.mxu0 0
    %2573 = vmatprep.subr.bf16.mxu0 0
    %2574 = vmatpush2.bf16.msra.mxu0 0
    %2575 = vmatprep.subr.bf16.mxu0 0
    %2576 = vmatpush2.bf16.msra.mxu0 0
    %2577 = vmatprep.subr.bf16.mxu0 0
    %2578 = vmatpush2.bf16.msra.mxu0 0
    %2579 = vmatprep.subr.bf16.mxu0 0
    %2580 = vmatpush2.bf16.msra.mxu0 0
    %2581 = vmatprep.subr.bf16.mxu0 0
    %2582 = vmatpush2.bf16.msra.mxu0 0
    %2583 = vmatprep.mubr.bf16.mxu0 0
    %2584 = vmatmul.mubr.bf16.gmra.mxu0 %v2509
    %v2585 = vpop.f32.mrf.mxu0
    %v2586 = vadd.f32 0.0, %v2585
    %v2587 = vpop.f32.mrf.mxu0
    %v2588 = vadd.f32 0.0, %v2587
    %v2589 = vpop.f32.mrf.mxu0
    %v2590 = vpop.f32.mrf.mxu0
    %2591 = vdwg.mxu0
    %v2592 = vadd.f32 %v2504, %v2545
    %v2593 = vadd.f32 %v2505, %v2547
    %v2594 = vadd.f32 %v2506, %v2586
    %v2595 = vadd.f32 %v2507, %v2588
    %v2596 = vld [vmem:[#allocation5] sm:$0xff]
    %v2597 = vmul.f32 %v2592, 0.5
    %v2598 = vtanh.pop %v2597
    %v2599 = vadd.f32 %v2598, 1.0
    %v2600 = vmul.f32 %v2599, 0.5
    %v2601 = vmul.f32 %v2593, 0.5
    %v2602 = vtanh.pop %v2601
    %v2603 = vadd.f32 %v2602, 1.0
    %v2604 = vmul.f32 %v2603, 0.5
    %v2605 = vtanh.pop %v2594
    %v2606 = vmul.f32 %v2595, 0.5
    %v2607 = vtanh.pop %v2606
    %v2608 = vadd.f32 %v2607, 1.0
    %v2609 = vmul.f32 %v2608, 0.5
    %v2610 = vmul.f32 %v2604, %v2596
    %v2611 = vmul.f32 %v2600, %v2605
    %v2612 = vadd.f32 %v2610, %v2611
    %v2613 = vtanh.pop %v2612
    %v2614 = vmul.f32 %v2609, %v2613
    %2615 = vst [vmem:[#allocation4] sm:$0xff] %v2614
    %2616 = vst [vmem:[#allocation5] sm:$0xff] %v2612
    %s2617 = scalar_lea.vmem %s7, 16
    %2618 = vst [vmem:[%s2617] sm:$0xff] %v2614
    %v2619 = vld [vmem:[%s1099] sm:$0xff]
    %v2620 = vld [vmem:[%s1099 + $0x8] sm:$0xff]
    %v2621 = vld [vmem:[%s1099 + $0x10] sm:$0xff]
    %v2622 = vld [vmem:[%s1099 + $0x18] sm:$0xff]
    %v2623 = vld [vmem:[#allocation4] sm:$0xff]
    %v2624 = vpack.c.bf16 %v2623, %v2623
    %2625 = vmatprep.subr.bf16.mxu0 %v2246
    %2626 = vmatpush1.bf16.msra.mxu0 %v2245
    %2627 = vmatprep.subr.bf16.mxu0 %v2242
    %2628 = vmatpush1.bf16.msra.mxu0 %v2241
    %2629 = vmatprep.subr.bf16.mxu0 %v2238
    %2630 = vmatpush1.bf16.msra.mxu0 %v2237
    %2631 = vmatprep.subr.bf16.mxu0 %v2234
    %2632 = vmatpush1.bf16.msra.mxu0 %v2233
    %2633 = vmatprep.subr.bf16.mxu0 %v2230
    %2634 = vmatpush1.bf16.msra.mxu0 %v2229
    %2635 = vmatprep.subr.bf16.mxu0 %v2226
    %2636 = vmatpush1.bf16.msra.mxu0 %v2225
    %2637 = vmatprep.subr.bf16.mxu0 %v2222
    %2638 = vmatpush1.bf16.msra.mxu0 %v2221
    %2639 = vmatprep.subr.bf16.mxu0 %v2218
    %2640 = vmatpush1.bf16.msra.mxu0 %v2217
    %2641 = vmatprep.subr.bf16.mxu0 0
    %2642 = vmatpush2.bf16.msra.mxu0 0
    %2643 = vmatprep.subr.bf16.mxu0 0
    %2644 = vmatpush2.bf16.msra.mxu0 0
    %2645 = vmatprep.subr.bf16.mxu0 0
    %2646 = vmatpush2.bf16.msra.mxu0 0
    %2647 = vmatprep.subr.bf16.mxu0 0
    %2648 = vmatpush2.bf16.msra.mxu0 0
    %2649 = vmatprep.subr.bf16.mxu0 0
    %2650 = vmatpush2.bf16.msra.mxu0 0
    %2651 = vmatprep.subr.bf16.mxu0 0
    %2652 = vmatpush2.bf16.msra.mxu0 0
    %2653 = vmatprep.subr.bf16.mxu0 0
    %2654 = vmatpush2.bf16.msra.mxu0 0
    %2655 = vmatprep.subr.bf16.mxu0 0
    %2656 = vmatpush2.bf16.msra.mxu0 0
    %2657 = vmatprep.mubr.bf16.mxu0 0
    %2658 = vmatmul.mubr.bf16.gmra.mxu0 %v2624
    %v2659 = vpop.f32.mrf.mxu0
    %v2660 = vadd.f32 0.0, %v2659
    %v2661 = vpop.f32.mrf.mxu0
    %v2662 = vadd.f32 0.0, %v2661
    %v2663 = vpop.f32.mrf.mxu0
    %v2664 = vpop.f32.mrf.mxu0
    %2665 = vdwg.mxu0
    %2666 = vmatprep.subr.bf16.mxu0 %v2248
    %2667 = vmatpush1.bf16.msra.mxu0 %v2247
    %2668 = vmatprep.subr.bf16.mxu0 %v2244
    %2669 = vmatpush1.bf16.msra.mxu0 %v2243
    %2670 = vmatprep.subr.bf16.mxu0 %v2240
    %2671 = vmatpush1.bf16.msra.mxu0 %v2239
    %2672 = vmatprep.subr.bf16.mxu0 %v2236
    %2673 = vmatpush1.bf16.msra.mxu0 %v2235
    %2674 = vmatprep.subr.bf16.mxu0 %v2232
    %2675 = vmatpush1.bf16.msra.mxu0 %v2231
    %2676 = vmatprep.subr.bf16.mxu0 %v2228
    %2677 = vmatpush1.bf16.msra.mxu0 %v2227
    %2678 = vmatprep.subr.bf16.mxu0 %v2224
    %2679 = vmatpush1.bf16.msra.mxu0 %v2223
    %2680 = vmatprep.subr.bf16.mxu0 %v2220
    %2681 = vmatpush1.bf16.msra.mxu0 %v2219
    %2682 = vmatprep.subr.bf16.mxu0 0
    %2683 = vmatpush2.bf16.msra.mxu0 0
    %2684 = vmatprep.subr.bf16.mxu0 0
    %2685 = vmatpush2.bf16.msra.mxu0 0
    %2686 = vmatprep.subr.bf16.mxu0 0
    %2687 = vmatpush2.bf16.msra.mxu0 0
    %2688 = vmatprep.subr.bf16.mxu0 0
    %2689 = vmatpush2.bf16.msra.mxu0 0
    %2690 = vmatprep.subr.bf16.mxu0 0
    %2691 = vmatpush2.bf16.msra.mxu0 0
    %2692 = vmatprep.subr.bf16.mxu0 0
    %2693 = vmatpush2.bf16.msra.mxu0 0
    %2694 = vmatprep.subr.bf16.mxu0 0
    %2695 = vmatpush2.bf16.msra.mxu0 0
    %2696 = vmatprep.subr.bf16.mxu0 0
    %2697 = vmatpush2.bf16.msra.mxu0 0
    %2698 = vmatprep.mubr.bf16.mxu0 0
    %2699 = vmatmul.mubr.bf16.gmra.mxu0 %v2624
    %v2700 = vpop.f32.mrf.mxu0
    %v2701 = vadd.f32 0.0, %v2700
    %v2702 = vpop.f32.mrf.mxu0
    %v2703 = vadd.f32 0.0, %v2702
    %v2704 = vpop.f32.mrf.mxu0
    %v2705 = vpop.f32.mrf.mxu0
    %2706 = vdwg.mxu0
    %v2707 = vadd.f32 %v2619, %v2660
    %v2708 = vadd.f32 %v2620, %v2662
    %v2709 = vadd.f32 %v2621, %v2701
    %v2710 = vadd.f32 %v2622, %v2703
    %v2711 = vld [vmem:[#allocation5] sm:$0xff]
    %v2712 = vmul.f32 %v2707, 0.5
    %v2713 = vtanh.pop %v2712
    %v2714 = vadd.f32 %v2713, 1.0
    %v2715 = vmul.f32 %v2714, 0.5
    %v2716 = vmul.f32 %v2708, 0.5
    %v2717 = vtanh.pop %v2716
    %v2718 = vadd.f32 %v2717, 1.0
    %v2719 = vmul.f32 %v2718, 0.5
    %v2720 = vtanh.pop %v2709
    %v2721 = vmul.f32 %v2710, 0.5
    %v2722 = vtanh.pop %v2721
    %v2723 = vadd.f32 %v2722, 1.0
    %v2724 = vmul.f32 %v2723, 0.5
    %v2725 = vmul.f32 %v2719, %v2711
    %v2726 = vmul.f32 %v2715, %v2720
    %v2727 = vadd.f32 %v2725, %v2726
    %v2728 = vtanh.pop %v2727
    %v2729 = vmul.f32 %v2724, %v2728
    %2730 = vst [vmem:[#allocation4] sm:$0xff] %v2729
    %2731 = vst [vmem:[#allocation5] sm:$0xff] %v2727
    %s2732 = scalar_lea.vmem %s7, 24
    %2733 = vst [vmem:[%s2732] sm:$0xff] %v2729
    %v2734 = vld [vmem:[%s1215] sm:$0xff]
    %v2735 = vld [vmem:[%s1215 + $0x8] sm:$0xff]
    %v2736 = vld [vmem:[%s1215 + $0x10] sm:$0xff]
    %v2737 = vld [vmem:[%s1215 + $0x18] sm:$0xff]
    %v2738 = vld [vmem:[#allocation4] sm:$0xff]
    %v2739 = vpack.c.bf16 %v2738, %v2738
    %2740 = vmatprep.subr.bf16.mxu0 %v2246
    %2741 = vmatpush1.bf16.msra.mxu0 %v2245
    %2742 = vmatprep.subr.bf16.mxu0 %v2242
    %2743 = vmatpush1.bf16.msra.mxu0 %v2241
    %2744 = vmatprep.subr.bf16.mxu0 %v2238
    %2745 = vmatpush1.bf16.msra.mxu0 %v2237
    %2746 = vmatprep.subr.bf16.mxu0 %v2234
    %2747 = vmatpush1.bf16.msra.mxu0 %v2233
    %2748 = vmatprep.subr.bf16.mxu0 %v2230
    %2749 = vmatpush1.bf16.msra.mxu0 %v2229
    %2750 = vmatprep.subr.bf16.mxu0 %v2226
    %2751 = vmatpush1.bf16.msra.mxu0 %v2225
    %2752 = vmatprep.subr.bf16.mxu0 %v2222
    %2753 = vmatpush1.bf16.msra.mxu0 %v2221
    %2754 = vmatprep.subr.bf16.mxu0 %v2218
    %2755 = vmatpush1.bf16.msra.mxu0 %v2217
    %2756 = vmatprep.subr.bf16.mxu0 0
    %2757 = vmatpush2.bf16.msra.mxu0 0
    %2758 = vmatprep.subr.bf16.mxu0 0
    %2759 = vmatpush2.bf16.msra.mxu0 0
    %2760 = vmatprep.subr.bf16.mxu0 0
    %2761 = vmatpush2.bf16.msra.mxu0 0
    %2762 = vmatprep.subr.bf16.mxu0 0
    %2763 = vmatpush2.bf16.msra.mxu0 0
    %2764 = vmatprep.subr.bf16.mxu0 0
    %2765 = vmatpush2.bf16.msra.mxu0 0
    %2766 = vmatprep.subr.bf16.mxu0 0
    %2767 = vmatpush2.bf16.msra.mxu0 0
    %2768 = vmatprep.subr.bf16.mxu0 0
    %2769 = vmatpush2.bf16.msra.mxu0 0
    %2770 = vmatprep.subr.bf16.mxu0 0
    %2771 = vmatpush2.bf16.msra.mxu0 0
    %2772 = vmatprep.mubr.bf16.mxu0 0
    %2773 = vmatmul.mubr.bf16.gmra.mxu0 %v2739
    %v2774 = vpop.f32.mrf.mxu0
    %v2775 = vadd.f32 0.0, %v2774
    %v2776 = vpop.f32.mrf.mxu0
    %v2777 = vadd.f32 0.0, %v2776
    %v2778 = vpop.f32.mrf.mxu0
    %v2779 = vpop.f32.mrf.mxu0
    %2780 = vdwg.mxu0
    %2781 = vmatprep.subr.bf16.mxu0 %v2248
    %2782 = vmatpush1.bf16.msra.mxu0 %v2247
    %2783 = vmatprep.subr.bf16.mxu0 %v2244
    %2784 = vmatpush1.bf16.msra.mxu0 %v2243
    %2785 = vmatprep.subr.bf16.mxu0 %v2240
    %2786 = vmatpush1.bf16.msra.mxu0 %v2239
    %2787 = vmatprep.subr.bf16.mxu0 %v2236
    %2788 = vmatpush1.bf16.msra.mxu0 %v2235
    %2789 = vmatprep.subr.bf16.mxu0 %v2232
    %2790 = vmatpush1.bf16.msra.mxu0 %v2231
    %2791 = vmatprep.subr.bf16.mxu0 %v2228
    %2792 = vmatpush1.bf16.msra.mxu0 %v2227
    %2793 = vmatprep.subr.bf16.mxu0 %v2224
    %2794 = vmatpush1.bf16.msra.mxu0 %v2223
    %2795 = vmatprep.subr.bf16.mxu0 %v2220
    %2796 = vmatpush1.bf16.msra.mxu0 %v2219
    %2797 = vmatprep.subr.bf16.mxu0 0
    %2798 = vmatpush2.bf16.msra.mxu0 0
    %2799 = vmatprep.subr.bf16.mxu0 0
    %2800 = vmatpush2.bf16.msra.mxu0 0
    %2801 = vmatprep.subr.bf16.mxu0 0
    %2802 = vmatpush2.bf16.msra.mxu0 0
    %2803 = vmatprep.subr.bf16.mxu0 0
    %2804 = vmatpush2.bf16.msra.mxu0 0
    %2805 = vmatprep.subr.bf16.mxu0 0
    %2806 = vmatpush2.bf16.msra.mxu0 0
    %2807 = vmatprep.subr.bf16.mxu0 0
    %2808 = vmatpush2.bf16.msra.mxu0 0
    %2809 = vmatprep.subr.bf16.mxu0 0
    %2810 = vmatpush2.bf16.msra.mxu0 0
    %2811 = vmatprep.subr.bf16.mxu0 0
    %2812 = vmatpush2.bf16.msra.mxu0 0
    %2813 = vmatprep.mubr.bf16.mxu0 0
    %2814 = vmatmul.mubr.bf16.gmra.mxu0 %v2739
    %v2815 = vpop.f32.mrf.mxu0
    %v2816 = vadd.f32 0.0, %v2815
    %v2817 = vpop.f32.mrf.mxu0
    %v2818 = vadd.f32 0.0, %v2817
    %v2819 = vpop.f32.mrf.mxu0
    %v2820 = vpop.f32.mrf.mxu0
    %2821 = vdwg.mxu0
    %v2822 = vadd.f32 %v2734, %v2775
    %v2823 = vadd.f32 %v2735, %v2777
    %v2824 = vadd.f32 %v2736, %v2816
    %v2825 = vadd.f32 %v2737, %v2818
    %v2826 = vld [vmem:[#allocation5] sm:$0xff]
    %v2827 = vmul.f32 %v2822, 0.5
    %v2828 = vtanh.pop %v2827
    %v2829 = vadd.f32 %v2828, 1.0
    %v2830 = vmul.f32 %v2829, 0.5
    %v2831 = vmul.f32 %v2823, 0.5
    %v2832 = vtanh.pop %v2831
    %v2833 = vadd.f32 %v2832, 1.0
    %v2834 = vmul.f32 %v2833, 0.5
    %v2835 = vtanh.pop %v2824
    %v2836 = vmul.f32 %v2825, 0.5
    %v2837 = vtanh.pop %v2836
    %v2838 = vadd.f32 %v2837, 1.0
    %v2839 = vmul.f32 %v2838, 0.5
    %v2840 = vmul.f32 %v2834, %v2826
    %v2841 = vmul.f32 %v2830, %v2835
    %v2842 = vadd.f32 %v2840, %v2841
    %v2843 = vtanh.pop %v2842
    %v2844 = vmul.f32 %v2839, %v2843
    %2845 = vst [vmem:[#allocation4] sm:$0xff] %v2844
    %2846 = vst [vmem:[#allocation5] sm:$0xff] %v2842
    %s2847 = scalar_lea.vmem %s7, 32
    %2848 = vst [vmem:[%s2847] sm:$0xff] %v2844
    %v2849 = vld [vmem:[%s1331] sm:$0xff]
    %v2850 = vld [vmem:[%s1331 + $0x8] sm:$0xff]
    %v2851 = vld [vmem:[%s1331 + $0x10] sm:$0xff]
    %v2852 = vld [vmem:[%s1331 + $0x18] sm:$0xff]
    %v2853 = vld [vmem:[#allocation4] sm:$0xff]
    %v2854 = vpack.c.bf16 %v2853, %v2853
    %2855 = vmatprep.subr.bf16.mxu0 %v2246
    %2856 = vmatpush1.bf16.msra.mxu0 %v2245
    %2857 = vmatprep.subr.bf16.mxu0 %v2242
    %2858 = vmatpush1.bf16.msra.mxu0 %v2241
    %2859 = vmatprep.subr.bf16.mxu0 %v2238
    %2860 = vmatpush1.bf16.msra.mxu0 %v2237
    %2861 = vmatprep.subr.bf16.mxu0 %v2234
    %2862 = vmatpush1.bf16.msra.mxu0 %v2233
    %2863 = vmatprep.subr.bf16.mxu0 %v2230
    %2864 = vmatpush1.bf16.msra.mxu0 %v2229
    %2865 = vmatprep.subr.bf16.mxu0 %v2226
    %2866 = vmatpush1.bf16.msra.mxu0 %v2225
    %2867 = vmatprep.subr.bf16.mxu0 %v2222
    %2868 = vmatpush1.bf16.msra.mxu0 %v2221
    %2869 = vmatprep.subr.bf16.mxu0 %v2218
    %2870 = vmatpush1.bf16.msra.mxu0 %v2217
    %2871 = vmatprep.subr.bf16.mxu0 0
    %2872 = vmatpush2.bf16.msra.mxu0 0
    %2873 = vmatprep.subr.bf16.mxu0 0
    %2874 = vmatpush2.bf16.msra.mxu0 0
    %2875 = vmatprep.subr.bf16.mxu0 0
    %2876 = vmatpush2.bf16.msra.mxu0 0
    %2877 = vmatprep.subr.bf16.mxu0 0
    %2878 = vmatpush2.bf16.msra.mxu0 0
    %2879 = vmatprep.subr.bf16.mxu0 0
    %2880 = vmatpush2.bf16.msra.mxu0 0
    %2881 = vmatprep.subr.bf16.mxu0 0
    %2882 = vmatpush2.bf16.msra.mxu0 0
    %2883 = vmatprep.subr.bf16.mxu0 0
    %2884 = vmatpush2.bf16.msra.mxu0 0
    %2885 = vmatprep.subr.bf16.mxu0 0
    %2886 = vmatpush2.bf16.msra.mxu0 0
    %2887 = vmatprep.mubr.bf16.mxu0 0
    %2888 = vmatmul.mubr.bf16.gmra.mxu0 %v2854
    %v2889 = vpop.f32.mrf.mxu0
    %v2890 = vadd.f32 0.0, %v2889
    %v2891 = vpop.f32.mrf.mxu0
    %v2892 = vadd.f32 0.0, %v2891
    %v2893 = vpop.f32.mrf.mxu0
    %v2894 = vpop.f32.mrf.mxu0
    %2895 = vdwg.mxu0
    %2896 = vmatprep.subr.bf16.mxu0 %v2248
    %2897 = vmatpush1.bf16.msra.mxu0 %v2247
    %2898 = vmatprep.subr.bf16.mxu0 %v2244
    %2899 = vmatpush1.bf16.msra.mxu0 %v2243
    %2900 = vmatprep.subr.bf16.mxu0 %v2240
    %2901 = vmatpush1.bf16.msra.mxu0 %v2239
    %2902 = vmatprep.subr.bf16.mxu0 %v2236
    %2903 = vmatpush1.bf16.msra.mxu0 %v2235
    %2904 = vmatprep.subr.bf16.mxu0 %v2232
    %2905 = vmatpush1.bf16.msra.mxu0 %v2231
    %2906 = vmatprep.subr.bf16.mxu0 %v2228
    %2907 = vmatpush1.bf16.msra.mxu0 %v2227
    %2908 = vmatprep.subr.bf16.mxu0 %v2224
    %2909 = vmatpush1.bf16.msra.mxu0 %v2223
    %2910 = vmatprep.subr.bf16.mxu0 %v2220
    %2911 = vmatpush1.bf16.msra.mxu0 %v2219
    %2912 = vmatprep.subr.bf16.mxu0 0
    %2913 = vmatpush2.bf16.msra.mxu0 0
    %2914 = vmatprep.subr.bf16.mxu0 0
    %2915 = vmatpush2.bf16.msra.mxu0 0
    %2916 = vmatprep.subr.bf16.mxu0 0
    %2917 = vmatpush2.bf16.msra.mxu0 0
    %2918 = vmatprep.subr.bf16.mxu0 0
    %2919 = vmatpush2.bf16.msra.mxu0 0
    %2920 = vmatprep.subr.bf16.mxu0 0
    %2921 = vmatpush2.bf16.msra.mxu0 0
    %2922 = vmatprep.subr.bf16.mxu0 0
    %2923 = vmatpush2.bf16.msra.mxu0 0
    %2924 = vmatprep.subr.bf16.mxu0 0
    %2925 = vmatpush2.bf16.msra.mxu0 0
    %2926 = vmatprep.subr.bf16.mxu0 0
    %2927 = vmatpush2.bf16.msra.mxu0 0
    %2928 = vmatprep.mubr.bf16.mxu0 0
    %2929 = vmatmul.mubr.bf16.gmra.mxu0 %v2854
    %v2930 = vpop.f32.mrf.mxu0
    %v2931 = vadd.f32 0.0, %v2930
    %v2932 = vpop.f32.mrf.mxu0
    %v2933 = vadd.f32 0.0, %v2932
    %v2934 = vpop.f32.mrf.mxu0
    %v2935 = vpop.f32.mrf.mxu0
    %2936 = vdwg.mxu0
    %v2937 = vadd.f32 %v2849, %v2890
    %v2938 = vadd.f32 %v2850, %v2892
    %v2939 = vadd.f32 %v2851, %v2931
    %v2940 = vadd.f32 %v2852, %v2933
    %v2941 = vld [vmem:[#allocation5] sm:$0xff]
    %v2942 = vmul.f32 %v2937, 0.5
    %v2943 = vtanh.pop %v2942
    %v2944 = vadd.f32 %v2943, 1.0
    %v2945 = vmul.f32 %v2944, 0.5
    %v2946 = vmul.f32 %v2938, 0.5
    %v2947 = vtanh.pop %v2946
    %v2948 = vadd.f32 %v2947, 1.0
    %v2949 = vmul.f32 %v2948, 0.5
    %v2950 = vtanh.pop %v2939
    %v2951 = vmul.f32 %v2940, 0.5
    %v2952 = vtanh.pop %v2951
    %v2953 = vadd.f32 %v2952, 1.0
    %v2954 = vmul.f32 %v2953, 0.5
    %v2955 = vmul.f32 %v2949, %v2941
    %v2956 = vmul.f32 %v2945, %v2950
    %v2957 = vadd.f32 %v2955, %v2956
    %v2958 = vtanh.pop %v2957
    %v2959 = vmul.f32 %v2954, %v2958
    %2960 = vst [vmem:[#allocation4] sm:$0xff] %v2959
    %2961 = vst [vmem:[#allocation5] sm:$0xff] %v2957
    %s2962 = scalar_lea.vmem %s7, 40
    %2963 = vst [vmem:[%s2962] sm:$0xff] %v2959
    %v2964 = vld [vmem:[%s1447] sm:$0xff]
    %v2965 = vld [vmem:[%s1447 + $0x8] sm:$0xff]
    %v2966 = vld [vmem:[%s1447 + $0x10] sm:$0xff]
    %v2967 = vld [vmem:[%s1447 + $0x18] sm:$0xff]
    %v2968 = vld [vmem:[#allocation4] sm:$0xff]
    %v2969 = vpack.c.bf16 %v2968, %v2968
    %2970 = vmatprep.subr.bf16.mxu0 %v2246
    %2971 = vmatpush1.bf16.msra.mxu0 %v2245
    %2972 = vmatprep.subr.bf16.mxu0 %v2242
    %2973 = vmatpush1.bf16.msra.mxu0 %v2241
    %2974 = vmatprep.subr.bf16.mxu0 %v2238
    %2975 = vmatpush1.bf16.msra.mxu0 %v2237
    %2976 = vmatprep.subr.bf16.mxu0 %v2234
    %2977 = vmatpush1.bf16.msra.mxu0 %v2233
    %2978 = vmatprep.subr.bf16.mxu0 %v2230
    %2979 = vmatpush1.bf16.msra.mxu0 %v2229
    %2980 = vmatprep.subr.bf16.mxu0 %v2226
    %2981 = vmatpush1.bf16.msra.mxu0 %v2225
    %2982 = vmatprep.subr.bf16.mxu0 %v2222
    %2983 = vmatpush1.bf16.msra.mxu0 %v2221
    %2984 = vmatprep.subr.bf16.mxu0 %v2218
    %2985 = vmatpush1.bf16.msra.mxu0 %v2217
    %2986 = vmatprep.subr.bf16.mxu0 0
    %2987 = vmatpush2.bf16.msra.mxu0 0
    %2988 = vmatprep.subr.bf16.mxu0 0
    %2989 = vmatpush2.bf16.msra.mxu0 0
    %2990 = vmatprep.subr.bf16.mxu0 0
    %2991 = vmatpush2.bf16.msra.mxu0 0
    %2992 = vmatprep.subr.bf16.mxu0 0
    %2993 = vmatpush2.bf16.msra.mxu0 0
    %2994 = vmatprep.subr.bf16.mxu0 0
    %2995 = vmatpush2.bf16.msra.mxu0 0
    %2996 = vmatprep.subr.bf16.mxu0 0
    %2997 = vmatpush2.bf16.msra.mxu0 0
    %2998 = vmatprep.subr.bf16.mxu0 0
    %2999 = vmatpush2.bf16.msra.mxu0 0
    %3000 = vmatprep.subr.bf16.mxu0 0
    %3001 = vmatpush2.bf16.msra.mxu0 0
    %3002 = vmatprep.mubr.bf16.mxu0 0
    %3003 = vmatmul.mubr.bf16.gmra.mxu0 %v2969
    %v3004 = vpop.f32.mrf.mxu0
    %v3005 = vadd.f32 0.0, %v3004
    %v3006 = vpop.f32.mrf.mxu0
    %v3007 = vadd.f32 0.0, %v3006
    %v3008 = vpop.f32.mrf.mxu0
    %v3009 = vpop.f32.mrf.mxu0
    %3010 = vdwg.mxu0
    %3011 = vmatprep.subr.bf16.mxu0 %v2248
    %3012 = vmatpush1.bf16.msra.mxu0 %v2247
    %3013 = vmatprep.subr.bf16.mxu0 %v2244
    %3014 = vmatpush1.bf16.msra.mxu0 %v2243
    %3015 = vmatprep.subr.bf16.mxu0 %v2240
    %3016 = vmatpush1.bf16.msra.mxu0 %v2239
    %3017 = vmatprep.subr.bf16.mxu0 %v2236
    %3018 = vmatpush1.bf16.msra.mxu0 %v2235
    %3019 = vmatprep.subr.bf16.mxu0 %v2232
    %3020 = vmatpush1.bf16.msra.mxu0 %v2231
    %3021 = vmatprep.subr.bf16.mxu0 %v2228
    %3022 = vmatpush1.bf16.msra.mxu0 %v2227
    %3023 = vmatprep.subr.bf16.mxu0 %v2224
    %3024 = vmatpush1.bf16.msra.mxu0 %v2223
    %3025 = vmatprep.subr.bf16.mxu0 %v2220
    %3026 = vmatpush1.bf16.msra.mxu0 %v2219
    %3027 = vmatprep.subr.bf16.mxu0 0
    %3028 = vmatpush2.bf16.msra.mxu0 0
    %3029 = vmatprep.subr.bf16.mxu0 0
    %3030 = vmatpush2.bf16.msra.mxu0 0
    %3031 = vmatprep.subr.bf16.mxu0 0
    %3032 = vmatpush2.bf16.msra.mxu0 0
    %3033 = vmatprep.subr.bf16.mxu0 0
    %3034 = vmatpush2.bf16.msra.mxu0 0
    %3035 = vmatprep.subr.bf16.mxu0 0
    %3036 = vmatpush2.bf16.msra.mxu0 0
    %3037 = vmatprep.subr.bf16.mxu0 0
    %3038 = vmatpush2.bf16.msra.mxu0 0
    %3039 = vmatprep.subr.bf16.mxu0 0
    %3040 = vmatpush2.bf16.msra.mxu0 0
    %3041 = vmatprep.subr.bf16.mxu0 0
    %3042 = vmatpush2.bf16.msra.mxu0 0
    %3043 = vmatprep.mubr.bf16.mxu0 0
    %3044 = vmatmul.mubr.bf16.gmra.mxu0 %v2969
    %v3045 = vpop.f32.mrf.mxu0
    %v3046 = vadd.f32 0.0, %v3045
    %v3047 = vpop.f32.mrf.mxu0
    %v3048 = vadd.f32 0.0, %v3047
    %v3049 = vpop.f32.mrf.mxu0
    %v3050 = vpop.f32.mrf.mxu0
    %3051 = vdwg.mxu0
    %v3052 = vadd.f32 %v2964, %v3005
    %v3053 = vadd.f32 %v2965, %v3007
    %v3054 = vadd.f32 %v2966, %v3046
    %v3055 = vadd.f32 %v2967, %v3048
    %v3056 = vld [vmem:[#allocation5] sm:$0xff]
    %v3057 = vmul.f32 %v3052, 0.5
    %v3058 = vtanh.pop %v3057
    %v3059 = vadd.f32 %v3058, 1.0
    %v3060 = vmul.f32 %v3059, 0.5
    %v3061 = vmul.f32 %v3053, 0.5
    %v3062 = vtanh.pop %v3061
    %v3063 = vadd.f32 %v3062, 1.0
    %v3064 = vmul.f32 %v3063, 0.5
    %v3065 = vtanh.pop %v3054
    %v3066 = vmul.f32 %v3055, 0.5
    %v3067 = vtanh.pop %v3066
    %v3068 = vadd.f32 %v3067, 1.0
    %v3069 = vmul.f32 %v3068, 0.5
    %v3070 = vmul.f32 %v3064, %v3056
    %v3071 = vmul.f32 %v3060, %v3065
    %v3072 = vadd.f32 %v3070, %v3071
    %v3073 = vtanh.pop %v3072
    %v3074 = vmul.f32 %v3069, %v3073
    %3075 = vst [vmem:[#allocation4] sm:$0xff] %v3074
    %3076 = vst [vmem:[#allocation5] sm:$0xff] %v3072
    %s3077 = scalar_lea.vmem %s7, 48
    %3078 = vst [vmem:[%s3077] sm:$0xff] %v3074
    %v3079 = vld [vmem:[%s1563] sm:$0xff]
    %v3080 = vld [vmem:[%s1563 + $0x8] sm:$0xff]
    %v3081 = vld [vmem:[%s1563 + $0x10] sm:$0xff]
    %v3082 = vld [vmem:[%s1563 + $0x18] sm:$0xff]
    %v3083 = vld [vmem:[#allocation4] sm:$0xff]
    %v3084 = vpack.c.bf16 %v3083, %v3083
    %3085 = vmatprep.subr.bf16.mxu0 %v2246
    %3086 = vmatpush1.bf16.msra.mxu0 %v2245
    %3087 = vmatprep.subr.bf16.mxu0 %v2242
    %3088 = vmatpush1.bf16.msra.mxu0 %v2241
    %3089 = vmatprep.subr.bf16.mxu0 %v2238
    %3090 = vmatpush1.bf16.msra.mxu0 %v2237
    %3091 = vmatprep.subr.bf16.mxu0 %v2234
    %3092 = vmatpush1.bf16.msra.mxu0 %v2233
    %3093 = vmatprep.subr.bf16.mxu0 %v2230
    %3094 = vmatpush1.bf16.msra.mxu0 %v2229
    %3095 = vmatprep.subr.bf16.mxu0 %v2226
    %3096 = vmatpush1.bf16.msra.mxu0 %v2225
    %3097 = vmatprep.subr.bf16.mxu0 %v2222
    %3098 = vmatpush1.bf16.msra.mxu0 %v2221
    %3099 = vmatprep.subr.bf16.mxu0 %v2218
    %3100 = vmatpush1.bf16.msra.mxu0 %v2217
    %3101 = vmatprep.subr.bf16.mxu0 0
    %3102 = vmatpush2.bf16.msra.mxu0 0
    %3103 = vmatprep.subr.bf16.mxu0 0
    %3104 = vmatpush2.bf16.msra.mxu0 0
    %3105 = vmatprep.subr.bf16.mxu0 0
    %3106 = vmatpush2.bf16.msra.mxu0 0
    %3107 = vmatprep.subr.bf16.mxu0 0
    %3108 = vmatpush2.bf16.msra.mxu0 0
    %3109 = vmatprep.subr.bf16.mxu0 0
    %3110 = vmatpush2.bf16.msra.mxu0 0
    %3111 = vmatprep.subr.bf16.mxu0 0
    %3112 = vmatpush2.bf16.msra.mxu0 0
    %3113 = vmatprep.subr.bf16.mxu0 0
    %3114 = vmatpush2.bf16.msra.mxu0 0
    %3115 = vmatprep.subr.bf16.mxu0 0
    %3116 = vmatpush2.bf16.msra.mxu0 0
    %3117 = vmatprep.mubr.bf16.mxu0 0
    %3118 = vmatmul.mubr.bf16.gmra.mxu0 %v3084
    %v3119 = vpop.f32.mrf.mxu0
    %v3120 = vadd.f32 0.0, %v3119
    %v3121 = vpop.f32.mrf.mxu0
    %v3122 = vadd.f32 0.0, %v3121
    %v3123 = vpop.f32.mrf.mxu0
    %v3124 = vpop.f32.mrf.mxu0
    %3125 = vdwg.mxu0
    %3126 = vmatprep.subr.bf16.mxu0 %v2248
    %3127 = vmatpush1.bf16.msra.mxu0 %v2247
    %3128 = vmatprep.subr.bf16.mxu0 %v2244
    %3129 = vmatpush1.bf16.msra.mxu0 %v2243
    %3130 = vmatprep.subr.bf16.mxu0 %v2240
    %3131 = vmatpush1.bf16.msra.mxu0 %v2239
    %3132 = vmatprep.subr.bf16.mxu0 %v2236
    %3133 = vmatpush1.bf16.msra.mxu0 %v2235
    %3134 = vmatprep.subr.bf16.mxu0 %v2232
    %3135 = vmatpush1.bf16.msra.mxu0 %v2231
    %3136 = vmatprep.subr.bf16.mxu0 %v2228
    %3137 = vmatpush1.bf16.msra.mxu0 %v2227
    %3138 = vmatprep.subr.bf16.mxu0 %v2224
    %3139 = vmatpush1.bf16.msra.mxu0 %v2223
    %3140 = vmatprep.subr.bf16.mxu0 %v2220
    %3141 = vmatpush1.bf16.msra.mxu0 %v2219
    %3142 = vmatprep.subr.bf16.mxu0 0
    %3143 = vmatpush2.bf16.msra.mxu0 0
    %3144 = vmatprep.subr.bf16.mxu0 0
    %3145 = vmatpush2.bf16.msra.mxu0 0
    %3146 = vmatprep.subr.bf16.mxu0 0
    %3147 = vmatpush2.bf16.msra.mxu0 0
    %3148 = vmatprep.subr.bf16.mxu0 0
    %3149 = vmatpush2.bf16.msra.mxu0 0
    %3150 = vmatprep.subr.bf16.mxu0 0
    %3151 = vmatpush2.bf16.msra.mxu0 0
    %3152 = vmatprep.subr.bf16.mxu0 0
    %3153 = vmatpush2.bf16.msra.mxu0 0
    %3154 = vmatprep.subr.bf16.mxu0 0
    %3155 = vmatpush2.bf16.msra.mxu0 0
    %3156 = vmatprep.subr.bf16.mxu0 0
    %3157 = vmatpush2.bf16.msra.mxu0 0
    %3158 = vmatprep.mubr.bf16.mxu0 0
    %3159 = vmatmul.mubr.bf16.gmra.mxu0 %v3084
    %v3160 = vpop.f32.mrf.mxu0
    %v3161 = vadd.f32 0.0, %v3160
    %v3162 = vpop.f32.mrf.mxu0
    %v3163 = vadd.f32 0.0, %v3162
    %v3164 = vpop.f32.mrf.mxu0
    %v3165 = vpop.f32.mrf.mxu0
    %3166 = vdwg.mxu0
    %v3167 = vadd.f32 %v3079, %v3120
    %v3168 = vadd.f32 %v3080, %v3122
    %v3169 = vadd.f32 %v3081, %v3161
    %v3170 = vadd.f32 %v3082, %v3163
    %v3171 = vld [vmem:[#allocation5] sm:$0xff]
    %v3172 = vmul.f32 %v3167, 0.5
    %v3173 = vtanh.pop %v3172
    %v3174 = vadd.f32 %v3173, 1.0
    %v3175 = vmul.f32 %v3174, 0.5
    %v3176 = vmul.f32 %v3168, 0.5
    %v3177 = vtanh.pop %v3176
    %v3178 = vadd.f32 %v3177, 1.0
    %v3179 = vmul.f32 %v3178, 0.5
    %v3180 = vtanh.pop %v3169
    %v3181 = vmul.f32 %v3170, 0.5
    %v3182 = vtanh.pop %v3181
    %v3183 = vadd.f32 %v3182, 1.0
    %v3184 = vmul.f32 %v3183, 0.5
    %v3185 = vmul.f32 %v3179, %v3171
    %v3186 = vmul.f32 %v3175, %v3180
    %v3187 = vadd.f32 %v3185, %v3186
    %v3188 = vtanh.pop %v3187
    %v3189 = vmul.f32 %v3184, %v3188
    %3190 = vst [vmem:[#allocation4] sm:$0xff] %v3189
    %3191 = vst [vmem:[#allocation5] sm:$0xff] %v3187
    %s3192 = scalar_lea.vmem %s7, 56
    %3193 = vst [vmem:[%s3192] sm:$0xff] %v3189
    // Predicated region
    $region50: #{seq2seq_forward.2} parent=1 // pred_check
      %p3194 = pneg %p85
    $region51: #{seq2seq_forward.2} parent=1 // pred_check_branch
      %3196 = sbr.rel (%p3194) target = $region53
    $region52: #{seq2seq_forward.2} parent=1 // pred_region
      %v3197 = vld [vmem:[#allocation2] sm:$0xff]
      %3198 = vst [vmem:[%s8] sm:$0xff] %v3197
      %v3199 = vld [vmem:[#allocation4] sm:$0xff]
      %3200 = vst [vmem:[%s9] sm:$0xff] %v3199
    $region53: #{seq2seq_forward.2} parent=1 // pred_fallthru
      _
    // Predicated region
    $region54: #{seq2seq_forward.2} parent=1 // pred_check
      _
    $region55: #{seq2seq_forward.2} parent=1 // pred_check_branch
      %3202 = sbr.rel (0) target = $region57
    $region56: #{seq2seq_forward.2} parent=1 // pred_region
      _
    $region57: #{seq2seq_forward.2} parent=1 // pred_fallthru
      _
    // Predicated region
    $region58: #{seq2seq_forward.2} parent=1 // pred_check
      _
    $region59: #{seq2seq_forward.2} parent=1 // pred_check_branch
      %3204 = sbr.rel (0) target = $region61
    $region60: #{seq2seq_forward.2} parent=1 // pred_region
      _
    $region61: #{seq2seq_forward.2} parent=1 // pred_fallthru
      _
    // Predicated region
    $region62: #{seq2seq_forward.2} parent=1 // pred_check
      _
    $region63: #{seq2seq_forward.2} parent=1 // pred_check_branch
      %3206 = sbr.rel (0) target = $region65
    $region64: #{seq2seq_forward.2} parent=1 // pred_region
      _
    $region65: #{seq2seq_forward.2} parent=1 // pred_fallthru
      _
    // Predicated region
    $region66: #{seq2seq_forward.2} parent=1 // pred_check
      _
    $region67: #{seq2seq_forward.2} parent=1 // pred_check_branch
      %3208 = sbr.rel (0) target = $region69
    $region68: #{seq2seq_forward.2} parent=1 // pred_region
      _
    $region69: #{seq2seq_forward.2} parent=1 // pred_fallthru
      _
    // Predicated region
    $region70: #{seq2seq_forward.2} parent=1 // pred_check
      _
    $region71: #{seq2seq_forward.2} parent=1 // pred_check_branch
      %3210 = sbr.rel (0) target = $region73
    $region72: #{seq2seq_forward.2} parent=1 // pred_region
      _
    $region73: #{seq2seq_forward.2} parent=1 // pred_fallthru
      _
    // Predicated region
    $region74: #{seq2seq_forward.2} parent=1 // pred_check
      _
    $region75: #{seq2seq_forward.2} parent=1 // pred_check_branch
      %3212 = sbr.rel (0) target = $region77
    $region76: #{seq2seq_forward.2} parent=1 // pred_region
      _
    $region77: #{seq2seq_forward.2} parent=1 // pred_fallthru
      _
    %3213 = vsyncpa [#allocation9], 1
    %3214 = vsyncpa [#allocation11], 1
    %3215 = vsyncpa [#allocation14], 1

</llo_original>
